<compile_context>
chip_gen: v5e
topology: v5e:2x2
jax: 0.10.0
libtpu: 0.0.40
codegen_flags: <defaults>
</compile_context>

<pallas_src>
import functools

import jax
import jax.numpy as jnp
from jax.experimental import pallas as pl
from jax.experimental.pallas import tpu as pltpu


# --------------------------------------------------------------------------------------
# Fused kernel: per-point MLP + global max over points + head MLP (finalize branch).
# --------------------------------------------------------------------------------------
def tnet_kernel(x_ref, w1_ref, s1_ref, w2_ref, s2_ref, w3_ref, s3_ref,
                w4_ref, s4_ref, w5_ref, s5_ref, w6_ref, b6_ref,
                o_ref, acc_ref, *, n_points, tn, chunk):
    nt = pl.program_id(1)                      # point-tile index (reduction axis)
    last = pl.num_programs(1) - 1
    bt, tn_blk, kin = x_ref.shape
    has_tail = (n_points % tn) != 0            # trace-time decision (static N, tn)

    @pl.when(nt == 0)
    def _():
        acc_ref[...] = jnp.full(acc_ref.shape, -jnp.inf, dtype=acc_ref.dtype)

    x = x_ref[...].reshape(bt * tn_blk, kin)                                # (rows, 8)

    # layer 1: K padded to 8, tiny; keep f32 operands.
    h = jnp.dot(x, w1_ref[...], preferred_element_type=jnp.float32)
    h = jnp.maximum(h + s1_ref[...], 0.0)                                   # (rows, 64)

    # layer 2: bf16 operands, f32 accumulation; BN scale pre-folded into weights.
    h = jnp.dot(h.astype(jnp.bfloat16), w2_ref[...],
                preferred_element_type=jnp.float32)
    h2 = jnp.maximum(h + s2_ref[...], 0.0).astype(jnp.bfloat16)             # (rows, 128)

    # layer 3: chunked over output channels, max fused per chunk.  The BN shift + ReLU
    # are deferred to the finalize branch (exact; see header comment).
    if has_tail:
        pid = nt * tn + jax.lax.broadcasted_iota(jnp.int32, (1, tn_blk, 1), 1)
        valid = pid < n_points

    n_ch = acc_ref.shape[1]
    assert n_ch % chunk == 0
    for c in range(0, n_ch, chunk):
        hc = jnp.dot(h2, w3_ref[:, c:c + chunk],
                     preferred_element_type=jnp.float32)                    # (rows, chunk)
        hc = hc.reshape(bt, tn_blk, chunk)
        if has_tail:
            @pl.when(nt != last)
            def _(hc=hc, c=c):
                acc_ref[:, c:c + chunk] = jnp.maximum(acc_ref[:, c:c + chunk],
                                                      jnp.max(hc, axis=1))

            @pl.when(nt == last)
            def _(hc=hc, c=c):
                hm = jnp.where(valid, hc, -jnp.inf)   # mask padded rows of last tile only
                acc_ref[:, c:c + chunk] = jnp.maximum(acc_ref[:, c:c + chunk],
                                                      jnp.max(hm, axis=1))
        else:
            acc_ref[:, c:c + chunk] = jnp.maximum(acc_ref[:, c:c + chunk],
                                                  jnp.max(hc, axis=1))

    @pl.when(nt == last)
    def _():
        # Deferred layer-3 epilogue, then the head MLP (once per batch tile).
        g = jnp.maximum(acc_ref[...] + s3_ref[...], 0.0)                    # (bt, 1024)
        f = jnp.dot(g.astype(jnp.bfloat16), w4_ref[...],
                    preferred_element_type=jnp.float32)
        f = jnp.maximum(f + s4_ref[...], 0.0)                               # (bt, 128)
        f = jnp.dot(f.astype(jnp.bfloat16), w5_ref[...],
                    preferred_element_type=jnp.float32)
        f = jnp.maximum(f + s5_ref[...], 0.0)                               # (bt, 128)
        o_ref[...] = (jnp.dot(f.astype(jnp.bfloat16), w6_ref[...],
                              preferred_element_type=jnp.float32)
                      + b6_ref[...])                                        # (bt, 9)


# --------------------------------------------------------------------------------------
# Wrapper
# --------------------------------------------------------------------------------------
def get_transform_forward(x, kparams, *, tn=256, bt=None, chunk=256,
                          vmem_limit_bytes=32 * 1024 * 1024):
    """x: (B, N, 3) float32 point cloud.  Returns (B, 3, 3)."""
    (w1, s1, w2, s2, w3, s3, w4, s4, w5, s5, w6, b6) = kparams
    B, N, c_in = x.shape

    # Pad coordinates to K=8 (w1 is stored already zero-row-padded to (8, 64)).
    if c_in < 8:
        x = jnp.pad(x, ((0, 0), (0, 0), (0, 8 - c_in)))

    # Batch tile: parallel grid axis (even megacore split on v7x).
    if bt is None or B % bt != 0 or (bt != B and bt % 8 != 0):
        bt = 8 if B % 8 == 0 else B

    # Bound rows per tile so the chunked layer-3 temp stays small even when bt == B.
    tn = min(tn, max(8, ((4096 // bt) // 8) * 8))
    # Point tile: second-to-last dim of the x block must be a multiple of 8 or == N.
    tn = min(tn, N)
    if tn != N and tn % 8 != 0:
        tn = max(8, (tn // 8) * 8)

    n_bt = B // bt
    n_pt = pl.cdiv(N, tn)

    kernel = functools.partial(tnet_kernel, n_points=N, tn=tn, chunk=chunk)
    const = lambda shape: pl.BlockSpec(shape, lambda b, n: (0,) * len(shape))

    out9 = pl.pallas_call(
        kernel,
        out_shape=jax.ShapeDtypeStruct((B, 9), jnp.float32),
        grid_spec=pltpu.PrefetchScalarGridSpec(
            num_scalar_prefetch=0,
            grid=(n_bt, n_pt),                      # reduction (points) innermost
            in_specs=[
                pl.BlockSpec((bt, tn, 8), lambda b, n: (b, n, 0)),
                const((8, 64)), const((1, 64)),
                const((64, 128)), const((1, 128)),
                const((128, 1024)), const((1, 1024)),
                const((1024, 128)), const((1, 128)),
                const((128, 128)), const((1, 128)),
                const((128, 9)), const((1, 9)),
            ],
            out_specs=pl.BlockSpec((bt, 9), lambda b, n: (b, 0)),
            scratch_shapes=[pltpu.VMEM((bt, 1024), jnp.float32)],
        ),
        compiler_params=pltpu.CompilerParams(
            dimension_semantics=("parallel", "arbitrary"),
            vmem_limit_bytes=vmem_limit_bytes,
        ),
    )(x, w1, s1, w2, s2, w3, s3, w4, s4, w5, s5, w6, b6)

    return out9.reshape(B, 3, 3)


# --------------------------------------------------------------------------------------
# Deterministic synthetic parameters (raw, f32) mirroring the PyTorch module.
# --------------------------------------------------------------------------------------
def init_params(key):
    keys = iter(jax.random.split(key, 40))
    nk = lambda: next(keys)

    def dense(fan_in, fan_out):
        w = jax.random.normal(nk(), (fan_in, fan_out), jnp.float32) / jnp.sqrt(fan_in)
        b = 0.05 * jax.random.normal(nk(), (fan_out,), jnp.float32)
        return w, b

    def bn(c):
        gamma = 1.0 + 0.1 * jax.random.normal(nk(), (c,), jnp.float32)
        beta = 0.1 * jax.random.normal(nk(), (c,), jnp.float32)
        mean = 0.1 * jax.random.normal(nk(), (c,), jnp.float32)
        var = jnp.abs(jax.random.normal(nk(), (c,), jnp.float32)) + 0.5
        return gamma, beta, mean, var

    return {
        "l1": dense(3, 64) + bn(64),
        "l2": dense(64, 128) + bn(128),
        "l3": dense(128, 1024) + bn(1024),
        "l4": dense(1024, 128) + bn(128),
        "l5": dense(128, 128) + bn(128),
        "l6": dense(128, 9),
    }


def prepare_kernel_params(raw, eps=1e-5):
    """Fold bias+BN into (weight-with-scale, shift), pad w1 to K=8, cast big weights bf16."""
    def fold(layer, dtype):
        w, b, gamma, beta, mean, var = layer
        scale = gamma / jnp.sqrt(var + eps)
        w_f = (w * scale[None, :]).astype(dtype)
        shift = ((b - mean) * scale + beta).reshape(1, -1).astype(jnp.float32)
        return w_f, shift

    w1, s1 = fold(raw["l1"], jnp.float32)      # K=3 layer stays f32
    w1 = jnp.pad(w1, ((0, 8 - w1.shape[0]), (0, 0)))   # zero rows -> exact
    w2, s2 = fold(raw["l2"], jnp.bfloat16)
    w3, s3 = fold(raw["l3"], jnp.bfloat16)
    w4, s4 = fold(raw["l4"], jnp.bfloat16)
    w5, s5 = fold(raw["l5"], jnp.bfloat16)
    w6, b6 = raw["l6"]
    return (w1, s1, w2, s2, w3, s3, w4, s4, w5, s5,
            w6.astype(jnp.bfloat16), b6.reshape(1, -1).astype(jnp.float32))


def reference_forward(x, raw, eps=1e-5):
    """Pure-JAX f32 reference with explicit BN math (matches the PyTorch module)."""
    def block(h, layer):
        w, b, gamma, beta, mean, var = layer
        h = h @ w + b
        h = (h - mean) / jnp.sqrt(var + eps) * gamma + beta
        return jnp.maximum(h, 0.0)

    h = block(x, raw["l1"])
    h = block(h, raw["l2"])
    h = block(h, raw["l3"])
    g = jnp.max(h, axis=1)
    f = block(g, raw["l4"])
    f = block(f, raw["l5"])
    w6, b6 = raw["l6"]
    o = f @ w6 + b6
    return o.reshape(-1, 3, 3)


if __name__ == "__main__":
    # Small stand-ins for the module's hardcoded 32 x 2048 points.
    B, N = 16, 200          # N % tn != 0 exercises the last-tile masking path
    key = jax.random.PRNGKey(0)
    kx, kp = jax.random.split(key)
    x = jax.random.normal(kx, (B, N, 3), jnp.float32)   # == NCHW (B,1,N,3).squeeze(1)

    raw_params = init_params(kp)
    kparams = prepare_kernel_params(raw_params)

    fwd = jax.jit(functools.partial(get_transform_forward, tn=64, bt=8))
    out = fwd(x, kparams)
    jax.block_until_ready(out)

    ref = reference_forward(x, raw_params)
    assert out.shape == (B, 3, 3)
    max_err = float(jnp.max(jnp.abs(out - ref)))
    assert jnp.allclose(out, ref, rtol=3e-2, atol=3e-2), f"max_err={max_err}"
    print("KERNEL_OK")
</pallas_src>

<mosaic_0001>
module attributes {stable_mosaic.version = 11 : i64} {
  func.func @tnet_kernel(%arg0: i32, %arg1: i32, %arg2: memref<8x64x8xf32, #tpu.memory_space<vmem>>, %arg3: memref<8x64xf32, #tpu.memory_space<vmem>>, %arg4: memref<1x64xf32, #tpu.memory_space<vmem>>, %arg5: memref<64x128xbf16, #tpu.memory_space<vmem>>, %arg6: memref<1x128xf32, #tpu.memory_space<vmem>>, %arg7: memref<128x1024xbf16, #tpu.memory_space<vmem>>, %arg8: memref<1x1024xf32, #tpu.memory_space<vmem>>, %arg9: memref<1024x128xbf16, #tpu.memory_space<vmem>>, %arg10: memref<1x128xf32, #tpu.memory_space<vmem>>, %arg11: memref<128x128xbf16, #tpu.memory_space<vmem>>, %arg12: memref<1x128xf32, #tpu.memory_space<vmem>>, %arg13: memref<128x9xbf16, #tpu.memory_space<vmem>>, %arg14: memref<1x9xf32, #tpu.memory_space<vmem>>, %arg15: memref<8x9xf32, #tpu.memory_space<vmem>>, %arg16: memref<8x1024xf32, #tpu.memory_space<vmem>>) attributes {dimension_semantics = [#tpu.dimension_semantics<parallel>, #tpu.dimension_semantics<arbitrary>], iteration_bounds = array<i64: 2, 4>, scalar_prefetch = 0 : i64, scratch_operands = 1 : i64, tpu.core_type = #tpu.core_type<tc>, window_params = [{transform_indices = @transform_0, window_bounds = array<i64: 8, 64, 8>}, {pipeline_mode = #tpu.pipeline_mode<synchronous>, transform_indices = @transform_1, window_bounds = array<i64: 8, 64>}, {pipeline_mode = #tpu.pipeline_mode<synchronous>, transform_indices = @transform_2, window_bounds = array<i64: 1, 64>}, {pipeline_mode = #tpu.pipeline_mode<synchronous>, transform_indices = @transform_3, window_bounds = array<i64: 64, 128>}, {pipeline_mode = #tpu.pipeline_mode<synchronous>, transform_indices = @transform_4, window_bounds = array<i64: 1, 128>}, {pipeline_mode = #tpu.pipeline_mode<synchronous>, transform_indices = @transform_5, window_bounds = array<i64: 128, 1024>}, {pipeline_mode = #tpu.pipeline_mode<synchronous>, transform_indices = @transform_6, window_bounds = array<i64: 1, 1024>}, {pipeline_mode = #tpu.pipeline_mode<synchronous>, transform_indices = @transform_7, window_bounds = array<i64: 1024, 128>}, {pipeline_mode = #tpu.pipeline_mode<synchronous>, transform_indices = @transform_8, window_bounds = array<i64: 1, 128>}, {pipeline_mode = #tpu.pipeline_mode<synchronous>, transform_indices = @transform_9, window_bounds = array<i64: 128, 128>}, {pipeline_mode = #tpu.pipeline_mode<synchronous>, transform_indices = @transform_10, window_bounds = array<i64: 1, 128>}, {pipeline_mode = #tpu.pipeline_mode<synchronous>, transform_indices = @transform_11, window_bounds = array<i64: 128, 9>}, {pipeline_mode = #tpu.pipeline_mode<synchronous>, transform_indices = @transform_12, window_bounds = array<i64: 1, 9>}, {transform_indices = @transform_13, window_bounds = array<i64: 8, 9>}]} {
    %c0_i32 = arith.constant 0 : i32
    %0 = arith.cmpi eq, %arg1, %c0_i32 : i32
    %1 = arith.extui %0 : i1 to i32
    %c0_i32_0 = arith.constant 0 : i32
    %2 = arith.cmpi ne, %1, %c0_i32_0 : i32
    scf.if %2 {
      %cst_40 = arith.constant 0xFF800000 : f32
      %66 = vector.broadcast %cst_40 : f32 to vector<8x1024xf32>
      %c0_41 = arith.constant 0 : index
      %c0_42 = arith.constant 0 : index
      %67 = vector.load %arg16[%c0_41, %c0_42] : memref<8x1024xf32, #tpu.memory_space<vmem>>, vector<8x1024xf32>
      tpu.vector_store %arg16[%c0_41, %c0_42], %66 {strides = array<i32>} : memref<8x1024xf32, #tpu.memory_space<vmem>>, vector<8x1024xf32>,
    } else {
    }
    %c0 = arith.constant 0 : index
    %c0_1 = arith.constant 0 : index
    %c0_2 = arith.constant 0 : index
    %3 = vector.load %arg2[%c0, %c0_1, %c0_2] : memref<8x64x8xf32, #tpu.memory_space<vmem>>, vector<8x64x8xf32>
    %4 = vector.shape_cast %3 : vector<8x64x8xf32> to vector<512x8xf32>
    %c0_3 = arith.constant 0 : index
    %c0_4 = arith.constant 0 : index
    %5 = vector.load %arg3[%c0_3, %c0_4] : memref<8x64xf32, #tpu.memory_space<vmem>>, vector<8x64xf32>
    %cst = arith.constant dense<0.000000e+00> : vector<512x64xf32>
    %6 = tpu.matmul %4, %5, %cst {dimension_numbers = #tpu.dot_dimension_numbers<[1], [0], [0], [1], [0, 0, 1, 1], [], []>} : vector<512x8xf32>, vector<8x64xf32>, vector<512x64xf32> -> vector<512x64xf32>
    %c0_5 = arith.constant 0 : index
    %c0_6 = arith.constant 0 : index
    %7 = vector.load %arg4[%c0_5, %c0_6] : memref<1x64xf32, #tpu.memory_space<vmem>>, vector<1x64xf32>
    %8 = vector.broadcast %7 : vector<1x64xf32> to vector<512x64xf32>
    %9 = arith.addf %6, %8 : vector<512x64xf32>
    %cst_7 = arith.constant 0.000000e+00 : f32
    %10 = vector.broadcast %cst_7 : f32 to vector<512x64xf32>
    %11 = arith.maximumf %9, %10 : vector<512x64xf32>
    %12 = arith.truncf %11 : vector<512x64xf32> to vector<512x64xbf16>
    %c0_8 = arith.constant 0 : index
    %c0_9 = arith.constant 0 : index
    %13 = vector.load %arg5[%c0_8, %c0_9] : memref<64x128xbf16, #tpu.memory_space<vmem>>, vector<64x128xbf16>
    %cst_10 = arith.constant dense<0.000000e+00> : vector<512x128xf32>
    %14 = tpu.matmul %12, %13, %cst_10 {dimension_numbers = #tpu.dot_dimension_numbers<[1], [0], [0], [1], [0, 0, 1, 1], [], []>} : vector<512x64xbf16>, vector<64x128xbf16>, vector<512x128xf32> -> vector<512x128xf32>
    %c0_11 = arith.constant 0 : index
    %c0_12 = arith.constant 0 : index
    %15 = vector.load %arg6[%c0_11, %c0_12] : memref<1x128xf32, #tpu.memory_space<vmem>>, vector<1x128xf32>
    %16 = vector.broadcast %15 : vector<1x128xf32> to vector<512x128xf32>
    %17 = arith.addf %14, %16 : vector<512x128xf32>
    %cst_13 = arith.constant 0.000000e+00 : f32
    %18 = vector.broadcast %cst_13 : f32 to vector<512x128xf32>
    %19 = arith.maximumf %17, %18 : vector<512x128xf32>
    %20 = arith.truncf %19 : vector<512x128xf32> to vector<512x128xbf16>
    %c64_i32 = arith.constant 64 : i32
    %21 = arith.muli %arg1, %c64_i32 : i32
    %22 = tpu.iota {dimensions = array<i32: 1>} : vector<1x64x1xi32>
    %23 = vector.broadcast %21 : i32 to vector<1x64x1xi32>
    %24 = arith.addi %23, %22 : vector<1x64x1xi32>
    %c200_i32 = arith.constant 200 : i32
    %25 = vector.broadcast %c200_i32 : i32 to vector<1x64x1xi32>
    %26 = arith.cmpi slt, %24, %25 : vector<1x64x1xi32>
    %c0_14 = arith.constant 0 : index
    %c0_15 = arith.constant 0 : index
    %27 = vector.load %arg7[%c0_14, %c0_15] : memref<128x1024xbf16, #tpu.memory_space<vmem>>, vector<128x256xbf16>
    %cst_16 = arith.constant dense<0.000000e+00> : vector<512x256xf32>
    %28 = tpu.matmul %20, %27, %cst_16 {dimension_numbers = #tpu.dot_dimension_numbers<[1], [0], [0], [1], [0, 0, 1, 1], [], []>} : vector<512x128xbf16>, vector<128x256xbf16>, vector<512x256xf32> -> vector<512x256xf32>
    %29 = vector.shape_cast %28 : vector<512x256xf32> to vector<8x64x256xf32>
    %c3_i32 = arith.constant 3 : i32
    %30 = arith.cmpi ne, %arg1, %c3_i32 : i32
    %31 = arith.extui %30 : i1 to i32
    %c0_i32_17 = arith.constant 0 : i32
    %32 = arith.cmpi ne, %31, %c0_i32_17 : i32
    scf.if %32 {
      %c0_40 = arith.constant 0 : index
      %c0_41 = arith.constant 0 : index
      %66 = vector.load %arg16[%c0_40, %c0_41] : memref<8x1024xf32, #tpu.memory_space<vmem>>, vector<8x256xf32>
      %cst_42 = arith.constant dense<0xFF800000> : vector<8x256xf32>
      %67 = vector.multi_reduction <maximumf>, %29, %cst_42 [1] : vector<8x64x256xf32> to vector<8x256xf32>
      %68 = arith.maximumf %66, %67 : vector<8x256xf32>
      %c0_43 = arith.constant 0 : index
      %c0_44 = arith.constant 0 : index
      %69 = vector.load %arg16[%c0_43, %c0_44] : memref<8x1024xf32, #tpu.memory_space<vmem>>, vector<8x256xf32>
      tpu.vector_store %arg16[%c0_43, %c0_44], %68 {strides = array<i32>} : memref<8x1024xf32, #tpu.memory_space<vmem>>, vector<8x256xf32>,
    } else {
    }
    %c3_i32_18 = arith.constant 3 : i32
    %33 = arith.cmpi eq, %arg1, %c3_i32_18 : i32
    %34 = arith.extui %33 : i1 to i32
    %c0_i32_19 = arith.constant 0 : i32
    %35 = arith.cmpi ne, %34, %c0_i32_19 : i32
    scf.if %35 {
      %cst_40 = arith.constant 0xFF800000 : f32
      %66 = vector.shape_cast %26 : vector<1x64x1xi1> to vector<1x64x1xi1>
      %67 = vector.broadcast %66 : vector<1x64x1xi1> to vector<8x64x256xi1>
      %68 = vector.broadcast %cst_40 : f32 to vector<8x64x256xf32>
      %69 = arith.select %67, %29, %68 : vector<8x64x256xi1>, vector<8x64x256xf32>
      %c0_41 = arith.constant 0 : index
      %c0_42 = arith.constant 0 : index
      %70 = vector.load %arg16[%c0_41, %c0_42] : memref<8x1024xf32, #tpu.memory_space<vmem>>, vector<8x256xf32>
      %cst_43 = arith.constant dense<0xFF800000> : vector<8x256xf32>
      %71 = vector.multi_reduction <maximumf>, %69, %cst_43 [1] : vector<8x64x256xf32> to vector<8x256xf32>
      %72 = arith.maximumf %70, %71 : vector<8x256xf32>
      %c0_44 = arith.constant 0 : index
      %c0_45 = arith.constant 0 : index
      %73 = vector.load %arg16[%c0_44, %c0_45] : memref<8x1024xf32, #tpu.memory_space<vmem>>, vector<8x256xf32>
      tpu.vector_store %arg16[%c0_44, %c0_45], %72 {strides = array<i32>} : memref<8x1024xf32, #tpu.memory_space<vmem>>, vector<8x256xf32>,
    } else {
    }
    %c0_20 = arith.constant 0 : index
    %c256 = arith.constant 256 : index
    %36 = vector.load %arg7[%c0_20, %c256] : memref<128x1024xbf16, #tpu.memory_space<vmem>>, vector<128x256xbf16>
    %cst_21 = arith.constant dense<0.000000e+00> : vector<512x256xf32>
    %37 = tpu.matmul %20, %36, %cst_21 {dimension_numbers = #tpu.dot_dimension_numbers<[1], [0], [0], [1], [0, 0, 1, 1], [], []>} : vector<512x128xbf16>, vector<128x256xbf16>, vector<512x256xf32> -> vector<512x256xf32>
    %38 = vector.shape_cast %37 : vector<512x256xf32> to vector<8x64x256xf32>
    %c3_i32_22 = arith.constant 3 : i32
    %39 = arith.cmpi ne, %arg1, %c3_i32_22 : i32
    %40 = arith.extui %39 : i1 to i32
    %c0_i32_23 = arith.constant 0 : i32
    %41 = arith.cmpi ne, %40, %c0_i32_23 : i32
    scf.if %41 {
      %c0_40 = arith.constant 0 : index
      %c256_41 = arith.constant 256 : index
      %66 = vector.load %arg16[%c0_40, %c256_41] : memref<8x1024xf32, #tpu.memory_space<vmem>>, vector<8x256xf32>
      %cst_42 = arith.constant dense<0xFF800000> : vector<8x256xf32>
      %67 = vector.multi_reduction <maximumf>, %38, %cst_42 [1] : vector<8x64x256xf32> to vector<8x256xf32>
      %68 = arith.maximumf %66, %67 : vector<8x256xf32>
      %c0_43 = arith.constant 0 : index
      %c256_44 = arith.constant 256 : index
      %69 = vector.load %arg16[%c0_43, %c256_44] : memref<8x1024xf32, #tpu.memory_space<vmem>>, vector<8x256xf32>
      tpu.vector_store %arg16[%c0_43, %c256_44], %68 {strides = array<i32>} : memref<8x1024xf32, #tpu.memory_space<vmem>>, vector<8x256xf32>,
    } else {
    }
    %c3_i32_24 = arith.constant 3 : i32
    %42 = arith.cmpi eq, %arg1, %c3_i32_24 : i32
    %43 = arith.extui %42 : i1 to i32
    %c0_i32_25 = arith.constant 0 : i32
    %44 = arith.cmpi ne, %43, %c0_i32_25 : i32
    scf.if %44 {
      %cst_40 = arith.constant 0xFF800000 : f32
      %66 = vector.shape_cast %26 : vector<1x64x1xi1> to vector<1x64x1xi1>
      %67 = vector.broadcast %66 : vector<1x64x1xi1> to vector<8x64x256xi1>
      %68 = vector.broadcast %cst_40 : f32 to vector<8x64x256xf32>
      %69 = arith.select %67, %38, %68 : vector<8x64x256xi1>, vector<8x64x256xf32>
      %c0_41 = arith.constant 0 : index
      %c256_42 = arith.constant 256 : index
      %70 = vector.load %arg16[%c0_41, %c256_42] : memref<8x1024xf32, #tpu.memory_space<vmem>>, vector<8x256xf32>
      %cst_43 = arith.constant dense<0xFF800000> : vector<8x256xf32>
      %71 = vector.multi_reduction <maximumf>, %69, %cst_43 [1] : vector<8x64x256xf32> to vector<8x256xf32>
      %72 = arith.maximumf %70, %71 : vector<8x256xf32>
      %c0_44 = arith.constant 0 : index
      %c256_45 = arith.constant 256 : index
      %73 = vector.load %arg16[%c0_44, %c256_45] : memref<8x1024xf32, #tpu.memory_space<vmem>>, vector<8x256xf32>
      tpu.vector_store %arg16[%c0_44, %c256_45], %72 {strides = array<i32>} : memref<8x1024xf32, #tpu.memory_space<vmem>>, vector<8x256xf32>,
    } else {
    }
    %c0_26 = arith.constant 0 : index
    %c512 = arith.constant 512 : index
    %45 = vector.load %arg7[%c0_26, %c512] : memref<128x1024xbf16, #tpu.memory_space<vmem>>, vector<128x256xbf16>
    %cst_27 = arith.constant dense<0.000000e+00> : vector<512x256xf32>
    %46 = tpu.matmul %20, %45, %cst_27 {dimension_numbers = #tpu.dot_dimension_numbers<[1], [0], [0], [1], [0, 0, 1, 1], [], []>} : vector<512x128xbf16>, vector<128x256xbf16>, vector<512x256xf32> -> vector<512x256xf32>
    %47 = vector.shape_cast %46 : vector<512x256xf32> to vector<8x64x256xf32>
    %c3_i32_28 = arith.constant 3 : i32
    %48 = arith.cmpi ne, %arg1, %c3_i32_28 : i32
    %49 = arith.extui %48 : i1 to i32
    %c0_i32_29 = arith.constant 0 : i32
    %50 = arith.cmpi ne, %49, %c0_i32_29 : i32
    scf.if %50 {
      %c0_40 = arith.constant 0 : index
      %c512_41 = arith.constant 512 : index
      %66 = vector.load %arg16[%c0_40, %c512_41] : memref<8x1024xf32, #tpu.memory_space<vmem>>, vector<8x256xf32>
      %cst_42 = arith.constant dense<0xFF800000> : vector<8x256xf32>
      %67 = vector.multi_reduction <maximumf>, %47, %cst_42 [1] : vector<8x64x256xf32> to vector<8x256xf32>
      %68 = arith.maximumf %66, %67 : vector<8x256xf32>
      %c0_43 = arith.constant 0 : index
      %c512_44 = arith.constant 512 : index
      %69 = vector.load %arg16[%c0_43, %c512_44] : memref<8x1024xf32, #tpu.memory_space<vmem>>, vector<8x256xf32>
      tpu.vector_store %arg16[%c0_43, %c512_44], %68 {strides = array<i32>} : memref<8x1024xf32, #tpu.memory_space<vmem>>, vector<8x256xf32>,
    } else {
    }
    %c3_i32_30 = arith.constant 3 : i32
    %51 = arith.cmpi eq, %arg1, %c3_i32_30 : i32
    %52 = arith.extui %51 : i1 to i32
    %c0_i32_31 = arith.constant 0 : i32
    %53 = arith.cmpi ne, %52, %c0_i32_31 : i32
    scf.if %53 {
      %cst_40 = arith.constant 0xFF800000 : f32
      %66 = vector.shape_cast %26 : vector<1x64x1xi1> to vector<1x64x1xi1>
      %67 = vector.broadcast %66 : vector<1x64x1xi1> to vector<8x64x256xi1>
      %68 = vector.broadcast %cst_40 : f32 to vector<8x64x256xf32>
      %69 = arith.select %67, %47, %68 : vector<8x64x256xi1>, vector<8x64x256xf32>
      %c0_41 = arith.constant 0 : index
      %c512_42 = arith.constant 512 : index
      %70 = vector.load %arg16[%c0_41, %c512_42] : memref<8x1024xf32, #tpu.memory_space<vmem>>, vector<8x256xf32>
      %cst_43 = arith.constant dense<0xFF800000> : vector<8x256xf32>
      %71 = vector.multi_reduction <maximumf>, %69, %cst_43 [1] : vector<8x64x256xf32> to vector<8x256xf32>
      %72 = arith.maximumf %70, %71 : vector<8x256xf32>
      %c0_44 = arith.constant 0 : index
      %c512_45 = arith.constant 512 : index
      %73 = vector.load %arg16[%c0_44, %c512_45] : memref<8x1024xf32, #tpu.memory_space<vmem>>, vector<8x256xf32>
      tpu.vector_store %arg16[%c0_44, %c512_45], %72 {strides = array<i32>} : memref<8x1024xf32, #tpu.memory_space<vmem>>, vector<8x256xf32>,
    } else {
    }
    %c0_32 = arith.constant 0 : index
    %c768 = arith.constant 768 : index
    %54 = vector.load %arg7[%c0_32, %c768] : memref<128x1024xbf16, #tpu.memory_space<vmem>>, vector<128x256xbf16>
    %cst_33 = arith.constant dense<0.000000e+00> : vector<512x256xf32>
    %55 = tpu.matmul %20, %54, %cst_33 {dimension_numbers = #tpu.dot_dimension_numbers<[1], [0], [0], [1], [0, 0, 1, 1], [], []>} : vector<512x128xbf16>, vector<128x256xbf16>, vector<512x256xf32> -> vector<512x256xf32>
    %56 = vector.shape_cast %55 : vector<512x256xf32> to vector<8x64x256xf32>
    %c3_i32_34 = arith.constant 3 : i32
    %57 = arith.cmpi ne, %arg1, %c3_i32_34 : i32
    %58 = arith.extui %57 : i1 to i32
    %c0_i32_35 = arith.constant 0 : i32
    %59 = arith.cmpi ne, %58, %c0_i32_35 : i32
    scf.if %59 {
      %c0_40 = arith.constant 0 : index
      %c768_41 = arith.constant 768 : index
      %66 = vector.load %arg16[%c0_40, %c768_41] : memref<8x1024xf32, #tpu.memory_space<vmem>>, vector<8x256xf32>
      %cst_42 = arith.constant dense<0xFF800000> : vector<8x256xf32>
      %67 = vector.multi_reduction <maximumf>, %56, %cst_42 [1] : vector<8x64x256xf32> to vector<8x256xf32>
      %68 = arith.maximumf %66, %67 : vector<8x256xf32>
      %c0_43 = arith.constant 0 : index
      %c768_44 = arith.constant 768 : index
      %69 = vector.load %arg16[%c0_43, %c768_44] : memref<8x1024xf32, #tpu.memory_space<vmem>>, vector<8x256xf32>
      tpu.vector_store %arg16[%c0_43, %c768_44], %68 {strides = array<i32>} : memref<8x1024xf32, #tpu.memory_space<vmem>>, vector<8x256xf32>,
    } else {
    }
    %c3_i32_36 = arith.constant 3 : i32
    %60 = arith.cmpi eq, %arg1, %c3_i32_36 : i32
    %61 = arith.extui %60 : i1 to i32
    %c0_i32_37 = arith.constant 0 : i32
    %62 = arith.cmpi ne, %61, %c0_i32_37 : i32
    scf.if %62 {
      %cst_40 = arith.constant 0xFF800000 : f32
      %66 = vector.shape_cast %26 : vector<1x64x1xi1> to vector<1x64x1xi1>
      %67 = vector.broadcast %66 : vector<1x64x1xi1> to vector<8x64x256xi1>
      %68 = vector.broadcast %cst_40 : f32 to vector<8x64x256xf32>
      %69 = arith.select %67, %56, %68 : vector<8x64x256xi1>, vector<8x64x256xf32>
      %c0_41 = arith.constant 0 : index
      %c768_42 = arith.constant 768 : index
      %70 = vector.load %arg16[%c0_41, %c768_42] : memref<8x1024xf32, #tpu.memory_space<vmem>>, vector<8x256xf32>
      %cst_43 = arith.constant dense<0xFF800000> : vector<8x256xf32>
      %71 = vector.multi_reduction <maximumf>, %69, %cst_43 [1] : vector<8x64x256xf32> to vector<8x256xf32>
      %72 = arith.maximumf %70, %71 : vector<8x256xf32>
      %c0_44 = arith.constant 0 : index
      %c768_45 = arith.constant 768 : index
      %73 = vector.load %arg16[%c0_44, %c768_45] : memref<8x1024xf32, #tpu.memory_space<vmem>>, vector<8x256xf32>
      tpu.vector_store %arg16[%c0_44, %c768_45], %72 {strides = array<i32>} : memref<8x1024xf32, #tpu.memory_space<vmem>>, vector<8x256xf32>,
    } else {
    }
    %c3_i32_38 = arith.constant 3 : i32
    %63 = arith.cmpi eq, %arg1, %c3_i32_38 : i32
    %64 = arith.extui %63 : i1 to i32
    %c0_i32_39 = arith.constant 0 : i32
    %65 = arith.cmpi ne, %64, %c0_i32_39 : i32
    scf.if %65 {
      %c0_40 = arith.constant 0 : index
      %c0_41 = arith.constant 0 : index
      %66 = vector.load %arg16[%c0_40, %c0_41] : memref<8x1024xf32, #tpu.memory_space<vmem>>, vector<8x1024xf32>
      %c0_42 = arith.constant 0 : index
      %c0_43 = arith.constant 0 : index
      %67 = vector.load %arg8[%c0_42, %c0_43] : memref<1x1024xf32, #tpu.memory_space<vmem>>, vector<1x1024xf32>
      %68 = vector.broadcast %67 : vector<1x1024xf32> to vector<8x1024xf32>
      %69 = arith.addf %66, %68 : vector<8x1024xf32>
      %cst_44 = arith.constant 0.000000e+00 : f32
      %70 = vector.broadcast %cst_44 : f32 to vector<8x1024xf32>
      %71 = arith.maximumf %69, %70 : vector<8x1024xf32>
      %72 = arith.truncf %71 : vector<8x1024xf32> to vector<8x1024xbf16>
      %c0_45 = arith.constant 0 : index
      %c0_46 = arith.constant 0 : index
      %73 = vector.load %arg9[%c0_45, %c0_46] : memref<1024x128xbf16, #tpu.memory_space<vmem>>, vector<1024x128xbf16>
      %cst_47 = arith.constant dense<0.000000e+00> : vector<8x128xf32>
      %74 = tpu.matmul %72, %73, %cst_47 {dimension_numbers = #tpu.dot_dimension_numbers<[1], [0], [0], [1], [0, 0, 1, 1], [], []>} : vector<8x1024xbf16>, vector<1024x128xbf16>, vector<8x128xf32> -> vector<8x128xf32>
      %c0_48 = arith.constant 0 : index
      %c0_49 = arith.constant 0 : index
      %75 = vector.load %arg10[%c0_48, %c0_49] : memref<1x128xf32, #tpu.memory_space<vmem>>, vector<1x128xf32>
      %76 = vector.broadcast %75 : vector<1x128xf32> to vector<8x128xf32>
      %77 = arith.addf %74, %76 : vector<8x128xf32>
      %cst_50 = arith.constant 0.000000e+00 : f32
      %78 = vector.broadcast %cst_50 : f32 to vector<8x128xf32>
      %79 = arith.maximumf %77, %78 : vector<8x128xf32>
      %80 = arith.truncf %79 : vector<8x128xf32> to vector<8x128xbf16>
      %c0_51 = arith.constant 0 : index
      %c0_52 = arith.constant 0 : index
      %81 = vector.load %arg11[%c0_51, %c0_52] : memref<128x128xbf16, #tpu.memory_space<vmem>>, vector<128x128xbf16>
      %cst_53 = arith.constant dense<0.000000e+00> : vector<8x128xf32>
      %82 = tpu.matmul %80, %81, %cst_53 {dimension_numbers = #tpu.dot_dimension_numbers<[1], [0], [0], [1], [0, 0, 1, 1], [], []>} : vector<8x128xbf16>, vector<128x128xbf16>, vector<8x128xf32> -> vector<8x128xf32>
      %c0_54 = arith.constant 0 : index
      %c0_55 = arith.constant 0 : index
      %83 = vector.load %arg12[%c0_54, %c0_55] : memref<1x128xf32, #tpu.memory_space<vmem>>, vector<1x128xf32>
      %84 = vector.broadcast %83 : vector<1x128xf32> to vector<8x128xf32>
      %85 = arith.addf %82, %84 : vector<8x128xf32>
      %cst_56 = arith.constant 0.000000e+00 : f32
      %86 = vector.broadcast %cst_56 : f32 to vector<8x128xf32>
      %87 = arith.maximumf %85, %86 : vector<8x128xf32>
      %88 = arith.truncf %87 : vector<8x128xf32> to vector<8x128xbf16>
      %c0_57 = arith.constant 0 : index
      %c0_58 = arith.constant 0 : index
      %89 = vector.load %arg13[%c0_57, %c0_58] : memref<128x9xbf16, #tpu.memory_space<vmem>>, vector<128x9xbf16>
      %cst_59 = arith.constant dense<0.000000e+00> : vector<8x9xf32>
      %90 = tpu.matmul %88, %89, %cst_59 {dimension_numbers = #tpu.dot_dimension_numbers<[1], [0], [0], [1], [0, 0, 1, 1], [], []>} : vector<8x128xbf16>, vector<128x9xbf16>, vector<8x9xf32> -> vector<8x9xf32>
      %c0_60 = arith.constant 0 : index
      %c0_61 = arith.constant 0 : index
      %91 = vector.load %arg14[%c0_60, %c0_61] : memref<1x9xf32, #tpu.memory_space<vmem>>, vector<1x9xf32>
      %92 = vector.broadcast %91 : vector<1x9xf32> to vector<8x9xf32>
      %93 = arith.addf %90, %92 : vector<8x9xf32>
      %c0_62 = arith.constant 0 : index
      %c0_63 = arith.constant 0 : index
      %94 = vector.load %arg15[%c0_62, %c0_63] : memref<8x9xf32, #tpu.memory_space<vmem>>, vector<8x9xf32>
      tpu.vector_store %arg15[%c0_62, %c0_63], %93 {strides = array<i32>} : memref<8x9xf32, #tpu.memory_space<vmem>>, vector<8x9xf32>,
    } else {
    }
    return
  }
  func.func @transform_0(%arg0: i32, %arg1: i32) -> (i32, i32, i32) {
    %c0_i32 = arith.constant 0 : i32
    %c0_i32_0 = arith.constant 0 : i32
    return %arg0, %arg1, %c0_i32 : i32, i32, i32
  }
  func.func @transform_1(%arg0: i32, %arg1: i32) -> (i32, i32) {
    %c0_i32 = arith.constant 0 : i32
    %c0_i32_0 = arith.constant 0 : i32
    %c0_i32_1 = arith.constant 0 : i32
    return %c0_i32, %c0_i32_0 : i32, i32
  }
  func.func @transform_2(%arg0: i32, %arg1: i32) -> (i32, i32) {
    %c0_i32 = arith.constant 0 : i32
    %c0_i32_0 = arith.constant 0 : i32
    %c0_i32_1 = arith.constant 0 : i32
    return %c0_i32, %c0_i32_0 : i32, i32
  }
  func.func @transform_3(%arg0: i32, %arg1: i32) -> (i32, i32) {
    %c0_i32 = arith.constant 0 : i32
    %c0_i32_0 = arith.constant 0 : i32
    %c0_i32_1 = arith.constant 0 : i32
    return %c0_i32, %c0_i32_0 : i32, i32
  }
  func.func @transform_4(%arg0: i32, %arg1: i32) -> (i32, i32) {
    %c0_i32 = arith.constant 0 : i32
    %c0_i32_0 = arith.constant 0 : i32
    %c0_i32_1 = arith.constant 0 : i32
    return %c0_i32, %c0_i32_0 : i32, i32
  }
  func.func @transform_5(%arg0: i32, %arg1: i32) -> (i32, i32) {
    %c0_i32 = arith.constant 0 : i32
    %c0_i32_0 = arith.constant 0 : i32
    %c0_i32_1 = arith.constant 0 : i32
    return %c0_i32, %c0_i32_0 : i32, i32
  }
  func.func @transform_6(%arg0: i32, %arg1: i32) -> (i32, i32) {
    %c0_i32 = arith.constant 0 : i32
    %c0_i32_0 = arith.constant 0 : i32
    %c0_i32_1 = arith.constant 0 : i32
    return %c0_i32, %c0_i32_0 : i32, i32
  }
  func.func @transform_7(%arg0: i32, %arg1: i32) -> (i32, i32) {
    %c0_i32 = arith.constant 0 : i32
    %c0_i32_0 = arith.constant 0 : i32
    %c0_i32_1 = arith.constant 0 : i32
    return %c0_i32, %c0_i32_0 : i32, i32
  }
  func.func @transform_8(%arg0: i32, %arg1: i32) -> (i32, i32) {
    %c0_i32 = arith.constant 0 : i32
    %c0_i32_0 = arith.constant 0 : i32
    %c0_i32_1 = arith.constant 0 : i32
    return %c0_i32, %c0_i32_0 : i32, i32
  }
  func.func @transform_9(%arg0: i32, %arg1: i32) -> (i32, i32) {
    %c0_i32 = arith.constant 0 : i32
    %c0_i32_0 = arith.constant 0 : i32
    %c0_i32_1 = arith.constant 0 : i32
    return %c0_i32, %c0_i32_0 : i32, i32
  }
  func.func @transform_10(%arg0: i32, %arg1: i32) -> (i32, i32) {
    %c0_i32 = arith.constant 0 : i32
    %c0_i32_0 = arith.constant 0 : i32
    %c0_i32_1 = arith.constant 0 : i32
    return %c0_i32, %c0_i32_0 : i32, i32
  }
  func.func @transform_11(%arg0: i32, %arg1: i32) -> (i32, i32) {
    %c0_i32 = arith.constant 0 : i32
    %c0_i32_0 = arith.constant 0 : i32
    %c0_i32_1 = arith.constant 0 : i32
    return %c0_i32, %c0_i32_0 : i32, i32
  }
  func.func @transform_12(%arg0: i32, %arg1: i32) -> (i32, i32) {
    %c0_i32 = arith.constant 0 : i32
    %c0_i32_0 = arith.constant 0 : i32
    %c0_i32_1 = arith.constant 0 : i32
    return %c0_i32, %c0_i32_0 : i32, i32
  }
  func.func @transform_13(%arg0: i32, %arg1: i32) -> (i32, i32) {
    %c0_i32 = arith.constant 0 : i32
    %c0_i32_0 = arith.constant 0 : i32
    return %arg0, %c0_i32 : i32, i32
  }
}

</mosaic_0001>

<llo_original>
// kernel: get_transform_forward.1
$region0: #{get_transform_forward.1}
  #allocation0 [shape = 'u32[]', space=smem, size = 0x4, offset = 0x4, fixed_abs, tag = 'smem constant byte address 0x4 - core index']
  #allocation1 [shape = 'u32[72,128]{1,0:T(1,128)}', space=vmem, size = 0x9000, scoped, tag = 'internal scratch']
  #allocation2 [shape = 'f32[8,1024]{1,0:T(8,128)}', space=vmem, size = 0x8000, scoped, tag = 'scratch operand']
  %s0 = inlined_call_operand.vmem [shape: f32[16,200,8], index: 0, kind: input, shape index: {}]
  %s1 = inlined_call_operand.vmem [shape: f32[8,64], index: 1, kind: input, shape index: {}]
  %s2 = inlined_call_operand.vmem [shape: f32[1,64], index: 2, kind: input, shape index: {}]
  %s3 = inlined_call_operand.vmem [shape: bf16[64,128], index: 3, kind: input, shape index: {}]
  %s4 = inlined_call_operand.vmem [shape: f32[1,128], index: 4, kind: input, shape index: {}]
  %s5 = inlined_call_operand.vmem [shape: bf16[128,1024], index: 5, kind: input, shape index: {}]
  %s6 = inlined_call_operand.vmem [shape: f32[1,1024], index: 6, kind: input, shape index: {}]
  %s7 = inlined_call_operand.vmem [shape: bf16[1024,128], index: 7, kind: input, shape index: {}]
  %s8 = inlined_call_operand.vmem [shape: f32[1,128], index: 8, kind: input, shape index: {}]
  %s9 = inlined_call_operand.vmem [shape: bf16[128,128], index: 9, kind: input, shape index: {}]
  %s10 = inlined_call_operand.vmem [shape: f32[1,128], index: 10, kind: input, shape index: {}]
  %s11 = inlined_call_operand.vmem [shape: bf16[128,9], index: 11, kind: input, shape index: {}]
  %s12 = inlined_call_operand.vmem [shape: f32[1,9], index: 12, kind: input, shape index: {}]
  %s13 = inlined_call_operand.vmem [shape: f32[16,9], index: 13, kind: output, shape index: {}]
  %s14 = sld [smem:[#allocation0]]
  $region173: #{get_transform_forward.1} parent=0
    _
  %s16 = ssub.s32 1, %s14
  %s17 = scalar_select 0, %s16, %s14
  $region1: #{get_transform_forward.1} parent=0
    #allocation3 [shape = 'u8[524288]{0}', space=vmem, size = 0x80000, scoped, tag = 'input window, operand 0']
    loop: start=0, step=1, limit=10
    $region2: #{get_transform_forward.1} parent=1 // loop_pre_header
      _
    $region3: #{get_transform_forward.1} parent=1 // loop_header
      %s19 = sphi 0, %s23
      %p20 = scmp.ge.s32.totalorder %s19, 10
      %s26 = sphi 0, %s38
      %s27 = sphi 0, %s34
      %s28 = sphi 0, %s26
      %s29 = sphi 0, %s27
      %s30 = sphi 0, %s28
      %s31 = sphi 0, %s29
      %s43 = sphi 0, %s45
      %s46 = sphi 0, %s43
      %s47 = sphi 0, %s46
      %s63 = sphi 0, %s47
      %s67 = sphi 0, %s67
      %s69 = sphi 0, %s67
      %s70 = sphi 0, %s69
      %s84 = sphi 0, %s70
      %s88 = sphi 0, %s88
      %s90 = sphi 0, %s88
      %s91 = sphi 0, %s90
      %s105 = sphi 0, %s91
      %s109 = sphi 0, %s109
      %s111 = sphi 0, %s109
      %s112 = sphi 0, %s111
      %s126 = sphi 0, %s112
      %s130 = sphi 0, %s130
      %s132 = sphi 0, %s130
      %s133 = sphi 0, %s132
      %s147 = sphi 0, %s133
      %s151 = sphi 0, %s151
      %s153 = sphi 0, %s151
      %s154 = sphi 0, %s153
      %s168 = sphi 0, %s154
      %s172 = sphi 0, %s172
      %s174 = sphi 0, %s172
      %s175 = sphi 0, %s174
      %s189 = sphi 0, %s175
      %s193 = sphi 0, %s193
      %s195 = sphi 0, %s193
      %s196 = sphi 0, %s195
      %s210 = sphi 0, %s196
      %s214 = sphi 0, %s214
      %s216 = sphi 0, %s214
      %s217 = sphi 0, %s216
      %s231 = sphi 0, %s217
      %s235 = sphi 0, %s235
      %s237 = sphi 0, %s235
      %s238 = sphi 0, %s237
      %s252 = sphi 0, %s238
      %s256 = sphi 0, %s256
      %s258 = sphi 0, %s256
      %s259 = sphi 0, %s258
      %s273 = sphi 0, %s259
      %s277 = sphi 0, %s277
      %s279 = sphi 0, %s277
      %s280 = sphi 0, %s279
      %s294 = sphi 0, %s280
      %s298 = sphi 0, %s298
      %s300 = sphi 0, %s298
      %s301 = sphi 0, %s300
      %s315 = sphi 0, %s301
      %s321 = sphi 0, %s323
      %s324 = sphi 0, %s321
      %s325 = sphi 0, %s324
      %s341 = sphi 0, %s325
    $region4: #{get_transform_forward.1} parent=1 // loop_header_branch
      %22 = sbr.rel (%p20) target = $region8
    $region5: #{get_transform_forward.1} parent=1 // loop_body
      %s24 = ssub.s32 %s19, 1
      %s25 = ssub.s32 %s19, 2
      %s32 = sadd.s32 1, %s27
      %p33 = scmp.ge.s32.totalorder %s32, 4
      %s34 = scalar_select %p33, 0, %s32
      %s35 = sadd.s32 1, %s26
      %s36 = scalar_select %p33, %s35, %s26
      %p37 = scmp.ge.s32.totalorder %s36, 2
      %s38 = scalar_select %p37, 0, %s36
      %s39 = ssub.s32 %s26, %s38
      %s40 = ssub.s32 %s27, %s34
      %s41 = sor.u32 %s39, %s40
      %p42 = scmp.eq.s32.totalorder %s41, 0
      %s44 = sadd.s32 %s43, 1
      %s45 = scalar_select %p42, %s43, %s44
      %p48 = pneg %p42
      %p49 = scmp.eq.s32.totalorder %s19, 7
      %p50 = por %p48, %p49
      %p51 = scmp.ne.s32.totalorder %s43, %s46
      %p52 = scmp.eq.s32.totalorder %s19, 0
      %p53 = por %p51, %p52
      %p54 = scmp.ne.s32.totalorder %s43, %s46
      %p55 = scmp.eq.s32.totalorder %s24, 7
      %p56 = por %p54, %p55
      %p57 = scmp.ne.s32.totalorder %s46, %s47
      %p58 = scmp.eq.s32.totalorder %s24, 0
      %p59 = por %p57, %p58
      %p60 = scmp.ne.s32.totalorder %s46, %s47
      %p61 = scmp.eq.s32.totalorder %s25, 7
      %p62 = por %p60, %p61
      %p64 = scmp.ne.s32.totalorder %s47, %s63
      %p65 = scmp.eq.s32.totalorder %s25, 0
      %p66 = por %p64, %p65
      %s68 = sadd.s32 %s67, 1
      %p71 = scmp.eq.s32.totalorder %s19, 7
      %p72 = scmp.ne.s32.totalorder %s67, %s69
      %p73 = scmp.eq.s32.totalorder %s19, 0
      %p74 = por %p72, %p73
      %p75 = scmp.ne.s32.totalorder %s67, %s69
      %p76 = scmp.eq.s32.totalorder %s24, 7
      %p77 = por %p75, %p76
      %p78 = scmp.ne.s32.totalorder %s69, %s70
      %p79 = scmp.eq.s32.totalorder %s24, 0
      %p80 = por %p78, %p79
      %p81 = scmp.ne.s32.totalorder %s69, %s70
      %p82 = scmp.eq.s32.totalorder %s25, 7
      %p83 = por %p81, %p82
      %p85 = scmp.ne.s32.totalorder %s70, %s84
      %p86 = scmp.eq.s32.totalorder %s25, 0
      %p87 = por %p85, %p86
      %s89 = sadd.s32 %s88, 1
      %p92 = scmp.eq.s32.totalorder %s19, 7
      %p93 = scmp.ne.s32.totalorder %s88, %s90
      %p94 = scmp.eq.s32.totalorder %s19, 0
      %p95 = por %p93, %p94
      %p96 = scmp.ne.s32.totalorder %s88, %s90
      %p97 = scmp.eq.s32.totalorder %s24, 7
      %p98 = por %p96, %p97
      %p99 = scmp.ne.s32.totalorder %s90, %s91
      %p100 = scmp.eq.s32.totalorder %s24, 0
      %p101 = por %p99, %p100
      %p102 = scmp.ne.s32.totalorder %s90, %s91
      %p103 = scmp.eq.s32.totalorder %s25, 7
      %p104 = por %p102, %p103
      %p106 = scmp.ne.s32.totalorder %s91, %s105
      %p107 = scmp.eq.s32.totalorder %s25, 0
      %p108 = por %p106, %p107
      %s110 = sadd.s32 %s109, 1
      %p113 = scmp.eq.s32.totalorder %s19, 7
      %p114 = scmp.ne.s32.totalorder %s109, %s111
      %p115 = scmp.eq.s32.totalorder %s19, 0
      %p116 = por %p114, %p115
      %p117 = scmp.ne.s32.totalorder %s109, %s111
      %p118 = scmp.eq.s32.totalorder %s24, 7
      %p119 = por %p117, %p118
      %p120 = scmp.ne.s32.totalorder %s111, %s112
      %p121 = scmp.eq.s32.totalorder %s24, 0
      %p122 = por %p120, %p121
      %p123 = scmp.ne.s32.totalorder %s111, %s112
      %p124 = scmp.eq.s32.totalorder %s25, 7
      %p125 = por %p123, %p124
      %p127 = scmp.ne.s32.totalorder %s112, %s126
      %p128 = scmp.eq.s32.totalorder %s25, 0
      %p129 = por %p127, %p128
      %s131 = sadd.s32 %s130, 1
      %p134 = scmp.eq.s32.totalorder %s19, 7
      %p135 = scmp.ne.s32.totalorder %s130, %s132
      %p136 = scmp.eq.s32.totalorder %s19, 0
      %p137 = por %p135, %p136
      %p138 = scmp.ne.s32.totalorder %s130, %s132
      %p139 = scmp.eq.s32.totalorder %s24, 7
      %p140 = por %p138, %p139
      %p141 = scmp.ne.s32.totalorder %s132, %s133
      %p142 = scmp.eq.s32.totalorder %s24, 0
      %p143 = por %p141, %p142
      %p144 = scmp.ne.s32.totalorder %s132, %s133
      %p145 = scmp.eq.s32.totalorder %s25, 7
      %p146 = por %p144, %p145
      %p148 = scmp.ne.s32.totalorder %s133, %s147
      %p149 = scmp.eq.s32.totalorder %s25, 0
      %p150 = por %p148, %p149
      %s152 = sadd.s32 %s151, 1
      %p155 = scmp.eq.s32.totalorder %s19, 7
      %p156 = scmp.ne.s32.totalorder %s151, %s153
      %p157 = scmp.eq.s32.totalorder %s19, 0
      %p158 = por %p156, %p157
      %p159 = scmp.ne.s32.totalorder %s151, %s153
      %p160 = scmp.eq.s32.totalorder %s24, 7
      %p161 = por %p159, %p160
      %p162 = scmp.ne.s32.totalorder %s153, %s154
      %p163 = scmp.eq.s32.totalorder %s24, 0
      %p164 = por %p162, %p163
      %p165 = scmp.ne.s32.totalorder %s153, %s154
      %p166 = scmp.eq.s32.totalorder %s25, 7
      %p167 = por %p165, %p166
      %p169 = scmp.ne.s32.totalorder %s154, %s168
      %p170 = scmp.eq.s32.totalorder %s25, 0
      %p171 = por %p169, %p170
      %s173 = sadd.s32 %s172, 1
      %p176 = scmp.eq.s32.totalorder %s19, 7
      %p177 = scmp.ne.s32.totalorder %s172, %s174
      %p178 = scmp.eq.s32.totalorder %s19, 0
      %p179 = por %p177, %p178
      %p180 = scmp.ne.s32.totalorder %s172, %s174
      %p181 = scmp.eq.s32.totalorder %s24, 7
      %p182 = por %p180, %p181
      %p183 = scmp.ne.s32.totalorder %s174, %s175
      %p184 = scmp.eq.s32.totalorder %s24, 0
      %p185 = por %p183, %p184
      %p186 = scmp.ne.s32.totalorder %s174, %s175
      %p187 = scmp.eq.s32.totalorder %s25, 7
      %p188 = por %p186, %p187
      %p190 = scmp.ne.s32.totalorder %s175, %s189
      %p191 = scmp.eq.s32.totalorder %s25, 0
      %p192 = por %p190, %p191
      %s194 = sadd.s32 %s193, 1
      %p197 = scmp.eq.s32.totalorder %s19, 7
      %p198 = scmp.ne.s32.totalorder %s193, %s195
      %p199 = scmp.eq.s32.totalorder %s19, 0
      %p200 = por %p198, %p199
      %p201 = scmp.ne.s32.totalorder %s193, %s195
      %p202 = scmp.eq.s32.totalorder %s24, 7
      %p203 = por %p201, %p202
      %p204 = scmp.ne.s32.totalorder %s195, %s196
      %p205 = scmp.eq.s32.totalorder %s24, 0
      %p206 = por %p204, %p205
      %p207 = scmp.ne.s32.totalorder %s195, %s196
      %p208 = scmp.eq.s32.totalorder %s25, 7
      %p209 = por %p207, %p208
      %p211 = scmp.ne.s32.totalorder %s196, %s210
      %p212 = scmp.eq.s32.totalorder %s25, 0
      %p213 = por %p211, %p212
      %s215 = sadd.s32 %s214, 1
      %p218 = scmp.eq.s32.totalorder %s19, 7
      %p219 = scmp.ne.s32.totalorder %s214, %s216
      %p220 = scmp.eq.s32.totalorder %s19, 0
      %p221 = por %p219, %p220
      %p222 = scmp.ne.s32.totalorder %s214, %s216
      %p223 = scmp.eq.s32.totalorder %s24, 7
      %p224 = por %p222, %p223
      %p225 = scmp.ne.s32.totalorder %s216, %s217
      %p226 = scmp.eq.s32.totalorder %s24, 0
      %p227 = por %p225, %p226
      %p228 = scmp.ne.s32.totalorder %s216, %s217
      %p229 = scmp.eq.s32.totalorder %s25, 7
      %p230 = por %p228, %p229
      %p232 = scmp.ne.s32.totalorder %s217, %s231
      %p233 = scmp.eq.s32.totalorder %s25, 0
      %p234 = por %p232, %p233
      %s236 = sadd.s32 %s235, 1
      %p239 = scmp.eq.s32.totalorder %s19, 7
      %p240 = scmp.ne.s32.totalorder %s235, %s237
      %p241 = scmp.eq.s32.totalorder %s19, 0
      %p242 = por %p240, %p241
      %p243 = scmp.ne.s32.totalorder %s235, %s237
      %p244 = scmp.eq.s32.totalorder %s24, 7
      %p245 = por %p243, %p244
      %p246 = scmp.ne.s32.totalorder %s237, %s238
      %p247 = scmp.eq.s32.totalorder %s24, 0
      %p248 = por %p246, %p247
      %p249 = scmp.ne.s32.totalorder %s237, %s238
      %p250 = scmp.eq.s32.totalorder %s25, 7
      %p251 = por %p249, %p250
      %p253 = scmp.ne.s32.totalorder %s238, %s252
      %p254 = scmp.eq.s32.totalorder %s25, 0
      %p255 = por %p253, %p254
      %s257 = sadd.s32 %s256, 1
      %p260 = scmp.eq.s32.totalorder %s19, 7
      %p261 = scmp.ne.s32.totalorder %s256, %s258
      %p262 = scmp.eq.s32.totalorder %s19, 0
      %p263 = por %p261, %p262
      %p264 = scmp.ne.s32.totalorder %s256, %s258
      %p265 = scmp.eq.s32.totalorder %s24, 7
      %p266 = por %p264, %p265
      %p267 = scmp.ne.s32.totalorder %s258, %s259
      %p268 = scmp.eq.s32.totalorder %s24, 0
      %p269 = por %p267, %p268
      %p270 = scmp.ne.s32.totalorder %s258, %s259
      %p271 = scmp.eq.s32.totalorder %s25, 7
      %p272 = por %p270, %p271
      %p274 = scmp.ne.s32.totalorder %s259, %s273
      %p275 = scmp.eq.s32.totalorder %s25, 0
      %p276 = por %p274, %p275
      %s278 = sadd.s32 %s277, 1
      %p281 = scmp.eq.s32.totalorder %s19, 7
      %p282 = scmp.ne.s32.totalorder %s277, %s279
      %p283 = scmp.eq.s32.totalorder %s19, 0
      %p284 = por %p282, %p283
      %p285 = scmp.ne.s32.totalorder %s277, %s279
      %p286 = scmp.eq.s32.totalorder %s24, 7
      %p287 = por %p285, %p286
      %p288 = scmp.ne.s32.totalorder %s279, %s280
      %p289 = scmp.eq.s32.totalorder %s24, 0
      %p290 = por %p288, %p289
      %p291 = scmp.ne.s32.totalorder %s279, %s280
      %p292 = scmp.eq.s32.totalorder %s25, 7
      %p293 = por %p291, %p292
      %p295 = scmp.ne.s32.totalorder %s280, %s294
      %p296 = scmp.eq.s32.totalorder %s25, 0
      %p297 = por %p295, %p296
      %s299 = sadd.s32 %s298, 1
      %p302 = scmp.eq.s32.totalorder %s19, 7
      %p303 = scmp.ne.s32.totalorder %s298, %s300
      %p304 = scmp.eq.s32.totalorder %s19, 0
      %p305 = por %p303, %p304
      %p306 = scmp.ne.s32.totalorder %s298, %s300
      %p307 = scmp.eq.s32.totalorder %s24, 7
      %p308 = por %p306, %p307
      %p309 = scmp.ne.s32.totalorder %s300, %s301
      %p310 = scmp.eq.s32.totalorder %s24, 0
      %p311 = por %p309, %p310
      %p312 = scmp.ne.s32.totalorder %s300, %s301
      %p313 = scmp.eq.s32.totalorder %s25, 7
      %p314 = por %p312, %p313
      %p316 = scmp.ne.s32.totalorder %s301, %s315
      %p317 = scmp.eq.s32.totalorder %s25, 0
      %p318 = por %p316, %p317
      %s319 = ssub.s32 %s26, %s38
      %p320 = scmp.eq.s32.totalorder %s319, 0
      %s322 = sadd.s32 %s321, 1
      %s323 = scalar_select %p320, %s321, %s322
      %p326 = pneg %p320
      %p327 = scmp.eq.s32.totalorder %s19, 7
      %p328 = por %p326, %p327
      %p329 = scmp.ne.s32.totalorder %s321, %s324
      %p330 = scmp.eq.s32.totalorder %s19, 0
      %p331 = por %p329, %p330
      %p332 = scmp.ne.s32.totalorder %s321, %s324
      %p333 = scmp.eq.s32.totalorder %s24, 7
      %p334 = por %p332, %p333
      %p335 = scmp.ne.s32.totalorder %s324, %s325
      %p336 = scmp.eq.s32.totalorder %s24, 0
      %p337 = por %p335, %p336
      %p338 = scmp.ne.s32.totalorder %s324, %s325
      %p339 = scmp.eq.s32.totalorder %s25, 7
      %p340 = por %p338, %p339
      %p342 = scmp.ne.s32.totalorder %s325, %s341
      %p343 = scmp.eq.s32.totalorder %s25, 0
      %p344 = por %p342, %p343
      %p345 = scmp.le.s32.totalorder 1, %s19
      %p346 = scmp.lt.s32.totalorder %s19, 9
      %p347 = pnand %p345, %p346
      %p348 = pneg %p347
      // Predicated region
      $region9: #{get_transform_forward.1} parent=5 // pred_check
        _
      $region10: #{get_transform_forward.1} parent=5 // pred_check_branch
        %350 = sbr.rel (%p347) target = $region12
      $region11: #{get_transform_forward.1} parent=5 // pred_region
        %s351 = ssub.s32 %s19, 1
        // Predicated region
        $region13: #{get_transform_forward.1} parent=11 // pred_check
          %p352 = pneg %p80
        $region14: #{get_transform_forward.1} parent=11 // pred_check_branch
          %354 = sbr.rel (%p352) target = $region16
        $region15: #{get_transform_forward.1} parent=11 // pred_region
          _
        $region16: #{get_transform_forward.1} parent=11 // pred_fallthru
          _
        // Predicated region
        $region17: #{get_transform_forward.1} parent=11 // pred_check
          %p355 = pneg %p101
        $region18: #{get_transform_forward.1} parent=11 // pred_check_branch
          %357 = sbr.rel (%p355) target = $region20
        $region19: #{get_transform_forward.1} parent=11 // pred_region
          _
        $region20: #{get_transform_forward.1} parent=11 // pred_fallthru
          _
        // Predicated region
        $region21: #{get_transform_forward.1} parent=11 // pred_check
          %p358 = pneg %p122
        $region22: #{get_transform_forward.1} parent=11 // pred_check_branch
          %360 = sbr.rel (%p358) target = $region24
        $region23: #{get_transform_forward.1} parent=11 // pred_region
          _
        $region24: #{get_transform_forward.1} parent=11 // pred_fallthru
          _
        // Predicated region
        $region25: #{get_transform_forward.1} parent=11 // pred_check
          %p361 = pneg %p143
        $region26: #{get_transform_forward.1} parent=11 // pred_check_branch
          %363 = sbr.rel (%p361) target = $region28
        $region27: #{get_transform_forward.1} parent=11 // pred_region
          _
        $region28: #{get_transform_forward.1} parent=11 // pred_fallthru
          _
        // Predicated region
        $region29: #{get_transform_forward.1} parent=11 // pred_check
          %p364 = pneg %p164
        $region30: #{get_transform_forward.1} parent=11 // pred_check_branch
          %366 = sbr.rel (%p364) target = $region32
        $region31: #{get_transform_forward.1} parent=11 // pred_region
          _
        $region32: #{get_transform_forward.1} parent=11 // pred_fallthru
          _
        // Predicated region
        $region33: #{get_transform_forward.1} parent=11 // pred_check
          %p367 = pneg %p185
        $region34: #{get_transform_forward.1} parent=11 // pred_check_branch
          %369 = sbr.rel (%p367) target = $region36
        $region35: #{get_transform_forward.1} parent=11 // pred_region
          _
        $region36: #{get_transform_forward.1} parent=11 // pred_fallthru
          _
        // Predicated region
        $region37: #{get_transform_forward.1} parent=11 // pred_check
          %p370 = pneg %p206
        $region38: #{get_transform_forward.1} parent=11 // pred_check_branch
          %372 = sbr.rel (%p370) target = $region40
        $region39: #{get_transform_forward.1} parent=11 // pred_region
          _
        $region40: #{get_transform_forward.1} parent=11 // pred_fallthru
          _
        // Predicated region
        $region41: #{get_transform_forward.1} parent=11 // pred_check
          %p373 = pneg %p227
        $region42: #{get_transform_forward.1} parent=11 // pred_check_branch
          %375 = sbr.rel (%p373) target = $region44
        $region43: #{get_transform_forward.1} parent=11 // pred_region
          _
        $region44: #{get_transform_forward.1} parent=11 // pred_fallthru
          _
        // Predicated region
        $region45: #{get_transform_forward.1} parent=11 // pred_check
          %p376 = pneg %p248
        $region46: #{get_transform_forward.1} parent=11 // pred_check_branch
          %378 = sbr.rel (%p376) target = $region48
        $region47: #{get_transform_forward.1} parent=11 // pred_region
          _
        $region48: #{get_transform_forward.1} parent=11 // pred_fallthru
          _
        // Predicated region
        $region49: #{get_transform_forward.1} parent=11 // pred_check
          %p379 = pneg %p269
        $region50: #{get_transform_forward.1} parent=11 // pred_check_branch
          %381 = sbr.rel (%p379) target = $region52
        $region51: #{get_transform_forward.1} parent=11 // pred_region
          _
        $region52: #{get_transform_forward.1} parent=11 // pred_fallthru
          _
        // Predicated region
        $region53: #{get_transform_forward.1} parent=11 // pred_check
          %p382 = pneg %p290
        $region54: #{get_transform_forward.1} parent=11 // pred_check_branch
          %384 = sbr.rel (%p382) target = $region56
        $region55: #{get_transform_forward.1} parent=11 // pred_region
          _
        $region56: #{get_transform_forward.1} parent=11 // pred_fallthru
          _
        // Predicated region
        $region57: #{get_transform_forward.1} parent=11 // pred_check
          %p385 = pneg %p311
        $region58: #{get_transform_forward.1} parent=11 // pred_check_branch
          %387 = sbr.rel (%p385) target = $region60
        $region59: #{get_transform_forward.1} parent=11 // pred_region
          _
        $region60: #{get_transform_forward.1} parent=11 // pred_fallthru
          _
      $region12: #{get_transform_forward.1} parent=5 // pred_fallthru
        _
      %p388 = scmp.lt.s32.totalorder %s19, 8
      // Predicated region
      $region61: #{get_transform_forward.1} parent=5 // pred_check
        %p389 = pneg %p388
      $region62: #{get_transform_forward.1} parent=5 // pred_check_branch
        %391 = sbr.rel (%p389) target = $region64
      $region63: #{get_transform_forward.1} parent=5 // pred_region
        // Predicated region
        $region65: #{get_transform_forward.1} parent=63 // pred_check
          %p392 = pneg %p53
        $region66: #{get_transform_forward.1} parent=63 // pred_check_branch
          %394 = sbr.rel (%p392) target = $region68
        $region67: #{get_transform_forward.1} parent=63 // pred_region
          %s395 = sand.u32 %s43, 1
          %s396 = sand.u32 %s43, 1
          %s397 = smul.addr %s396, 512
          %s398 = scalar_lea.vmem [#allocation3], %s397
          %s399 = smul.u32 8, %s26
          %s400 = smul.u32 8, %s27
          %s401 = ssub.s32 25, %s400
          %p402 = scmp.lt.s32.totalorder %s401, 8
          %s403 = scalar_select %p402, %s401, 8
          %s404 = smul.u32 64, %s403
          %p405 = scmp.ne.s32.totalorder 0, %s404
          %s406 = smul.addr %s399, 25
          %s407 = sadd.s32 %s400, %s406
          %s408 = smul.addr %s407, 8
          %s409 = scalar_lea.vmem %s0, %s408
          // Predicated region
          $region69: #{get_transform_forward.1} parent=67 // pred_check
            %p410 = pneg %p405
          $region70: #{get_transform_forward.1} parent=67 // pred_check_branch
            %412 = sbr.rel (%p410) target = $region72
          $region71: #{get_transform_forward.1} parent=67 // pred_region
            // Predicated region
            $region73: #{get_transform_forward.1} parent=71 // pred_check
              _
            $region74: #{get_transform_forward.1} parent=71 // pred_check_branch
              %414 = sbr.rel (0) target = $region76
            $region75: #{get_transform_forward.1} parent=71 // pred_region
              // Predicated region
              $region95: #{get_transform_forward.1} parent=75 // pred_check
                _
              $region96: #{get_transform_forward.1} parent=75 // pred_check_branch
                %540 = sbr.rel (0) target = $region98
              $region97: #{get_transform_forward.1} parent=75 // pred_region
                %s541 = sshrl.u32 %s403, 2
                // While loop
                $region99: #{get_transform_forward.1} parent=97 // loop_pre_header
                  _
                $region100: #{get_transform_forward.1} parent=97 // loop_header
                  %s543 = sphi 0, %s545
                  %p544 = scmp.ge.s32.totalorder %s543, %s541
                  %s548 = sphi 0, %s617
                  %s549 = sphi %s409, %s620
                  %s550 = sphi %s398, %s621
                $region101: #{get_transform_forward.1} parent=97 // loop_header_branch
                  %547 = sbr.rel (%p544) target = $region105
                $region102: #{get_transform_forward.1} parent=97 // loop_body
                  %v551 = vld [vmem:[%s549] sm:$0xff]
                  %552 = vst [vmem:[%s550] sm:$0xff] %v551
                  %v553 = vld [vmem:[%s549 + $0x8] sm:$0xff]
                  %554 = vst [vmem:[%s550 + $0x8] sm:$0xff] %v553
                  %v555 = vld [vmem:[%s549 + $0x10] sm:$0xff]
                  %556 = vst [vmem:[%s550 + $0x10] sm:$0xff] %v555
                  %v557 = vld [vmem:[%s549 + $0x18] sm:$0xff]
                  %558 = vst [vmem:[%s550 + $0x18] sm:$0xff] %v557
                  %v559 = vld [vmem:[%s549 + $0xc8] sm:$0xff]
                  %560 = vst [vmem:[%s550 + $0x40] sm:$0xff] %v559
                  %v561 = vld [vmem:[%s549 + $0xd0] sm:$0xff]
                  %562 = vst [vmem:[%s550 + $0x48] sm:$0xff] %v561
                  %v563 = vld [vmem:[%s549 + $0xd8] sm:$0xff]
                  %564 = vst [vmem:[%s550 + $0x50] sm:$0xff] %v563
                  %v565 = vld [vmem:[%s549 + $0xe0] sm:$0xff]
                  %566 = vst [vmem:[%s550 + $0x58] sm:$0xff] %v565
                  %v567 = vld [vmem:[%s549 + $0x190] sm:$0xff]
                  %568 = vst [vmem:[%s550 + $0x80] sm:$0xff] %v567
                  %v569 = vld [vmem:[%s549 + $0x198] sm:$0xff]
                  %570 = vst [vmem:[%s550 + $0x88] sm:$0xff] %v569
                  %v571 = vld [vmem:[%s549 + $0x1a0] sm:$0xff]
                  %572 = vst [vmem:[%s550 + $0x90] sm:$0xff] %v571
                  %v573 = vld [vmem:[%s549 + $0x1a8] sm:$0xff]
                  %574 = vst [vmem:[%s550 + $0x98] sm:$0xff] %v573
                  %v575 = vld [vmem:[%s549 + $0x258] sm:$0xff]
                  %576 = vst [vmem:[%s550 + $0xc0] sm:$0xff] %v575
                  %v577 = vld [vmem:[%s549 + $0x260] sm:$0xff]
                  %578 = vst [vmem:[%s550 + $0xc8] sm:$0xff] %v577
                  %v579 = vld [vmem:[%s549 + $0x268] sm:$0xff]
                  %580 = vst [vmem:[%s550 + $0xd0] sm:$0xff] %v579
                  %v581 = vld [vmem:[%s549 + $0x270] sm:$0xff]
                  %582 = vst [vmem:[%s550 + $0xd8] sm:$0xff] %v581
                  %v583 = vld [vmem:[%s549 + $0x320] sm:$0xff]
                  %584 = vst [vmem:[%s550 + $0x100] sm:$0xff] %v583
                  %v585 = vld [vmem:[%s549 + $0x328] sm:$0xff]
                  %586 = vst [vmem:[%s550 + $0x108] sm:$0xff] %v585
                  %v587 = vld [vmem:[%s549 + $0x330] sm:$0xff]
                  %588 = vst [vmem:[%s550 + $0x110] sm:$0xff] %v587
                  %v589 = vld [vmem:[%s549 + $0x338] sm:$0xff]
                  %590 = vst [vmem:[%s550 + $0x118] sm:$0xff] %v589
                  %v591 = vld [vmem:[%s549 + $0x3e8] sm:$0xff]
                  %592 = vst [vmem:[%s550 + $0x140] sm:$0xff] %v591
                  %v593 = vld [vmem:[%s549 + $0x3f0] sm:$0xff]
                  %594 = vst [vmem:[%s550 + $0x148] sm:$0xff] %v593
                  %v595 = vld [vmem:[%s549 + $0x3f8] sm:$0xff]
                  %596 = vst [vmem:[%s550 + $0x150] sm:$0xff] %v595
                  %v597 = vld [vmem:[%s549 + $0x400] sm:$0xff]
                  %598 = vst [vmem:[%s550 + $0x158] sm:$0xff] %v597
                  %v599 = vld [vmem:[%s549 + $0x4b0] sm:$0xff]
                  %600 = vst [vmem:[%s550 + $0x180] sm:$0xff] %v599
                  %v601 = vld [vmem:[%s549 + $0x4b8] sm:$0xff]
                  %602 = vst [vmem:[%s550 + $0x188] sm:$0xff] %v601
                  %v603 = vld [vmem:[%s549 + $0x4c0] sm:$0xff]
                  %604 = vst [vmem:[%s550 + $0x190] sm:$0xff] %v603
                  %v605 = vld [vmem:[%s549 + $0x4c8] sm:$0xff]
                  %606 = vst [vmem:[%s550 + $0x198] sm:$0xff] %v605
                  %v607 = vld [vmem:[%s549 + $0x578] sm:$0xff]
                  %608 = vst [vmem:[%s550 + $0x1c0] sm:$0xff] %v607
                  %v609 = vld [vmem:[%s549 + $0x580] sm:$0xff]
                  %610 = vst [vmem:[%s550 + $0x1c8] sm:$0xff] %v609
                  %v611 = vld [vmem:[%s549 + $0x588] sm:$0xff]
                  %612 = vst [vmem:[%s550 + $0x1d0] sm:$0xff] %v611
                  %v613 = vld [vmem:[%s549 + $0x590] sm:$0xff]
                  %614 = vst [vmem:[%s550 + $0x1d8] sm:$0xff] %v613
                  %s615 = sadd.s32 1, %s548
                  %p616 = scmp.ge.s32.totalorder %s615, %s541
                  %s617 = scalar_select %p616, 0, %s615
                  %s618 = smul.u32 %s617, 32
                  %s619 = smul.u32 %s617, 32
                  %s620 = scalar_lea.vmem %s409, %s618
                  %s621 = scalar_lea.vmem %s398, %s619 [#allocation3]
                $region103: #{get_transform_forward.1} parent=97 // loop_footer
                  %s545 = sadd.s32 %s543, 1
                $region104: #{get_transform_forward.1} parent=97 // loop_footer_branch
                  %542 = sbr.rel target = $region100
                $region105: #{get_transform_forward.1} parent=97 // loop_exit
                  _
                %s622 = sshrl.u32 %s403, 2
                %s623 = sand.u32 %s403, 3
                %s624 = smul.u32 %s622, 4
                %s625 = smul.u32 8, %s624
                %s626 = scalar_lea.vmem %s409, %s625
                %s627 = smul.u32 8, %s624
                %s628 = scalar_lea.vmem %s398, %s627 [#allocation3]
                // While loop
                $region106: #{get_transform_forward.1} parent=97 // loop_pre_header
                  _
                $region107: #{get_transform_forward.1} parent=97 // loop_header
                  %s630 = sphi 0, %s632
                  %p631 = scmp.ge.s32.totalorder %s630, %s623
                  %s635 = sphi 0, %s656
                  %s636 = sphi %s626, %s659
                  %s637 = sphi %s628, %s660
                $region108: #{get_transform_forward.1} parent=97 // loop_header_branch
                  %634 = sbr.rel (%p631) target = $region112
                $region109: #{get_transform_forward.1} parent=97 // loop_body
                  %v638 = vld [vmem:[%s636] sm:$0xff]
                  %639 = vst [vmem:[%s637] sm:$0xff] %v638
                  %v640 = vld [vmem:[%s636 + $0xc8] sm:$0xff]
                  %641 = vst [vmem:[%s637 + $0x40] sm:$0xff] %v640
                  %v642 = vld [vmem:[%s636 + $0x190] sm:$0xff]
                  %643 = vst [vmem:[%s637 + $0x80] sm:$0xff] %v642
                  %v644 = vld [vmem:[%s636 + $0x258] sm:$0xff]
                  %645 = vst [vmem:[%s637 + $0xc0] sm:$0xff] %v644
                  %v646 = vld [vmem:[%s636 + $0x320] sm:$0xff]
                  %647 = vst [vmem:[%s637 + $0x100] sm:$0xff] %v646
                  %v648 = vld [vmem:[%s636 + $0x3e8] sm:$0xff]
                  %649 = vst [vmem:[%s637 + $0x140] sm:$0xff] %v648
                  %v650 = vld [vmem:[%s636 + $0x4b0] sm:$0xff]
                  %651 = vst [vmem:[%s637 + $0x180] sm:$0xff] %v650
                  %v652 = vld [vmem:[%s636 + $0x578] sm:$0xff]
                  %653 = vst [vmem:[%s637 + $0x1c0] sm:$0xff] %v652
                  %s654 = sadd.s32 1, %s635
                  %p655 = scmp.ge.s32.totalorder %s654, %s623
                  %s656 = scalar_select %p655, 0, %s654
                  %s657 = smul.u32 %s656, 8
                  %s658 = smul.u32 %s656, 8
                  %s659 = scalar_lea.vmem %s626, %s657
                  %s660 = scalar_lea.vmem %s628, %s658 [#allocation3]
                $region110: #{get_transform_forward.1} parent=97 // loop_footer
                  %s632 = sadd.s32 %s630, 1
                $region111: #{get_transform_forward.1} parent=97 // loop_footer_branch
                  %629 = sbr.rel target = $region107
                $region112: #{get_transform_forward.1} parent=97 // loop_exit
                  _
              $region98: #{get_transform_forward.1} parent=75 // pred_fallthru
                _
              // Predicated region
              $region113: #{get_transform_forward.1} parent=75 // pred_check
                _
              $region114: #{get_transform_forward.1} parent=75 // pred_check_branch
                %662 = sbr.rel target = $region116
              $region115: #{get_transform_forward.1} parent=75 // pred_region
                _
              $region116: #{get_transform_forward.1} parent=75 // pred_fallthru
                _
            $region76: #{get_transform_forward.1} parent=71 // pred_fallthru
              _
            // Predicated region
            $region77: #{get_transform_forward.1} parent=71 // pred_check
              _
            $region78: #{get_transform_forward.1} parent=71 // pred_check_branch
              %416 = sbr.rel target = $region80
            $region79: #{get_transform_forward.1} parent=71 // pred_region
              %s418 = ssub.s32 256, 1
              %s419 = sshrl.u32 %s403, 2
              // While loop
              $region81: #{get_transform_forward.1} parent=79 // loop_pre_header
                _
              $region82: #{get_transform_forward.1} parent=79 // loop_header
                %s421 = sphi 0, %s423
                %p422 = scmp.ge.s32.totalorder %s421, %s419
                %s426 = sphi 0, %s495
                %s427 = sphi %s409, %s498
                %s428 = sphi %s398, %s499
              $region83: #{get_transform_forward.1} parent=79 // loop_header_branch
                %425 = sbr.rel (%p422) target = $region87
              $region84: #{get_transform_forward.1} parent=79 // loop_body
                %v429 = vld [vmem:[%s427] sm:%s418]
                %430 = vst [vmem:[%s428] sm:%s418] %v429
                %v431 = vld [vmem:[%s427 + $0x8] sm:%s418]
                %432 = vst [vmem:[%s428 + $0x8] sm:%s418] %v431
                %v433 = vld [vmem:[%s427 + $0x10] sm:%s418]
                %434 = vst [vmem:[%s428 + $0x10] sm:%s418] %v433
                %v435 = vld [vmem:[%s427 + $0x18] sm:%s418]
                %436 = vst [vmem:[%s428 + $0x18] sm:%s418] %v435
                %v437 = vld [vmem:[%s427 + $0xc8] sm:%s418]
                %438 = vst [vmem:[%s428 + $0x40] sm:%s418] %v437
                %v439 = vld [vmem:[%s427 + $0xd0] sm:%s418]
                %440 = vst [vmem:[%s428 + $0x48] sm:%s418] %v439
                %v441 = vld [vmem:[%s427 + $0xd8] sm:%s418]
                %442 = vst [vmem:[%s428 + $0x50] sm:%s418] %v441
                %v443 = vld [vmem:[%s427 + $0xe0] sm:%s418]
                %444 = vst [vmem:[%s428 + $0x58] sm:%s418] %v443
                %v445 = vld [vmem:[%s427 + $0x190] sm:%s418]
                %446 = vst [vmem:[%s428 + $0x80] sm:%s418] %v445
                %v447 = vld [vmem:[%s427 + $0x198] sm:%s418]
                %448 = vst [vmem:[%s428 + $0x88] sm:%s418] %v447
                %v449 = vld [vmem:[%s427 + $0x1a0] sm:%s418]
                %450 = vst [vmem:[%s428 + $0x90] sm:%s418] %v449
                %v451 = vld [vmem:[%s427 + $0x1a8] sm:%s418]
                %452 = vst [vmem:[%s428 + $0x98] sm:%s418] %v451
                %v453 = vld [vmem:[%s427 + $0x258] sm:%s418]
                %454 = vst [vmem:[%s428 + $0xc0] sm:%s418] %v453
                %v455 = vld [vmem:[%s427 + $0x260] sm:%s418]
                %456 = vst [vmem:[%s428 + $0xc8] sm:%s418] %v455
                %v457 = vld [vmem:[%s427 + $0x268] sm:%s418]
                %458 = vst [vmem:[%s428 + $0xd0] sm:%s418] %v457
                %v459 = vld [vmem:[%s427 + $0x270] sm:%s418]
                %460 = vst [vmem:[%s428 + $0xd8] sm:%s418] %v459
                %v461 = vld [vmem:[%s427 + $0x320] sm:%s418]
                %462 = vst [vmem:[%s428 + $0x100] sm:%s418] %v461
                %v463 = vld [vmem:[%s427 + $0x328] sm:%s418]
                %464 = vst [vmem:[%s428 + $0x108] sm:%s418] %v463
                %v465 = vld [vmem:[%s427 + $0x330] sm:%s418]
                %466 = vst [vmem:[%s428 + $0x110] sm:%s418] %v465
                %v467 = vld [vmem:[%s427 + $0x338] sm:%s418]
                %468 = vst [vmem:[%s428 + $0x118] sm:%s418] %v467
                %v469 = vld [vmem:[%s427 + $0x3e8] sm:%s418]
                %470 = vst [vmem:[%s428 + $0x140] sm:%s418] %v469
                %v471 = vld [vmem:[%s427 + $0x3f0] sm:%s418]
                %472 = vst [vmem:[%s428 + $0x148] sm:%s418] %v471
                %v473 = vld [vmem:[%s427 + $0x3f8] sm:%s418]
                %474 = vst [vmem:[%s428 + $0x150] sm:%s418] %v473
                %v475 = vld [vmem:[%s427 + $0x400] sm:%s418]
                %476 = vst [vmem:[%s428 + $0x158] sm:%s418] %v475
                %v477 = vld [vmem:[%s427 + $0x4b0] sm:%s418]
                %478 = vst [vmem:[%s428 + $0x180] sm:%s418] %v477
                %v479 = vld [vmem:[%s427 + $0x4b8] sm:%s418]
                %480 = vst [vmem:[%s428 + $0x188] sm:%s418] %v479
                %v481 = vld [vmem:[%s427 + $0x4c0] sm:%s418]
                %482 = vst [vmem:[%s428 + $0x190] sm:%s418] %v481
                %v483 = vld [vmem:[%s427 + $0x4c8] sm:%s418]
                %484 = vst [vmem:[%s428 + $0x198] sm:%s418] %v483
                %v485 = vld [vmem:[%s427 + $0x578] sm:%s418]
                %486 = vst [vmem:[%s428 + $0x1c0] sm:%s418] %v485
                %v487 = vld [vmem:[%s427 + $0x580] sm:%s418]
                %488 = vst [vmem:[%s428 + $0x1c8] sm:%s418] %v487
                %v489 = vld [vmem:[%s427 + $0x588] sm:%s418]
                %490 = vst [vmem:[%s428 + $0x1d0] sm:%s418] %v489
                %v491 = vld [vmem:[%s427 + $0x590] sm:%s418]
                %492 = vst [vmem:[%s428 + $0x1d8] sm:%s418] %v491
                %s493 = sadd.s32 1, %s426
                %p494 = scmp.ge.s32.totalorder %s493, %s419
                %s495 = scalar_select %p494, 0, %s493
                %s496 = smul.u32 %s495, 32
                %s497 = smul.u32 %s495, 32
                %s498 = scalar_lea.vmem %s409, %s496
                %s499 = scalar_lea.vmem %s398, %s497 [#allocation3]
              $region85: #{get_transform_forward.1} parent=79 // loop_footer
                %s423 = sadd.s32 %s421, 1
              $region86: #{get_transform_forward.1} parent=79 // loop_footer_branch
                %420 = sbr.rel target = $region82
              $region87: #{get_transform_forward.1} parent=79 // loop_exit
                _
              %s500 = sshrl.u32 %s403, 2
              %s501 = sand.u32 %s403, 3
              %s502 = smul.u32 %s500, 4
              %s503 = smul.u32 8, %s502
              %s504 = scalar_lea.vmem %s409, %s503
              %s505 = smul.u32 8, %s502
              %s506 = scalar_lea.vmem %s398, %s505 [#allocation3]
              // While loop
              $region88: #{get_transform_forward.1} parent=79 // loop_pre_header
                _
              $region89: #{get_transform_forward.1} parent=79 // loop_header
                %s508 = sphi 0, %s510
                %p509 = scmp.ge.s32.totalorder %s508, %s501
                %s513 = sphi 0, %s534
                %s514 = sphi %s504, %s537
                %s515 = sphi %s506, %s538
              $region90: #{get_transform_forward.1} parent=79 // loop_header_branch
                %512 = sbr.rel (%p509) target = $region94
              $region91: #{get_transform_forward.1} parent=79 // loop_body
                %v516 = vld [vmem:[%s514] sm:%s418]
                %517 = vst [vmem:[%s515] sm:%s418] %v516
                %v518 = vld [vmem:[%s514 + $0xc8] sm:%s418]
                %519 = vst [vmem:[%s515 + $0x40] sm:%s418] %v518
                %v520 = vld [vmem:[%s514 + $0x190] sm:%s418]
                %521 = vst [vmem:[%s515 + $0x80] sm:%s418] %v520
                %v522 = vld [vmem:[%s514 + $0x258] sm:%s418]
                %523 = vst [vmem:[%s515 + $0xc0] sm:%s418] %v522
                %v524 = vld [vmem:[%s514 + $0x320] sm:%s418]
                %525 = vst [vmem:[%s515 + $0x100] sm:%s418] %v524
                %v526 = vld [vmem:[%s514 + $0x3e8] sm:%s418]
                %527 = vst [vmem:[%s515 + $0x140] sm:%s418] %v526
                %v528 = vld [vmem:[%s514 + $0x4b0] sm:%s418]
                %529 = vst [vmem:[%s515 + $0x180] sm:%s418] %v528
                %v530 = vld [vmem:[%s514 + $0x578] sm:%s418]
                %531 = vst [vmem:[%s515 + $0x1c0] sm:%s418] %v530
                %s532 = sadd.s32 1, %s513
                %p533 = scmp.ge.s32.totalorder %s532, %s501
                %s534 = scalar_select %p533, 0, %s532
                %s535 = smul.u32 %s534, 8
                %s536 = smul.u32 %s534, 8
                %s537 = scalar_lea.vmem %s504, %s535
                %s538 = scalar_lea.vmem %s506, %s536 [#allocation3]
              $region92: #{get_transform_forward.1} parent=79 // loop_footer
                %s510 = sadd.s32 %s508, 1
              $region93: #{get_transform_forward.1} parent=79 // loop_footer_branch
                %507 = sbr.rel target = $region89
              $region94: #{get_transform_forward.1} parent=79 // loop_exit
                _
            $region80: #{get_transform_forward.1} parent=71 // pred_fallthru
              _
          $region72: #{get_transform_forward.1} parent=67 // pred_fallthru
            _
          %663 = vnop
        $region68: #{get_transform_forward.1} parent=63 // pred_fallthru
          _
      $region64: #{get_transform_forward.1} parent=5 // pred_fallthru
        _
      %p664 = scmp.le.s32.totalorder 1, %s19
      %p665 = scmp.lt.s32.totalorder %s19, 9
      %p666 = pnand %p664, %p665
      %p667 = pneg %p666
      // Predicated region
      $region117: #{get_transform_forward.1} parent=5 // pred_check
        _
      $region118: #{get_transform_forward.1} parent=5 // pred_check_branch
        %669 = sbr.rel (%p666) target = $region120
      $region119: #{get_transform_forward.1} parent=5 // pred_region
        %s670 = ssub.s32 %s19, 1
        %s671 = sand.u32 %s46, 1
        %s672 = sand.u32 %s46, 1
        %s673 = smul.addr %s672, 512
        %s674 = scalar_lea.vmem [#allocation3], %s673
        // Predicated region
        $region121: #{get_transform_forward.1} parent=119 // pred_check
          %p675 = pneg %p59
        $region122: #{get_transform_forward.1} parent=119 // pred_check_branch
          %677 = sbr.rel (%p675) target = $region124
        $region123: #{get_transform_forward.1} parent=119 // pred_region
          _
        $region124: #{get_transform_forward.1} parent=119 // pred_fallthru
          _
        %s678 = sand.u32 %s46, 1
        %s679 = sand.u32 %s46, 1
        %s680 = smul.addr %s679, 512
        %s681 = scalar_lea.vmem [#allocation3], %s680
        %p682 = pneg %p59
        %p683 = pneg %p56
        %p684 = pneg %p80
        %p685 = pneg %p77
        %p686 = pneg %p101
        %p687 = pneg %p98
        %p688 = pneg %p122
        %p689 = pneg %p119
        %p690 = pneg %p143
        %p691 = pneg %p140
        %p692 = pneg %p164
        %p693 = pneg %p161
        %p694 = pneg %p185
        %p695 = pneg %p182
        %p696 = pneg %p206
        %p697 = pneg %p203
        %p698 = pneg %p227
        %p699 = pneg %p224
        %p700 = pneg %p248
        %p701 = pneg %p245
        %p702 = pneg %p269
        %p703 = pneg %p266
        %p704 = pneg %p290
        %p705 = pneg %p287
        %p706 = pneg %p311
        %p707 = pneg %p308
        %p708 = pneg %p337
        %p709 = pneg %p334
        %p710 = scmp.lt.s32.totalorder %s28, 1
        %s711 = scalar_select %p710, %s28, 1
        %s712 = smul.addr %s711, 8
        %s713 = scalar_lea.vmem %s13, %s712
        %s714 = smul.u32 8, %s28
        %s715 = smul.u32 8, %s29
        %s716 = ssub.s32 25, %s715
        %p717 = scmp.lt.s32.totalorder %s716, 8
        %s718 = scalar_select %p717, %s716, 8
        %s719 = smul.u32 64, %s718
        %p720 = scmp.lt.s32.totalorder %s28, 1
        %s721 = scalar_select %p720, %s28, 1
        %s722 = smul.addr %s721, 8
        %s723 = scalar_lea.vmem %s13, %s722
        %p725 = scmp.eq.s32.totalorder %s29, 0
        // Predicated region
        $region125: #{get_transform_forward.1} parent=119 // pred_check
          %p726 = pneg %p725
        $region126: #{get_transform_forward.1} parent=119 // pred_check_branch
          %728 = sbr.rel (%p726) target = $region128
        $region127: #{get_transform_forward.1} parent=119 // pred_region
          %729 = vst [vmem:[#allocation2] sm:$0xff] -inf
          %730 = vst [vmem:[#allocation2 + $0x8] sm:$0xff] -inf
          %731 = vst [vmem:[#allocation2 + $0x10] sm:$0xff] -inf
          %732 = vst [vmem:[#allocation2 + $0x18] sm:$0xff] -inf
          %733 = vst [vmem:[#allocation2 + $0x20] sm:$0xff] -inf
          %734 = vst [vmem:[#allocation2 + $0x28] sm:$0xff] -inf
          %735 = vst [vmem:[#allocation2 + $0x30] sm:$0xff] -inf
          %736 = vst [vmem:[#allocation2 + $0x38] sm:$0xff] -inf
        $region128: #{get_transform_forward.1} parent=119 // pred_fallthru
          _
        %v737 = vld [vmem:[%s674] sm:$0xff]
        %v738 = vld [vmem:[%s674 + $0x8] sm:$0xff]
        %v739 = vld [vmem:[%s674 + $0x10] sm:$0xff]
        %v740 = vld [vmem:[%s674 + $0x18] sm:$0xff]
        %v741 = vld [vmem:[%s674 + $0x20] sm:$0xff]
        %v742 = vld [vmem:[%s674 + $0x28] sm:$0xff]
        %v743 = vld [vmem:[%s674 + $0x30] sm:$0xff]
        %v744 = vld [vmem:[%s674 + $0x38] sm:$0xff]
        %v745 = vld [vmem:[%s674 + $0x40] sm:$0xff]
        %v746 = vld [vmem:[%s674 + $0x48] sm:$0xff]
        %v747 = vld [vmem:[%s674 + $0x50] sm:$0xff]
        %v748 = vld [vmem:[%s674 + $0x58] sm:$0xff]
        %v749 = vld [vmem:[%s674 + $0x60] sm:$0xff]
        %v750 = vld [vmem:[%s674 + $0x68] sm:$0xff]
        %v751 = vld [vmem:[%s674 + $0x70] sm:$0xff]
        %v752 = vld [vmem:[%s674 + $0x78] sm:$0xff]
        %v753 = vld [vmem:[%s674 + $0x80] sm:$0xff]
        %v754 = vld [vmem:[%s674 + $0x88] sm:$0xff]
        %v755 = vld [vmem:[%s674 + $0x90] sm:$0xff]
        %v756 = vld [vmem:[%s674 + $0x98] sm:$0xff]
        %v757 = vld [vmem:[%s674 + $0xa0] sm:$0xff]
        %v758 = vld [vmem:[%s674 + $0xa8] sm:$0xff]
        %v759 = vld [vmem:[%s674 + $0xb0] sm:$0xff]
        %v760 = vld [vmem:[%s674 + $0xb8] sm:$0xff]
        %v761 = vld [vmem:[%s674 + $0xc0] sm:$0xff]
        %v762 = vld [vmem:[%s674 + $0xc8] sm:$0xff]
        %v763 = vld [vmem:[%s674 + $0xd0] sm:$0xff]
        %v764 = vld [vmem:[%s674 + $0xd8] sm:$0xff]
        %v765 = vld [vmem:[%s674 + $0xe0] sm:$0xff]
        %v766 = vld [vmem:[%s674 + $0xe8] sm:$0xff]
        %v767 = vld [vmem:[%s674 + $0xf0] sm:$0xff]
        %v768 = vld [vmem:[%s674 + $0xf8] sm:$0xff]
        %v769 = vld [vmem:[%s674 + $0x100] sm:$0xff]
        %v770 = vld [vmem:[%s674 + $0x108] sm:$0xff]
        %v771 = vld [vmem:[%s674 + $0x110] sm:$0xff]
        %v772 = vld [vmem:[%s674 + $0x118] sm:$0xff]
        %v773 = vld [vmem:[%s674 + $0x120] sm:$0xff]
        %v774 = vld [vmem:[%s674 + $0x128] sm:$0xff]
        %v775 = vld [vmem:[%s674 + $0x130] sm:$0xff]
        %v776 = vld [vmem:[%s674 + $0x138] sm:$0xff]
        %v777 = vld [vmem:[%s674 + $0x140] sm:$0xff]
        %v778 = vld [vmem:[%s674 + $0x148] sm:$0xff]
        %v779 = vld [vmem:[%s674 + $0x150] sm:$0xff]
        %v780 = vld [vmem:[%s674 + $0x158] sm:$0xff]
        %v781 = vld [vmem:[%s674 + $0x160] sm:$0xff]
        %v782 = vld [vmem:[%s674 + $0x168] sm:$0xff]
        %v783 = vld [vmem:[%s674 + $0x170] sm:$0xff]
        %v784 = vld [vmem:[%s674 + $0x178] sm:$0xff]
        %v785 = vld [vmem:[%s674 + $0x180] sm:$0xff]
        %v786 = vld [vmem:[%s674 + $0x188] sm:$0xff]
        %v787 = vld [vmem:[%s674 + $0x190] sm:$0xff]
        %v788 = vld [vmem:[%s674 + $0x198] sm:$0xff]
        %v789 = vld [vmem:[%s674 + $0x1a0] sm:$0xff]
        %v790 = vld [vmem:[%s674 + $0x1a8] sm:$0xff]
        %v791 = vld [vmem:[%s674 + $0x1b0] sm:$0xff]
        %v792 = vld [vmem:[%s674 + $0x1b8] sm:$0xff]
        %v793 = vld [vmem:[%s674 + $0x1c0] sm:$0xff]
        %v794 = vld [vmem:[%s674 + $0x1c8] sm:$0xff]
        %v795 = vld [vmem:[%s674 + $0x1d0] sm:$0xff]
        %v796 = vld [vmem:[%s674 + $0x1d8] sm:$0xff]
        %v797 = vld [vmem:[%s674 + $0x1e0] sm:$0xff]
        %v798 = vld [vmem:[%s674 + $0x1e8] sm:$0xff]
        %v799 = vld [vmem:[%s674 + $0x1f0] sm:$0xff]
        %v800 = vld [vmem:[%s674 + $0x1f8] sm:$0xff]
        %v801 = vld [vmem:[%s1] sm:$0xff]
        %v802 = vld [vmem:[%s2] sm:$0x1]
        %v804 = vperm.slane %v802, 0
        %vm806 = vcmask 64512
        %v808 = vsel %vm806, %v737, 0
        %v811 = vsel %vm806, %v738, 0
        %v814 = vsel %vm806, %v739, 0
        %v817 = vsel %vm806, %v740, 0
        %v820 = vsel %vm806, %v741, 0
        %v823 = vsel %vm806, %v742, 0
        %v826 = vsel %vm806, %v743, 0
        %v829 = vsel %vm806, %v744, 0
        %v832 = vsel %vm806, %v745, 0
        %v835 = vsel %vm806, %v746, 0
        %v838 = vsel %vm806, %v747, 0
        %v841 = vsel %vm806, %v748, 0
        %v844 = vsel %vm806, %v749, 0
        %v847 = vsel %vm806, %v750, 0
        %v850 = vsel %vm806, %v751, 0
        %v853 = vsel %vm806, %v752, 0
        %v856 = vsel %vm806, %v753, 0
        %v859 = vsel %vm806, %v754, 0
        %v862 = vsel %vm806, %v755, 0
        %v865 = vsel %vm806, %v756, 0
        %v868 = vsel %vm806, %v757, 0
        %v871 = vsel %vm806, %v758, 0
        %v874 = vsel %vm806, %v759, 0
        %v877 = vsel %vm806, %v760, 0
        %v880 = vsel %vm806, %v761, 0
        %v883 = vsel %vm806, %v762, 0
        %v886 = vsel %vm806, %v763, 0
        %v889 = vsel %vm806, %v764, 0
        %v892 = vsel %vm806, %v765, 0
        %v895 = vsel %vm806, %v766, 0
        %v898 = vsel %vm806, %v767, 0
        %v901 = vsel %vm806, %v768, 0
        %v904 = vsel %vm806, %v769, 0
        %v907 = vsel %vm806, %v770, 0
        %v910 = vsel %vm806, %v771, 0
        %v913 = vsel %vm806, %v772, 0
        %v916 = vsel %vm806, %v773, 0
        %v919 = vsel %vm806, %v774, 0
        %v922 = vsel %vm806, %v775, 0
        %v925 = vsel %vm806, %v776, 0
        %v928 = vsel %vm806, %v777, 0
        %v931 = vsel %vm806, %v778, 0
        %v934 = vsel %vm806, %v779, 0
        %v937 = vsel %vm806, %v780, 0
        %v940 = vsel %vm806, %v781, 0
        %v943 = vsel %vm806, %v782, 0
        %v946 = vsel %vm806, %v783, 0
        %v949 = vsel %vm806, %v784, 0
        %v952 = vsel %vm806, %v785, 0
        %v955 = vsel %vm806, %v786, 0
        %v958 = vsel %vm806, %v787, 0
        %v961 = vsel %vm806, %v788, 0
        %v964 = vsel %vm806, %v789, 0
        %v967 = vsel %vm806, %v790, 0
        %v970 = vsel %vm806, %v791, 0
        %v973 = vsel %vm806, %v792, 0
        %v976 = vsel %vm806, %v793, 0
        %v979 = vsel %vm806, %v794, 0
        %v982 = vsel %vm806, %v795, 0
        %v985 = vsel %vm806, %v796, 0
        %v988 = vsel %vm806, %v797, 0
        %v991 = vsel %vm806, %v798, 0
        %v994 = vsel %vm806, %v799, 0
        %v997 = vsel %vm806, %v800, 0
        %999 = vmatpush.msra.mxu0 0.0
        %1000 = vmatpush.msra.mxu0 0.0
        %1001 = vmatpush.msra.mxu0 0.0
        %1002 = vmatpush.msra.mxu0 0.0
        %1003 = vmatpush.msra.mxu0 0.0
        %1004 = vmatpush.msra.mxu0 0.0
        %1005 = vmatpush.msra.mxu0 0.0
        %1006 = vmatpush.msra.mxu0 0.0
        %1007 = vmatpush.msra.mxu0 0.0
        %1008 = vmatpush.msra.mxu0 0.0
        %1009 = vmatpush.msra.mxu0 0.0
        %1010 = vmatpush.msra.mxu0 0.0
        %1011 = vmatpush.msra.mxu0 0.0
        %1012 = vmatpush.msra.mxu0 0.0
        %1013 = vmatpush.msra.mxu0 0.0
        %1014 = vmatpush.msra.mxu0 %v801
        %1015 = vmatmul.f32.gmra.mxu0 %v808
        %v1016 = vpop.f32.mrf.mxu0
        %v1017 = vadd.f32 %v804, %v1016
        %1018 = vmatmul.f32.gmra.mxu0 %v811
        %v1019 = vpop.f32.mrf.mxu0
        %v1020 = vadd.f32 %v804, %v1019
        %1021 = vmatmul.f32.gmra.mxu0 %v814
        %v1022 = vpop.f32.mrf.mxu0
        %v1023 = vadd.f32 %v804, %v1022
        %1024 = vmatmul.f32.gmra.mxu0 %v817
        %v1025 = vpop.f32.mrf.mxu0
        %v1026 = vadd.f32 %v804, %v1025
        %1027 = vmatmul.f32.gmra.mxu0 %v820
        %v1028 = vpop.f32.mrf.mxu0
        %v1029 = vadd.f32 %v804, %v1028
        %1030 = vmatmul.f32.gmra.mxu0 %v823
        %v1031 = vpop.f32.mrf.mxu0
        %v1032 = vadd.f32 %v804, %v1031
        %1033 = vmatmul.f32.gmra.mxu0 %v826
        %v1034 = vpop.f32.mrf.mxu0
        %v1035 = vadd.f32 %v804, %v1034
        %1036 = vmatmul.f32.gmra.mxu0 %v829
        %v1037 = vpop.f32.mrf.mxu0
        %v1038 = vadd.f32 %v804, %v1037
        %1039 = vmatmul.f32.gmra.mxu0 %v832
        %v1040 = vpop.f32.mrf.mxu0
        %v1041 = vadd.f32 %v804, %v1040
        %1042 = vmatmul.f32.gmra.mxu0 %v835
        %v1043 = vpop.f32.mrf.mxu0
        %v1044 = vadd.f32 %v804, %v1043
        %1045 = vmatmul.f32.gmra.mxu0 %v838
        %v1046 = vpop.f32.mrf.mxu0
        %v1047 = vadd.f32 %v804, %v1046
        %1048 = vmatmul.f32.gmra.mxu0 %v841
        %v1049 = vpop.f32.mrf.mxu0
        %v1050 = vadd.f32 %v804, %v1049
        %1051 = vmatmul.f32.gmra.mxu0 %v844
        %v1052 = vpop.f32.mrf.mxu0
        %v1053 = vadd.f32 %v804, %v1052
        %1054 = vmatmul.f32.gmra.mxu0 %v847
        %v1055 = vpop.f32.mrf.mxu0
        %v1056 = vadd.f32 %v804, %v1055
        %1057 = vmatmul.f32.gmra.mxu0 %v850
        %v1058 = vpop.f32.mrf.mxu0
        %v1059 = vadd.f32 %v804, %v1058
        %1060 = vmatmul.f32.gmra.mxu0 %v853
        %v1061 = vpop.f32.mrf.mxu0
        %v1062 = vadd.f32 %v804, %v1061
        %1063 = vmatmul.f32.gmra.mxu0 %v856
        %v1064 = vpop.f32.mrf.mxu0
        %v1065 = vadd.f32 %v804, %v1064
        %1066 = vmatmul.f32.gmra.mxu0 %v859
        %v1067 = vpop.f32.mrf.mxu0
        %v1068 = vadd.f32 %v804, %v1067
        %1069 = vmatmul.f32.gmra.mxu0 %v862
        %v1070 = vpop.f32.mrf.mxu0
        %v1071 = vadd.f32 %v804, %v1070
        %1072 = vmatmul.f32.gmra.mxu0 %v865
        %v1073 = vpop.f32.mrf.mxu0
        %v1074 = vadd.f32 %v804, %v1073
        %1075 = vmatmul.f32.gmra.mxu0 %v868
        %v1076 = vpop.f32.mrf.mxu0
        %v1077 = vadd.f32 %v804, %v1076
        %1078 = vmatmul.f32.gmra.mxu0 %v871
        %v1079 = vpop.f32.mrf.mxu0
        %v1080 = vadd.f32 %v804, %v1079
        %1081 = vmatmul.f32.gmra.mxu0 %v874
        %v1082 = vpop.f32.mrf.mxu0
        %v1083 = vadd.f32 %v804, %v1082
        %1084 = vmatmul.f32.gmra.mxu0 %v877
        %v1085 = vpop.f32.mrf.mxu0
        %v1086 = vadd.f32 %v804, %v1085
        %1087 = vmatmul.f32.gmra.mxu0 %v880
        %v1088 = vpop.f32.mrf.mxu0
        %v1089 = vadd.f32 %v804, %v1088
        %1090 = vmatmul.f32.gmra.mxu0 %v883
        %v1091 = vpop.f32.mrf.mxu0
        %v1092 = vadd.f32 %v804, %v1091
        %1093 = vmatmul.f32.gmra.mxu0 %v886
        %v1094 = vpop.f32.mrf.mxu0
        %v1095 = vadd.f32 %v804, %v1094
        %1096 = vmatmul.f32.gmra.mxu0 %v889
        %v1097 = vpop.f32.mrf.mxu0
        %v1098 = vadd.f32 %v804, %v1097
        %1099 = vmatmul.f32.gmra.mxu0 %v892
        %v1100 = vpop.f32.mrf.mxu0
        %v1101 = vadd.f32 %v804, %v1100
        %1102 = vmatmul.f32.gmra.mxu0 %v895
        %v1103 = vpop.f32.mrf.mxu0
        %v1104 = vadd.f32 %v804, %v1103
        %1105 = vmatmul.f32.gmra.mxu0 %v898
        %v1106 = vpop.f32.mrf.mxu0
        %v1107 = vadd.f32 %v804, %v1106
        %1108 = vmatmul.f32.gmra.mxu0 %v901
        %v1109 = vpop.f32.mrf.mxu0
        %v1110 = vadd.f32 %v804, %v1109
        %1111 = vmatmul.f32.gmra.mxu0 %v904
        %v1112 = vpop.f32.mrf.mxu0
        %v1113 = vadd.f32 %v804, %v1112
        %1114 = vmatmul.f32.gmra.mxu0 %v907
        %v1115 = vpop.f32.mrf.mxu0
        %v1116 = vadd.f32 %v804, %v1115
        %1117 = vmatmul.f32.gmra.mxu0 %v910
        %v1118 = vpop.f32.mrf.mxu0
        %v1119 = vadd.f32 %v804, %v1118
        %1120 = vmatmul.f32.gmra.mxu0 %v913
        %v1121 = vpop.f32.mrf.mxu0
        %v1122 = vadd.f32 %v804, %v1121
        %1123 = vmatmul.f32.gmra.mxu0 %v916
        %v1124 = vpop.f32.mrf.mxu0
        %v1125 = vadd.f32 %v804, %v1124
        %1126 = vmatmul.f32.gmra.mxu0 %v919
        %v1127 = vpop.f32.mrf.mxu0
        %v1128 = vadd.f32 %v804, %v1127
        %1129 = vmatmul.f32.gmra.mxu0 %v922
        %v1130 = vpop.f32.mrf.mxu0
        %v1131 = vadd.f32 %v804, %v1130
        %1132 = vmatmul.f32.gmra.mxu0 %v925
        %v1133 = vpop.f32.mrf.mxu0
        %v1134 = vadd.f32 %v804, %v1133
        %1135 = vmatmul.f32.gmra.mxu0 %v928
        %v1136 = vpop.f32.mrf.mxu0
        %v1137 = vadd.f32 %v804, %v1136
        %1138 = vmatmul.f32.gmra.mxu0 %v931
        %v1139 = vpop.f32.mrf.mxu0
        %v1140 = vadd.f32 %v804, %v1139
        %1141 = vmatmul.f32.gmra.mxu0 %v934
        %v1142 = vpop.f32.mrf.mxu0
        %v1143 = vadd.f32 %v804, %v1142
        %1144 = vmatmul.f32.gmra.mxu0 %v937
        %v1145 = vpop.f32.mrf.mxu0
        %v1146 = vadd.f32 %v804, %v1145
        %1147 = vmatmul.f32.gmra.mxu0 %v940
        %v1148 = vpop.f32.mrf.mxu0
        %v1149 = vadd.f32 %v804, %v1148
        %1150 = vmatmul.f32.gmra.mxu0 %v943
        %v1151 = vpop.f32.mrf.mxu0
        %v1152 = vadd.f32 %v804, %v1151
        %1153 = vmatmul.f32.gmra.mxu0 %v946
        %v1154 = vpop.f32.mrf.mxu0
        %v1155 = vadd.f32 %v804, %v1154
        %1156 = vmatmul.f32.gmra.mxu0 %v949
        %v1157 = vpop.f32.mrf.mxu0
        %v1158 = vadd.f32 %v804, %v1157
        %1159 = vmatmul.f32.gmra.mxu0 %v952
        %v1160 = vpop.f32.mrf.mxu0
        %v1161 = vadd.f32 %v804, %v1160
        %1162 = vmatmul.f32.gmra.mxu0 %v955
        %v1163 = vpop.f32.mrf.mxu0
        %v1164 = vadd.f32 %v804, %v1163
        %1165 = vmatmul.f32.gmra.mxu0 %v958
        %v1166 = vpop.f32.mrf.mxu0
        %v1167 = vadd.f32 %v804, %v1166
        %1168 = vmatmul.f32.gmra.mxu0 %v961
        %v1169 = vpop.f32.mrf.mxu0
        %v1170 = vadd.f32 %v804, %v1169
        %1171 = vmatmul.f32.gmra.mxu0 %v964
        %v1172 = vpop.f32.mrf.mxu0
        %v1173 = vadd.f32 %v804, %v1172
        %1174 = vmatmul.f32.gmra.mxu0 %v967
        %v1175 = vpop.f32.mrf.mxu0
        %v1176 = vadd.f32 %v804, %v1175
        %1177 = vmatmul.f32.gmra.mxu0 %v970
        %v1178 = vpop.f32.mrf.mxu0
        %v1179 = vadd.f32 %v804, %v1178
        %1180 = vmatmul.f32.gmra.mxu0 %v973
        %v1181 = vpop.f32.mrf.mxu0
        %v1182 = vadd.f32 %v804, %v1181
        %1183 = vmatmul.f32.gmra.mxu0 %v976
        %v1184 = vpop.f32.mrf.mxu0
        %v1185 = vadd.f32 %v804, %v1184
        %1186 = vmatmul.f32.gmra.mxu0 %v979
        %v1187 = vpop.f32.mrf.mxu0
        %v1188 = vadd.f32 %v804, %v1187
        %1189 = vmatmul.f32.gmra.mxu0 %v982
        %v1190 = vpop.f32.mrf.mxu0
        %v1191 = vadd.f32 %v804, %v1190
        %1192 = vmatmul.f32.gmra.mxu0 %v985
        %v1193 = vpop.f32.mrf.mxu0
        %v1194 = vadd.f32 %v804, %v1193
        %1195 = vmatmul.f32.gmra.mxu0 %v988
        %v1196 = vpop.f32.mrf.mxu0
        %v1197 = vadd.f32 %v804, %v1196
        %1198 = vmatmul.f32.gmra.mxu0 %v991
        %v1199 = vpop.f32.mrf.mxu0
        %v1200 = vadd.f32 %v804, %v1199
        %1201 = vmatmul.f32.gmra.mxu0 %v994
        %v1202 = vpop.f32.mrf.mxu0
        %v1203 = vadd.f32 %v804, %v1202
        %1204 = vmatmul.f32.gmra.mxu0 %v997
        %v1205 = vpop.f32.mrf.mxu0
        %v1206 = vadd.f32 %v804, %v1205
        %1207 = vdwg.mxu0
        %v1208 = vmax.f32 %v1017, 0.0
        %v1209 = vmax.f32 %v1020, 0.0
        %v1210 = vmax.f32 %v1023, 0.0
        %v1211 = vmax.f32 %v1026, 0.0
        %v1212 = vmax.f32 %v1029, 0.0
        %v1213 = vmax.f32 %v1032, 0.0
        %v1214 = vmax.f32 %v1035, 0.0
        %v1215 = vmax.f32 %v1038, 0.0
        %v1216 = vmax.f32 %v1041, 0.0
        %v1217 = vmax.f32 %v1044, 0.0
        %v1218 = vmax.f32 %v1047, 0.0
        %v1219 = vmax.f32 %v1050, 0.0
        %v1220 = vmax.f32 %v1053, 0.0
        %v1221 = vmax.f32 %v1056, 0.0
        %v1222 = vmax.f32 %v1059, 0.0
        %v1223 = vmax.f32 %v1062, 0.0
        %v1224 = vmax.f32 %v1065, 0.0
        %v1225 = vmax.f32 %v1068, 0.0
        %v1226 = vmax.f32 %v1071, 0.0
        %v1227 = vmax.f32 %v1074, 0.0
        %v1228 = vmax.f32 %v1077, 0.0
        %v1229 = vmax.f32 %v1080, 0.0
        %v1230 = vmax.f32 %v1083, 0.0
        %v1231 = vmax.f32 %v1086, 0.0
        %v1232 = vmax.f32 %v1089, 0.0
        %v1233 = vmax.f32 %v1092, 0.0
        %v1234 = vmax.f32 %v1095, 0.0
        %v1235 = vmax.f32 %v1098, 0.0
        %v1236 = vmax.f32 %v1101, 0.0
        %v1237 = vmax.f32 %v1104, 0.0
        %v1238 = vmax.f32 %v1107, 0.0
        %v1239 = vmax.f32 %v1110, 0.0
        %v1240 = vmax.f32 %v1113, 0.0
        %v1241 = vmax.f32 %v1116, 0.0
        %v1242 = vmax.f32 %v1119, 0.0
        %v1243 = vmax.f32 %v1122, 0.0
        %v1244 = vmax.f32 %v1125, 0.0
        %v1245 = vmax.f32 %v1128, 0.0
        %v1246 = vmax.f32 %v1131, 0.0
        %v1247 = vmax.f32 %v1134, 0.0
        %v1248 = vmax.f32 %v1137, 0.0
        %v1249 = vmax.f32 %v1140, 0.0
        %v1250 = vmax.f32 %v1143, 0.0
        %v1251 = vmax.f32 %v1146, 0.0
        %v1252 = vmax.f32 %v1149, 0.0
        %v1253 = vmax.f32 %v1152, 0.0
        %v1254 = vmax.f32 %v1155, 0.0
        %v1255 = vmax.f32 %v1158, 0.0
        %v1256 = vmax.f32 %v1161, 0.0
        %v1257 = vmax.f32 %v1164, 0.0
        %v1258 = vmax.f32 %v1167, 0.0
        %v1259 = vmax.f32 %v1170, 0.0
        %v1260 = vmax.f32 %v1173, 0.0
        %v1261 = vmax.f32 %v1176, 0.0
        %v1262 = vmax.f32 %v1179, 0.0
        %v1263 = vmax.f32 %v1182, 0.0
        %v1264 = vmax.f32 %v1185, 0.0
        %v1265 = vmax.f32 %v1188, 0.0
        %v1266 = vmax.f32 %v1191, 0.0
        %v1267 = vmax.f32 %v1194, 0.0
        %v1268 = vmax.f32 %v1197, 0.0
        %v1269 = vmax.f32 %v1200, 0.0
        %v1270 = vmax.f32 %v1203, 0.0
        %v1271 = vmax.f32 %v1206, 0.0
        %v1272 = vpack.c.bf16 %v1209, %v1208
        %v1273 = vpack.c.bf16 %v1211, %v1210
        %v1274 = vpack.c.bf16 %v1213, %v1212
        %v1275 = vpack.c.bf16 %v1215, %v1214
        %v1276 = vpack.c.bf16 %v1217, %v1216
        %v1277 = vpack.c.bf16 %v1219, %v1218
        %v1278 = vpack.c.bf16 %v1221, %v1220
        %v1279 = vpack.c.bf16 %v1223, %v1222
        %v1280 = vpack.c.bf16 %v1225, %v1224
        %v1281 = vpack.c.bf16 %v1227, %v1226
        %v1282 = vpack.c.bf16 %v1229, %v1228
        %v1283 = vpack.c.bf16 %v1231, %v1230
        %v1284 = vpack.c.bf16 %v1233, %v1232
        %v1285 = vpack.c.bf16 %v1235, %v1234
        %v1286 = vpack.c.bf16 %v1237, %v1236
        %v1287 = vpack.c.bf16 %v1239, %v1238
        %v1288 = vpack.c.bf16 %v1241, %v1240
        %v1289 = vpack.c.bf16 %v1243, %v1242
        %v1290 = vpack.c.bf16 %v1245, %v1244
        %v1291 = vpack.c.bf16 %v1247, %v1246
        %v1292 = vpack.c.bf16 %v1249, %v1248
        %v1293 = vpack.c.bf16 %v1251, %v1250
        %v1294 = vpack.c.bf16 %v1253, %v1252
        %v1295 = vpack.c.bf16 %v1255, %v1254
        %v1296 = vpack.c.bf16 %v1257, %v1256
        %v1297 = vpack.c.bf16 %v1259, %v1258
        %v1298 = vpack.c.bf16 %v1261, %v1260
        %v1299 = vpack.c.bf16 %v1263, %v1262
        %v1300 = vpack.c.bf16 %v1265, %v1264
        %v1301 = vpack.c.bf16 %v1267, %v1266
        %v1302 = vpack.c.bf16 %v1269, %v1268
        %v1303 = vpack.c.bf16 %v1271, %v1270
        %v1304 = vld [vmem:[%s3] sm:$0xf]
        %v1305 = vld [vmem:[%s3 + $0x4] sm:$0xf]
        %v1306 = vld [vmem:[%s3 + $0x8] sm:$0xf]
        %v1307 = vld [vmem:[%s3 + $0xc] sm:$0xf]
        %v1308 = vld [vmem:[%s3 + $0x10] sm:$0xf]
        %v1309 = vld [vmem:[%s3 + $0x14] sm:$0xf]
        %v1310 = vld [vmem:[%s3 + $0x18] sm:$0xf]
        %v1311 = vld [vmem:[%s3 + $0x1c] sm:$0xf]
        %v1312 = vld [vmem:[%s4] sm:$0x1]
        %v1314 = vperm.slane %v1312, 0
        %v1324 = vunpack.c.l.b16 %v1304
        %v1325 = vunpack.c.l.b16 %v1305
        %v1326 = vunpack.c.l.b16 %v1306
        %v1327 = vunpack.c.l.b16 %v1307
        %v1328 = vunpack.c.l.b16 %v1308
        %v1329 = vunpack.c.l.b16 %v1309
        %v1330 = vunpack.c.l.b16 %v1310
        %v1331 = vunpack.c.l.b16 %v1311
        %v1332 = vpack.c.b16 %v1325, %v1324
        %v1333 = vpack.c.b16 %v1327, %v1326
        %v1334 = vpack.c.b16 %v1329, %v1328
        %v1335 = vpack.c.b16 %v1331, %v1330
        %vm1340 = vcmask 523264
        %v1342 = vsel %vm1340, %v1272, 0
        %v1345 = vsel %vm1340, %v1273, 0
        %v1348 = vsel %vm1340, %v1274, 0
        %v1351 = vsel %vm1340, %v1275, 0
        %v1354 = vsel %vm1340, %v1276, 0
        %v1357 = vsel %vm1340, %v1277, 0
        %v1360 = vsel %vm1340, %v1278, 0
        %v1363 = vsel %vm1340, %v1279, 0
        %v1366 = vsel %vm1340, %v1280, 0
        %v1369 = vsel %vm1340, %v1281, 0
        %v1372 = vsel %vm1340, %v1282, 0
        %v1375 = vsel %vm1340, %v1283, 0
        %v1378 = vsel %vm1340, %v1284, 0
        %v1381 = vsel %vm1340, %v1285, 0
        %v1384 = vsel %vm1340, %v1286, 0
        %v1387 = vsel %vm1340, %v1287, 0
        %v1390 = vsel %vm1340, %v1288, 0
        %v1393 = vsel %vm1340, %v1289, 0
        %v1396 = vsel %vm1340, %v1290, 0
        %v1399 = vsel %vm1340, %v1291, 0
        %v1402 = vsel %vm1340, %v1292, 0
        %v1405 = vsel %vm1340, %v1293, 0
        %v1408 = vsel %vm1340, %v1294, 0
        %v1411 = vsel %vm1340, %v1295, 0
        %v1414 = vsel %vm1340, %v1296, 0
        %v1417 = vsel %vm1340, %v1297, 0
        %v1420 = vsel %vm1340, %v1298, 0
        %v1423 = vsel %vm1340, %v1299, 0
        %v1426 = vsel %vm1340, %v1300, 0
        %v1429 = vsel %vm1340, %v1301, 0
        %v1432 = vsel %vm1340, %v1302, 0
        %v1435 = vsel %vm1340, %v1303, 0
        %1437 = vmatpush.bf16.msra.mxu0 0
        %1438 = vmatpush.bf16.msra.mxu0 0
        %1439 = vmatpush.bf16.msra.mxu0 0
        %1440 = vmatpush.bf16.msra.mxu0 0
        %1441 = vmatpush.bf16.msra.mxu0 %v1335
        %1442 = vmatpush.bf16.msra.mxu0 %v1334
        %1443 = vmatpush.bf16.msra.mxu0 %v1333
        %1444 = vmatpush.bf16.msra.mxu0 %v1332
        %1445 = vmatmul.bf16.gmra.mxu0 %v1342
        %v1446 = vpop.f32.mrf.mxu0
        %v1447 = vadd.f32 %v1314, %v1446
        %v1448 = vpop.f32.mrf.mxu0
        %v1449 = vadd.f32 %v1314, %v1448
        %1450 = vmatmul.bf16.gmra.mxu0 %v1345
        %v1451 = vpop.f32.mrf.mxu0
        %v1452 = vadd.f32 %v1314, %v1451
        %v1453 = vpop.f32.mrf.mxu0
        %v1454 = vadd.f32 %v1314, %v1453
        %1455 = vmatmul.bf16.gmra.mxu0 %v1348
        %v1456 = vpop.f32.mrf.mxu0
        %v1457 = vadd.f32 %v1314, %v1456
        %v1458 = vpop.f32.mrf.mxu0
        %v1459 = vadd.f32 %v1314, %v1458
        %1460 = vmatmul.bf16.gmra.mxu0 %v1351
        %v1461 = vpop.f32.mrf.mxu0
        %v1462 = vadd.f32 %v1314, %v1461
        %v1463 = vpop.f32.mrf.mxu0
        %v1464 = vadd.f32 %v1314, %v1463
        %1465 = vmatmul.bf16.gmra.mxu0 %v1354
        %v1466 = vpop.f32.mrf.mxu0
        %v1467 = vadd.f32 %v1314, %v1466
        %v1468 = vpop.f32.mrf.mxu0
        %v1469 = vadd.f32 %v1314, %v1468
        %1470 = vmatmul.bf16.gmra.mxu0 %v1357
        %v1471 = vpop.f32.mrf.mxu0
        %v1472 = vadd.f32 %v1314, %v1471
        %v1473 = vpop.f32.mrf.mxu0
        %v1474 = vadd.f32 %v1314, %v1473
        %1475 = vmatmul.bf16.gmra.mxu0 %v1360
        %v1476 = vpop.f32.mrf.mxu0
        %v1477 = vadd.f32 %v1314, %v1476
        %v1478 = vpop.f32.mrf.mxu0
        %v1479 = vadd.f32 %v1314, %v1478
        %1480 = vmatmul.bf16.gmra.mxu0 %v1363
        %v1481 = vpop.f32.mrf.mxu0
        %v1482 = vadd.f32 %v1314, %v1481
        %v1483 = vpop.f32.mrf.mxu0
        %v1484 = vadd.f32 %v1314, %v1483
        %1485 = vmatmul.bf16.gmra.mxu0 %v1366
        %v1486 = vpop.f32.mrf.mxu0
        %v1487 = vadd.f32 %v1314, %v1486
        %v1488 = vpop.f32.mrf.mxu0
        %v1489 = vadd.f32 %v1314, %v1488
        %1490 = vmatmul.bf16.gmra.mxu0 %v1369
        %v1491 = vpop.f32.mrf.mxu0
        %v1492 = vadd.f32 %v1314, %v1491
        %v1493 = vpop.f32.mrf.mxu0
        %v1494 = vadd.f32 %v1314, %v1493
        %1495 = vmatmul.bf16.gmra.mxu0 %v1372
        %v1496 = vpop.f32.mrf.mxu0
        %v1497 = vadd.f32 %v1314, %v1496
        %v1498 = vpop.f32.mrf.mxu0
        %v1499 = vadd.f32 %v1314, %v1498
        %1500 = vmatmul.bf16.gmra.mxu0 %v1375
        %v1501 = vpop.f32.mrf.mxu0
        %v1502 = vadd.f32 %v1314, %v1501
        %v1503 = vpop.f32.mrf.mxu0
        %v1504 = vadd.f32 %v1314, %v1503
        %1505 = vmatmul.bf16.gmra.mxu0 %v1378
        %v1506 = vpop.f32.mrf.mxu0
        %v1507 = vadd.f32 %v1314, %v1506
        %v1508 = vpop.f32.mrf.mxu0
        %v1509 = vadd.f32 %v1314, %v1508
        %1510 = vmatmul.bf16.gmra.mxu0 %v1381
        %v1511 = vpop.f32.mrf.mxu0
        %v1512 = vadd.f32 %v1314, %v1511
        %v1513 = vpop.f32.mrf.mxu0
        %v1514 = vadd.f32 %v1314, %v1513
        %1515 = vmatmul.bf16.gmra.mxu0 %v1384
        %v1516 = vpop.f32.mrf.mxu0
        %v1517 = vadd.f32 %v1314, %v1516
        %v1518 = vpop.f32.mrf.mxu0
        %v1519 = vadd.f32 %v1314, %v1518
        %1520 = vmatmul.bf16.gmra.mxu0 %v1387
        %v1521 = vpop.f32.mrf.mxu0
        %v1522 = vadd.f32 %v1314, %v1521
        %v1523 = vpop.f32.mrf.mxu0
        %v1524 = vadd.f32 %v1314, %v1523
        %1525 = vmatmul.bf16.gmra.mxu0 %v1390
        %v1526 = vpop.f32.mrf.mxu0
        %v1527 = vadd.f32 %v1314, %v1526
        %v1528 = vpop.f32.mrf.mxu0
        %v1529 = vadd.f32 %v1314, %v1528
        %1530 = vmatmul.bf16.gmra.mxu0 %v1393
        %v1531 = vpop.f32.mrf.mxu0
        %v1532 = vadd.f32 %v1314, %v1531
        %v1533 = vpop.f32.mrf.mxu0
        %v1534 = vadd.f32 %v1314, %v1533
        %1535 = vmatmul.bf16.gmra.mxu0 %v1396
        %v1536 = vpop.f32.mrf.mxu0
        %v1537 = vadd.f32 %v1314, %v1536
        %v1538 = vpop.f32.mrf.mxu0
        %v1539 = vadd.f32 %v1314, %v1538
        %1540 = vmatmul.bf16.gmra.mxu0 %v1399
        %v1541 = vpop.f32.mrf.mxu0
        %v1542 = vadd.f32 %v1314, %v1541
        %v1543 = vpop.f32.mrf.mxu0
        %v1544 = vadd.f32 %v1314, %v1543
        %1545 = vmatmul.bf16.gmra.mxu0 %v1402
        %v1546 = vpop.f32.mrf.mxu0
        %v1547 = vadd.f32 %v1314, %v1546
        %v1548 = vpop.f32.mrf.mxu0
        %v1549 = vadd.f32 %v1314, %v1548
        %1550 = vmatmul.bf16.gmra.mxu0 %v1405
        %v1551 = vpop.f32.mrf.mxu0
        %v1552 = vadd.f32 %v1314, %v1551
        %v1553 = vpop.f32.mrf.mxu0
        %v1554 = vadd.f32 %v1314, %v1553
        %1555 = vmatmul.bf16.gmra.mxu0 %v1408
        %v1556 = vpop.f32.mrf.mxu0
        %v1557 = vadd.f32 %v1314, %v1556
        %v1558 = vpop.f32.mrf.mxu0
        %v1559 = vadd.f32 %v1314, %v1558
        %1560 = vmatmul.bf16.gmra.mxu0 %v1411
        %v1561 = vpop.f32.mrf.mxu0
        %v1562 = vadd.f32 %v1314, %v1561
        %v1563 = vpop.f32.mrf.mxu0
        %v1564 = vadd.f32 %v1314, %v1563
        %1565 = vmatmul.bf16.gmra.mxu0 %v1414
        %v1566 = vpop.f32.mrf.mxu0
        %v1567 = vadd.f32 %v1314, %v1566
        %v1568 = vpop.f32.mrf.mxu0
        %v1569 = vadd.f32 %v1314, %v1568
        %1570 = vmatmul.bf16.gmra.mxu0 %v1417
        %v1571 = vpop.f32.mrf.mxu0
        %v1572 = vadd.f32 %v1314, %v1571
        %v1573 = vpop.f32.mrf.mxu0
        %v1574 = vadd.f32 %v1314, %v1573
        %1575 = vmatmul.bf16.gmra.mxu0 %v1420
        %v1576 = vpop.f32.mrf.mxu0
        %v1577 = vadd.f32 %v1314, %v1576
        %v1578 = vpop.f32.mrf.mxu0
        %v1579 = vadd.f32 %v1314, %v1578
        %1580 = vmatmul.bf16.gmra.mxu0 %v1423
        %v1581 = vpop.f32.mrf.mxu0
        %v1582 = vadd.f32 %v1314, %v1581
        %v1583 = vpop.f32.mrf.mxu0
        %v1584 = vadd.f32 %v1314, %v1583
        %1585 = vmatmul.bf16.gmra.mxu0 %v1426
        %v1586 = vpop.f32.mrf.mxu0
        %v1587 = vadd.f32 %v1314, %v1586
        %v1588 = vpop.f32.mrf.mxu0
        %v1589 = vadd.f32 %v1314, %v1588
        %1590 = vmatmul.bf16.gmra.mxu0 %v1429
        %v1591 = vpop.f32.mrf.mxu0
        %v1592 = vadd.f32 %v1314, %v1591
        %v1593 = vpop.f32.mrf.mxu0
        %v1594 = vadd.f32 %v1314, %v1593
        %1595 = vmatmul.bf16.gmra.mxu0 %v1432
        %v1596 = vpop.f32.mrf.mxu0
        %v1597 = vadd.f32 %v1314, %v1596
        %v1598 = vpop.f32.mrf.mxu0
        %v1599 = vadd.f32 %v1314, %v1598
        %1600 = vmatmul.bf16.gmra.mxu0 %v1435
        %v1601 = vpop.f32.mrf.mxu0
        %v1602 = vadd.f32 %v1314, %v1601
        %v1603 = vpop.f32.mrf.mxu0
        %v1604 = vadd.f32 %v1314, %v1603
        %1605 = vdwg.mxu0
        %v1606 = vmax.f32 %v1447, 0.0
        %v1607 = vmax.f32 %v1449, 0.0
        %v1608 = vmax.f32 %v1452, 0.0
        %v1609 = vmax.f32 %v1454, 0.0
        %v1610 = vmax.f32 %v1457, 0.0
        %v1611 = vmax.f32 %v1459, 0.0
        %v1612 = vmax.f32 %v1462, 0.0
        %v1613 = vmax.f32 %v1464, 0.0
        %v1614 = vmax.f32 %v1467, 0.0
        %v1615 = vmax.f32 %v1469, 0.0
        %v1616 = vmax.f32 %v1472, 0.0
        %v1617 = vmax.f32 %v1474, 0.0
        %v1618 = vmax.f32 %v1477, 0.0
        %v1619 = vmax.f32 %v1479, 0.0
        %v1620 = vmax.f32 %v1482, 0.0
        %v1621 = vmax.f32 %v1484, 0.0
        %v1622 = vmax.f32 %v1487, 0.0
        %v1623 = vmax.f32 %v1489, 0.0
        %v1624 = vmax.f32 %v1492, 0.0
        %v1625 = vmax.f32 %v1494, 0.0
        %v1626 = vmax.f32 %v1497, 0.0
        %v1627 = vmax.f32 %v1499, 0.0
        %v1628 = vmax.f32 %v1502, 0.0
        %v1629 = vmax.f32 %v1504, 0.0
        %v1630 = vmax.f32 %v1507, 0.0
        %v1631 = vmax.f32 %v1509, 0.0
        %v1632 = vmax.f32 %v1512, 0.0
        %v1633 = vmax.f32 %v1514, 0.0
        %v1634 = vmax.f32 %v1517, 0.0
        %v1635 = vmax.f32 %v1519, 0.0
        %v1636 = vmax.f32 %v1522, 0.0
        %v1637 = vmax.f32 %v1524, 0.0
        %v1638 = vmax.f32 %v1527, 0.0
        %v1639 = vmax.f32 %v1529, 0.0
        %v1640 = vmax.f32 %v1532, 0.0
        %v1641 = vmax.f32 %v1534, 0.0
        %v1642 = vmax.f32 %v1537, 0.0
        %v1643 = vmax.f32 %v1539, 0.0
        %v1644 = vmax.f32 %v1542, 0.0
        %v1645 = vmax.f32 %v1544, 0.0
        %v1646 = vmax.f32 %v1547, 0.0
        %v1647 = vmax.f32 %v1549, 0.0
        %v1648 = vmax.f32 %v1552, 0.0
        %v1649 = vmax.f32 %v1554, 0.0
        %v1650 = vmax.f32 %v1557, 0.0
        %v1651 = vmax.f32 %v1559, 0.0
        %v1652 = vmax.f32 %v1562, 0.0
        %v1653 = vmax.f32 %v1564, 0.0
        %v1654 = vmax.f32 %v1567, 0.0
        %v1655 = vmax.f32 %v1569, 0.0
        %v1656 = vmax.f32 %v1572, 0.0
        %v1657 = vmax.f32 %v1574, 0.0
        %v1658 = vmax.f32 %v1577, 0.0
        %v1659 = vmax.f32 %v1579, 0.0
        %v1660 = vmax.f32 %v1582, 0.0
        %v1661 = vmax.f32 %v1584, 0.0
        %v1662 = vmax.f32 %v1587, 0.0
        %v1663 = vmax.f32 %v1589, 0.0
        %v1664 = vmax.f32 %v1592, 0.0
        %v1665 = vmax.f32 %v1594, 0.0
        %v1666 = vmax.f32 %v1597, 0.0
        %v1667 = vmax.f32 %v1599, 0.0
        %v1668 = vmax.f32 %v1602, 0.0
        %v1669 = vmax.f32 %v1604, 0.0
        %v1670 = vpack.c.bf16 %v1607, %v1606
        %v1671 = vpack.c.bf16 %v1609, %v1608
        %v1672 = vpack.c.bf16 %v1611, %v1610
        %v1673 = vpack.c.bf16 %v1613, %v1612
        %v1674 = vpack.c.bf16 %v1615, %v1614
        %v1675 = vpack.c.bf16 %v1617, %v1616
        %v1676 = vpack.c.bf16 %v1619, %v1618
        %v1677 = vpack.c.bf16 %v1621, %v1620
        %v1678 = vpack.c.bf16 %v1623, %v1622
        %v1679 = vpack.c.bf16 %v1625, %v1624
        %v1680 = vpack.c.bf16 %v1627, %v1626
        %v1681 = vpack.c.bf16 %v1629, %v1628
        %v1682 = vpack.c.bf16 %v1631, %v1630
        %v1683 = vpack.c.bf16 %v1633, %v1632
        %v1684 = vpack.c.bf16 %v1635, %v1634
        %v1685 = vpack.c.bf16 %v1637, %v1636
        %v1686 = vpack.c.bf16 %v1639, %v1638
        %v1687 = vpack.c.bf16 %v1641, %v1640
        %v1688 = vpack.c.bf16 %v1643, %v1642
        %v1689 = vpack.c.bf16 %v1645, %v1644
        %v1690 = vpack.c.bf16 %v1647, %v1646
        %v1691 = vpack.c.bf16 %v1649, %v1648
        %v1692 = vpack.c.bf16 %v1651, %v1650
        %v1693 = vpack.c.bf16 %v1653, %v1652
        %v1694 = vpack.c.bf16 %v1655, %v1654
        %v1695 = vpack.c.bf16 %v1657, %v1656
        %v1696 = vpack.c.bf16 %v1659, %v1658
        %v1697 = vpack.c.bf16 %v1661, %v1660
        %v1698 = vpack.c.bf16 %v1663, %v1662
        %v1699 = vpack.c.bf16 %v1665, %v1664
        %v1700 = vpack.c.bf16 %v1667, %v1666
        %v1701 = vpack.c.bf16 %v1669, %v1668
        %s1702 = smul.u32 %s29, 64
        %v1703 = vlaneseq
        %v1704 = vshrl.u32 %v1703, 7
        %v1705 = vadd.s32 %v1704, 8
        %v1706 = vadd.s32 %v1704, 16
        %v1707 = vadd.s32 %v1704, 24
        %v1708 = vadd.s32 %v1704, 32
        %v1709 = vadd.s32 %v1704, 40
        %v1710 = vadd.s32 %v1704, 48
        %v1711 = vadd.s32 %v1704, 56
        %v1712 = vstv %s1702
        %v1713 = vadd.s32 %v1712, %v1704
        %v1714 = vadd.s32 %v1712, %v1705
        %v1715 = vadd.s32 %v1712, %v1706
        %v1716 = vadd.s32 %v1712, %v1707
        %v1717 = vadd.s32 %v1712, %v1708
        %v1718 = vadd.s32 %v1712, %v1709
        %v1719 = vadd.s32 %v1712, %v1710
        %v1720 = vadd.s32 %v1712, %v1711
        %vm1721 = vcmp.lt.s32.totalorder %v1713, 200
        %vm1722 = vcmp.lt.s32.totalorder %v1714, 200
        %vm1723 = vcmp.lt.s32.totalorder %v1715, 200
        %vm1724 = vcmp.lt.s32.totalorder %v1716, 200
        %vm1725 = vcmp.lt.s32.totalorder %v1717, 200
        %vm1726 = vcmp.lt.s32.totalorder %v1718, 200
        %vm1727 = vcmp.lt.s32.totalorder %v1719, 200
        %vm1728 = vcmp.lt.s32.totalorder %v1720, 200
        %v1729 = vld [vmem:[%s5] sm:$0xff]
        %v1730 = vld [vmem:[%s5 + $0x20] sm:$0xff]
        %v1731 = vld [vmem:[%s5 + $0x40] sm:$0xff]
        %v1732 = vld [vmem:[%s5 + $0x60] sm:$0xff]
        %v1733 = vld [vmem:[%s5 + $0x80] sm:$0xff]
        %v1734 = vld [vmem:[%s5 + $0xa0] sm:$0xff]
        %v1735 = vld [vmem:[%s5 + $0xc0] sm:$0xff]
        %v1736 = vld [vmem:[%s5 + $0xe0] sm:$0xff]
        %v1737 = vld [vmem:[%s5 + $0x100] sm:$0xff]
        %v1738 = vld [vmem:[%s5 + $0x120] sm:$0xff]
        %v1739 = vld [vmem:[%s5 + $0x140] sm:$0xff]
        %v1740 = vld [vmem:[%s5 + $0x160] sm:$0xff]
        %v1741 = vld [vmem:[%s5 + $0x180] sm:$0xff]
        %v1742 = vld [vmem:[%s5 + $0x1a0] sm:$0xff]
        %v1743 = vld [vmem:[%s5 + $0x1c0] sm:$0xff]
        %v1744 = vld [vmem:[%s5 + $0x1e0] sm:$0xff]
        %v1761 = vunpack.c.l.b16 %v1729
        %v1762 = vunpack.c.h.b16 %v1729
        %v1763 = vunpack.c.l.b16 %v1730
        %v1764 = vunpack.c.h.b16 %v1730
        %v1765 = vunpack.c.l.b16 %v1731
        %v1766 = vunpack.c.h.b16 %v1731
        %v1767 = vunpack.c.l.b16 %v1732
        %v1768 = vunpack.c.h.b16 %v1732
        %v1769 = vunpack.c.l.b16 %v1733
        %v1770 = vunpack.c.h.b16 %v1733
        %v1771 = vunpack.c.l.b16 %v1734
        %v1772 = vunpack.c.h.b16 %v1734
        %v1773 = vunpack.c.l.b16 %v1735
        %v1774 = vunpack.c.h.b16 %v1735
        %v1775 = vunpack.c.l.b16 %v1736
        %v1776 = vunpack.c.h.b16 %v1736
        %v1777 = vunpack.c.l.b16 %v1737
        %v1778 = vunpack.c.h.b16 %v1737
        %v1779 = vunpack.c.l.b16 %v1738
        %v1780 = vunpack.c.h.b16 %v1738
        %v1781 = vunpack.c.l.b16 %v1739
        %v1782 = vunpack.c.h.b16 %v1739
        %v1783 = vunpack.c.l.b16 %v1740
        %v1784 = vunpack.c.h.b16 %v1740
        %v1785 = vunpack.c.l.b16 %v1741
        %v1786 = vunpack.c.h.b16 %v1741
        %v1787 = vunpack.c.l.b16 %v1742
        %v1788 = vunpack.c.h.b16 %v1742
        %v1789 = vunpack.c.l.b16 %v1743
        %v1790 = vunpack.c.h.b16 %v1743
        %v1791 = vunpack.c.l.b16 %v1744
        %v1792 = vunpack.c.h.b16 %v1744
        %v1793 = vpack.c.b16 %v1763, %v1761
        %v1794 = vpack.c.b16 %v1764, %v1762
        %v1795 = vpack.c.b16 %v1767, %v1765
        %v1796 = vpack.c.b16 %v1768, %v1766
        %v1797 = vpack.c.b16 %v1771, %v1769
        %v1798 = vpack.c.b16 %v1772, %v1770
        %v1799 = vpack.c.b16 %v1775, %v1773
        %v1800 = vpack.c.b16 %v1776, %v1774
        %v1801 = vpack.c.b16 %v1779, %v1777
        %v1802 = vpack.c.b16 %v1780, %v1778
        %v1803 = vpack.c.b16 %v1783, %v1781
        %v1804 = vpack.c.b16 %v1784, %v1782
        %v1805 = vpack.c.b16 %v1787, %v1785
        %v1806 = vpack.c.b16 %v1788, %v1786
        %v1807 = vpack.c.b16 %v1791, %v1789
        %v1808 = vpack.c.b16 %v1792, %v1790
        %1825 = vmatpush.bf16.msra.mxu0 %v1807
        %1826 = vmatpush.bf16.msra.mxu0 %v1805
        %1827 = vmatpush.bf16.msra.mxu0 %v1803
        %1828 = vmatpush.bf16.msra.mxu0 %v1801
        %1829 = vmatpush.bf16.msra.mxu0 %v1799
        %1830 = vmatpush.bf16.msra.mxu0 %v1797
        %1831 = vmatpush.bf16.msra.mxu0 %v1795
        %1832 = vmatpush.bf16.msra.mxu0 %v1793
        %1833 = vmatmul.bf16.gmra.mxu0 %v1670
        %v1834 = vpop.f32.mrf.mxu0
        %v1835 = vadd.f32 0.0, %v1834
        %v1836 = vpop.f32.mrf.mxu0
        %v1837 = vadd.f32 0.0, %v1836
        %1838 = vmatmul.bf16.gmra.mxu0 %v1671
        %v1839 = vpop.f32.mrf.mxu0
        %v1840 = vadd.f32 0.0, %v1839
        %v1841 = vpop.f32.mrf.mxu0
        %v1842 = vadd.f32 0.0, %v1841
        %1843 = vmatmul.bf16.gmra.mxu0 %v1672
        %v1844 = vpop.f32.mrf.mxu0
        %v1845 = vadd.f32 0.0, %v1844
        %v1846 = vpop.f32.mrf.mxu0
        %v1847 = vadd.f32 0.0, %v1846
        %1848 = vmatmul.bf16.gmra.mxu0 %v1673
        %v1849 = vpop.f32.mrf.mxu0
        %v1850 = vadd.f32 0.0, %v1849
        %v1851 = vpop.f32.mrf.mxu0
        %v1852 = vadd.f32 0.0, %v1851
        %1853 = vmatmul.bf16.gmra.mxu0 %v1674
        %v1854 = vpop.f32.mrf.mxu0
        %v1855 = vadd.f32 0.0, %v1854
        %v1856 = vpop.f32.mrf.mxu0
        %v1857 = vadd.f32 0.0, %v1856
        %1858 = vmatmul.bf16.gmra.mxu0 %v1675
        %v1859 = vpop.f32.mrf.mxu0
        %v1860 = vadd.f32 0.0, %v1859
        %v1861 = vpop.f32.mrf.mxu0
        %v1862 = vadd.f32 0.0, %v1861
        %1863 = vmatmul.bf16.gmra.mxu0 %v1676
        %v1864 = vpop.f32.mrf.mxu0
        %v1865 = vadd.f32 0.0, %v1864
        %v1866 = vpop.f32.mrf.mxu0
        %v1867 = vadd.f32 0.0, %v1866
        %1868 = vmatmul.bf16.gmra.mxu0 %v1677
        %v1869 = vpop.f32.mrf.mxu0
        %v1870 = vadd.f32 0.0, %v1869
        %v1871 = vpop.f32.mrf.mxu0
        %v1872 = vadd.f32 0.0, %v1871
        %1873 = vmatmul.bf16.gmra.mxu0 %v1678
        %v1874 = vpop.f32.mrf.mxu0
        %v1875 = vadd.f32 0.0, %v1874
        %v1876 = vpop.f32.mrf.mxu0
        %v1877 = vadd.f32 0.0, %v1876
        %1878 = vmatmul.bf16.gmra.mxu0 %v1679
        %v1879 = vpop.f32.mrf.mxu0
        %v1880 = vadd.f32 0.0, %v1879
        %v1881 = vpop.f32.mrf.mxu0
        %v1882 = vadd.f32 0.0, %v1881
        %1883 = vmatmul.bf16.gmra.mxu0 %v1680
        %v1884 = vpop.f32.mrf.mxu0
        %v1885 = vadd.f32 0.0, %v1884
        %v1886 = vpop.f32.mrf.mxu0
        %v1887 = vadd.f32 0.0, %v1886
        %1888 = vmatmul.bf16.gmra.mxu0 %v1681
        %v1889 = vpop.f32.mrf.mxu0
        %v1890 = vadd.f32 0.0, %v1889
        %v1891 = vpop.f32.mrf.mxu0
        %v1892 = vadd.f32 0.0, %v1891
        %1893 = vmatmul.bf16.gmra.mxu0 %v1682
        %v1894 = vpop.f32.mrf.mxu0
        %v1895 = vadd.f32 0.0, %v1894
        %v1896 = vpop.f32.mrf.mxu0
        %v1897 = vadd.f32 0.0, %v1896
        %1898 = vmatmul.bf16.gmra.mxu0 %v1683
        %v1899 = vpop.f32.mrf.mxu0
        %v1900 = vadd.f32 0.0, %v1899
        %v1901 = vpop.f32.mrf.mxu0
        %v1902 = vadd.f32 0.0, %v1901
        %1903 = vmatmul.bf16.gmra.mxu0 %v1684
        %v1904 = vpop.f32.mrf.mxu0
        %v1905 = vadd.f32 0.0, %v1904
        %v1906 = vpop.f32.mrf.mxu0
        %v1907 = vadd.f32 0.0, %v1906
        %1908 = vmatmul.bf16.gmra.mxu0 %v1685
        %v1909 = vpop.f32.mrf.mxu0
        %v1910 = vadd.f32 0.0, %v1909
        %v1911 = vpop.f32.mrf.mxu0
        %v1912 = vadd.f32 0.0, %v1911
        %1913 = vmatmul.bf16.gmra.mxu0 %v1686
        %v1914 = vpop.f32.mrf.mxu0
        %v1915 = vadd.f32 0.0, %v1914
        %v1916 = vpop.f32.mrf.mxu0
        %v1917 = vadd.f32 0.0, %v1916
        %1918 = vmatmul.bf16.gmra.mxu0 %v1687
        %v1919 = vpop.f32.mrf.mxu0
        %v1920 = vadd.f32 0.0, %v1919
        %v1921 = vpop.f32.mrf.mxu0
        %v1922 = vadd.f32 0.0, %v1921
        %1923 = vmatmul.bf16.gmra.mxu0 %v1688
        %v1924 = vpop.f32.mrf.mxu0
        %v1925 = vadd.f32 0.0, %v1924
        %v1926 = vpop.f32.mrf.mxu0
        %v1927 = vadd.f32 0.0, %v1926
        %1928 = vmatmul.bf16.gmra.mxu0 %v1689
        %v1929 = vpop.f32.mrf.mxu0
        %v1930 = vadd.f32 0.0, %v1929
        %v1931 = vpop.f32.mrf.mxu0
        %v1932 = vadd.f32 0.0, %v1931
        %1933 = vmatmul.bf16.gmra.mxu0 %v1690
        %v1934 = vpop.f32.mrf.mxu0
        %v1935 = vadd.f32 0.0, %v1934
        %v1936 = vpop.f32.mrf.mxu0
        %v1937 = vadd.f32 0.0, %v1936
        %1938 = vmatmul.bf16.gmra.mxu0 %v1691
        %v1939 = vpop.f32.mrf.mxu0
        %v1940 = vadd.f32 0.0, %v1939
        %v1941 = vpop.f32.mrf.mxu0
        %v1942 = vadd.f32 0.0, %v1941
        %1943 = vmatmul.bf16.gmra.mxu0 %v1692
        %v1944 = vpop.f32.mrf.mxu0
        %v1945 = vadd.f32 0.0, %v1944
        %v1946 = vpop.f32.mrf.mxu0
        %v1947 = vadd.f32 0.0, %v1946
        %1948 = vmatmul.bf16.gmra.mxu0 %v1693
        %v1949 = vpop.f32.mrf.mxu0
        %v1950 = vadd.f32 0.0, %v1949
        %v1951 = vpop.f32.mrf.mxu0
        %v1952 = vadd.f32 0.0, %v1951
        %1953 = vmatmul.bf16.gmra.mxu0 %v1694
        %v1954 = vpop.f32.mrf.mxu0
        %v1955 = vadd.f32 0.0, %v1954
        %v1956 = vpop.f32.mrf.mxu0
        %v1957 = vadd.f32 0.0, %v1956
        %1958 = vmatmul.bf16.gmra.mxu0 %v1695
        %v1959 = vpop.f32.mrf.mxu0
        %v1960 = vadd.f32 0.0, %v1959
        %v1961 = vpop.f32.mrf.mxu0
        %v1962 = vadd.f32 0.0, %v1961
        %1963 = vmatmul.bf16.gmra.mxu0 %v1696
        %v1964 = vpop.f32.mrf.mxu0
        %v1965 = vadd.f32 0.0, %v1964
        %v1966 = vpop.f32.mrf.mxu0
        %v1967 = vadd.f32 0.0, %v1966
        %1968 = vmatmul.bf16.gmra.mxu0 %v1697
        %v1969 = vpop.f32.mrf.mxu0
        %v1970 = vadd.f32 0.0, %v1969
        %v1971 = vpop.f32.mrf.mxu0
        %v1972 = vadd.f32 0.0, %v1971
        %1973 = vmatmul.bf16.gmra.mxu0 %v1698
        %v1974 = vpop.f32.mrf.mxu0
        %v1975 = vadd.f32 0.0, %v1974
        %v1976 = vpop.f32.mrf.mxu0
        %v1977 = vadd.f32 0.0, %v1976
        %1978 = vmatmul.bf16.gmra.mxu0 %v1699
        %v1979 = vpop.f32.mrf.mxu0
        %v1980 = vadd.f32 0.0, %v1979
        %v1981 = vpop.f32.mrf.mxu0
        %v1982 = vadd.f32 0.0, %v1981
        %1983 = vmatmul.bf16.gmra.mxu0 %v1700
        %v1984 = vpop.f32.mrf.mxu0
        %v1985 = vadd.f32 0.0, %v1984
        %v1986 = vpop.f32.mrf.mxu0
        %v1987 = vadd.f32 0.0, %v1986
        %1988 = vmatmul.bf16.gmra.mxu0 %v1701
        %v1989 = vpop.f32.mrf.mxu0
        %v1990 = vadd.f32 0.0, %v1989
        %v1991 = vpop.f32.mrf.mxu0
        %v1992 = vadd.f32 0.0, %v1991
        %1993 = vdwg.mxu0
        %1994 = vmatpush.bf16.msra.mxu0 %v1808
        %1995 = vmatpush.bf16.msra.mxu0 %v1806
        %1996 = vmatpush.bf16.msra.mxu0 %v1804
        %1997 = vmatpush.bf16.msra.mxu0 %v1802
        %1998 = vmatpush.bf16.msra.mxu0 %v1800
        %1999 = vmatpush.bf16.msra.mxu0 %v1798
        %2000 = vmatpush.bf16.msra.mxu0 %v1796
        %2001 = vmatpush.bf16.msra.mxu0 %v1794
        %2002 = vmatmul.bf16.gmra.mxu0 %v1670
        %v2003 = vpop.f32.mrf.mxu0
        %v2004 = vadd.f32 0.0, %v2003
        %v2005 = vpop.f32.mrf.mxu0
        %v2006 = vadd.f32 0.0, %v2005
        %2007 = vmatmul.bf16.gmra.mxu0 %v1671
        %v2008 = vpop.f32.mrf.mxu0
        %v2009 = vadd.f32 0.0, %v2008
        %v2010 = vpop.f32.mrf.mxu0
        %v2011 = vadd.f32 0.0, %v2010
        %2012 = vmatmul.bf16.gmra.mxu0 %v1672
        %v2013 = vpop.f32.mrf.mxu0
        %v2014 = vadd.f32 0.0, %v2013
        %v2015 = vpop.f32.mrf.mxu0
        %v2016 = vadd.f32 0.0, %v2015
        %2017 = vmatmul.bf16.gmra.mxu0 %v1673
        %v2018 = vpop.f32.mrf.mxu0
        %v2019 = vadd.f32 0.0, %v2018
        %v2020 = vpop.f32.mrf.mxu0
        %v2021 = vadd.f32 0.0, %v2020
        %2022 = vmatmul.bf16.gmra.mxu0 %v1674
        %v2023 = vpop.f32.mrf.mxu0
        %v2024 = vadd.f32 0.0, %v2023
        %v2025 = vpop.f32.mrf.mxu0
        %v2026 = vadd.f32 0.0, %v2025
        %2027 = vmatmul.bf16.gmra.mxu0 %v1675
        %v2028 = vpop.f32.mrf.mxu0
        %v2029 = vadd.f32 0.0, %v2028
        %v2030 = vpop.f32.mrf.mxu0
        %v2031 = vadd.f32 0.0, %v2030
        %2032 = vmatmul.bf16.gmra.mxu0 %v1676
        %v2033 = vpop.f32.mrf.mxu0
        %v2034 = vadd.f32 0.0, %v2033
        %v2035 = vpop.f32.mrf.mxu0
        %v2036 = vadd.f32 0.0, %v2035
        %2037 = vmatmul.bf16.gmra.mxu0 %v1677
        %v2038 = vpop.f32.mrf.mxu0
        %v2039 = vadd.f32 0.0, %v2038
        %v2040 = vpop.f32.mrf.mxu0
        %v2041 = vadd.f32 0.0, %v2040
        %2042 = vmatmul.bf16.gmra.mxu0 %v1678
        %v2043 = vpop.f32.mrf.mxu0
        %v2044 = vadd.f32 0.0, %v2043
        %v2045 = vpop.f32.mrf.mxu0
        %v2046 = vadd.f32 0.0, %v2045
        %2047 = vmatmul.bf16.gmra.mxu0 %v1679
        %v2048 = vpop.f32.mrf.mxu0
        %v2049 = vadd.f32 0.0, %v2048
        %v2050 = vpop.f32.mrf.mxu0
        %v2051 = vadd.f32 0.0, %v2050
        %2052 = vmatmul.bf16.gmra.mxu0 %v1680
        %v2053 = vpop.f32.mrf.mxu0
        %v2054 = vadd.f32 0.0, %v2053
        %v2055 = vpop.f32.mrf.mxu0
        %v2056 = vadd.f32 0.0, %v2055
        %2057 = vmatmul.bf16.gmra.mxu0 %v1681
        %v2058 = vpop.f32.mrf.mxu0
        %v2059 = vadd.f32 0.0, %v2058
        %v2060 = vpop.f32.mrf.mxu0
        %v2061 = vadd.f32 0.0, %v2060
        %2062 = vmatmul.bf16.gmra.mxu0 %v1682
        %v2063 = vpop.f32.mrf.mxu0
        %v2064 = vadd.f32 0.0, %v2063
        %v2065 = vpop.f32.mrf.mxu0
        %v2066 = vadd.f32 0.0, %v2065
        %2067 = vmatmul.bf16.gmra.mxu0 %v1683
        %v2068 = vpop.f32.mrf.mxu0
        %v2069 = vadd.f32 0.0, %v2068
        %v2070 = vpop.f32.mrf.mxu0
        %v2071 = vadd.f32 0.0, %v2070
        %2072 = vmatmul.bf16.gmra.mxu0 %v1684
        %v2073 = vpop.f32.mrf.mxu0
        %v2074 = vadd.f32 0.0, %v2073
        %v2075 = vpop.f32.mrf.mxu0
        %v2076 = vadd.f32 0.0, %v2075
        %2077 = vmatmul.bf16.gmra.mxu0 %v1685
        %v2078 = vpop.f32.mrf.mxu0
        %v2079 = vadd.f32 0.0, %v2078
        %v2080 = vpop.f32.mrf.mxu0
        %v2081 = vadd.f32 0.0, %v2080
        %2082 = vmatmul.bf16.gmra.mxu0 %v1686
        %v2083 = vpop.f32.mrf.mxu0
        %v2084 = vadd.f32 0.0, %v2083
        %v2085 = vpop.f32.mrf.mxu0
        %v2086 = vadd.f32 0.0, %v2085
        %2087 = vmatmul.bf16.gmra.mxu0 %v1687
        %v2088 = vpop.f32.mrf.mxu0
        %v2089 = vadd.f32 0.0, %v2088
        %v2090 = vpop.f32.mrf.mxu0
        %v2091 = vadd.f32 0.0, %v2090
        %2092 = vmatmul.bf16.gmra.mxu0 %v1688
        %v2093 = vpop.f32.mrf.mxu0
        %v2094 = vadd.f32 0.0, %v2093
        %v2095 = vpop.f32.mrf.mxu0
        %v2096 = vadd.f32 0.0, %v2095
        %2097 = vmatmul.bf16.gmra.mxu0 %v1689
        %v2098 = vpop.f32.mrf.mxu0
        %v2099 = vadd.f32 0.0, %v2098
        %v2100 = vpop.f32.mrf.mxu0
        %v2101 = vadd.f32 0.0, %v2100
        %2102 = vmatmul.bf16.gmra.mxu0 %v1690
        %v2103 = vpop.f32.mrf.mxu0
        %v2104 = vadd.f32 0.0, %v2103
        %v2105 = vpop.f32.mrf.mxu0
        %v2106 = vadd.f32 0.0, %v2105
        %2107 = vmatmul.bf16.gmra.mxu0 %v1691
        %v2108 = vpop.f32.mrf.mxu0
        %v2109 = vadd.f32 0.0, %v2108
        %v2110 = vpop.f32.mrf.mxu0
        %v2111 = vadd.f32 0.0, %v2110
        %2112 = vmatmul.bf16.gmra.mxu0 %v1692
        %v2113 = vpop.f32.mrf.mxu0
        %v2114 = vadd.f32 0.0, %v2113
        %v2115 = vpop.f32.mrf.mxu0
        %v2116 = vadd.f32 0.0, %v2115
        %2117 = vmatmul.bf16.gmra.mxu0 %v1693
        %v2118 = vpop.f32.mrf.mxu0
        %v2119 = vadd.f32 0.0, %v2118
        %v2120 = vpop.f32.mrf.mxu0
        %v2121 = vadd.f32 0.0, %v2120
        %2122 = vmatmul.bf16.gmra.mxu0 %v1694
        %v2123 = vpop.f32.mrf.mxu0
        %v2124 = vadd.f32 0.0, %v2123
        %v2125 = vpop.f32.mrf.mxu0
        %v2126 = vadd.f32 0.0, %v2125
        %2127 = vmatmul.bf16.gmra.mxu0 %v1695
        %v2128 = vpop.f32.mrf.mxu0
        %v2129 = vadd.f32 0.0, %v2128
        %v2130 = vpop.f32.mrf.mxu0
        %v2131 = vadd.f32 0.0, %v2130
        %2132 = vmatmul.bf16.gmra.mxu0 %v1696
        %v2133 = vpop.f32.mrf.mxu0
        %v2134 = vadd.f32 0.0, %v2133
        %v2135 = vpop.f32.mrf.mxu0
        %v2136 = vadd.f32 0.0, %v2135
        %2137 = vmatmul.bf16.gmra.mxu0 %v1697
        %v2138 = vpop.f32.mrf.mxu0
        %v2139 = vadd.f32 0.0, %v2138
        %v2140 = vpop.f32.mrf.mxu0
        %v2141 = vadd.f32 0.0, %v2140
        %2142 = vmatmul.bf16.gmra.mxu0 %v1698
        %v2143 = vpop.f32.mrf.mxu0
        %v2144 = vadd.f32 0.0, %v2143
        %v2145 = vpop.f32.mrf.mxu0
        %v2146 = vadd.f32 0.0, %v2145
        %2147 = vmatmul.bf16.gmra.mxu0 %v1699
        %v2148 = vpop.f32.mrf.mxu0
        %v2149 = vadd.f32 0.0, %v2148
        %v2150 = vpop.f32.mrf.mxu0
        %v2151 = vadd.f32 0.0, %v2150
        %2152 = vmatmul.bf16.gmra.mxu0 %v1700
        %v2153 = vpop.f32.mrf.mxu0
        %v2154 = vadd.f32 0.0, %v2153
        %v2155 = vpop.f32.mrf.mxu0
        %v2156 = vadd.f32 0.0, %v2155
        %2157 = vmatmul.bf16.gmra.mxu0 %v1701
        %v2158 = vpop.f32.mrf.mxu0
        %v2159 = vadd.f32 0.0, %v2158
        %v2160 = vpop.f32.mrf.mxu0
        %v2161 = vadd.f32 0.0, %v2160
        %2162 = vdwg.mxu0
        %p2163 = scmp.ne.s32.totalorder %s29, 3
        // Predicated region
        $region129: #{get_transform_forward.1} parent=119 // pred_check
          %p2164 = pneg %p2163
        $region130: #{get_transform_forward.1} parent=119 // pred_check_branch
          %2166 = sbr.rel (%p2164) target = $region132
        $region131: #{get_transform_forward.1} parent=119 // pred_region
          %v2167 = vld [vmem:[#allocation2] sm:$0xff]
          %v2168 = vld [vmem:[#allocation2 + $0x8] sm:$0xff]
          %v2169 = vmax.f32 %v1835, %v1837
          %v2170 = vmax.f32 %v2169, %v1840
          %v2171 = vmax.f32 %v2170, %v1842
          %v2172 = vmax.f32 %v2171, %v1845
          %v2173 = vmax.f32 %v2172, %v1847
          %v2174 = vmax.f32 %v2173, %v1850
          %v2175 = vmax.f32 %v2174, %v1852
          %v2176 = vrot.slane %v2175, 4
          %v2177 = vmax.f32 %v2175, %v2176
          %v2178 = vrot.slane %v2177, 2
          %v2179 = vmax.f32 %v2177, %v2178
          %v2180 = vrot.slane %v2179, 1
          %v2181 = vmax.f32 %v2179, %v2180
          %v2182 = vmax.f32 %v2004, %v2006
          %v2183 = vmax.f32 %v2182, %v2009
          %v2184 = vmax.f32 %v2183, %v2011
          %v2185 = vmax.f32 %v2184, %v2014
          %v2186 = vmax.f32 %v2185, %v2016
          %v2187 = vmax.f32 %v2186, %v2019
          %v2188 = vmax.f32 %v2187, %v2021
          %v2189 = vrot.slane %v2188, 4
          %v2190 = vmax.f32 %v2188, %v2189
          %v2191 = vrot.slane %v2190, 2
          %v2192 = vmax.f32 %v2190, %v2191
          %v2193 = vrot.slane %v2192, 1
          %v2194 = vmax.f32 %v2192, %v2193
          %v2195 = vmax.f32 %v1855, %v1857
          %v2196 = vmax.f32 %v2195, %v1860
          %v2197 = vmax.f32 %v2196, %v1862
          %v2198 = vmax.f32 %v2197, %v1865
          %v2199 = vmax.f32 %v2198, %v1867
          %v2200 = vmax.f32 %v2199, %v1870
          %v2201 = vmax.f32 %v2200, %v1872
          %v2202 = vrot.slane %v2201, 4
          %v2203 = vmax.f32 %v2201, %v2202
          %v2204 = vrot.slane %v2203, 2
          %v2205 = vmax.f32 %v2203, %v2204
          %v2206 = vrot.slane %v2205, 1
          %v2207 = vmax.f32 %v2205, %v2206
          %v2208 = vmax.f32 %v2024, %v2026
          %v2209 = vmax.f32 %v2208, %v2029
          %v2210 = vmax.f32 %v2209, %v2031
          %v2211 = vmax.f32 %v2210, %v2034
          %v2212 = vmax.f32 %v2211, %v2036
          %v2213 = vmax.f32 %v2212, %v2039
          %v2214 = vmax.f32 %v2213, %v2041
          %v2215 = vrot.slane %v2214, 4
          %v2216 = vmax.f32 %v2214, %v2215
          %v2217 = vrot.slane %v2216, 2
          %v2218 = vmax.f32 %v2216, %v2217
          %v2219 = vrot.slane %v2218, 1
          %v2220 = vmax.f32 %v2218, %v2219
          %v2221 = vmax.f32 %v1875, %v1877
          %v2222 = vmax.f32 %v2221, %v1880
          %v2223 = vmax.f32 %v2222, %v1882
          %v2224 = vmax.f32 %v2223, %v1885
          %v2225 = vmax.f32 %v2224, %v1887
          %v2226 = vmax.f32 %v2225, %v1890
          %v2227 = vmax.f32 %v2226, %v1892
          %v2228 = vrot.slane %v2227, 4
          %v2229 = vmax.f32 %v2227, %v2228
          %v2230 = vrot.slane %v2229, 2
          %v2231 = vmax.f32 %v2229, %v2230
          %v2232 = vrot.slane %v2231, 1
          %v2233 = vmax.f32 %v2231, %v2232
          %v2234 = vmax.f32 %v2044, %v2046
          %v2235 = vmax.f32 %v2234, %v2049
          %v2236 = vmax.f32 %v2235, %v2051
          %v2237 = vmax.f32 %v2236, %v2054
          %v2238 = vmax.f32 %v2237, %v2056
          %v2239 = vmax.f32 %v2238, %v2059
          %v2240 = vmax.f32 %v2239, %v2061
          %v2241 = vrot.slane %v2240, 4
          %v2242 = vmax.f32 %v2240, %v2241
          %v2243 = vrot.slane %v2242, 2
          %v2244 = vmax.f32 %v2242, %v2243
          %v2245 = vrot.slane %v2244, 1
          %v2246 = vmax.f32 %v2244, %v2245
          %v2247 = vmax.f32 %v1895, %v1897
          %v2248 = vmax.f32 %v2247, %v1900
          %v2249 = vmax.f32 %v2248, %v1902
          %v2250 = vmax.f32 %v2249, %v1905
          %v2251 = vmax.f32 %v2250, %v1907
          %v2252 = vmax.f32 %v2251, %v1910
          %v2253 = vmax.f32 %v2252, %v1912
          %v2254 = vrot.slane %v2253, 4
          %v2255 = vmax.f32 %v2253, %v2254
          %v2256 = vrot.slane %v2255, 2
          %v2257 = vmax.f32 %v2255, %v2256
          %v2258 = vrot.slane %v2257, 1
          %v2259 = vmax.f32 %v2257, %v2258
          %v2260 = vmax.f32 %v2064, %v2066
          %v2261 = vmax.f32 %v2260, %v2069
          %v2262 = vmax.f32 %v2261, %v2071
          %v2263 = vmax.f32 %v2262, %v2074
          %v2264 = vmax.f32 %v2263, %v2076
          %v2265 = vmax.f32 %v2264, %v2079
          %v2266 = vmax.f32 %v2265, %v2081
          %v2267 = vrot.slane %v2266, 4
          %v2268 = vmax.f32 %v2266, %v2267
          %v2269 = vrot.slane %v2268, 2
          %v2270 = vmax.f32 %v2268, %v2269
          %v2271 = vrot.slane %v2270, 1
          %v2272 = vmax.f32 %v2270, %v2271
          %v2273 = vmax.f32 %v1915, %v1917
          %v2274 = vmax.f32 %v2273, %v1920
          %v2275 = vmax.f32 %v2274, %v1922
          %v2276 = vmax.f32 %v2275, %v1925
          %v2277 = vmax.f32 %v2276, %v1927
          %v2278 = vmax.f32 %v2277, %v1930
          %v2279 = vmax.f32 %v2278, %v1932
          %v2280 = vrot.slane %v2279, 4
          %v2281 = vmax.f32 %v2279, %v2280
          %v2282 = vrot.slane %v2281, 2
          %v2283 = vmax.f32 %v2281, %v2282
          %v2284 = vrot.slane %v2283, 1
          %v2285 = vmax.f32 %v2283, %v2284
          %v2286 = vmax.f32 %v2084, %v2086
          %v2287 = vmax.f32 %v2286, %v2089
          %v2288 = vmax.f32 %v2287, %v2091
          %v2289 = vmax.f32 %v2288, %v2094
          %v2290 = vmax.f32 %v2289, %v2096
          %v2291 = vmax.f32 %v2290, %v2099
          %v2292 = vmax.f32 %v2291, %v2101
          %v2293 = vrot.slane %v2292, 4
          %v2294 = vmax.f32 %v2292, %v2293
          %v2295 = vrot.slane %v2294, 2
          %v2296 = vmax.f32 %v2294, %v2295
          %v2297 = vrot.slane %v2296, 1
          %v2298 = vmax.f32 %v2296, %v2297
          %v2299 = vmax.f32 %v1935, %v1937
          %v2300 = vmax.f32 %v2299, %v1940
          %v2301 = vmax.f32 %v2300, %v1942
          %v2302 = vmax.f32 %v2301, %v1945
          %v2303 = vmax.f32 %v2302, %v1947
          %v2304 = vmax.f32 %v2303, %v1950
          %v2305 = vmax.f32 %v2304, %v1952
          %v2306 = vrot.slane %v2305, 4
          %v2307 = vmax.f32 %v2305, %v2306
          %v2308 = vrot.slane %v2307, 2
          %v2309 = vmax.f32 %v2307, %v2308
          %v2310 = vrot.slane %v2309, 1
          %v2311 = vmax.f32 %v2309, %v2310
          %v2312 = vmax.f32 %v2104, %v2106
          %v2313 = vmax.f32 %v2312, %v2109
          %v2314 = vmax.f32 %v2313, %v2111
          %v2315 = vmax.f32 %v2314, %v2114
          %v2316 = vmax.f32 %v2315, %v2116
          %v2317 = vmax.f32 %v2316, %v2119
          %v2318 = vmax.f32 %v2317, %v2121
          %v2319 = vrot.slane %v2318, 4
          %v2320 = vmax.f32 %v2318, %v2319
          %v2321 = vrot.slane %v2320, 2
          %v2322 = vmax.f32 %v2320, %v2321
          %v2323 = vrot.slane %v2322, 1
          %v2324 = vmax.f32 %v2322, %v2323
          %v2325 = vmax.f32 %v1955, %v1957
          %v2326 = vmax.f32 %v2325, %v1960
          %v2327 = vmax.f32 %v2326, %v1962
          %v2328 = vmax.f32 %v2327, %v1965
          %v2329 = vmax.f32 %v2328, %v1967
          %v2330 = vmax.f32 %v2329, %v1970
          %v2331 = vmax.f32 %v2330, %v1972
          %v2332 = vrot.slane %v2331, 4
          %v2333 = vmax.f32 %v2331, %v2332
          %v2334 = vrot.slane %v2333, 2
          %v2335 = vmax.f32 %v2333, %v2334
          %v2336 = vrot.slane %v2335, 1
          %v2337 = vmax.f32 %v2335, %v2336
          %v2338 = vmax.f32 %v2124, %v2126
          %v2339 = vmax.f32 %v2338, %v2129
          %v2340 = vmax.f32 %v2339, %v2131
          %v2341 = vmax.f32 %v2340, %v2134
          %v2342 = vmax.f32 %v2341, %v2136
          %v2343 = vmax.f32 %v2342, %v2139
          %v2344 = vmax.f32 %v2343, %v2141
          %v2345 = vrot.slane %v2344, 4
          %v2346 = vmax.f32 %v2344, %v2345
          %v2347 = vrot.slane %v2346, 2
          %v2348 = vmax.f32 %v2346, %v2347
          %v2349 = vrot.slane %v2348, 1
          %v2350 = vmax.f32 %v2348, %v2349
          %v2351 = vmax.f32 %v1975, %v1977
          %v2352 = vmax.f32 %v2351, %v1980
          %v2353 = vmax.f32 %v2352, %v1982
          %v2354 = vmax.f32 %v2353, %v1985
          %v2355 = vmax.f32 %v2354, %v1987
          %v2356 = vmax.f32 %v2355, %v1990
          %v2357 = vmax.f32 %v2356, %v1992
          %v2358 = vrot.slane %v2357, 4
          %v2359 = vmax.f32 %v2357, %v2358
          %v2360 = vrot.slane %v2359, 2
          %v2361 = vmax.f32 %v2359, %v2360
          %v2362 = vrot.slane %v2361, 1
          %v2363 = vmax.f32 %v2361, %v2362
          %v2364 = vmax.f32 %v2144, %v2146
          %v2365 = vmax.f32 %v2364, %v2149
          %v2366 = vmax.f32 %v2365, %v2151
          %v2367 = vmax.f32 %v2366, %v2154
          %v2368 = vmax.f32 %v2367, %v2156
          %v2369 = vmax.f32 %v2368, %v2159
          %v2370 = vmax.f32 %v2369, %v2161
          %v2371 = vrot.slane %v2370, 4
          %v2372 = vmax.f32 %v2370, %v2371
          %v2373 = vrot.slane %v2372, 2
          %v2374 = vmax.f32 %v2372, %v2373
          %v2375 = vrot.slane %v2374, 1
          %v2376 = vmax.f32 %v2374, %v2375
          %vm2393 = vcmask 1041409
          %v2394 = vsel %vm2393, %v2207, %v2181
          %vm2395 = vcmask 1042434
          %v2396 = vsel %vm2395, %v2233, %v2394
          %vm2397 = vcmask 1043459
          %v2398 = vsel %vm2397, %v2259, %v2396
          %vm2399 = vcmask 1044484
          %v2400 = vsel %vm2399, %v2285, %v2398
          %vm2401 = vcmask 1045509
          %v2402 = vsel %vm2401, %v2311, %v2400
          %vm2403 = vcmask 1046534
          %v2404 = vsel %vm2403, %v2337, %v2402
          %vm2405 = vcmask 1047559
          %v2406 = vsel %vm2405, %v2363, %v2404
          %v2407 = vsel %vm2393, %v2220, %v2194
          %v2408 = vsel %vm2395, %v2246, %v2407
          %v2409 = vsel %vm2397, %v2272, %v2408
          %v2410 = vsel %vm2399, %v2298, %v2409
          %v2411 = vsel %vm2401, %v2324, %v2410
          %v2412 = vsel %vm2403, %v2350, %v2411
          %v2413 = vsel %vm2405, %v2376, %v2412
          %v2416 = vmax.f32 %v2167, %v2406
          %v2417 = vmax.f32 %v2168, %v2413
          %2418 = vst [vmem:[#allocation2] sm:$0xff] %v2416
          %2419 = vst [vmem:[#allocation2 + $0x8] sm:$0xff] %v2417
        $region132: #{get_transform_forward.1} parent=119 // pred_fallthru
          _
        %p2420 = scmp.eq.s32.totalorder %s29, 3
        // Predicated region
        $region133: #{get_transform_forward.1} parent=119 // pred_check
          %p2421 = pneg %p2420
        $region134: #{get_transform_forward.1} parent=119 // pred_check_branch
          %2423 = sbr.rel (%p2421) target = $region136
        $region135: #{get_transform_forward.1} parent=119 // pred_region
          %v2424 = vsel %vm1721, 1, 0
          %v2425 = vsel %vm1722, 1, 0
          %v2426 = vsel %vm1723, 1, 0
          %v2427 = vsel %vm1724, 1, 0
          %v2428 = vsel %vm1725, 1, 0
          %v2429 = vsel %vm1726, 1, 0
          %v2430 = vsel %vm1727, 1, 0
          %v2431 = vsel %vm1728, 1, 0
          %vm2432 = vcmp.eq.s32.totalorder %v2424, 1
          %vm2433 = vcmp.eq.s32.totalorder %v2425, 1
          %vm2434 = vcmp.eq.s32.totalorder %v2426, 1
          %vm2435 = vcmp.eq.s32.totalorder %v2427, 1
          %vm2436 = vcmp.eq.s32.totalorder %v2428, 1
          %vm2437 = vcmp.eq.s32.totalorder %v2429, 1
          %vm2438 = vcmp.eq.s32.totalorder %v2430, 1
          %vm2439 = vcmp.eq.s32.totalorder %v2431, 1
          %v2440 = vsel %vm2432, %v1835, -inf
          %v2441 = vsel %vm2432, %v2004, -inf
          %v2442 = vsel %vm2433, %v1837, -inf
          %v2443 = vsel %vm2433, %v2006, -inf
          %v2444 = vsel %vm2434, %v1840, -inf
          %v2445 = vsel %vm2434, %v2009, -inf
          %v2446 = vsel %vm2435, %v1842, -inf
          %v2447 = vsel %vm2435, %v2011, -inf
          %v2448 = vsel %vm2436, %v1845, -inf
          %v2449 = vsel %vm2436, %v2014, -inf
          %v2450 = vsel %vm2437, %v1847, -inf
          %v2451 = vsel %vm2437, %v2016, -inf
          %v2452 = vsel %vm2438, %v1850, -inf
          %v2453 = vsel %vm2438, %v2019, -inf
          %v2454 = vsel %vm2439, %v1852, -inf
          %v2455 = vsel %vm2439, %v2021, -inf
          %v2456 = vsel %vm2432, %v1855, -inf
          %v2457 = vsel %vm2432, %v2024, -inf
          %v2458 = vsel %vm2433, %v1857, -inf
          %v2459 = vsel %vm2433, %v2026, -inf
          %v2460 = vsel %vm2434, %v1860, -inf
          %v2461 = vsel %vm2434, %v2029, -inf
          %v2462 = vsel %vm2435, %v1862, -inf
          %v2463 = vsel %vm2435, %v2031, -inf
          %v2464 = vsel %vm2436, %v1865, -inf
          %v2465 = vsel %vm2436, %v2034, -inf
          %v2466 = vsel %vm2437, %v1867, -inf
          %v2467 = vsel %vm2437, %v2036, -inf
          %v2468 = vsel %vm2438, %v1870, -inf
          %v2469 = vsel %vm2438, %v2039, -inf
          %v2470 = vsel %vm2439, %v1872, -inf
          %v2471 = vsel %vm2439, %v2041, -inf
          %v2472 = vsel %vm2432, %v1875, -inf
          %v2473 = vsel %vm2432, %v2044, -inf
          %v2474 = vsel %vm2433, %v1877, -inf
          %v2475 = vsel %vm2433, %v2046, -inf
          %v2476 = vsel %vm2434, %v1880, -inf
          %v2477 = vsel %vm2434, %v2049, -inf
          %v2478 = vsel %vm2435, %v1882, -inf
          %v2479 = vsel %vm2435, %v2051, -inf
          %v2480 = vsel %vm2436, %v1885, -inf
          %v2481 = vsel %vm2436, %v2054, -inf
          %v2482 = vsel %vm2437, %v1887, -inf
          %v2483 = vsel %vm2437, %v2056, -inf
          %v2484 = vsel %vm2438, %v1890, -inf
          %v2485 = vsel %vm2438, %v2059, -inf
          %v2486 = vsel %vm2439, %v1892, -inf
          %v2487 = vsel %vm2439, %v2061, -inf
          %v2488 = vsel %vm2432, %v1895, -inf
          %v2489 = vsel %vm2432, %v2064, -inf
          %v2490 = vsel %vm2433, %v1897, -inf
          %v2491 = vsel %vm2433, %v2066, -inf
          %v2492 = vsel %vm2434, %v1900, -inf
          %v2493 = vsel %vm2434, %v2069, -inf
          %v2494 = vsel %vm2435, %v1902, -inf
          %v2495 = vsel %vm2435, %v2071, -inf
          %v2496 = vsel %vm2436, %v1905, -inf
          %v2497 = vsel %vm2436, %v2074, -inf
          %v2498 = vsel %vm2437, %v1907, -inf
          %v2499 = vsel %vm2437, %v2076, -inf
          %v2500 = vsel %vm2438, %v1910, -inf
          %v2501 = vsel %vm2438, %v2079, -inf
          %v2502 = vsel %vm2439, %v1912, -inf
          %v2503 = vsel %vm2439, %v2081, -inf
          %v2504 = vsel %vm2432, %v1915, -inf
          %v2505 = vsel %vm2432, %v2084, -inf
          %v2506 = vsel %vm2433, %v1917, -inf
          %v2507 = vsel %vm2433, %v2086, -inf
          %v2508 = vsel %vm2434, %v1920, -inf
          %v2509 = vsel %vm2434, %v2089, -inf
          %v2510 = vsel %vm2435, %v1922, -inf
          %v2511 = vsel %vm2435, %v2091, -inf
          %v2512 = vsel %vm2436, %v1925, -inf
          %v2513 = vsel %vm2436, %v2094, -inf
          %v2514 = vsel %vm2437, %v1927, -inf
          %v2515 = vsel %vm2437, %v2096, -inf
          %v2516 = vsel %vm2438, %v1930, -inf
          %v2517 = vsel %vm2438, %v2099, -inf
          %v2518 = vsel %vm2439, %v1932, -inf
          %v2519 = vsel %vm2439, %v2101, -inf
          %v2520 = vsel %vm2432, %v1935, -inf
          %v2521 = vsel %vm2432, %v2104, -inf
          %v2522 = vsel %vm2433, %v1937, -inf
          %v2523 = vsel %vm2433, %v2106, -inf
          %v2524 = vsel %vm2434, %v1940, -inf
          %v2525 = vsel %vm2434, %v2109, -inf
          %v2526 = vsel %vm2435, %v1942, -inf
          %v2527 = vsel %vm2435, %v2111, -inf
          %v2528 = vsel %vm2436, %v1945, -inf
          %v2529 = vsel %vm2436, %v2114, -inf
          %v2530 = vsel %vm2437, %v1947, -inf
          %v2531 = vsel %vm2437, %v2116, -inf
          %v2532 = vsel %vm2438, %v1950, -inf
          %v2533 = vsel %vm2438, %v2119, -inf
          %v2534 = vsel %vm2439, %v1952, -inf
          %v2535 = vsel %vm2439, %v2121, -inf
          %v2536 = vsel %vm2432, %v1955, -inf
          %v2537 = vsel %vm2432, %v2124, -inf
          %v2538 = vsel %vm2433, %v1957, -inf
          %v2539 = vsel %vm2433, %v2126, -inf
          %v2540 = vsel %vm2434, %v1960, -inf
          %v2541 = vsel %vm2434, %v2129, -inf
          %v2542 = vsel %vm2435, %v1962, -inf
          %v2543 = vsel %vm2435, %v2131, -inf
          %v2544 = vsel %vm2436, %v1965, -inf
          %v2545 = vsel %vm2436, %v2134, -inf
          %v2546 = vsel %vm2437, %v1967, -inf
          %v2547 = vsel %vm2437, %v2136, -inf
          %v2548 = vsel %vm2438, %v1970, -inf
          %v2549 = vsel %vm2438, %v2139, -inf
          %v2550 = vsel %vm2439, %v1972, -inf
          %v2551 = vsel %vm2439, %v2141, -inf
          %v2552 = vsel %vm2432, %v1975, -inf
          %v2553 = vsel %vm2432, %v2144, -inf
          %v2554 = vsel %vm2433, %v1977, -inf
          %v2555 = vsel %vm2433, %v2146, -inf
          %v2556 = vsel %vm2434, %v1980, -inf
          %v2557 = vsel %vm2434, %v2149, -inf
          %v2558 = vsel %vm2435, %v1982, -inf
          %v2559 = vsel %vm2435, %v2151, -inf
          %v2560 = vsel %vm2436, %v1985, -inf
          %v2561 = vsel %vm2436, %v2154, -inf
          %v2562 = vsel %vm2437, %v1987, -inf
          %v2563 = vsel %vm2437, %v2156, -inf
          %v2564 = vsel %vm2438, %v1990, -inf
          %v2565 = vsel %vm2438, %v2159, -inf
          %v2566 = vsel %vm2439, %v1992, -inf
          %v2567 = vsel %vm2439, %v2161, -inf
          %v2568 = vld [vmem:[#allocation2] sm:$0xff]
          %v2569 = vld [vmem:[#allocation2 + $0x8] sm:$0xff]
          %v2570 = vmax.f32 %v2440, %v2442
          %v2571 = vmax.f32 %v2570, %v2444
          %v2572 = vmax.f32 %v2571, %v2446
          %v2573 = vmax.f32 %v2572, %v2448
          %v2574 = vmax.f32 %v2573, %v2450
          %v2575 = vmax.f32 %v2574, %v2452
          %v2576 = vmax.f32 %v2575, %v2454
          %v2577 = vrot.slane %v2576, 4
          %v2578 = vmax.f32 %v2576, %v2577
          %v2579 = vrot.slane %v2578, 2
          %v2580 = vmax.f32 %v2578, %v2579
          %v2581 = vrot.slane %v2580, 1
          %v2582 = vmax.f32 %v2580, %v2581
          %v2583 = vmax.f32 %v2441, %v2443
          %v2584 = vmax.f32 %v2583, %v2445
          %v2585 = vmax.f32 %v2584, %v2447
          %v2586 = vmax.f32 %v2585, %v2449
          %v2587 = vmax.f32 %v2586, %v2451
          %v2588 = vmax.f32 %v2587, %v2453
          %v2589 = vmax.f32 %v2588, %v2455
          %v2590 = vrot.slane %v2589, 4
          %v2591 = vmax.f32 %v2589, %v2590
          %v2592 = vrot.slane %v2591, 2
          %v2593 = vmax.f32 %v2591, %v2592
          %v2594 = vrot.slane %v2593, 1
          %v2595 = vmax.f32 %v2593, %v2594
          %v2596 = vmax.f32 %v2456, %v2458
          %v2597 = vmax.f32 %v2596, %v2460
          %v2598 = vmax.f32 %v2597, %v2462
          %v2599 = vmax.f32 %v2598, %v2464
          %v2600 = vmax.f32 %v2599, %v2466
          %v2601 = vmax.f32 %v2600, %v2468
          %v2602 = vmax.f32 %v2601, %v2470
          %v2603 = vrot.slane %v2602, 4
          %v2604 = vmax.f32 %v2602, %v2603
          %v2605 = vrot.slane %v2604, 2
          %v2606 = vmax.f32 %v2604, %v2605
          %v2607 = vrot.slane %v2606, 1
          %v2608 = vmax.f32 %v2606, %v2607
          %v2609 = vmax.f32 %v2457, %v2459
          %v2610 = vmax.f32 %v2609, %v2461
          %v2611 = vmax.f32 %v2610, %v2463
          %v2612 = vmax.f32 %v2611, %v2465
          %v2613 = vmax.f32 %v2612, %v2467
          %v2614 = vmax.f32 %v2613, %v2469
          %v2615 = vmax.f32 %v2614, %v2471
          %v2616 = vrot.slane %v2615, 4
          %v2617 = vmax.f32 %v2615, %v2616
          %v2618 = vrot.slane %v2617, 2
          %v2619 = vmax.f32 %v2617, %v2618
          %v2620 = vrot.slane %v2619, 1
          %v2621 = vmax.f32 %v2619, %v2620
          %v2622 = vmax.f32 %v2472, %v2474
          %v2623 = vmax.f32 %v2622, %v2476
          %v2624 = vmax.f32 %v2623, %v2478
          %v2625 = vmax.f32 %v2624, %v2480
          %v2626 = vmax.f32 %v2625, %v2482
          %v2627 = vmax.f32 %v2626, %v2484
          %v2628 = vmax.f32 %v2627, %v2486
          %v2629 = vrot.slane %v2628, 4
          %v2630 = vmax.f32 %v2628, %v2629
          %v2631 = vrot.slane %v2630, 2
          %v2632 = vmax.f32 %v2630, %v2631
          %v2633 = vrot.slane %v2632, 1
          %v2634 = vmax.f32 %v2632, %v2633
          %v2635 = vmax.f32 %v2473, %v2475
          %v2636 = vmax.f32 %v2635, %v2477
          %v2637 = vmax.f32 %v2636, %v2479
          %v2638 = vmax.f32 %v2637, %v2481
          %v2639 = vmax.f32 %v2638, %v2483
          %v2640 = vmax.f32 %v2639, %v2485
          %v2641 = vmax.f32 %v2640, %v2487
          %v2642 = vrot.slane %v2641, 4
          %v2643 = vmax.f32 %v2641, %v2642
          %v2644 = vrot.slane %v2643, 2
          %v2645 = vmax.f32 %v2643, %v2644
          %v2646 = vrot.slane %v2645, 1
          %v2647 = vmax.f32 %v2645, %v2646
          %v2648 = vmax.f32 %v2488, %v2490
          %v2649 = vmax.f32 %v2648, %v2492
          %v2650 = vmax.f32 %v2649, %v2494
          %v2651 = vmax.f32 %v2650, %v2496
          %v2652 = vmax.f32 %v2651, %v2498
          %v2653 = vmax.f32 %v2652, %v2500
          %v2654 = vmax.f32 %v2653, %v2502
          %v2655 = vrot.slane %v2654, 4
          %v2656 = vmax.f32 %v2654, %v2655
          %v2657 = vrot.slane %v2656, 2
          %v2658 = vmax.f32 %v2656, %v2657
          %v2659 = vrot.slane %v2658, 1
          %v2660 = vmax.f32 %v2658, %v2659
          %v2661 = vmax.f32 %v2489, %v2491
          %v2662 = vmax.f32 %v2661, %v2493
          %v2663 = vmax.f32 %v2662, %v2495
          %v2664 = vmax.f32 %v2663, %v2497
          %v2665 = vmax.f32 %v2664, %v2499
          %v2666 = vmax.f32 %v2665, %v2501
          %v2667 = vmax.f32 %v2666, %v2503
          %v2668 = vrot.slane %v2667, 4
          %v2669 = vmax.f32 %v2667, %v2668
          %v2670 = vrot.slane %v2669, 2
          %v2671 = vmax.f32 %v2669, %v2670
          %v2672 = vrot.slane %v2671, 1
          %v2673 = vmax.f32 %v2671, %v2672
          %v2674 = vmax.f32 %v2504, %v2506
          %v2675 = vmax.f32 %v2674, %v2508
          %v2676 = vmax.f32 %v2675, %v2510
          %v2677 = vmax.f32 %v2676, %v2512
          %v2678 = vmax.f32 %v2677, %v2514
          %v2679 = vmax.f32 %v2678, %v2516
          %v2680 = vmax.f32 %v2679, %v2518
          %v2681 = vrot.slane %v2680, 4
          %v2682 = vmax.f32 %v2680, %v2681
          %v2683 = vrot.slane %v2682, 2
          %v2684 = vmax.f32 %v2682, %v2683
          %v2685 = vrot.slane %v2684, 1
          %v2686 = vmax.f32 %v2684, %v2685
          %v2687 = vmax.f32 %v2505, %v2507
          %v2688 = vmax.f32 %v2687, %v2509
          %v2689 = vmax.f32 %v2688, %v2511
          %v2690 = vmax.f32 %v2689, %v2513
          %v2691 = vmax.f32 %v2690, %v2515
          %v2692 = vmax.f32 %v2691, %v2517
          %v2693 = vmax.f32 %v2692, %v2519
          %v2694 = vrot.slane %v2693, 4
          %v2695 = vmax.f32 %v2693, %v2694
          %v2696 = vrot.slane %v2695, 2
          %v2697 = vmax.f32 %v2695, %v2696
          %v2698 = vrot.slane %v2697, 1
          %v2699 = vmax.f32 %v2697, %v2698
          %v2700 = vmax.f32 %v2520, %v2522
          %v2701 = vmax.f32 %v2700, %v2524
          %v2702 = vmax.f32 %v2701, %v2526
          %v2703 = vmax.f32 %v2702, %v2528
          %v2704 = vmax.f32 %v2703, %v2530
          %v2705 = vmax.f32 %v2704, %v2532
          %v2706 = vmax.f32 %v2705, %v2534
          %v2707 = vrot.slane %v2706, 4
          %v2708 = vmax.f32 %v2706, %v2707
          %v2709 = vrot.slane %v2708, 2
          %v2710 = vmax.f32 %v2708, %v2709
          %v2711 = vrot.slane %v2710, 1
          %v2712 = vmax.f32 %v2710, %v2711
          %v2713 = vmax.f32 %v2521, %v2523
          %v2714 = vmax.f32 %v2713, %v2525
          %v2715 = vmax.f32 %v2714, %v2527
          %v2716 = vmax.f32 %v2715, %v2529
          %v2717 = vmax.f32 %v2716, %v2531
          %v2718 = vmax.f32 %v2717, %v2533
          %v2719 = vmax.f32 %v2718, %v2535
          %v2720 = vrot.slane %v2719, 4
          %v2721 = vmax.f32 %v2719, %v2720
          %v2722 = vrot.slane %v2721, 2
          %v2723 = vmax.f32 %v2721, %v2722
          %v2724 = vrot.slane %v2723, 1
          %v2725 = vmax.f32 %v2723, %v2724
          %v2726 = vmax.f32 %v2536, %v2538
          %v2727 = vmax.f32 %v2726, %v2540
          %v2728 = vmax.f32 %v2727, %v2542
          %v2729 = vmax.f32 %v2728, %v2544
          %v2730 = vmax.f32 %v2729, %v2546
          %v2731 = vmax.f32 %v2730, %v2548
          %v2732 = vmax.f32 %v2731, %v2550
          %v2733 = vrot.slane %v2732, 4
          %v2734 = vmax.f32 %v2732, %v2733
          %v2735 = vrot.slane %v2734, 2
          %v2736 = vmax.f32 %v2734, %v2735
          %v2737 = vrot.slane %v2736, 1
          %v2738 = vmax.f32 %v2736, %v2737
          %v2739 = vmax.f32 %v2537, %v2539
          %v2740 = vmax.f32 %v2739, %v2541
          %v2741 = vmax.f32 %v2740, %v2543
          %v2742 = vmax.f32 %v2741, %v2545
          %v2743 = vmax.f32 %v2742, %v2547
          %v2744 = vmax.f32 %v2743, %v2549
          %v2745 = vmax.f32 %v2744, %v2551
          %v2746 = vrot.slane %v2745, 4
          %v2747 = vmax.f32 %v2745, %v2746
          %v2748 = vrot.slane %v2747, 2
          %v2749 = vmax.f32 %v2747, %v2748
          %v2750 = vrot.slane %v2749, 1
          %v2751 = vmax.f32 %v2749, %v2750
          %v2752 = vmax.f32 %v2552, %v2554
          %v2753 = vmax.f32 %v2752, %v2556
          %v2754 = vmax.f32 %v2753, %v2558
          %v2755 = vmax.f32 %v2754, %v2560
          %v2756 = vmax.f32 %v2755, %v2562
          %v2757 = vmax.f32 %v2756, %v2564
          %v2758 = vmax.f32 %v2757, %v2566
          %v2759 = vrot.slane %v2758, 4
          %v2760 = vmax.f32 %v2758, %v2759
          %v2761 = vrot.slane %v2760, 2
          %v2762 = vmax.f32 %v2760, %v2761
          %v2763 = vrot.slane %v2762, 1
          %v2764 = vmax.f32 %v2762, %v2763
          %v2765 = vmax.f32 %v2553, %v2555
          %v2766 = vmax.f32 %v2765, %v2557
          %v2767 = vmax.f32 %v2766, %v2559
          %v2768 = vmax.f32 %v2767, %v2561
          %v2769 = vmax.f32 %v2768, %v2563
          %v2770 = vmax.f32 %v2769, %v2565
          %v2771 = vmax.f32 %v2770, %v2567
          %v2772 = vrot.slane %v2771, 4
          %v2773 = vmax.f32 %v2771, %v2772
          %v2774 = vrot.slane %v2773, 2
          %v2775 = vmax.f32 %v2773, %v2774
          %v2776 = vrot.slane %v2775, 1
          %v2777 = vmax.f32 %v2775, %v2776
          %vm2794 = vcmask 1041409
          %v2795 = vsel %vm2794, %v2608, %v2582
          %vm2796 = vcmask 1042434
          %v2797 = vsel %vm2796, %v2634, %v2795
          %vm2798 = vcmask 1043459
          %v2799 = vsel %vm2798, %v2660, %v2797
          %vm2800 = vcmask 1044484
          %v2801 = vsel %vm2800, %v2686, %v2799
          %vm2802 = vcmask 1045509
          %v2803 = vsel %vm2802, %v2712, %v2801
          %vm2804 = vcmask 1046534
          %v2805 = vsel %vm2804, %v2738, %v2803
          %vm2806 = vcmask 1047559
          %v2807 = vsel %vm2806, %v2764, %v2805
          %v2808 = vsel %vm2794, %v2621, %v2595
          %v2809 = vsel %vm2796, %v2647, %v2808
          %v2810 = vsel %vm2798, %v2673, %v2809
          %v2811 = vsel %vm2800, %v2699, %v2810
          %v2812 = vsel %vm2802, %v2725, %v2811
          %v2813 = vsel %vm2804, %v2751, %v2812
          %v2814 = vsel %vm2806, %v2777, %v2813
          %v2817 = vmax.f32 %v2568, %v2807
          %v2818 = vmax.f32 %v2569, %v2814
          %2819 = vst [vmem:[#allocation2] sm:$0xff] %v2817
          %2820 = vst [vmem:[#allocation2 + $0x8] sm:$0xff] %v2818
        $region136: #{get_transform_forward.1} parent=119 // pred_fallthru
          _
        %v2821 = vld [vmem:[%s5 + $0x8] sm:$0xff]
        %v2822 = vld [vmem:[%s5 + $0x28] sm:$0xff]
        %v2823 = vld [vmem:[%s5 + $0x48] sm:$0xff]
        %v2824 = vld [vmem:[%s5 + $0x68] sm:$0xff]
        %v2825 = vld [vmem:[%s5 + $0x88] sm:$0xff]
        %v2826 = vld [vmem:[%s5 + $0xa8] sm:$0xff]
        %v2827 = vld [vmem:[%s5 + $0xc8] sm:$0xff]
        %v2828 = vld [vmem:[%s5 + $0xe8] sm:$0xff]
        %v2829 = vld [vmem:[%s5 + $0x108] sm:$0xff]
        %v2830 = vld [vmem:[%s5 + $0x128] sm:$0xff]
        %v2831 = vld [vmem:[%s5 + $0x148] sm:$0xff]
        %v2832 = vld [vmem:[%s5 + $0x168] sm:$0xff]
        %v2833 = vld [vmem:[%s5 + $0x188] sm:$0xff]
        %v2834 = vld [vmem:[%s5 + $0x1a8] sm:$0xff]
        %v2835 = vld [vmem:[%s5 + $0x1c8] sm:$0xff]
        %v2836 = vld [vmem:[%s5 + $0x1e8] sm:$0xff]
        %v2853 = vunpack.c.l.b16 %v2821
        %v2854 = vunpack.c.h.b16 %v2821
        %v2855 = vunpack.c.l.b16 %v2822
        %v2856 = vunpack.c.h.b16 %v2822
        %v2857 = vunpack.c.l.b16 %v2823
        %v2858 = vunpack.c.h.b16 %v2823
        %v2859 = vunpack.c.l.b16 %v2824
        %v2860 = vunpack.c.h.b16 %v2824
        %v2861 = vunpack.c.l.b16 %v2825
        %v2862 = vunpack.c.h.b16 %v2825
        %v2863 = vunpack.c.l.b16 %v2826
        %v2864 = vunpack.c.h.b16 %v2826
        %v2865 = vunpack.c.l.b16 %v2827
        %v2866 = vunpack.c.h.b16 %v2827
        %v2867 = vunpack.c.l.b16 %v2828
        %v2868 = vunpack.c.h.b16 %v2828
        %v2869 = vunpack.c.l.b16 %v2829
        %v2870 = vunpack.c.h.b16 %v2829
        %v2871 = vunpack.c.l.b16 %v2830
        %v2872 = vunpack.c.h.b16 %v2830
        %v2873 = vunpack.c.l.b16 %v2831
        %v2874 = vunpack.c.h.b16 %v2831
        %v2875 = vunpack.c.l.b16 %v2832
        %v2876 = vunpack.c.h.b16 %v2832
        %v2877 = vunpack.c.l.b16 %v2833
        %v2878 = vunpack.c.h.b16 %v2833
        %v2879 = vunpack.c.l.b16 %v2834
        %v2880 = vunpack.c.h.b16 %v2834
        %v2881 = vunpack.c.l.b16 %v2835
        %v2882 = vunpack.c.h.b16 %v2835
        %v2883 = vunpack.c.l.b16 %v2836
        %v2884 = vunpack.c.h.b16 %v2836
        %v2885 = vpack.c.b16 %v2855, %v2853
        %v2886 = vpack.c.b16 %v2856, %v2854
        %v2887 = vpack.c.b16 %v2859, %v2857
        %v2888 = vpack.c.b16 %v2860, %v2858
        %v2889 = vpack.c.b16 %v2863, %v2861
        %v2890 = vpack.c.b16 %v2864, %v2862
        %v2891 = vpack.c.b16 %v2867, %v2865
        %v2892 = vpack.c.b16 %v2868, %v2866
        %v2893 = vpack.c.b16 %v2871, %v2869
        %v2894 = vpack.c.b16 %v2872, %v2870
        %v2895 = vpack.c.b16 %v2875, %v2873
        %v2896 = vpack.c.b16 %v2876, %v2874
        %v2897 = vpack.c.b16 %v2879, %v2877
        %v2898 = vpack.c.b16 %v2880, %v2878
        %v2899 = vpack.c.b16 %v2883, %v2881
        %v2900 = vpack.c.b16 %v2884, %v2882
        %2917 = vmatpush.bf16.msra.mxu0 %v2899
        %2918 = vmatpush.bf16.msra.mxu0 %v2897
        %2919 = vmatpush.bf16.msra.mxu0 %v2895
        %2920 = vmatpush.bf16.msra.mxu0 %v2893
        %2921 = vmatpush.bf16.msra.mxu0 %v2891
        %2922 = vmatpush.bf16.msra.mxu0 %v2889
        %2923 = vmatpush.bf16.msra.mxu0 %v2887
        %2924 = vmatpush.bf16.msra.mxu0 %v2885
        %2925 = vmatmul.bf16.gmra.mxu0 %v1670
        %v2926 = vpop.f32.mrf.mxu0
        %v2927 = vadd.f32 0.0, %v2926
        %v2928 = vpop.f32.mrf.mxu0
        %v2929 = vadd.f32 0.0, %v2928
        %2930 = vmatmul.bf16.gmra.mxu0 %v1671
        %v2931 = vpop.f32.mrf.mxu0
        %v2932 = vadd.f32 0.0, %v2931
        %v2933 = vpop.f32.mrf.mxu0
        %v2934 = vadd.f32 0.0, %v2933
        %2935 = vmatmul.bf16.gmra.mxu0 %v1672
        %v2936 = vpop.f32.mrf.mxu0
        %v2937 = vadd.f32 0.0, %v2936
        %v2938 = vpop.f32.mrf.mxu0
        %v2939 = vadd.f32 0.0, %v2938
        %2940 = vmatmul.bf16.gmra.mxu0 %v1673
        %v2941 = vpop.f32.mrf.mxu0
        %v2942 = vadd.f32 0.0, %v2941
        %v2943 = vpop.f32.mrf.mxu0
        %v2944 = vadd.f32 0.0, %v2943
        %2945 = vmatmul.bf16.gmra.mxu0 %v1674
        %v2946 = vpop.f32.mrf.mxu0
        %v2947 = vadd.f32 0.0, %v2946
        %v2948 = vpop.f32.mrf.mxu0
        %v2949 = vadd.f32 0.0, %v2948
        %2950 = vmatmul.bf16.gmra.mxu0 %v1675
        %v2951 = vpop.f32.mrf.mxu0
        %v2952 = vadd.f32 0.0, %v2951
        %v2953 = vpop.f32.mrf.mxu0
        %v2954 = vadd.f32 0.0, %v2953
        %2955 = vmatmul.bf16.gmra.mxu0 %v1676
        %v2956 = vpop.f32.mrf.mxu0
        %v2957 = vadd.f32 0.0, %v2956
        %v2958 = vpop.f32.mrf.mxu0
        %v2959 = vadd.f32 0.0, %v2958
        %2960 = vmatmul.bf16.gmra.mxu0 %v1677
        %v2961 = vpop.f32.mrf.mxu0
        %v2962 = vadd.f32 0.0, %v2961
        %v2963 = vpop.f32.mrf.mxu0
        %v2964 = vadd.f32 0.0, %v2963
        %2965 = vmatmul.bf16.gmra.mxu0 %v1678
        %v2966 = vpop.f32.mrf.mxu0
        %v2967 = vadd.f32 0.0, %v2966
        %v2968 = vpop.f32.mrf.mxu0
        %v2969 = vadd.f32 0.0, %v2968
        %2970 = vmatmul.bf16.gmra.mxu0 %v1679
        %v2971 = vpop.f32.mrf.mxu0
        %v2972 = vadd.f32 0.0, %v2971
        %v2973 = vpop.f32.mrf.mxu0
        %v2974 = vadd.f32 0.0, %v2973
        %2975 = vmatmul.bf16.gmra.mxu0 %v1680
        %v2976 = vpop.f32.mrf.mxu0
        %v2977 = vadd.f32 0.0, %v2976
        %v2978 = vpop.f32.mrf.mxu0
        %v2979 = vadd.f32 0.0, %v2978
        %2980 = vmatmul.bf16.gmra.mxu0 %v1681
        %v2981 = vpop.f32.mrf.mxu0
        %v2982 = vadd.f32 0.0, %v2981
        %v2983 = vpop.f32.mrf.mxu0
        %v2984 = vadd.f32 0.0, %v2983
        %2985 = vmatmul.bf16.gmra.mxu0 %v1682
        %v2986 = vpop.f32.mrf.mxu0
        %v2987 = vadd.f32 0.0, %v2986
        %v2988 = vpop.f32.mrf.mxu0
        %v2989 = vadd.f32 0.0, %v2988
        %2990 = vmatmul.bf16.gmra.mxu0 %v1683
        %v2991 = vpop.f32.mrf.mxu0
        %v2992 = vadd.f32 0.0, %v2991
        %v2993 = vpop.f32.mrf.mxu0
        %v2994 = vadd.f32 0.0, %v2993
        %2995 = vmatmul.bf16.gmra.mxu0 %v1684
        %v2996 = vpop.f32.mrf.mxu0
        %v2997 = vadd.f32 0.0, %v2996
        %v2998 = vpop.f32.mrf.mxu0
        %v2999 = vadd.f32 0.0, %v2998
        %3000 = vmatmul.bf16.gmra.mxu0 %v1685
        %v3001 = vpop.f32.mrf.mxu0
        %v3002 = vadd.f32 0.0, %v3001
        %v3003 = vpop.f32.mrf.mxu0
        %v3004 = vadd.f32 0.0, %v3003
        %3005 = vmatmul.bf16.gmra.mxu0 %v1686
        %v3006 = vpop.f32.mrf.mxu0
        %v3007 = vadd.f32 0.0, %v3006
        %v3008 = vpop.f32.mrf.mxu0
        %v3009 = vadd.f32 0.0, %v3008
        %3010 = vmatmul.bf16.gmra.mxu0 %v1687
        %v3011 = vpop.f32.mrf.mxu0
        %v3012 = vadd.f32 0.0, %v3011
        %v3013 = vpop.f32.mrf.mxu0
        %v3014 = vadd.f32 0.0, %v3013
        %3015 = vmatmul.bf16.gmra.mxu0 %v1688
        %v3016 = vpop.f32.mrf.mxu0
        %v3017 = vadd.f32 0.0, %v3016
        %v3018 = vpop.f32.mrf.mxu0
        %v3019 = vadd.f32 0.0, %v3018
        %3020 = vmatmul.bf16.gmra.mxu0 %v1689
        %v3021 = vpop.f32.mrf.mxu0
        %v3022 = vadd.f32 0.0, %v3021
        %v3023 = vpop.f32.mrf.mxu0
        %v3024 = vadd.f32 0.0, %v3023
        %3025 = vmatmul.bf16.gmra.mxu0 %v1690
        %v3026 = vpop.f32.mrf.mxu0
        %v3027 = vadd.f32 0.0, %v3026
        %v3028 = vpop.f32.mrf.mxu0
        %v3029 = vadd.f32 0.0, %v3028
        %3030 = vmatmul.bf16.gmra.mxu0 %v1691
        %v3031 = vpop.f32.mrf.mxu0
        %v3032 = vadd.f32 0.0, %v3031
        %v3033 = vpop.f32.mrf.mxu0
        %v3034 = vadd.f32 0.0, %v3033
        %3035 = vmatmul.bf16.gmra.mxu0 %v1692
        %v3036 = vpop.f32.mrf.mxu0
        %v3037 = vadd.f32 0.0, %v3036
        %v3038 = vpop.f32.mrf.mxu0
        %v3039 = vadd.f32 0.0, %v3038
        %3040 = vmatmul.bf16.gmra.mxu0 %v1693
        %v3041 = vpop.f32.mrf.mxu0
        %v3042 = vadd.f32 0.0, %v3041
        %v3043 = vpop.f32.mrf.mxu0
        %v3044 = vadd.f32 0.0, %v3043
        %3045 = vmatmul.bf16.gmra.mxu0 %v1694
        %v3046 = vpop.f32.mrf.mxu0
        %v3047 = vadd.f32 0.0, %v3046
        %v3048 = vpop.f32.mrf.mxu0
        %v3049 = vadd.f32 0.0, %v3048
        %3050 = vmatmul.bf16.gmra.mxu0 %v1695
        %v3051 = vpop.f32.mrf.mxu0
        %v3052 = vadd.f32 0.0, %v3051
        %v3053 = vpop.f32.mrf.mxu0
        %v3054 = vadd.f32 0.0, %v3053
        %3055 = vmatmul.bf16.gmra.mxu0 %v1696
        %v3056 = vpop.f32.mrf.mxu0
        %v3057 = vadd.f32 0.0, %v3056
        %v3058 = vpop.f32.mrf.mxu0
        %v3059 = vadd.f32 0.0, %v3058
        %3060 = vmatmul.bf16.gmra.mxu0 %v1697
        %v3061 = vpop.f32.mrf.mxu0
        %v3062 = vadd.f32 0.0, %v3061
        %v3063 = vpop.f32.mrf.mxu0
        %v3064 = vadd.f32 0.0, %v3063
        %3065 = vmatmul.bf16.gmra.mxu0 %v1698
        %v3066 = vpop.f32.mrf.mxu0
        %v3067 = vadd.f32 0.0, %v3066
        %v3068 = vpop.f32.mrf.mxu0
        %v3069 = vadd.f32 0.0, %v3068
        %3070 = vmatmul.bf16.gmra.mxu0 %v1699
        %v3071 = vpop.f32.mrf.mxu0
        %v3072 = vadd.f32 0.0, %v3071
        %v3073 = vpop.f32.mrf.mxu0
        %v3074 = vadd.f32 0.0, %v3073
        %3075 = vmatmul.bf16.gmra.mxu0 %v1700
        %v3076 = vpop.f32.mrf.mxu0
        %v3077 = vadd.f32 0.0, %v3076
        %v3078 = vpop.f32.mrf.mxu0
        %v3079 = vadd.f32 0.0, %v3078
        %3080 = vmatmul.bf16.gmra.mxu0 %v1701
        %v3081 = vpop.f32.mrf.mxu0
        %v3082 = vadd.f32 0.0, %v3081
        %v3083 = vpop.f32.mrf.mxu0
        %v3084 = vadd.f32 0.0, %v3083
        %3085 = vdwg.mxu0
        %3086 = vmatpush.bf16.msra.mxu0 %v2900
        %3087 = vmatpush.bf16.msra.mxu0 %v2898
        %3088 = vmatpush.bf16.msra.mxu0 %v2896
        %3089 = vmatpush.bf16.msra.mxu0 %v2894
        %3090 = vmatpush.bf16.msra.mxu0 %v2892
        %3091 = vmatpush.bf16.msra.mxu0 %v2890
        %3092 = vmatpush.bf16.msra.mxu0 %v2888
        %3093 = vmatpush.bf16.msra.mxu0 %v2886
        %3094 = vmatmul.bf16.gmra.mxu0 %v1670
        %v3095 = vpop.f32.mrf.mxu0
        %v3096 = vadd.f32 0.0, %v3095
        %v3097 = vpop.f32.mrf.mxu0
        %v3098 = vadd.f32 0.0, %v3097
        %3099 = vmatmul.bf16.gmra.mxu0 %v1671
        %v3100 = vpop.f32.mrf.mxu0
        %v3101 = vadd.f32 0.0, %v3100
        %v3102 = vpop.f32.mrf.mxu0
        %v3103 = vadd.f32 0.0, %v3102
        %3104 = vmatmul.bf16.gmra.mxu0 %v1672
        %v3105 = vpop.f32.mrf.mxu0
        %v3106 = vadd.f32 0.0, %v3105
        %v3107 = vpop.f32.mrf.mxu0
        %v3108 = vadd.f32 0.0, %v3107
        %3109 = vmatmul.bf16.gmra.mxu0 %v1673
        %v3110 = vpop.f32.mrf.mxu0
        %v3111 = vadd.f32 0.0, %v3110
        %v3112 = vpop.f32.mrf.mxu0
        %v3113 = vadd.f32 0.0, %v3112
        %3114 = vmatmul.bf16.gmra.mxu0 %v1674
        %v3115 = vpop.f32.mrf.mxu0
        %v3116 = vadd.f32 0.0, %v3115
        %v3117 = vpop.f32.mrf.mxu0
        %v3118 = vadd.f32 0.0, %v3117
        %3119 = vmatmul.bf16.gmra.mxu0 %v1675
        %v3120 = vpop.f32.mrf.mxu0
        %v3121 = vadd.f32 0.0, %v3120
        %v3122 = vpop.f32.mrf.mxu0
        %v3123 = vadd.f32 0.0, %v3122
        %3124 = vmatmul.bf16.gmra.mxu0 %v1676
        %v3125 = vpop.f32.mrf.mxu0
        %v3126 = vadd.f32 0.0, %v3125
        %v3127 = vpop.f32.mrf.mxu0
        %v3128 = vadd.f32 0.0, %v3127
        %3129 = vmatmul.bf16.gmra.mxu0 %v1677
        %v3130 = vpop.f32.mrf.mxu0
        %v3131 = vadd.f32 0.0, %v3130
        %v3132 = vpop.f32.mrf.mxu0
        %v3133 = vadd.f32 0.0, %v3132
        %3134 = vmatmul.bf16.gmra.mxu0 %v1678
        %v3135 = vpop.f32.mrf.mxu0
        %v3136 = vadd.f32 0.0, %v3135
        %v3137 = vpop.f32.mrf.mxu0
        %v3138 = vadd.f32 0.0, %v3137
        %3139 = vmatmul.bf16.gmra.mxu0 %v1679
        %v3140 = vpop.f32.mrf.mxu0
        %v3141 = vadd.f32 0.0, %v3140
        %v3142 = vpop.f32.mrf.mxu0
        %v3143 = vadd.f32 0.0, %v3142
        %3144 = vmatmul.bf16.gmra.mxu0 %v1680
        %v3145 = vpop.f32.mrf.mxu0
        %v3146 = vadd.f32 0.0, %v3145
        %v3147 = vpop.f32.mrf.mxu0
        %v3148 = vadd.f32 0.0, %v3147
        %3149 = vmatmul.bf16.gmra.mxu0 %v1681
        %v3150 = vpop.f32.mrf.mxu0
        %v3151 = vadd.f32 0.0, %v3150
        %v3152 = vpop.f32.mrf.mxu0
        %v3153 = vadd.f32 0.0, %v3152
        %3154 = vmatmul.bf16.gmra.mxu0 %v1682
        %v3155 = vpop.f32.mrf.mxu0
        %v3156 = vadd.f32 0.0, %v3155
        %v3157 = vpop.f32.mrf.mxu0
        %v3158 = vadd.f32 0.0, %v3157
        %3159 = vmatmul.bf16.gmra.mxu0 %v1683
        %v3160 = vpop.f32.mrf.mxu0
        %v3161 = vadd.f32 0.0, %v3160
        %v3162 = vpop.f32.mrf.mxu0
        %v3163 = vadd.f32 0.0, %v3162
        %3164 = vmatmul.bf16.gmra.mxu0 %v1684
        %v3165 = vpop.f32.mrf.mxu0
        %v3166 = vadd.f32 0.0, %v3165
        %v3167 = vpop.f32.mrf.mxu0
        %v3168 = vadd.f32 0.0, %v3167
        %3169 = vmatmul.bf16.gmra.mxu0 %v1685
        %v3170 = vpop.f32.mrf.mxu0
        %v3171 = vadd.f32 0.0, %v3170
        %v3172 = vpop.f32.mrf.mxu0
        %v3173 = vadd.f32 0.0, %v3172
        %3174 = vmatmul.bf16.gmra.mxu0 %v1686
        %v3175 = vpop.f32.mrf.mxu0
        %v3176 = vadd.f32 0.0, %v3175
        %v3177 = vpop.f32.mrf.mxu0
        %v3178 = vadd.f32 0.0, %v3177
        %3179 = vmatmul.bf16.gmra.mxu0 %v1687
        %v3180 = vpop.f32.mrf.mxu0
        %v3181 = vadd.f32 0.0, %v3180
        %v3182 = vpop.f32.mrf.mxu0
        %v3183 = vadd.f32 0.0, %v3182
        %3184 = vmatmul.bf16.gmra.mxu0 %v1688
        %v3185 = vpop.f32.mrf.mxu0
        %v3186 = vadd.f32 0.0, %v3185
        %v3187 = vpop.f32.mrf.mxu0
        %v3188 = vadd.f32 0.0, %v3187
        %3189 = vmatmul.bf16.gmra.mxu0 %v1689
        %v3190 = vpop.f32.mrf.mxu0
        %v3191 = vadd.f32 0.0, %v3190
        %v3192 = vpop.f32.mrf.mxu0
        %v3193 = vadd.f32 0.0, %v3192
        %3194 = vmatmul.bf16.gmra.mxu0 %v1690
        %v3195 = vpop.f32.mrf.mxu0
        %v3196 = vadd.f32 0.0, %v3195
        %v3197 = vpop.f32.mrf.mxu0
        %v3198 = vadd.f32 0.0, %v3197
        %3199 = vmatmul.bf16.gmra.mxu0 %v1691
        %v3200 = vpop.f32.mrf.mxu0
        %v3201 = vadd.f32 0.0, %v3200
        %v3202 = vpop.f32.mrf.mxu0
        %v3203 = vadd.f32 0.0, %v3202
        %3204 = vmatmul.bf16.gmra.mxu0 %v1692
        %v3205 = vpop.f32.mrf.mxu0
        %v3206 = vadd.f32 0.0, %v3205
        %v3207 = vpop.f32.mrf.mxu0
        %v3208 = vadd.f32 0.0, %v3207
        %3209 = vmatmul.bf16.gmra.mxu0 %v1693
        %v3210 = vpop.f32.mrf.mxu0
        %v3211 = vadd.f32 0.0, %v3210
        %v3212 = vpop.f32.mrf.mxu0
        %v3213 = vadd.f32 0.0, %v3212
        %3214 = vmatmul.bf16.gmra.mxu0 %v1694
        %v3215 = vpop.f32.mrf.mxu0
        %v3216 = vadd.f32 0.0, %v3215
        %v3217 = vpop.f32.mrf.mxu0
        %v3218 = vadd.f32 0.0, %v3217
        %3219 = vmatmul.bf16.gmra.mxu0 %v1695
        %v3220 = vpop.f32.mrf.mxu0
        %v3221 = vadd.f32 0.0, %v3220
        %v3222 = vpop.f32.mrf.mxu0
        %v3223 = vadd.f32 0.0, %v3222
        %3224 = vmatmul.bf16.gmra.mxu0 %v1696
        %v3225 = vpop.f32.mrf.mxu0
        %v3226 = vadd.f32 0.0, %v3225
        %v3227 = vpop.f32.mrf.mxu0
        %v3228 = vadd.f32 0.0, %v3227
        %3229 = vmatmul.bf16.gmra.mxu0 %v1697
        %v3230 = vpop.f32.mrf.mxu0
        %v3231 = vadd.f32 0.0, %v3230
        %v3232 = vpop.f32.mrf.mxu0
        %v3233 = vadd.f32 0.0, %v3232
        %3234 = vmatmul.bf16.gmra.mxu0 %v1698
        %v3235 = vpop.f32.mrf.mxu0
        %v3236 = vadd.f32 0.0, %v3235
        %v3237 = vpop.f32.mrf.mxu0
        %v3238 = vadd.f32 0.0, %v3237
        %3239 = vmatmul.bf16.gmra.mxu0 %v1699
        %v3240 = vpop.f32.mrf.mxu0
        %v3241 = vadd.f32 0.0, %v3240
        %v3242 = vpop.f32.mrf.mxu0
        %v3243 = vadd.f32 0.0, %v3242
        %3244 = vmatmul.bf16.gmra.mxu0 %v1700
        %v3245 = vpop.f32.mrf.mxu0
        %v3246 = vadd.f32 0.0, %v3245
        %v3247 = vpop.f32.mrf.mxu0
        %v3248 = vadd.f32 0.0, %v3247
        %3249 = vmatmul.bf16.gmra.mxu0 %v1701
        %v3250 = vpop.f32.mrf.mxu0
        %v3251 = vadd.f32 0.0, %v3250
        %v3252 = vpop.f32.mrf.mxu0
        %v3253 = vadd.f32 0.0, %v3252
        %3254 = vdwg.mxu0
        // Predicated region
        $region137: #{get_transform_forward.1} parent=119 // pred_check
          %p3255 = pneg %p2163
        $region138: #{get_transform_forward.1} parent=119 // pred_check_branch
          %3257 = sbr.rel (%p3255) target = $region140
        $region139: #{get_transform_forward.1} parent=119 // pred_region
          %v3258 = vld [vmem:[#allocation2 + $0x10] sm:$0xff]
          %v3259 = vld [vmem:[#allocation2 + $0x18] sm:$0xff]
          %v3260 = vmax.f32 %v2927, %v2929
          %v3261 = vmax.f32 %v3260, %v2932
          %v3262 = vmax.f32 %v3261, %v2934
          %v3263 = vmax.f32 %v3262, %v2937
          %v3264 = vmax.f32 %v3263, %v2939
          %v3265 = vmax.f32 %v3264, %v2942
          %v3266 = vmax.f32 %v3265, %v2944
          %v3267 = vrot.slane %v3266, 4
          %v3268 = vmax.f32 %v3266, %v3267
          %v3269 = vrot.slane %v3268, 2
          %v3270 = vmax.f32 %v3268, %v3269
          %v3271 = vrot.slane %v3270, 1
          %v3272 = vmax.f32 %v3270, %v3271
          %v3273 = vmax.f32 %v3096, %v3098
          %v3274 = vmax.f32 %v3273, %v3101
          %v3275 = vmax.f32 %v3274, %v3103
          %v3276 = vmax.f32 %v3275, %v3106
          %v3277 = vmax.f32 %v3276, %v3108
          %v3278 = vmax.f32 %v3277, %v3111
          %v3279 = vmax.f32 %v3278, %v3113
          %v3280 = vrot.slane %v3279, 4
          %v3281 = vmax.f32 %v3279, %v3280
          %v3282 = vrot.slane %v3281, 2
          %v3283 = vmax.f32 %v3281, %v3282
          %v3284 = vrot.slane %v3283, 1
          %v3285 = vmax.f32 %v3283, %v3284
          %v3286 = vmax.f32 %v2947, %v2949
          %v3287 = vmax.f32 %v3286, %v2952
          %v3288 = vmax.f32 %v3287, %v2954
          %v3289 = vmax.f32 %v3288, %v2957
          %v3290 = vmax.f32 %v3289, %v2959
          %v3291 = vmax.f32 %v3290, %v2962
          %v3292 = vmax.f32 %v3291, %v2964
          %v3293 = vrot.slane %v3292, 4
          %v3294 = vmax.f32 %v3292, %v3293
          %v3295 = vrot.slane %v3294, 2
          %v3296 = vmax.f32 %v3294, %v3295
          %v3297 = vrot.slane %v3296, 1
          %v3298 = vmax.f32 %v3296, %v3297
          %v3299 = vmax.f32 %v3116, %v3118
          %v3300 = vmax.f32 %v3299, %v3121
          %v3301 = vmax.f32 %v3300, %v3123
          %v3302 = vmax.f32 %v3301, %v3126
          %v3303 = vmax.f32 %v3302, %v3128
          %v3304 = vmax.f32 %v3303, %v3131
          %v3305 = vmax.f32 %v3304, %v3133
          %v3306 = vrot.slane %v3305, 4
          %v3307 = vmax.f32 %v3305, %v3306
          %v3308 = vrot.slane %v3307, 2
          %v3309 = vmax.f32 %v3307, %v3308
          %v3310 = vrot.slane %v3309, 1
          %v3311 = vmax.f32 %v3309, %v3310
          %v3312 = vmax.f32 %v2967, %v2969
          %v3313 = vmax.f32 %v3312, %v2972
          %v3314 = vmax.f32 %v3313, %v2974
          %v3315 = vmax.f32 %v3314, %v2977
          %v3316 = vmax.f32 %v3315, %v2979
          %v3317 = vmax.f32 %v3316, %v2982
          %v3318 = vmax.f32 %v3317, %v2984
          %v3319 = vrot.slane %v3318, 4
          %v3320 = vmax.f32 %v3318, %v3319
          %v3321 = vrot.slane %v3320, 2
          %v3322 = vmax.f32 %v3320, %v3321
          %v3323 = vrot.slane %v3322, 1
          %v3324 = vmax.f32 %v3322, %v3323
          %v3325 = vmax.f32 %v3136, %v3138
          %v3326 = vmax.f32 %v3325, %v3141
          %v3327 = vmax.f32 %v3326, %v3143
          %v3328 = vmax.f32 %v3327, %v3146
          %v3329 = vmax.f32 %v3328, %v3148
          %v3330 = vmax.f32 %v3329, %v3151
          %v3331 = vmax.f32 %v3330, %v3153
          %v3332 = vrot.slane %v3331, 4
          %v3333 = vmax.f32 %v3331, %v3332
          %v3334 = vrot.slane %v3333, 2
          %v3335 = vmax.f32 %v3333, %v3334
          %v3336 = vrot.slane %v3335, 1
          %v3337 = vmax.f32 %v3335, %v3336
          %v3338 = vmax.f32 %v2987, %v2989
          %v3339 = vmax.f32 %v3338, %v2992
          %v3340 = vmax.f32 %v3339, %v2994
          %v3341 = vmax.f32 %v3340, %v2997
          %v3342 = vmax.f32 %v3341, %v2999
          %v3343 = vmax.f32 %v3342, %v3002
          %v3344 = vmax.f32 %v3343, %v3004
          %v3345 = vrot.slane %v3344, 4
          %v3346 = vmax.f32 %v3344, %v3345
          %v3347 = vrot.slane %v3346, 2
          %v3348 = vmax.f32 %v3346, %v3347
          %v3349 = vrot.slane %v3348, 1
          %v3350 = vmax.f32 %v3348, %v3349
          %v3351 = vmax.f32 %v3156, %v3158
          %v3352 = vmax.f32 %v3351, %v3161
          %v3353 = vmax.f32 %v3352, %v3163
          %v3354 = vmax.f32 %v3353, %v3166
          %v3355 = vmax.f32 %v3354, %v3168
          %v3356 = vmax.f32 %v3355, %v3171
          %v3357 = vmax.f32 %v3356, %v3173
          %v3358 = vrot.slane %v3357, 4
          %v3359 = vmax.f32 %v3357, %v3358
          %v3360 = vrot.slane %v3359, 2
          %v3361 = vmax.f32 %v3359, %v3360
          %v3362 = vrot.slane %v3361, 1
          %v3363 = vmax.f32 %v3361, %v3362
          %v3364 = vmax.f32 %v3007, %v3009
          %v3365 = vmax.f32 %v3364, %v3012
          %v3366 = vmax.f32 %v3365, %v3014
          %v3367 = vmax.f32 %v3366, %v3017
          %v3368 = vmax.f32 %v3367, %v3019
          %v3369 = vmax.f32 %v3368, %v3022
          %v3370 = vmax.f32 %v3369, %v3024
          %v3371 = vrot.slane %v3370, 4
          %v3372 = vmax.f32 %v3370, %v3371
          %v3373 = vrot.slane %v3372, 2
          %v3374 = vmax.f32 %v3372, %v3373
          %v3375 = vrot.slane %v3374, 1
          %v3376 = vmax.f32 %v3374, %v3375
          %v3377 = vmax.f32 %v3176, %v3178
          %v3378 = vmax.f32 %v3377, %v3181
          %v3379 = vmax.f32 %v3378, %v3183
          %v3380 = vmax.f32 %v3379, %v3186
          %v3381 = vmax.f32 %v3380, %v3188
          %v3382 = vmax.f32 %v3381, %v3191
          %v3383 = vmax.f32 %v3382, %v3193
          %v3384 = vrot.slane %v3383, 4
          %v3385 = vmax.f32 %v3383, %v3384
          %v3386 = vrot.slane %v3385, 2
          %v3387 = vmax.f32 %v3385, %v3386
          %v3388 = vrot.slane %v3387, 1
          %v3389 = vmax.f32 %v3387, %v3388
          %v3390 = vmax.f32 %v3027, %v3029
          %v3391 = vmax.f32 %v3390, %v3032
          %v3392 = vmax.f32 %v3391, %v3034
          %v3393 = vmax.f32 %v3392, %v3037
          %v3394 = vmax.f32 %v3393, %v3039
          %v3395 = vmax.f32 %v3394, %v3042
          %v3396 = vmax.f32 %v3395, %v3044
          %v3397 = vrot.slane %v3396, 4
          %v3398 = vmax.f32 %v3396, %v3397
          %v3399 = vrot.slane %v3398, 2
          %v3400 = vmax.f32 %v3398, %v3399
          %v3401 = vrot.slane %v3400, 1
          %v3402 = vmax.f32 %v3400, %v3401
          %v3403 = vmax.f32 %v3196, %v3198
          %v3404 = vmax.f32 %v3403, %v3201
          %v3405 = vmax.f32 %v3404, %v3203
          %v3406 = vmax.f32 %v3405, %v3206
          %v3407 = vmax.f32 %v3406, %v3208
          %v3408 = vmax.f32 %v3407, %v3211
          %v3409 = vmax.f32 %v3408, %v3213
          %v3410 = vrot.slane %v3409, 4
          %v3411 = vmax.f32 %v3409, %v3410
          %v3412 = vrot.slane %v3411, 2
          %v3413 = vmax.f32 %v3411, %v3412
          %v3414 = vrot.slane %v3413, 1
          %v3415 = vmax.f32 %v3413, %v3414
          %v3416 = vmax.f32 %v3047, %v3049
          %v3417 = vmax.f32 %v3416, %v3052
          %v3418 = vmax.f32 %v3417, %v3054
          %v3419 = vmax.f32 %v3418, %v3057
          %v3420 = vmax.f32 %v3419, %v3059
          %v3421 = vmax.f32 %v3420, %v3062
          %v3422 = vmax.f32 %v3421, %v3064
          %v3423 = vrot.slane %v3422, 4
          %v3424 = vmax.f32 %v3422, %v3423
          %v3425 = vrot.slane %v3424, 2
          %v3426 = vmax.f32 %v3424, %v3425
          %v3427 = vrot.slane %v3426, 1
          %v3428 = vmax.f32 %v3426, %v3427
          %v3429 = vmax.f32 %v3216, %v3218
          %v3430 = vmax.f32 %v3429, %v3221
          %v3431 = vmax.f32 %v3430, %v3223
          %v3432 = vmax.f32 %v3431, %v3226
          %v3433 = vmax.f32 %v3432, %v3228
          %v3434 = vmax.f32 %v3433, %v3231
          %v3435 = vmax.f32 %v3434, %v3233
          %v3436 = vrot.slane %v3435, 4
          %v3437 = vmax.f32 %v3435, %v3436
          %v3438 = vrot.slane %v3437, 2
          %v3439 = vmax.f32 %v3437, %v3438
          %v3440 = vrot.slane %v3439, 1
          %v3441 = vmax.f32 %v3439, %v3440
          %v3442 = vmax.f32 %v3067, %v3069
          %v3443 = vmax.f32 %v3442, %v3072
          %v3444 = vmax.f32 %v3443, %v3074
          %v3445 = vmax.f32 %v3444, %v3077
          %v3446 = vmax.f32 %v3445, %v3079
          %v3447 = vmax.f32 %v3446, %v3082
          %v3448 = vmax.f32 %v3447, %v3084
          %v3449 = vrot.slane %v3448, 4
          %v3450 = vmax.f32 %v3448, %v3449
          %v3451 = vrot.slane %v3450, 2
          %v3452 = vmax.f32 %v3450, %v3451
          %v3453 = vrot.slane %v3452, 1
          %v3454 = vmax.f32 %v3452, %v3453
          %v3455 = vmax.f32 %v3236, %v3238
          %v3456 = vmax.f32 %v3455, %v3241
          %v3457 = vmax.f32 %v3456, %v3243
          %v3458 = vmax.f32 %v3457, %v3246
          %v3459 = vmax.f32 %v3458, %v3248
          %v3460 = vmax.f32 %v3459, %v3251
          %v3461 = vmax.f32 %v3460, %v3253
          %v3462 = vrot.slane %v3461, 4
          %v3463 = vmax.f32 %v3461, %v3462
          %v3464 = vrot.slane %v3463, 2
          %v3465 = vmax.f32 %v3463, %v3464
          %v3466 = vrot.slane %v3465, 1
          %v3467 = vmax.f32 %v3465, %v3466
          %vm3484 = vcmask 1041409
          %v3485 = vsel %vm3484, %v3298, %v3272
          %vm3486 = vcmask 1042434
          %v3487 = vsel %vm3486, %v3324, %v3485
          %vm3488 = vcmask 1043459
          %v3489 = vsel %vm3488, %v3350, %v3487
          %vm3490 = vcmask 1044484
          %v3491 = vsel %vm3490, %v3376, %v3489
          %vm3492 = vcmask 1045509
          %v3493 = vsel %vm3492, %v3402, %v3491
          %vm3494 = vcmask 1046534
          %v3495 = vsel %vm3494, %v3428, %v3493
          %vm3496 = vcmask 1047559
          %v3497 = vsel %vm3496, %v3454, %v3495
          %v3498 = vsel %vm3484, %v3311, %v3285
          %v3499 = vsel %vm3486, %v3337, %v3498
          %v3500 = vsel %vm3488, %v3363, %v3499
          %v3501 = vsel %vm3490, %v3389, %v3500
          %v3502 = vsel %vm3492, %v3415, %v3501
          %v3503 = vsel %vm3494, %v3441, %v3502
          %v3504 = vsel %vm3496, %v3467, %v3503
          %v3507 = vmax.f32 %v3258, %v3497
          %v3508 = vmax.f32 %v3259, %v3504
          %3509 = vst [vmem:[#allocation2 + $0x10] sm:$0xff] %v3507
          %3510 = vst [vmem:[#allocation2 + $0x18] sm:$0xff] %v3508
        $region140: #{get_transform_forward.1} parent=119 // pred_fallthru
          _
        // Predicated region
        $region141: #{get_transform_forward.1} parent=119 // pred_check
          %p3511 = pneg %p2420
        $region142: #{get_transform_forward.1} parent=119 // pred_check_branch
          %3513 = sbr.rel (%p3511) target = $region144
        $region143: #{get_transform_forward.1} parent=119 // pred_region
          %v3514 = vsel %vm1721, 1, 0
          %v3515 = vsel %vm1722, 1, 0
          %v3516 = vsel %vm1723, 1, 0
          %v3517 = vsel %vm1724, 1, 0
          %v3518 = vsel %vm1725, 1, 0
          %v3519 = vsel %vm1726, 1, 0
          %v3520 = vsel %vm1727, 1, 0
          %v3521 = vsel %vm1728, 1, 0
          %vm3522 = vcmp.eq.s32.totalorder %v3514, 1
          %vm3523 = vcmp.eq.s32.totalorder %v3515, 1
          %vm3524 = vcmp.eq.s32.totalorder %v3516, 1
          %vm3525 = vcmp.eq.s32.totalorder %v3517, 1
          %vm3526 = vcmp.eq.s32.totalorder %v3518, 1
          %vm3527 = vcmp.eq.s32.totalorder %v3519, 1
          %vm3528 = vcmp.eq.s32.totalorder %v3520, 1
          %vm3529 = vcmp.eq.s32.totalorder %v3521, 1
          %v3530 = vsel %vm3522, %v2927, -inf
          %v3531 = vsel %vm3522, %v3096, -inf
          %v3532 = vsel %vm3523, %v2929, -inf
          %v3533 = vsel %vm3523, %v3098, -inf
          %v3534 = vsel %vm3524, %v2932, -inf
          %v3535 = vsel %vm3524, %v3101, -inf
          %v3536 = vsel %vm3525, %v2934, -inf
          %v3537 = vsel %vm3525, %v3103, -inf
          %v3538 = vsel %vm3526, %v2937, -inf
          %v3539 = vsel %vm3526, %v3106, -inf
          %v3540 = vsel %vm3527, %v2939, -inf
          %v3541 = vsel %vm3527, %v3108, -inf
          %v3542 = vsel %vm3528, %v2942, -inf
          %v3543 = vsel %vm3528, %v3111, -inf
          %v3544 = vsel %vm3529, %v2944, -inf
          %v3545 = vsel %vm3529, %v3113, -inf
          %v3546 = vsel %vm3522, %v2947, -inf
          %v3547 = vsel %vm3522, %v3116, -inf
          %v3548 = vsel %vm3523, %v2949, -inf
          %v3549 = vsel %vm3523, %v3118, -inf
          %v3550 = vsel %vm3524, %v2952, -inf
          %v3551 = vsel %vm3524, %v3121, -inf
          %v3552 = vsel %vm3525, %v2954, -inf
          %v3553 = vsel %vm3525, %v3123, -inf
          %v3554 = vsel %vm3526, %v2957, -inf
          %v3555 = vsel %vm3526, %v3126, -inf
          %v3556 = vsel %vm3527, %v2959, -inf
          %v3557 = vsel %vm3527, %v3128, -inf
          %v3558 = vsel %vm3528, %v2962, -inf
          %v3559 = vsel %vm3528, %v3131, -inf
          %v3560 = vsel %vm3529, %v2964, -inf
          %v3561 = vsel %vm3529, %v3133, -inf
          %v3562 = vsel %vm3522, %v2967, -inf
          %v3563 = vsel %vm3522, %v3136, -inf
          %v3564 = vsel %vm3523, %v2969, -inf
          %v3565 = vsel %vm3523, %v3138, -inf
          %v3566 = vsel %vm3524, %v2972, -inf
          %v3567 = vsel %vm3524, %v3141, -inf
          %v3568 = vsel %vm3525, %v2974, -inf
          %v3569 = vsel %vm3525, %v3143, -inf
          %v3570 = vsel %vm3526, %v2977, -inf
          %v3571 = vsel %vm3526, %v3146, -inf
          %v3572 = vsel %vm3527, %v2979, -inf
          %v3573 = vsel %vm3527, %v3148, -inf
          %v3574 = vsel %vm3528, %v2982, -inf
          %v3575 = vsel %vm3528, %v3151, -inf
          %v3576 = vsel %vm3529, %v2984, -inf
          %v3577 = vsel %vm3529, %v3153, -inf
          %v3578 = vsel %vm3522, %v2987, -inf
          %v3579 = vsel %vm3522, %v3156, -inf
          %v3580 = vsel %vm3523, %v2989, -inf
          %v3581 = vsel %vm3523, %v3158, -inf
          %v3582 = vsel %vm3524, %v2992, -inf
          %v3583 = vsel %vm3524, %v3161, -inf
          %v3584 = vsel %vm3525, %v2994, -inf
          %v3585 = vsel %vm3525, %v3163, -inf
          %v3586 = vsel %vm3526, %v2997, -inf
          %v3587 = vsel %vm3526, %v3166, -inf
          %v3588 = vsel %vm3527, %v2999, -inf
          %v3589 = vsel %vm3527, %v3168, -inf
          %v3590 = vsel %vm3528, %v3002, -inf
          %v3591 = vsel %vm3528, %v3171, -inf
          %v3592 = vsel %vm3529, %v3004, -inf
          %v3593 = vsel %vm3529, %v3173, -inf
          %v3594 = vsel %vm3522, %v3007, -inf
          %v3595 = vsel %vm3522, %v3176, -inf
          %v3596 = vsel %vm3523, %v3009, -inf
          %v3597 = vsel %vm3523, %v3178, -inf
          %v3598 = vsel %vm3524, %v3012, -inf
          %v3599 = vsel %vm3524, %v3181, -inf
          %v3600 = vsel %vm3525, %v3014, -inf
          %v3601 = vsel %vm3525, %v3183, -inf
          %v3602 = vsel %vm3526, %v3017, -inf
          %v3603 = vsel %vm3526, %v3186, -inf
          %v3604 = vsel %vm3527, %v3019, -inf
          %v3605 = vsel %vm3527, %v3188, -inf
          %v3606 = vsel %vm3528, %v3022, -inf
          %v3607 = vsel %vm3528, %v3191, -inf
          %v3608 = vsel %vm3529, %v3024, -inf
          %v3609 = vsel %vm3529, %v3193, -inf
          %v3610 = vsel %vm3522, %v3027, -inf
          %v3611 = vsel %vm3522, %v3196, -inf
          %v3612 = vsel %vm3523, %v3029, -inf
          %v3613 = vsel %vm3523, %v3198, -inf
          %v3614 = vsel %vm3524, %v3032, -inf
          %v3615 = vsel %vm3524, %v3201, -inf
          %v3616 = vsel %vm3525, %v3034, -inf
          %v3617 = vsel %vm3525, %v3203, -inf
          %v3618 = vsel %vm3526, %v3037, -inf
          %v3619 = vsel %vm3526, %v3206, -inf
          %v3620 = vsel %vm3527, %v3039, -inf
          %v3621 = vsel %vm3527, %v3208, -inf
          %v3622 = vsel %vm3528, %v3042, -inf
          %v3623 = vsel %vm3528, %v3211, -inf
          %v3624 = vsel %vm3529, %v3044, -inf
          %v3625 = vsel %vm3529, %v3213, -inf
          %v3626 = vsel %vm3522, %v3047, -inf
          %v3627 = vsel %vm3522, %v3216, -inf
          %v3628 = vsel %vm3523, %v3049, -inf
          %v3629 = vsel %vm3523, %v3218, -inf
          %v3630 = vsel %vm3524, %v3052, -inf
          %v3631 = vsel %vm3524, %v3221, -inf
          %v3632 = vsel %vm3525, %v3054, -inf
          %v3633 = vsel %vm3525, %v3223, -inf
          %v3634 = vsel %vm3526, %v3057, -inf
          %v3635 = vsel %vm3526, %v3226, -inf
          %v3636 = vsel %vm3527, %v3059, -inf
          %v3637 = vsel %vm3527, %v3228, -inf
          %v3638 = vsel %vm3528, %v3062, -inf
          %v3639 = vsel %vm3528, %v3231, -inf
          %v3640 = vsel %vm3529, %v3064, -inf
          %v3641 = vsel %vm3529, %v3233, -inf
          %v3642 = vsel %vm3522, %v3067, -inf
          %v3643 = vsel %vm3522, %v3236, -inf
          %v3644 = vsel %vm3523, %v3069, -inf
          %v3645 = vsel %vm3523, %v3238, -inf
          %v3646 = vsel %vm3524, %v3072, -inf
          %v3647 = vsel %vm3524, %v3241, -inf
          %v3648 = vsel %vm3525, %v3074, -inf
          %v3649 = vsel %vm3525, %v3243, -inf
          %v3650 = vsel %vm3526, %v3077, -inf
          %v3651 = vsel %vm3526, %v3246, -inf
          %v3652 = vsel %vm3527, %v3079, -inf
          %v3653 = vsel %vm3527, %v3248, -inf
          %v3654 = vsel %vm3528, %v3082, -inf
          %v3655 = vsel %vm3528, %v3251, -inf
          %v3656 = vsel %vm3529, %v3084, -inf
          %v3657 = vsel %vm3529, %v3253, -inf
          %v3658 = vld [vmem:[#allocation2 + $0x10] sm:$0xff]
          %v3659 = vld [vmem:[#allocation2 + $0x18] sm:$0xff]
          %v3660 = vmax.f32 %v3530, %v3532
          %v3661 = vmax.f32 %v3660, %v3534
          %v3662 = vmax.f32 %v3661, %v3536
          %v3663 = vmax.f32 %v3662, %v3538
          %v3664 = vmax.f32 %v3663, %v3540
          %v3665 = vmax.f32 %v3664, %v3542
          %v3666 = vmax.f32 %v3665, %v3544
          %v3667 = vrot.slane %v3666, 4
          %v3668 = vmax.f32 %v3666, %v3667
          %v3669 = vrot.slane %v3668, 2
          %v3670 = vmax.f32 %v3668, %v3669
          %v3671 = vrot.slane %v3670, 1
          %v3672 = vmax.f32 %v3670, %v3671
          %v3673 = vmax.f32 %v3531, %v3533
          %v3674 = vmax.f32 %v3673, %v3535
          %v3675 = vmax.f32 %v3674, %v3537
          %v3676 = vmax.f32 %v3675, %v3539
          %v3677 = vmax.f32 %v3676, %v3541
          %v3678 = vmax.f32 %v3677, %v3543
          %v3679 = vmax.f32 %v3678, %v3545
          %v3680 = vrot.slane %v3679, 4
          %v3681 = vmax.f32 %v3679, %v3680
          %v3682 = vrot.slane %v3681, 2
          %v3683 = vmax.f32 %v3681, %v3682
          %v3684 = vrot.slane %v3683, 1
          %v3685 = vmax.f32 %v3683, %v3684
          %v3686 = vmax.f32 %v3546, %v3548
          %v3687 = vmax.f32 %v3686, %v3550
          %v3688 = vmax.f32 %v3687, %v3552
          %v3689 = vmax.f32 %v3688, %v3554
          %v3690 = vmax.f32 %v3689, %v3556
          %v3691 = vmax.f32 %v3690, %v3558
          %v3692 = vmax.f32 %v3691, %v3560
          %v3693 = vrot.slane %v3692, 4
          %v3694 = vmax.f32 %v3692, %v3693
          %v3695 = vrot.slane %v3694, 2
          %v3696 = vmax.f32 %v3694, %v3695
          %v3697 = vrot.slane %v3696, 1
          %v3698 = vmax.f32 %v3696, %v3697
          %v3699 = vmax.f32 %v3547, %v3549
          %v3700 = vmax.f32 %v3699, %v3551
          %v3701 = vmax.f32 %v3700, %v3553
          %v3702 = vmax.f32 %v3701, %v3555
          %v3703 = vmax.f32 %v3702, %v3557
          %v3704 = vmax.f32 %v3703, %v3559
          %v3705 = vmax.f32 %v3704, %v3561
          %v3706 = vrot.slane %v3705, 4
          %v3707 = vmax.f32 %v3705, %v3706
          %v3708 = vrot.slane %v3707, 2
          %v3709 = vmax.f32 %v3707, %v3708
          %v3710 = vrot.slane %v3709, 1
          %v3711 = vmax.f32 %v3709, %v3710
          %v3712 = vmax.f32 %v3562, %v3564
          %v3713 = vmax.f32 %v3712, %v3566
          %v3714 = vmax.f32 %v3713, %v3568
          %v3715 = vmax.f32 %v3714, %v3570
          %v3716 = vmax.f32 %v3715, %v3572
          %v3717 = vmax.f32 %v3716, %v3574
          %v3718 = vmax.f32 %v3717, %v3576
          %v3719 = vrot.slane %v3718, 4
          %v3720 = vmax.f32 %v3718, %v3719
          %v3721 = vrot.slane %v3720, 2
          %v3722 = vmax.f32 %v3720, %v3721
          %v3723 = vrot.slane %v3722, 1
          %v3724 = vmax.f32 %v3722, %v3723
          %v3725 = vmax.f32 %v3563, %v3565
          %v3726 = vmax.f32 %v3725, %v3567
          %v3727 = vmax.f32 %v3726, %v3569
          %v3728 = vmax.f32 %v3727, %v3571
          %v3729 = vmax.f32 %v3728, %v3573
          %v3730 = vmax.f32 %v3729, %v3575
          %v3731 = vmax.f32 %v3730, %v3577
          %v3732 = vrot.slane %v3731, 4
          %v3733 = vmax.f32 %v3731, %v3732
          %v3734 = vrot.slane %v3733, 2
          %v3735 = vmax.f32 %v3733, %v3734
          %v3736 = vrot.slane %v3735, 1
          %v3737 = vmax.f32 %v3735, %v3736
          %v3738 = vmax.f32 %v3578, %v3580
          %v3739 = vmax.f32 %v3738, %v3582
          %v3740 = vmax.f32 %v3739, %v3584
          %v3741 = vmax.f32 %v3740, %v3586
          %v3742 = vmax.f32 %v3741, %v3588
          %v3743 = vmax.f32 %v3742, %v3590
          %v3744 = vmax.f32 %v3743, %v3592
          %v3745 = vrot.slane %v3744, 4
          %v3746 = vmax.f32 %v3744, %v3745
          %v3747 = vrot.slane %v3746, 2
          %v3748 = vmax.f32 %v3746, %v3747
          %v3749 = vrot.slane %v3748, 1
          %v3750 = vmax.f32 %v3748, %v3749
          %v3751 = vmax.f32 %v3579, %v3581
          %v3752 = vmax.f32 %v3751, %v3583
          %v3753 = vmax.f32 %v3752, %v3585
          %v3754 = vmax.f32 %v3753, %v3587
          %v3755 = vmax.f32 %v3754, %v3589
          %v3756 = vmax.f32 %v3755, %v3591
          %v3757 = vmax.f32 %v3756, %v3593
          %v3758 = vrot.slane %v3757, 4
          %v3759 = vmax.f32 %v3757, %v3758
          %v3760 = vrot.slane %v3759, 2
          %v3761 = vmax.f32 %v3759, %v3760
          %v3762 = vrot.slane %v3761, 1
          %v3763 = vmax.f32 %v3761, %v3762
          %v3764 = vmax.f32 %v3594, %v3596
          %v3765 = vmax.f32 %v3764, %v3598
          %v3766 = vmax.f32 %v3765, %v3600
          %v3767 = vmax.f32 %v3766, %v3602
          %v3768 = vmax.f32 %v3767, %v3604
          %v3769 = vmax.f32 %v3768, %v3606
          %v3770 = vmax.f32 %v3769, %v3608
          %v3771 = vrot.slane %v3770, 4
          %v3772 = vmax.f32 %v3770, %v3771
          %v3773 = vrot.slane %v3772, 2
          %v3774 = vmax.f32 %v3772, %v3773
          %v3775 = vrot.slane %v3774, 1
          %v3776 = vmax.f32 %v3774, %v3775
          %v3777 = vmax.f32 %v3595, %v3597
          %v3778 = vmax.f32 %v3777, %v3599
          %v3779 = vmax.f32 %v3778, %v3601
          %v3780 = vmax.f32 %v3779, %v3603
          %v3781 = vmax.f32 %v3780, %v3605
          %v3782 = vmax.f32 %v3781, %v3607
          %v3783 = vmax.f32 %v3782, %v3609
          %v3784 = vrot.slane %v3783, 4
          %v3785 = vmax.f32 %v3783, %v3784
          %v3786 = vrot.slane %v3785, 2
          %v3787 = vmax.f32 %v3785, %v3786
          %v3788 = vrot.slane %v3787, 1
          %v3789 = vmax.f32 %v3787, %v3788
          %v3790 = vmax.f32 %v3610, %v3612
          %v3791 = vmax.f32 %v3790, %v3614
          %v3792 = vmax.f32 %v3791, %v3616
          %v3793 = vmax.f32 %v3792, %v3618
          %v3794 = vmax.f32 %v3793, %v3620
          %v3795 = vmax.f32 %v3794, %v3622
          %v3796 = vmax.f32 %v3795, %v3624
          %v3797 = vrot.slane %v3796, 4
          %v3798 = vmax.f32 %v3796, %v3797
          %v3799 = vrot.slane %v3798, 2
          %v3800 = vmax.f32 %v3798, %v3799
          %v3801 = vrot.slane %v3800, 1
          %v3802 = vmax.f32 %v3800, %v3801
          %v3803 = vmax.f32 %v3611, %v3613
          %v3804 = vmax.f32 %v3803, %v3615
          %v3805 = vmax.f32 %v3804, %v3617
          %v3806 = vmax.f32 %v3805, %v3619
          %v3807 = vmax.f32 %v3806, %v3621
          %v3808 = vmax.f32 %v3807, %v3623
          %v3809 = vmax.f32 %v3808, %v3625
          %v3810 = vrot.slane %v3809, 4
          %v3811 = vmax.f32 %v3809, %v3810
          %v3812 = vrot.slane %v3811, 2
          %v3813 = vmax.f32 %v3811, %v3812
          %v3814 = vrot.slane %v3813, 1
          %v3815 = vmax.f32 %v3813, %v3814
          %v3816 = vmax.f32 %v3626, %v3628
          %v3817 = vmax.f32 %v3816, %v3630
          %v3818 = vmax.f32 %v3817, %v3632
          %v3819 = vmax.f32 %v3818, %v3634
          %v3820 = vmax.f32 %v3819, %v3636
          %v3821 = vmax.f32 %v3820, %v3638
          %v3822 = vmax.f32 %v3821, %v3640
          %v3823 = vrot.slane %v3822, 4
          %v3824 = vmax.f32 %v3822, %v3823
          %v3825 = vrot.slane %v3824, 2
          %v3826 = vmax.f32 %v3824, %v3825
          %v3827 = vrot.slane %v3826, 1
          %v3828 = vmax.f32 %v3826, %v3827
          %v3829 = vmax.f32 %v3627, %v3629
          %v3830 = vmax.f32 %v3829, %v3631
          %v3831 = vmax.f32 %v3830, %v3633
          %v3832 = vmax.f32 %v3831, %v3635
          %v3833 = vmax.f32 %v3832, %v3637
          %v3834 = vmax.f32 %v3833, %v3639
          %v3835 = vmax.f32 %v3834, %v3641
          %v3836 = vrot.slane %v3835, 4
          %v3837 = vmax.f32 %v3835, %v3836
          %v3838 = vrot.slane %v3837, 2
          %v3839 = vmax.f32 %v3837, %v3838
          %v3840 = vrot.slane %v3839, 1
          %v3841 = vmax.f32 %v3839, %v3840
          %v3842 = vmax.f32 %v3642, %v3644
          %v3843 = vmax.f32 %v3842, %v3646
          %v3844 = vmax.f32 %v3843, %v3648
          %v3845 = vmax.f32 %v3844, %v3650
          %v3846 = vmax.f32 %v3845, %v3652
          %v3847 = vmax.f32 %v3846, %v3654
          %v3848 = vmax.f32 %v3847, %v3656
          %v3849 = vrot.slane %v3848, 4
          %v3850 = vmax.f32 %v3848, %v3849
          %v3851 = vrot.slane %v3850, 2
          %v3852 = vmax.f32 %v3850, %v3851
          %v3853 = vrot.slane %v3852, 1
          %v3854 = vmax.f32 %v3852, %v3853
          %v3855 = vmax.f32 %v3643, %v3645
          %v3856 = vmax.f32 %v3855, %v3647
          %v3857 = vmax.f32 %v3856, %v3649
          %v3858 = vmax.f32 %v3857, %v3651
          %v3859 = vmax.f32 %v3858, %v3653
          %v3860 = vmax.f32 %v3859, %v3655
          %v3861 = vmax.f32 %v3860, %v3657
          %v3862 = vrot.slane %v3861, 4
          %v3863 = vmax.f32 %v3861, %v3862
          %v3864 = vrot.slane %v3863, 2
          %v3865 = vmax.f32 %v3863, %v3864
          %v3866 = vrot.slane %v3865, 1
          %v3867 = vmax.f32 %v3865, %v3866
          %vm3884 = vcmask 1041409
          %v3885 = vsel %vm3884, %v3698, %v3672
          %vm3886 = vcmask 1042434
          %v3887 = vsel %vm3886, %v3724, %v3885
          %vm3888 = vcmask 1043459
          %v3889 = vsel %vm3888, %v3750, %v3887
          %vm3890 = vcmask 1044484
          %v3891 = vsel %vm3890, %v3776, %v3889
          %vm3892 = vcmask 1045509
          %v3893 = vsel %vm3892, %v3802, %v3891
          %vm3894 = vcmask 1046534
          %v3895 = vsel %vm3894, %v3828, %v3893
          %vm3896 = vcmask 1047559
          %v3897 = vsel %vm3896, %v3854, %v3895
          %v3898 = vsel %vm3884, %v3711, %v3685
          %v3899 = vsel %vm3886, %v3737, %v3898
          %v3900 = vsel %vm3888, %v3763, %v3899
          %v3901 = vsel %vm3890, %v3789, %v3900
          %v3902 = vsel %vm3892, %v3815, %v3901
          %v3903 = vsel %vm3894, %v3841, %v3902
          %v3904 = vsel %vm3896, %v3867, %v3903
          %v3907 = vmax.f32 %v3658, %v3897
          %v3908 = vmax.f32 %v3659, %v3904
          %3909 = vst [vmem:[#allocation2 + $0x10] sm:$0xff] %v3907
          %3910 = vst [vmem:[#allocation2 + $0x18] sm:$0xff] %v3908
        $region144: #{get_transform_forward.1} parent=119 // pred_fallthru
          _
        %v3911 = vld [vmem:[%s5 + $0x10] sm:$0xff]
        %v3912 = vld [vmem:[%s5 + $0x30] sm:$0xff]
        %v3913 = vld [vmem:[%s5 + $0x50] sm:$0xff]
        %v3914 = vld [vmem:[%s5 + $0x70] sm:$0xff]
        %v3915 = vld [vmem:[%s5 + $0x90] sm:$0xff]
        %v3916 = vld [vmem:[%s5 + $0xb0] sm:$0xff]
        %v3917 = vld [vmem:[%s5 + $0xd0] sm:$0xff]
        %v3918 = vld [vmem:[%s5 + $0xf0] sm:$0xff]
        %v3919 = vld [vmem:[%s5 + $0x110] sm:$0xff]
        %v3920 = vld [vmem:[%s5 + $0x130] sm:$0xff]
        %v3921 = vld [vmem:[%s5 + $0x150] sm:$0xff]
        %v3922 = vld [vmem:[%s5 + $0x170] sm:$0xff]
        %v3923 = vld [vmem:[%s5 + $0x190] sm:$0xff]
        %v3924 = vld [vmem:[%s5 + $0x1b0] sm:$0xff]
        %v3925 = vld [vmem:[%s5 + $0x1d0] sm:$0xff]
        %v3926 = vld [vmem:[%s5 + $0x1f0] sm:$0xff]
        %v3943 = vunpack.c.l.b16 %v3911
        %v3944 = vunpack.c.h.b16 %v3911
        %v3945 = vunpack.c.l.b16 %v3912
        %v3946 = vunpack.c.h.b16 %v3912
        %v3947 = vunpack.c.l.b16 %v3913
        %v3948 = vunpack.c.h.b16 %v3913
        %v3949 = vunpack.c.l.b16 %v3914
        %v3950 = vunpack.c.h.b16 %v3914
        %v3951 = vunpack.c.l.b16 %v3915
        %v3952 = vunpack.c.h.b16 %v3915
        %v3953 = vunpack.c.l.b16 %v3916
        %v3954 = vunpack.c.h.b16 %v3916
        %v3955 = vunpack.c.l.b16 %v3917
        %v3956 = vunpack.c.h.b16 %v3917
        %v3957 = vunpack.c.l.b16 %v3918
        %v3958 = vunpack.c.h.b16 %v3918
        %v3959 = vunpack.c.l.b16 %v3919
        %v3960 = vunpack.c.h.b16 %v3919
        %v3961 = vunpack.c.l.b16 %v3920
        %v3962 = vunpack.c.h.b16 %v3920
        %v3963 = vunpack.c.l.b16 %v3921
        %v3964 = vunpack.c.h.b16 %v3921
        %v3965 = vunpack.c.l.b16 %v3922
        %v3966 = vunpack.c.h.b16 %v3922
        %v3967 = vunpack.c.l.b16 %v3923
        %v3968 = vunpack.c.h.b16 %v3923
        %v3969 = vunpack.c.l.b16 %v3924
        %v3970 = vunpack.c.h.b16 %v3924
        %v3971 = vunpack.c.l.b16 %v3925
        %v3972 = vunpack.c.h.b16 %v3925
        %v3973 = vunpack.c.l.b16 %v3926
        %v3974 = vunpack.c.h.b16 %v3926
        %v3975 = vpack.c.b16 %v3945, %v3943
        %v3976 = vpack.c.b16 %v3946, %v3944
        %v3977 = vpack.c.b16 %v3949, %v3947
        %v3978 = vpack.c.b16 %v3950, %v3948
        %v3979 = vpack.c.b16 %v3953, %v3951
        %v3980 = vpack.c.b16 %v3954, %v3952
        %v3981 = vpack.c.b16 %v3957, %v3955
        %v3982 = vpack.c.b16 %v3958, %v3956
        %v3983 = vpack.c.b16 %v3961, %v3959
        %v3984 = vpack.c.b16 %v3962, %v3960
        %v3985 = vpack.c.b16 %v3965, %v3963
        %v3986 = vpack.c.b16 %v3966, %v3964
        %v3987 = vpack.c.b16 %v3969, %v3967
        %v3988 = vpack.c.b16 %v3970, %v3968
        %v3989 = vpack.c.b16 %v3973, %v3971
        %v3990 = vpack.c.b16 %v3974, %v3972
        %4007 = vmatpush.bf16.msra.mxu0 %v3989
        %4008 = vmatpush.bf16.msra.mxu0 %v3987
        %4009 = vmatpush.bf16.msra.mxu0 %v3985
        %4010 = vmatpush.bf16.msra.mxu0 %v3983
        %4011 = vmatpush.bf16.msra.mxu0 %v3981
        %4012 = vmatpush.bf16.msra.mxu0 %v3979
        %4013 = vmatpush.bf16.msra.mxu0 %v3977
        %4014 = vmatpush.bf16.msra.mxu0 %v3975
        %4015 = vmatmul.bf16.gmra.mxu0 %v1670
        %v4016 = vpop.f32.mrf.mxu0
        %v4017 = vadd.f32 0.0, %v4016
        %v4018 = vpop.f32.mrf.mxu0
        %v4019 = vadd.f32 0.0, %v4018
        %4020 = vmatmul.bf16.gmra.mxu0 %v1671
        %v4021 = vpop.f32.mrf.mxu0
        %v4022 = vadd.f32 0.0, %v4021
        %v4023 = vpop.f32.mrf.mxu0
        %v4024 = vadd.f32 0.0, %v4023
        %4025 = vmatmul.bf16.gmra.mxu0 %v1672
        %v4026 = vpop.f32.mrf.mxu0
        %v4027 = vadd.f32 0.0, %v4026
        %v4028 = vpop.f32.mrf.mxu0
        %v4029 = vadd.f32 0.0, %v4028
        %4030 = vmatmul.bf16.gmra.mxu0 %v1673
        %v4031 = vpop.f32.mrf.mxu0
        %v4032 = vadd.f32 0.0, %v4031
        %v4033 = vpop.f32.mrf.mxu0
        %v4034 = vadd.f32 0.0, %v4033
        %4035 = vmatmul.bf16.gmra.mxu0 %v1674
        %v4036 = vpop.f32.mrf.mxu0
        %v4037 = vadd.f32 0.0, %v4036
        %v4038 = vpop.f32.mrf.mxu0
        %v4039 = vadd.f32 0.0, %v4038
        %4040 = vmatmul.bf16.gmra.mxu0 %v1675
        %v4041 = vpop.f32.mrf.mxu0
        %v4042 = vadd.f32 0.0, %v4041
        %v4043 = vpop.f32.mrf.mxu0
        %v4044 = vadd.f32 0.0, %v4043
        %4045 = vmatmul.bf16.gmra.mxu0 %v1676
        %v4046 = vpop.f32.mrf.mxu0
        %v4047 = vadd.f32 0.0, %v4046
        %v4048 = vpop.f32.mrf.mxu0
        %v4049 = vadd.f32 0.0, %v4048
        %4050 = vmatmul.bf16.gmra.mxu0 %v1677
        %v4051 = vpop.f32.mrf.mxu0
        %v4052 = vadd.f32 0.0, %v4051
        %v4053 = vpop.f32.mrf.mxu0
        %v4054 = vadd.f32 0.0, %v4053
        %4055 = vmatmul.bf16.gmra.mxu0 %v1678
        %v4056 = vpop.f32.mrf.mxu0
        %v4057 = vadd.f32 0.0, %v4056
        %v4058 = vpop.f32.mrf.mxu0
        %v4059 = vadd.f32 0.0, %v4058
        %4060 = vmatmul.bf16.gmra.mxu0 %v1679
        %v4061 = vpop.f32.mrf.mxu0
        %v4062 = vadd.f32 0.0, %v4061
        %v4063 = vpop.f32.mrf.mxu0
        %v4064 = vadd.f32 0.0, %v4063
        %4065 = vmatmul.bf16.gmra.mxu0 %v1680
        %v4066 = vpop.f32.mrf.mxu0
        %v4067 = vadd.f32 0.0, %v4066
        %v4068 = vpop.f32.mrf.mxu0
        %v4069 = vadd.f32 0.0, %v4068
        %4070 = vmatmul.bf16.gmra.mxu0 %v1681
        %v4071 = vpop.f32.mrf.mxu0
        %v4072 = vadd.f32 0.0, %v4071
        %v4073 = vpop.f32.mrf.mxu0
        %v4074 = vadd.f32 0.0, %v4073
        %4075 = vmatmul.bf16.gmra.mxu0 %v1682
        %v4076 = vpop.f32.mrf.mxu0
        %v4077 = vadd.f32 0.0, %v4076
        %v4078 = vpop.f32.mrf.mxu0
        %v4079 = vadd.f32 0.0, %v4078
        %4080 = vmatmul.bf16.gmra.mxu0 %v1683
        %v4081 = vpop.f32.mrf.mxu0
        %v4082 = vadd.f32 0.0, %v4081
        %v4083 = vpop.f32.mrf.mxu0
        %v4084 = vadd.f32 0.0, %v4083
        %4085 = vmatmul.bf16.gmra.mxu0 %v1684
        %v4086 = vpop.f32.mrf.mxu0
        %v4087 = vadd.f32 0.0, %v4086
        %v4088 = vpop.f32.mrf.mxu0
        %v4089 = vadd.f32 0.0, %v4088
        %4090 = vmatmul.bf16.gmra.mxu0 %v1685
        %v4091 = vpop.f32.mrf.mxu0
        %v4092 = vadd.f32 0.0, %v4091
        %v4093 = vpop.f32.mrf.mxu0
        %v4094 = vadd.f32 0.0, %v4093
        %4095 = vmatmul.bf16.gmra.mxu0 %v1686
        %v4096 = vpop.f32.mrf.mxu0
        %v4097 = vadd.f32 0.0, %v4096
        %v4098 = vpop.f32.mrf.mxu0
        %v4099 = vadd.f32 0.0, %v4098
        %4100 = vmatmul.bf16.gmra.mxu0 %v1687
        %v4101 = vpop.f32.mrf.mxu0
        %v4102 = vadd.f32 0.0, %v4101
        %v4103 = vpop.f32.mrf.mxu0
        %v4104 = vadd.f32 0.0, %v4103
        %4105 = vmatmul.bf16.gmra.mxu0 %v1688
        %v4106 = vpop.f32.mrf.mxu0
        %v4107 = vadd.f32 0.0, %v4106
        %v4108 = vpop.f32.mrf.mxu0
        %v4109 = vadd.f32 0.0, %v4108
        %4110 = vmatmul.bf16.gmra.mxu0 %v1689
        %v4111 = vpop.f32.mrf.mxu0
        %v4112 = vadd.f32 0.0, %v4111
        %v4113 = vpop.f32.mrf.mxu0
        %v4114 = vadd.f32 0.0, %v4113
        %4115 = vmatmul.bf16.gmra.mxu0 %v1690
        %v4116 = vpop.f32.mrf.mxu0
        %v4117 = vadd.f32 0.0, %v4116
        %v4118 = vpop.f32.mrf.mxu0
        %v4119 = vadd.f32 0.0, %v4118
        %4120 = vmatmul.bf16.gmra.mxu0 %v1691
        %v4121 = vpop.f32.mrf.mxu0
        %v4122 = vadd.f32 0.0, %v4121
        %v4123 = vpop.f32.mrf.mxu0
        %v4124 = vadd.f32 0.0, %v4123
        %4125 = vmatmul.bf16.gmra.mxu0 %v1692
        %v4126 = vpop.f32.mrf.mxu0
        %v4127 = vadd.f32 0.0, %v4126
        %v4128 = vpop.f32.mrf.mxu0
        %v4129 = vadd.f32 0.0, %v4128
        %4130 = vmatmul.bf16.gmra.mxu0 %v1693
        %v4131 = vpop.f32.mrf.mxu0
        %v4132 = vadd.f32 0.0, %v4131
        %v4133 = vpop.f32.mrf.mxu0
        %v4134 = vadd.f32 0.0, %v4133
        %4135 = vmatmul.bf16.gmra.mxu0 %v1694
        %v4136 = vpop.f32.mrf.mxu0
        %v4137 = vadd.f32 0.0, %v4136
        %v4138 = vpop.f32.mrf.mxu0
        %v4139 = vadd.f32 0.0, %v4138
        %4140 = vmatmul.bf16.gmra.mxu0 %v1695
        %v4141 = vpop.f32.mrf.mxu0
        %v4142 = vadd.f32 0.0, %v4141
        %v4143 = vpop.f32.mrf.mxu0
        %v4144 = vadd.f32 0.0, %v4143
        %4145 = vmatmul.bf16.gmra.mxu0 %v1696
        %v4146 = vpop.f32.mrf.mxu0
        %v4147 = vadd.f32 0.0, %v4146
        %v4148 = vpop.f32.mrf.mxu0
        %v4149 = vadd.f32 0.0, %v4148
        %4150 = vmatmul.bf16.gmra.mxu0 %v1697
        %v4151 = vpop.f32.mrf.mxu0
        %v4152 = vadd.f32 0.0, %v4151
        %v4153 = vpop.f32.mrf.mxu0
        %v4154 = vadd.f32 0.0, %v4153
        %4155 = vmatmul.bf16.gmra.mxu0 %v1698
        %v4156 = vpop.f32.mrf.mxu0
        %v4157 = vadd.f32 0.0, %v4156
        %v4158 = vpop.f32.mrf.mxu0
        %v4159 = vadd.f32 0.0, %v4158
        %4160 = vmatmul.bf16.gmra.mxu0 %v1699
        %v4161 = vpop.f32.mrf.mxu0
        %v4162 = vadd.f32 0.0, %v4161
        %v4163 = vpop.f32.mrf.mxu0
        %v4164 = vadd.f32 0.0, %v4163
        %4165 = vmatmul.bf16.gmra.mxu0 %v1700
        %v4166 = vpop.f32.mrf.mxu0
        %v4167 = vadd.f32 0.0, %v4166
        %v4168 = vpop.f32.mrf.mxu0
        %v4169 = vadd.f32 0.0, %v4168
        %4170 = vmatmul.bf16.gmra.mxu0 %v1701
        %v4171 = vpop.f32.mrf.mxu0
        %v4172 = vadd.f32 0.0, %v4171
        %v4173 = vpop.f32.mrf.mxu0
        %v4174 = vadd.f32 0.0, %v4173
        %4175 = vdwg.mxu0
        %4176 = vmatpush.bf16.msra.mxu0 %v3990
        %4177 = vmatpush.bf16.msra.mxu0 %v3988
        %4178 = vmatpush.bf16.msra.mxu0 %v3986
        %4179 = vmatpush.bf16.msra.mxu0 %v3984
        %4180 = vmatpush.bf16.msra.mxu0 %v3982
        %4181 = vmatpush.bf16.msra.mxu0 %v3980
        %4182 = vmatpush.bf16.msra.mxu0 %v3978
        %4183 = vmatpush.bf16.msra.mxu0 %v3976
        %4184 = vmatmul.bf16.gmra.mxu0 %v1670
        %v4185 = vpop.f32.mrf.mxu0
        %v4186 = vadd.f32 0.0, %v4185
        %v4187 = vpop.f32.mrf.mxu0
        %v4188 = vadd.f32 0.0, %v4187
        %4189 = vmatmul.bf16.gmra.mxu0 %v1671
        %v4190 = vpop.f32.mrf.mxu0
        %v4191 = vadd.f32 0.0, %v4190
        %v4192 = vpop.f32.mrf.mxu0
        %v4193 = vadd.f32 0.0, %v4192
        %4194 = vmatmul.bf16.gmra.mxu0 %v1672
        %v4195 = vpop.f32.mrf.mxu0
        %v4196 = vadd.f32 0.0, %v4195
        %v4197 = vpop.f32.mrf.mxu0
        %v4198 = vadd.f32 0.0, %v4197
        %4199 = vmatmul.bf16.gmra.mxu0 %v1673
        %v4200 = vpop.f32.mrf.mxu0
        %v4201 = vadd.f32 0.0, %v4200
        %v4202 = vpop.f32.mrf.mxu0
        %v4203 = vadd.f32 0.0, %v4202
        %4204 = vmatmul.bf16.gmra.mxu0 %v1674
        %v4205 = vpop.f32.mrf.mxu0
        %v4206 = vadd.f32 0.0, %v4205
        %v4207 = vpop.f32.mrf.mxu0
        %v4208 = vadd.f32 0.0, %v4207
        %4209 = vmatmul.bf16.gmra.mxu0 %v1675
        %v4210 = vpop.f32.mrf.mxu0
        %v4211 = vadd.f32 0.0, %v4210
        %v4212 = vpop.f32.mrf.mxu0
        %v4213 = vadd.f32 0.0, %v4212
        %4214 = vmatmul.bf16.gmra.mxu0 %v1676
        %v4215 = vpop.f32.mrf.mxu0
        %v4216 = vadd.f32 0.0, %v4215
        %v4217 = vpop.f32.mrf.mxu0
        %v4218 = vadd.f32 0.0, %v4217
        %4219 = vmatmul.bf16.gmra.mxu0 %v1677
        %v4220 = vpop.f32.mrf.mxu0
        %v4221 = vadd.f32 0.0, %v4220
        %v4222 = vpop.f32.mrf.mxu0
        %v4223 = vadd.f32 0.0, %v4222
        %4224 = vmatmul.bf16.gmra.mxu0 %v1678
        %v4225 = vpop.f32.mrf.mxu0
        %v4226 = vadd.f32 0.0, %v4225
        %v4227 = vpop.f32.mrf.mxu0
        %v4228 = vadd.f32 0.0, %v4227
        %4229 = vmatmul.bf16.gmra.mxu0 %v1679
        %v4230 = vpop.f32.mrf.mxu0
        %v4231 = vadd.f32 0.0, %v4230
        %v4232 = vpop.f32.mrf.mxu0
        %v4233 = vadd.f32 0.0, %v4232
        %4234 = vmatmul.bf16.gmra.mxu0 %v1680
        %v4235 = vpop.f32.mrf.mxu0
        %v4236 = vadd.f32 0.0, %v4235
        %v4237 = vpop.f32.mrf.mxu0
        %v4238 = vadd.f32 0.0, %v4237
        %4239 = vmatmul.bf16.gmra.mxu0 %v1681
        %v4240 = vpop.f32.mrf.mxu0
        %v4241 = vadd.f32 0.0, %v4240
        %v4242 = vpop.f32.mrf.mxu0
        %v4243 = vadd.f32 0.0, %v4242
        %4244 = vmatmul.bf16.gmra.mxu0 %v1682
        %v4245 = vpop.f32.mrf.mxu0
        %v4246 = vadd.f32 0.0, %v4245
        %v4247 = vpop.f32.mrf.mxu0
        %v4248 = vadd.f32 0.0, %v4247
        %4249 = vmatmul.bf16.gmra.mxu0 %v1683
        %v4250 = vpop.f32.mrf.mxu0
        %v4251 = vadd.f32 0.0, %v4250
        %v4252 = vpop.f32.mrf.mxu0
        %v4253 = vadd.f32 0.0, %v4252
        %4254 = vmatmul.bf16.gmra.mxu0 %v1684
        %v4255 = vpop.f32.mrf.mxu0
        %v4256 = vadd.f32 0.0, %v4255
        %v4257 = vpop.f32.mrf.mxu0
        %v4258 = vadd.f32 0.0, %v4257
        %4259 = vmatmul.bf16.gmra.mxu0 %v1685
        %v4260 = vpop.f32.mrf.mxu0
        %v4261 = vadd.f32 0.0, %v4260
        %v4262 = vpop.f32.mrf.mxu0
        %v4263 = vadd.f32 0.0, %v4262
        %4264 = vmatmul.bf16.gmra.mxu0 %v1686
        %v4265 = vpop.f32.mrf.mxu0
        %v4266 = vadd.f32 0.0, %v4265
        %v4267 = vpop.f32.mrf.mxu0
        %v4268 = vadd.f32 0.0, %v4267
        %4269 = vmatmul.bf16.gmra.mxu0 %v1687
        %v4270 = vpop.f32.mrf.mxu0
        %v4271 = vadd.f32 0.0, %v4270
        %v4272 = vpop.f32.mrf.mxu0
        %v4273 = vadd.f32 0.0, %v4272
        %4274 = vmatmul.bf16.gmra.mxu0 %v1688
        %v4275 = vpop.f32.mrf.mxu0
        %v4276 = vadd.f32 0.0, %v4275
        %v4277 = vpop.f32.mrf.mxu0
        %v4278 = vadd.f32 0.0, %v4277
        %4279 = vmatmul.bf16.gmra.mxu0 %v1689
        %v4280 = vpop.f32.mrf.mxu0
        %v4281 = vadd.f32 0.0, %v4280
        %v4282 = vpop.f32.mrf.mxu0
        %v4283 = vadd.f32 0.0, %v4282
        %4284 = vmatmul.bf16.gmra.mxu0 %v1690
        %v4285 = vpop.f32.mrf.mxu0
        %v4286 = vadd.f32 0.0, %v4285
        %v4287 = vpop.f32.mrf.mxu0
        %v4288 = vadd.f32 0.0, %v4287
        %4289 = vmatmul.bf16.gmra.mxu0 %v1691
        %v4290 = vpop.f32.mrf.mxu0
        %v4291 = vadd.f32 0.0, %v4290
        %v4292 = vpop.f32.mrf.mxu0
        %v4293 = vadd.f32 0.0, %v4292
        %4294 = vmatmul.bf16.gmra.mxu0 %v1692
        %v4295 = vpop.f32.mrf.mxu0
        %v4296 = vadd.f32 0.0, %v4295
        %v4297 = vpop.f32.mrf.mxu0
        %v4298 = vadd.f32 0.0, %v4297
        %4299 = vmatmul.bf16.gmra.mxu0 %v1693
        %v4300 = vpop.f32.mrf.mxu0
        %v4301 = vadd.f32 0.0, %v4300
        %v4302 = vpop.f32.mrf.mxu0
        %v4303 = vadd.f32 0.0, %v4302
        %4304 = vmatmul.bf16.gmra.mxu0 %v1694
        %v4305 = vpop.f32.mrf.mxu0
        %v4306 = vadd.f32 0.0, %v4305
        %v4307 = vpop.f32.mrf.mxu0
        %v4308 = vadd.f32 0.0, %v4307
        %4309 = vmatmul.bf16.gmra.mxu0 %v1695
        %v4310 = vpop.f32.mrf.mxu0
        %v4311 = vadd.f32 0.0, %v4310
        %v4312 = vpop.f32.mrf.mxu0
        %v4313 = vadd.f32 0.0, %v4312
        %4314 = vmatmul.bf16.gmra.mxu0 %v1696
        %v4315 = vpop.f32.mrf.mxu0
        %v4316 = vadd.f32 0.0, %v4315
        %v4317 = vpop.f32.mrf.mxu0
        %v4318 = vadd.f32 0.0, %v4317
        %4319 = vmatmul.bf16.gmra.mxu0 %v1697
        %v4320 = vpop.f32.mrf.mxu0
        %v4321 = vadd.f32 0.0, %v4320
        %v4322 = vpop.f32.mrf.mxu0
        %v4323 = vadd.f32 0.0, %v4322
        %4324 = vmatmul.bf16.gmra.mxu0 %v1698
        %v4325 = vpop.f32.mrf.mxu0
        %v4326 = vadd.f32 0.0, %v4325
        %v4327 = vpop.f32.mrf.mxu0
        %v4328 = vadd.f32 0.0, %v4327
        %4329 = vmatmul.bf16.gmra.mxu0 %v1699
        %v4330 = vpop.f32.mrf.mxu0
        %v4331 = vadd.f32 0.0, %v4330
        %v4332 = vpop.f32.mrf.mxu0
        %v4333 = vadd.f32 0.0, %v4332
        %4334 = vmatmul.bf16.gmra.mxu0 %v1700
        %v4335 = vpop.f32.mrf.mxu0
        %v4336 = vadd.f32 0.0, %v4335
        %v4337 = vpop.f32.mrf.mxu0
        %v4338 = vadd.f32 0.0, %v4337
        %4339 = vmatmul.bf16.gmra.mxu0 %v1701
        %v4340 = vpop.f32.mrf.mxu0
        %v4341 = vadd.f32 0.0, %v4340
        %v4342 = vpop.f32.mrf.mxu0
        %v4343 = vadd.f32 0.0, %v4342
        %4344 = vdwg.mxu0
        // Predicated region
        $region145: #{get_transform_forward.1} parent=119 // pred_check
          %p4345 = pneg %p2163
        $region146: #{get_transform_forward.1} parent=119 // pred_check_branch
          %4347 = sbr.rel (%p4345) target = $region148
        $region147: #{get_transform_forward.1} parent=119 // pred_region
          %v4348 = vld [vmem:[#allocation2 + $0x20] sm:$0xff]
          %v4349 = vld [vmem:[#allocation2 + $0x28] sm:$0xff]
          %v4350 = vmax.f32 %v4017, %v4019
          %v4351 = vmax.f32 %v4350, %v4022
          %v4352 = vmax.f32 %v4351, %v4024
          %v4353 = vmax.f32 %v4352, %v4027
          %v4354 = vmax.f32 %v4353, %v4029
          %v4355 = vmax.f32 %v4354, %v4032
          %v4356 = vmax.f32 %v4355, %v4034
          %v4357 = vrot.slane %v4356, 4
          %v4358 = vmax.f32 %v4356, %v4357
          %v4359 = vrot.slane %v4358, 2
          %v4360 = vmax.f32 %v4358, %v4359
          %v4361 = vrot.slane %v4360, 1
          %v4362 = vmax.f32 %v4360, %v4361
          %v4363 = vmax.f32 %v4186, %v4188
          %v4364 = vmax.f32 %v4363, %v4191
          %v4365 = vmax.f32 %v4364, %v4193
          %v4366 = vmax.f32 %v4365, %v4196
          %v4367 = vmax.f32 %v4366, %v4198
          %v4368 = vmax.f32 %v4367, %v4201
          %v4369 = vmax.f32 %v4368, %v4203
          %v4370 = vrot.slane %v4369, 4
          %v4371 = vmax.f32 %v4369, %v4370
          %v4372 = vrot.slane %v4371, 2
          %v4373 = vmax.f32 %v4371, %v4372
          %v4374 = vrot.slane %v4373, 1
          %v4375 = vmax.f32 %v4373, %v4374
          %v4376 = vmax.f32 %v4037, %v4039
          %v4377 = vmax.f32 %v4376, %v4042
          %v4378 = vmax.f32 %v4377, %v4044
          %v4379 = vmax.f32 %v4378, %v4047
          %v4380 = vmax.f32 %v4379, %v4049
          %v4381 = vmax.f32 %v4380, %v4052
          %v4382 = vmax.f32 %v4381, %v4054
          %v4383 = vrot.slane %v4382, 4
          %v4384 = vmax.f32 %v4382, %v4383
          %v4385 = vrot.slane %v4384, 2
          %v4386 = vmax.f32 %v4384, %v4385
          %v4387 = vrot.slane %v4386, 1
          %v4388 = vmax.f32 %v4386, %v4387
          %v4389 = vmax.f32 %v4206, %v4208
          %v4390 = vmax.f32 %v4389, %v4211
          %v4391 = vmax.f32 %v4390, %v4213
          %v4392 = vmax.f32 %v4391, %v4216
          %v4393 = vmax.f32 %v4392, %v4218
          %v4394 = vmax.f32 %v4393, %v4221
          %v4395 = vmax.f32 %v4394, %v4223
          %v4396 = vrot.slane %v4395, 4
          %v4397 = vmax.f32 %v4395, %v4396
          %v4398 = vrot.slane %v4397, 2
          %v4399 = vmax.f32 %v4397, %v4398
          %v4400 = vrot.slane %v4399, 1
          %v4401 = vmax.f32 %v4399, %v4400
          %v4402 = vmax.f32 %v4057, %v4059
          %v4403 = vmax.f32 %v4402, %v4062
          %v4404 = vmax.f32 %v4403, %v4064
          %v4405 = vmax.f32 %v4404, %v4067
          %v4406 = vmax.f32 %v4405, %v4069
          %v4407 = vmax.f32 %v4406, %v4072
          %v4408 = vmax.f32 %v4407, %v4074
          %v4409 = vrot.slane %v4408, 4
          %v4410 = vmax.f32 %v4408, %v4409
          %v4411 = vrot.slane %v4410, 2
          %v4412 = vmax.f32 %v4410, %v4411
          %v4413 = vrot.slane %v4412, 1
          %v4414 = vmax.f32 %v4412, %v4413
          %v4415 = vmax.f32 %v4226, %v4228
          %v4416 = vmax.f32 %v4415, %v4231
          %v4417 = vmax.f32 %v4416, %v4233
          %v4418 = vmax.f32 %v4417, %v4236
          %v4419 = vmax.f32 %v4418, %v4238
          %v4420 = vmax.f32 %v4419, %v4241
          %v4421 = vmax.f32 %v4420, %v4243
          %v4422 = vrot.slane %v4421, 4
          %v4423 = vmax.f32 %v4421, %v4422
          %v4424 = vrot.slane %v4423, 2
          %v4425 = vmax.f32 %v4423, %v4424
          %v4426 = vrot.slane %v4425, 1
          %v4427 = vmax.f32 %v4425, %v4426
          %v4428 = vmax.f32 %v4077, %v4079
          %v4429 = vmax.f32 %v4428, %v4082
          %v4430 = vmax.f32 %v4429, %v4084
          %v4431 = vmax.f32 %v4430, %v4087
          %v4432 = vmax.f32 %v4431, %v4089
          %v4433 = vmax.f32 %v4432, %v4092
          %v4434 = vmax.f32 %v4433, %v4094
          %v4435 = vrot.slane %v4434, 4
          %v4436 = vmax.f32 %v4434, %v4435
          %v4437 = vrot.slane %v4436, 2
          %v4438 = vmax.f32 %v4436, %v4437
          %v4439 = vrot.slane %v4438, 1
          %v4440 = vmax.f32 %v4438, %v4439
          %v4441 = vmax.f32 %v4246, %v4248
          %v4442 = vmax.f32 %v4441, %v4251
          %v4443 = vmax.f32 %v4442, %v4253
          %v4444 = vmax.f32 %v4443, %v4256
          %v4445 = vmax.f32 %v4444, %v4258
          %v4446 = vmax.f32 %v4445, %v4261
          %v4447 = vmax.f32 %v4446, %v4263
          %v4448 = vrot.slane %v4447, 4
          %v4449 = vmax.f32 %v4447, %v4448
          %v4450 = vrot.slane %v4449, 2
          %v4451 = vmax.f32 %v4449, %v4450
          %v4452 = vrot.slane %v4451, 1
          %v4453 = vmax.f32 %v4451, %v4452
          %v4454 = vmax.f32 %v4097, %v4099
          %v4455 = vmax.f32 %v4454, %v4102
          %v4456 = vmax.f32 %v4455, %v4104
          %v4457 = vmax.f32 %v4456, %v4107
          %v4458 = vmax.f32 %v4457, %v4109
          %v4459 = vmax.f32 %v4458, %v4112
          %v4460 = vmax.f32 %v4459, %v4114
          %v4461 = vrot.slane %v4460, 4
          %v4462 = vmax.f32 %v4460, %v4461
          %v4463 = vrot.slane %v4462, 2
          %v4464 = vmax.f32 %v4462, %v4463
          %v4465 = vrot.slane %v4464, 1
          %v4466 = vmax.f32 %v4464, %v4465
          %v4467 = vmax.f32 %v4266, %v4268
          %v4468 = vmax.f32 %v4467, %v4271
          %v4469 = vmax.f32 %v4468, %v4273
          %v4470 = vmax.f32 %v4469, %v4276
          %v4471 = vmax.f32 %v4470, %v4278
          %v4472 = vmax.f32 %v4471, %v4281
          %v4473 = vmax.f32 %v4472, %v4283
          %v4474 = vrot.slane %v4473, 4
          %v4475 = vmax.f32 %v4473, %v4474
          %v4476 = vrot.slane %v4475, 2
          %v4477 = vmax.f32 %v4475, %v4476
          %v4478 = vrot.slane %v4477, 1
          %v4479 = vmax.f32 %v4477, %v4478
          %v4480 = vmax.f32 %v4117, %v4119
          %v4481 = vmax.f32 %v4480, %v4122
          %v4482 = vmax.f32 %v4481, %v4124
          %v4483 = vmax.f32 %v4482, %v4127
          %v4484 = vmax.f32 %v4483, %v4129
          %v4485 = vmax.f32 %v4484, %v4132
          %v4486 = vmax.f32 %v4485, %v4134
          %v4487 = vrot.slane %v4486, 4
          %v4488 = vmax.f32 %v4486, %v4487
          %v4489 = vrot.slane %v4488, 2
          %v4490 = vmax.f32 %v4488, %v4489
          %v4491 = vrot.slane %v4490, 1
          %v4492 = vmax.f32 %v4490, %v4491
          %v4493 = vmax.f32 %v4286, %v4288
          %v4494 = vmax.f32 %v4493, %v4291
          %v4495 = vmax.f32 %v4494, %v4293
          %v4496 = vmax.f32 %v4495, %v4296
          %v4497 = vmax.f32 %v4496, %v4298
          %v4498 = vmax.f32 %v4497, %v4301
          %v4499 = vmax.f32 %v4498, %v4303
          %v4500 = vrot.slane %v4499, 4
          %v4501 = vmax.f32 %v4499, %v4500
          %v4502 = vrot.slane %v4501, 2
          %v4503 = vmax.f32 %v4501, %v4502
          %v4504 = vrot.slane %v4503, 1
          %v4505 = vmax.f32 %v4503, %v4504
          %v4506 = vmax.f32 %v4137, %v4139
          %v4507 = vmax.f32 %v4506, %v4142
          %v4508 = vmax.f32 %v4507, %v4144
          %v4509 = vmax.f32 %v4508, %v4147
          %v4510 = vmax.f32 %v4509, %v4149
          %v4511 = vmax.f32 %v4510, %v4152
          %v4512 = vmax.f32 %v4511, %v4154
          %v4513 = vrot.slane %v4512, 4
          %v4514 = vmax.f32 %v4512, %v4513
          %v4515 = vrot.slane %v4514, 2
          %v4516 = vmax.f32 %v4514, %v4515
          %v4517 = vrot.slane %v4516, 1
          %v4518 = vmax.f32 %v4516, %v4517
          %v4519 = vmax.f32 %v4306, %v4308
          %v4520 = vmax.f32 %v4519, %v4311
          %v4521 = vmax.f32 %v4520, %v4313
          %v4522 = vmax.f32 %v4521, %v4316
          %v4523 = vmax.f32 %v4522, %v4318
          %v4524 = vmax.f32 %v4523, %v4321
          %v4525 = vmax.f32 %v4524, %v4323
          %v4526 = vrot.slane %v4525, 4
          %v4527 = vmax.f32 %v4525, %v4526
          %v4528 = vrot.slane %v4527, 2
          %v4529 = vmax.f32 %v4527, %v4528
          %v4530 = vrot.slane %v4529, 1
          %v4531 = vmax.f32 %v4529, %v4530
          %v4532 = vmax.f32 %v4157, %v4159
          %v4533 = vmax.f32 %v4532, %v4162
          %v4534 = vmax.f32 %v4533, %v4164
          %v4535 = vmax.f32 %v4534, %v4167
          %v4536 = vmax.f32 %v4535, %v4169
          %v4537 = vmax.f32 %v4536, %v4172
          %v4538 = vmax.f32 %v4537, %v4174
          %v4539 = vrot.slane %v4538, 4
          %v4540 = vmax.f32 %v4538, %v4539
          %v4541 = vrot.slane %v4540, 2
          %v4542 = vmax.f32 %v4540, %v4541
          %v4543 = vrot.slane %v4542, 1
          %v4544 = vmax.f32 %v4542, %v4543
          %v4545 = vmax.f32 %v4326, %v4328
          %v4546 = vmax.f32 %v4545, %v4331
          %v4547 = vmax.f32 %v4546, %v4333
          %v4548 = vmax.f32 %v4547, %v4336
          %v4549 = vmax.f32 %v4548, %v4338
          %v4550 = vmax.f32 %v4549, %v4341
          %v4551 = vmax.f32 %v4550, %v4343
          %v4552 = vrot.slane %v4551, 4
          %v4553 = vmax.f32 %v4551, %v4552
          %v4554 = vrot.slane %v4553, 2
          %v4555 = vmax.f32 %v4553, %v4554
          %v4556 = vrot.slane %v4555, 1
          %v4557 = vmax.f32 %v4555, %v4556
          %vm4574 = vcmask 1041409
          %v4575 = vsel %vm4574, %v4388, %v4362
          %vm4576 = vcmask 1042434
          %v4577 = vsel %vm4576, %v4414, %v4575
          %vm4578 = vcmask 1043459
          %v4579 = vsel %vm4578, %v4440, %v4577
          %vm4580 = vcmask 1044484
          %v4581 = vsel %vm4580, %v4466, %v4579
          %vm4582 = vcmask 1045509
          %v4583 = vsel %vm4582, %v4492, %v4581
          %vm4584 = vcmask 1046534
          %v4585 = vsel %vm4584, %v4518, %v4583
          %vm4586 = vcmask 1047559
          %v4587 = vsel %vm4586, %v4544, %v4585
          %v4588 = vsel %vm4574, %v4401, %v4375
          %v4589 = vsel %vm4576, %v4427, %v4588
          %v4590 = vsel %vm4578, %v4453, %v4589
          %v4591 = vsel %vm4580, %v4479, %v4590
          %v4592 = vsel %vm4582, %v4505, %v4591
          %v4593 = vsel %vm4584, %v4531, %v4592
          %v4594 = vsel %vm4586, %v4557, %v4593
          %v4597 = vmax.f32 %v4348, %v4587
          %v4598 = vmax.f32 %v4349, %v4594
          %4599 = vst [vmem:[#allocation2 + $0x20] sm:$0xff] %v4597
          %4600 = vst [vmem:[#allocation2 + $0x28] sm:$0xff] %v4598
        $region148: #{get_transform_forward.1} parent=119 // pred_fallthru
          _
        // Predicated region
        $region149: #{get_transform_forward.1} parent=119 // pred_check
          %p4601 = pneg %p2420
        $region150: #{get_transform_forward.1} parent=119 // pred_check_branch
          %4603 = sbr.rel (%p4601) target = $region152
        $region151: #{get_transform_forward.1} parent=119 // pred_region
          %v4604 = vsel %vm1721, 1, 0
          %v4605 = vsel %vm1722, 1, 0
          %v4606 = vsel %vm1723, 1, 0
          %v4607 = vsel %vm1724, 1, 0
          %v4608 = vsel %vm1725, 1, 0
          %v4609 = vsel %vm1726, 1, 0
          %v4610 = vsel %vm1727, 1, 0
          %v4611 = vsel %vm1728, 1, 0
          %vm4612 = vcmp.eq.s32.totalorder %v4604, 1
          %vm4613 = vcmp.eq.s32.totalorder %v4605, 1
          %vm4614 = vcmp.eq.s32.totalorder %v4606, 1
          %vm4615 = vcmp.eq.s32.totalorder %v4607, 1
          %vm4616 = vcmp.eq.s32.totalorder %v4608, 1
          %vm4617 = vcmp.eq.s32.totalorder %v4609, 1
          %vm4618 = vcmp.eq.s32.totalorder %v4610, 1
          %vm4619 = vcmp.eq.s32.totalorder %v4611, 1
          %v4620 = vsel %vm4612, %v4017, -inf
          %v4621 = vsel %vm4612, %v4186, -inf
          %v4622 = vsel %vm4613, %v4019, -inf
          %v4623 = vsel %vm4613, %v4188, -inf
          %v4624 = vsel %vm4614, %v4022, -inf
          %v4625 = vsel %vm4614, %v4191, -inf
          %v4626 = vsel %vm4615, %v4024, -inf
          %v4627 = vsel %vm4615, %v4193, -inf
          %v4628 = vsel %vm4616, %v4027, -inf
          %v4629 = vsel %vm4616, %v4196, -inf
          %v4630 = vsel %vm4617, %v4029, -inf
          %v4631 = vsel %vm4617, %v4198, -inf
          %v4632 = vsel %vm4618, %v4032, -inf
          %v4633 = vsel %vm4618, %v4201, -inf
          %v4634 = vsel %vm4619, %v4034, -inf
          %v4635 = vsel %vm4619, %v4203, -inf
          %v4636 = vsel %vm4612, %v4037, -inf
          %v4637 = vsel %vm4612, %v4206, -inf
          %v4638 = vsel %vm4613, %v4039, -inf
          %v4639 = vsel %vm4613, %v4208, -inf
          %v4640 = vsel %vm4614, %v4042, -inf
          %v4641 = vsel %vm4614, %v4211, -inf
          %v4642 = vsel %vm4615, %v4044, -inf
          %v4643 = vsel %vm4615, %v4213, -inf
          %v4644 = vsel %vm4616, %v4047, -inf
          %v4645 = vsel %vm4616, %v4216, -inf
          %v4646 = vsel %vm4617, %v4049, -inf
          %v4647 = vsel %vm4617, %v4218, -inf
          %v4648 = vsel %vm4618, %v4052, -inf
          %v4649 = vsel %vm4618, %v4221, -inf
          %v4650 = vsel %vm4619, %v4054, -inf
          %v4651 = vsel %vm4619, %v4223, -inf
          %v4652 = vsel %vm4612, %v4057, -inf
          %v4653 = vsel %vm4612, %v4226, -inf
          %v4654 = vsel %vm4613, %v4059, -inf
          %v4655 = vsel %vm4613, %v4228, -inf
          %v4656 = vsel %vm4614, %v4062, -inf
          %v4657 = vsel %vm4614, %v4231, -inf
          %v4658 = vsel %vm4615, %v4064, -inf
          %v4659 = vsel %vm4615, %v4233, -inf
          %v4660 = vsel %vm4616, %v4067, -inf
          %v4661 = vsel %vm4616, %v4236, -inf
          %v4662 = vsel %vm4617, %v4069, -inf
          %v4663 = vsel %vm4617, %v4238, -inf
          %v4664 = vsel %vm4618, %v4072, -inf
          %v4665 = vsel %vm4618, %v4241, -inf
          %v4666 = vsel %vm4619, %v4074, -inf
          %v4667 = vsel %vm4619, %v4243, -inf
          %v4668 = vsel %vm4612, %v4077, -inf
          %v4669 = vsel %vm4612, %v4246, -inf
          %v4670 = vsel %vm4613, %v4079, -inf
          %v4671 = vsel %vm4613, %v4248, -inf
          %v4672 = vsel %vm4614, %v4082, -inf
          %v4673 = vsel %vm4614, %v4251, -inf
          %v4674 = vsel %vm4615, %v4084, -inf
          %v4675 = vsel %vm4615, %v4253, -inf
          %v4676 = vsel %vm4616, %v4087, -inf
          %v4677 = vsel %vm4616, %v4256, -inf
          %v4678 = vsel %vm4617, %v4089, -inf
          %v4679 = vsel %vm4617, %v4258, -inf
          %v4680 = vsel %vm4618, %v4092, -inf
          %v4681 = vsel %vm4618, %v4261, -inf
          %v4682 = vsel %vm4619, %v4094, -inf
          %v4683 = vsel %vm4619, %v4263, -inf
          %v4684 = vsel %vm4612, %v4097, -inf
          %v4685 = vsel %vm4612, %v4266, -inf
          %v4686 = vsel %vm4613, %v4099, -inf
          %v4687 = vsel %vm4613, %v4268, -inf
          %v4688 = vsel %vm4614, %v4102, -inf
          %v4689 = vsel %vm4614, %v4271, -inf
          %v4690 = vsel %vm4615, %v4104, -inf
          %v4691 = vsel %vm4615, %v4273, -inf
          %v4692 = vsel %vm4616, %v4107, -inf
          %v4693 = vsel %vm4616, %v4276, -inf
          %v4694 = vsel %vm4617, %v4109, -inf
          %v4695 = vsel %vm4617, %v4278, -inf
          %v4696 = vsel %vm4618, %v4112, -inf
          %v4697 = vsel %vm4618, %v4281, -inf
          %v4698 = vsel %vm4619, %v4114, -inf
          %v4699 = vsel %vm4619, %v4283, -inf
          %v4700 = vsel %vm4612, %v4117, -inf
          %v4701 = vsel %vm4612, %v4286, -inf
          %v4702 = vsel %vm4613, %v4119, -inf
          %v4703 = vsel %vm4613, %v4288, -inf
          %v4704 = vsel %vm4614, %v4122, -inf
          %v4705 = vsel %vm4614, %v4291, -inf
          %v4706 = vsel %vm4615, %v4124, -inf
          %v4707 = vsel %vm4615, %v4293, -inf
          %v4708 = vsel %vm4616, %v4127, -inf
          %v4709 = vsel %vm4616, %v4296, -inf
          %v4710 = vsel %vm4617, %v4129, -inf
          %v4711 = vsel %vm4617, %v4298, -inf
          %v4712 = vsel %vm4618, %v4132, -inf
          %v4713 = vsel %vm4618, %v4301, -inf
          %v4714 = vsel %vm4619, %v4134, -inf
          %v4715 = vsel %vm4619, %v4303, -inf
          %v4716 = vsel %vm4612, %v4137, -inf
          %v4717 = vsel %vm4612, %v4306, -inf
          %v4718 = vsel %vm4613, %v4139, -inf
          %v4719 = vsel %vm4613, %v4308, -inf
          %v4720 = vsel %vm4614, %v4142, -inf
          %v4721 = vsel %vm4614, %v4311, -inf
          %v4722 = vsel %vm4615, %v4144, -inf
          %v4723 = vsel %vm4615, %v4313, -inf
          %v4724 = vsel %vm4616, %v4147, -inf
          %v4725 = vsel %vm4616, %v4316, -inf
          %v4726 = vsel %vm4617, %v4149, -inf
          %v4727 = vsel %vm4617, %v4318, -inf
          %v4728 = vsel %vm4618, %v4152, -inf
          %v4729 = vsel %vm4618, %v4321, -inf
          %v4730 = vsel %vm4619, %v4154, -inf
          %v4731 = vsel %vm4619, %v4323, -inf
          %v4732 = vsel %vm4612, %v4157, -inf
          %v4733 = vsel %vm4612, %v4326, -inf
          %v4734 = vsel %vm4613, %v4159, -inf
          %v4735 = vsel %vm4613, %v4328, -inf
          %v4736 = vsel %vm4614, %v4162, -inf
          %v4737 = vsel %vm4614, %v4331, -inf
          %v4738 = vsel %vm4615, %v4164, -inf
          %v4739 = vsel %vm4615, %v4333, -inf
          %v4740 = vsel %vm4616, %v4167, -inf
          %v4741 = vsel %vm4616, %v4336, -inf
          %v4742 = vsel %vm4617, %v4169, -inf
          %v4743 = vsel %vm4617, %v4338, -inf
          %v4744 = vsel %vm4618, %v4172, -inf
          %v4745 = vsel %vm4618, %v4341, -inf
          %v4746 = vsel %vm4619, %v4174, -inf
          %v4747 = vsel %vm4619, %v4343, -inf
          %v4748 = vld [vmem:[#allocation2 + $0x20] sm:$0xff]
          %v4749 = vld [vmem:[#allocation2 + $0x28] sm:$0xff]
          %v4750 = vmax.f32 %v4620, %v4622
          %v4751 = vmax.f32 %v4750, %v4624
          %v4752 = vmax.f32 %v4751, %v4626
          %v4753 = vmax.f32 %v4752, %v4628
          %v4754 = vmax.f32 %v4753, %v4630
          %v4755 = vmax.f32 %v4754, %v4632
          %v4756 = vmax.f32 %v4755, %v4634
          %v4757 = vrot.slane %v4756, 4
          %v4758 = vmax.f32 %v4756, %v4757
          %v4759 = vrot.slane %v4758, 2
          %v4760 = vmax.f32 %v4758, %v4759
          %v4761 = vrot.slane %v4760, 1
          %v4762 = vmax.f32 %v4760, %v4761
          %v4763 = vmax.f32 %v4621, %v4623
          %v4764 = vmax.f32 %v4763, %v4625
          %v4765 = vmax.f32 %v4764, %v4627
          %v4766 = vmax.f32 %v4765, %v4629
          %v4767 = vmax.f32 %v4766, %v4631
          %v4768 = vmax.f32 %v4767, %v4633
          %v4769 = vmax.f32 %v4768, %v4635
          %v4770 = vrot.slane %v4769, 4
          %v4771 = vmax.f32 %v4769, %v4770
          %v4772 = vrot.slane %v4771, 2
          %v4773 = vmax.f32 %v4771, %v4772
          %v4774 = vrot.slane %v4773, 1
          %v4775 = vmax.f32 %v4773, %v4774
          %v4776 = vmax.f32 %v4636, %v4638
          %v4777 = vmax.f32 %v4776, %v4640
          %v4778 = vmax.f32 %v4777, %v4642
          %v4779 = vmax.f32 %v4778, %v4644
          %v4780 = vmax.f32 %v4779, %v4646
          %v4781 = vmax.f32 %v4780, %v4648
          %v4782 = vmax.f32 %v4781, %v4650
          %v4783 = vrot.slane %v4782, 4
          %v4784 = vmax.f32 %v4782, %v4783
          %v4785 = vrot.slane %v4784, 2
          %v4786 = vmax.f32 %v4784, %v4785
          %v4787 = vrot.slane %v4786, 1
          %v4788 = vmax.f32 %v4786, %v4787
          %v4789 = vmax.f32 %v4637, %v4639
          %v4790 = vmax.f32 %v4789, %v4641
          %v4791 = vmax.f32 %v4790, %v4643
          %v4792 = vmax.f32 %v4791, %v4645
          %v4793 = vmax.f32 %v4792, %v4647
          %v4794 = vmax.f32 %v4793, %v4649
          %v4795 = vmax.f32 %v4794, %v4651
          %v4796 = vrot.slane %v4795, 4
          %v4797 = vmax.f32 %v4795, %v4796
          %v4798 = vrot.slane %v4797, 2
          %v4799 = vmax.f32 %v4797, %v4798
          %v4800 = vrot.slane %v4799, 1
          %v4801 = vmax.f32 %v4799, %v4800
          %v4802 = vmax.f32 %v4652, %v4654
          %v4803 = vmax.f32 %v4802, %v4656
          %v4804 = vmax.f32 %v4803, %v4658
          %v4805 = vmax.f32 %v4804, %v4660
          %v4806 = vmax.f32 %v4805, %v4662
          %v4807 = vmax.f32 %v4806, %v4664
          %v4808 = vmax.f32 %v4807, %v4666
          %v4809 = vrot.slane %v4808, 4
          %v4810 = vmax.f32 %v4808, %v4809
          %v4811 = vrot.slane %v4810, 2
          %v4812 = vmax.f32 %v4810, %v4811
          %v4813 = vrot.slane %v4812, 1
          %v4814 = vmax.f32 %v4812, %v4813
          %v4815 = vmax.f32 %v4653, %v4655
          %v4816 = vmax.f32 %v4815, %v4657
          %v4817 = vmax.f32 %v4816, %v4659
          %v4818 = vmax.f32 %v4817, %v4661
          %v4819 = vmax.f32 %v4818, %v4663
          %v4820 = vmax.f32 %v4819, %v4665
          %v4821 = vmax.f32 %v4820, %v4667
          %v4822 = vrot.slane %v4821, 4
          %v4823 = vmax.f32 %v4821, %v4822
          %v4824 = vrot.slane %v4823, 2
          %v4825 = vmax.f32 %v4823, %v4824
          %v4826 = vrot.slane %v4825, 1
          %v4827 = vmax.f32 %v4825, %v4826
          %v4828 = vmax.f32 %v4668, %v4670
          %v4829 = vmax.f32 %v4828, %v4672
          %v4830 = vmax.f32 %v4829, %v4674
          %v4831 = vmax.f32 %v4830, %v4676
          %v4832 = vmax.f32 %v4831, %v4678
          %v4833 = vmax.f32 %v4832, %v4680
          %v4834 = vmax.f32 %v4833, %v4682
          %v4835 = vrot.slane %v4834, 4
          %v4836 = vmax.f32 %v4834, %v4835
          %v4837 = vrot.slane %v4836, 2
          %v4838 = vmax.f32 %v4836, %v4837
          %v4839 = vrot.slane %v4838, 1
          %v4840 = vmax.f32 %v4838, %v4839
          %v4841 = vmax.f32 %v4669, %v4671
          %v4842 = vmax.f32 %v4841, %v4673
          %v4843 = vmax.f32 %v4842, %v4675
          %v4844 = vmax.f32 %v4843, %v4677
          %v4845 = vmax.f32 %v4844, %v4679
          %v4846 = vmax.f32 %v4845, %v4681
          %v4847 = vmax.f32 %v4846, %v4683
          %v4848 = vrot.slane %v4847, 4
          %v4849 = vmax.f32 %v4847, %v4848
          %v4850 = vrot.slane %v4849, 2
          %v4851 = vmax.f32 %v4849, %v4850
          %v4852 = vrot.slane %v4851, 1
          %v4853 = vmax.f32 %v4851, %v4852
          %v4854 = vmax.f32 %v4684, %v4686
          %v4855 = vmax.f32 %v4854, %v4688
          %v4856 = vmax.f32 %v4855, %v4690
          %v4857 = vmax.f32 %v4856, %v4692
          %v4858 = vmax.f32 %v4857, %v4694
          %v4859 = vmax.f32 %v4858, %v4696
          %v4860 = vmax.f32 %v4859, %v4698
          %v4861 = vrot.slane %v4860, 4
          %v4862 = vmax.f32 %v4860, %v4861
          %v4863 = vrot.slane %v4862, 2
          %v4864 = vmax.f32 %v4862, %v4863
          %v4865 = vrot.slane %v4864, 1
          %v4866 = vmax.f32 %v4864, %v4865
          %v4867 = vmax.f32 %v4685, %v4687
          %v4868 = vmax.f32 %v4867, %v4689
          %v4869 = vmax.f32 %v4868, %v4691
          %v4870 = vmax.f32 %v4869, %v4693
          %v4871 = vmax.f32 %v4870, %v4695
          %v4872 = vmax.f32 %v4871, %v4697
          %v4873 = vmax.f32 %v4872, %v4699
          %v4874 = vrot.slane %v4873, 4
          %v4875 = vmax.f32 %v4873, %v4874
          %v4876 = vrot.slane %v4875, 2
          %v4877 = vmax.f32 %v4875, %v4876
          %v4878 = vrot.slane %v4877, 1
          %v4879 = vmax.f32 %v4877, %v4878
          %v4880 = vmax.f32 %v4700, %v4702
          %v4881 = vmax.f32 %v4880, %v4704
          %v4882 = vmax.f32 %v4881, %v4706
          %v4883 = vmax.f32 %v4882, %v4708
          %v4884 = vmax.f32 %v4883, %v4710
          %v4885 = vmax.f32 %v4884, %v4712
          %v4886 = vmax.f32 %v4885, %v4714
          %v4887 = vrot.slane %v4886, 4
          %v4888 = vmax.f32 %v4886, %v4887
          %v4889 = vrot.slane %v4888, 2
          %v4890 = vmax.f32 %v4888, %v4889
          %v4891 = vrot.slane %v4890, 1
          %v4892 = vmax.f32 %v4890, %v4891
          %v4893 = vmax.f32 %v4701, %v4703
          %v4894 = vmax.f32 %v4893, %v4705
          %v4895 = vmax.f32 %v4894, %v4707
          %v4896 = vmax.f32 %v4895, %v4709
          %v4897 = vmax.f32 %v4896, %v4711
          %v4898 = vmax.f32 %v4897, %v4713
          %v4899 = vmax.f32 %v4898, %v4715
          %v4900 = vrot.slane %v4899, 4
          %v4901 = vmax.f32 %v4899, %v4900
          %v4902 = vrot.slane %v4901, 2
          %v4903 = vmax.f32 %v4901, %v4902
          %v4904 = vrot.slane %v4903, 1
          %v4905 = vmax.f32 %v4903, %v4904
          %v4906 = vmax.f32 %v4716, %v4718
          %v4907 = vmax.f32 %v4906, %v4720
          %v4908 = vmax.f32 %v4907, %v4722
          %v4909 = vmax.f32 %v4908, %v4724
          %v4910 = vmax.f32 %v4909, %v4726
          %v4911 = vmax.f32 %v4910, %v4728
          %v4912 = vmax.f32 %v4911, %v4730
          %v4913 = vrot.slane %v4912, 4
          %v4914 = vmax.f32 %v4912, %v4913
          %v4915 = vrot.slane %v4914, 2
          %v4916 = vmax.f32 %v4914, %v4915
          %v4917 = vrot.slane %v4916, 1
          %v4918 = vmax.f32 %v4916, %v4917
          %v4919 = vmax.f32 %v4717, %v4719
          %v4920 = vmax.f32 %v4919, %v4721
          %v4921 = vmax.f32 %v4920, %v4723
          %v4922 = vmax.f32 %v4921, %v4725
          %v4923 = vmax.f32 %v4922, %v4727
          %v4924 = vmax.f32 %v4923, %v4729
          %v4925 = vmax.f32 %v4924, %v4731
          %v4926 = vrot.slane %v4925, 4
          %v4927 = vmax.f32 %v4925, %v4926
          %v4928 = vrot.slane %v4927, 2
          %v4929 = vmax.f32 %v4927, %v4928
          %v4930 = vrot.slane %v4929, 1
          %v4931 = vmax.f32 %v4929, %v4930
          %v4932 = vmax.f32 %v4732, %v4734
          %v4933 = vmax.f32 %v4932, %v4736
          %v4934 = vmax.f32 %v4933, %v4738
          %v4935 = vmax.f32 %v4934, %v4740
          %v4936 = vmax.f32 %v4935, %v4742
          %v4937 = vmax.f32 %v4936, %v4744
          %v4938 = vmax.f32 %v4937, %v4746
          %v4939 = vrot.slane %v4938, 4
          %v4940 = vmax.f32 %v4938, %v4939
          %v4941 = vrot.slane %v4940, 2
          %v4942 = vmax.f32 %v4940, %v4941
          %v4943 = vrot.slane %v4942, 1
          %v4944 = vmax.f32 %v4942, %v4943
          %v4945 = vmax.f32 %v4733, %v4735
          %v4946 = vmax.f32 %v4945, %v4737
          %v4947 = vmax.f32 %v4946, %v4739
          %v4948 = vmax.f32 %v4947, %v4741
          %v4949 = vmax.f32 %v4948, %v4743
          %v4950 = vmax.f32 %v4949, %v4745
          %v4951 = vmax.f32 %v4950, %v4747
          %v4952 = vrot.slane %v4951, 4
          %v4953 = vmax.f32 %v4951, %v4952
          %v4954 = vrot.slane %v4953, 2
          %v4955 = vmax.f32 %v4953, %v4954
          %v4956 = vrot.slane %v4955, 1
          %v4957 = vmax.f32 %v4955, %v4956
          %vm4974 = vcmask 1041409
          %v4975 = vsel %vm4974, %v4788, %v4762
          %vm4976 = vcmask 1042434
          %v4977 = vsel %vm4976, %v4814, %v4975
          %vm4978 = vcmask 1043459
          %v4979 = vsel %vm4978, %v4840, %v4977
          %vm4980 = vcmask 1044484
          %v4981 = vsel %vm4980, %v4866, %v4979
          %vm4982 = vcmask 1045509
          %v4983 = vsel %vm4982, %v4892, %v4981
          %vm4984 = vcmask 1046534
          %v4985 = vsel %vm4984, %v4918, %v4983
          %vm4986 = vcmask 1047559
          %v4987 = vsel %vm4986, %v4944, %v4985
          %v4988 = vsel %vm4974, %v4801, %v4775
          %v4989 = vsel %vm4976, %v4827, %v4988
          %v4990 = vsel %vm4978, %v4853, %v4989
          %v4991 = vsel %vm4980, %v4879, %v4990
          %v4992 = vsel %vm4982, %v4905, %v4991
          %v4993 = vsel %vm4984, %v4931, %v4992
          %v4994 = vsel %vm4986, %v4957, %v4993
          %v4997 = vmax.f32 %v4748, %v4987
          %v4998 = vmax.f32 %v4749, %v4994
          %4999 = vst [vmem:[#allocation2 + $0x20] sm:$0xff] %v4997
          %5000 = vst [vmem:[#allocation2 + $0x28] sm:$0xff] %v4998
        $region152: #{get_transform_forward.1} parent=119 // pred_fallthru
          _
        %v5001 = vld [vmem:[%s5 + $0x18] sm:$0xff]
        %v5002 = vld [vmem:[%s5 + $0x38] sm:$0xff]
        %v5003 = vld [vmem:[%s5 + $0x58] sm:$0xff]
        %v5004 = vld [vmem:[%s5 + $0x78] sm:$0xff]
        %v5005 = vld [vmem:[%s5 + $0x98] sm:$0xff]
        %v5006 = vld [vmem:[%s5 + $0xb8] sm:$0xff]
        %v5007 = vld [vmem:[%s5 + $0xd8] sm:$0xff]
        %v5008 = vld [vmem:[%s5 + $0xf8] sm:$0xff]
        %v5009 = vld [vmem:[%s5 + $0x118] sm:$0xff]
        %v5010 = vld [vmem:[%s5 + $0x138] sm:$0xff]
        %v5011 = vld [vmem:[%s5 + $0x158] sm:$0xff]
        %v5012 = vld [vmem:[%s5 + $0x178] sm:$0xff]
        %v5013 = vld [vmem:[%s5 + $0x198] sm:$0xff]
        %v5014 = vld [vmem:[%s5 + $0x1b8] sm:$0xff]
        %v5015 = vld [vmem:[%s5 + $0x1d8] sm:$0xff]
        %v5016 = vld [vmem:[%s5 + $0x1f8] sm:$0xff]
        %v5033 = vunpack.c.l.b16 %v5001
        %v5034 = vunpack.c.h.b16 %v5001
        %v5035 = vunpack.c.l.b16 %v5002
        %v5036 = vunpack.c.h.b16 %v5002
        %v5037 = vunpack.c.l.b16 %v5003
        %v5038 = vunpack.c.h.b16 %v5003
        %v5039 = vunpack.c.l.b16 %v5004
        %v5040 = vunpack.c.h.b16 %v5004
        %v5041 = vunpack.c.l.b16 %v5005
        %v5042 = vunpack.c.h.b16 %v5005
        %v5043 = vunpack.c.l.b16 %v5006
        %v5044 = vunpack.c.h.b16 %v5006
        %v5045 = vunpack.c.l.b16 %v5007
        %v5046 = vunpack.c.h.b16 %v5007
        %v5047 = vunpack.c.l.b16 %v5008
        %v5048 = vunpack.c.h.b16 %v5008
        %v5049 = vunpack.c.l.b16 %v5009
        %v5050 = vunpack.c.h.b16 %v5009
        %v5051 = vunpack.c.l.b16 %v5010
        %v5052 = vunpack.c.h.b16 %v5010
        %v5053 = vunpack.c.l.b16 %v5011
        %v5054 = vunpack.c.h.b16 %v5011
        %v5055 = vunpack.c.l.b16 %v5012
        %v5056 = vunpack.c.h.b16 %v5012
        %v5057 = vunpack.c.l.b16 %v5013
        %v5058 = vunpack.c.h.b16 %v5013
        %v5059 = vunpack.c.l.b16 %v5014
        %v5060 = vunpack.c.h.b16 %v5014
        %v5061 = vunpack.c.l.b16 %v5015
        %v5062 = vunpack.c.h.b16 %v5015
        %v5063 = vunpack.c.l.b16 %v5016
        %v5064 = vunpack.c.h.b16 %v5016
        %v5065 = vpack.c.b16 %v5035, %v5033
        %v5066 = vpack.c.b16 %v5036, %v5034
        %v5067 = vpack.c.b16 %v5039, %v5037
        %v5068 = vpack.c.b16 %v5040, %v5038
        %v5069 = vpack.c.b16 %v5043, %v5041
        %v5070 = vpack.c.b16 %v5044, %v5042
        %v5071 = vpack.c.b16 %v5047, %v5045
        %v5072 = vpack.c.b16 %v5048, %v5046
        %v5073 = vpack.c.b16 %v5051, %v5049
        %v5074 = vpack.c.b16 %v5052, %v5050
        %v5075 = vpack.c.b16 %v5055, %v5053
        %v5076 = vpack.c.b16 %v5056, %v5054
        %v5077 = vpack.c.b16 %v5059, %v5057
        %v5078 = vpack.c.b16 %v5060, %v5058
        %v5079 = vpack.c.b16 %v5063, %v5061
        %v5080 = vpack.c.b16 %v5064, %v5062
        %5097 = vmatpush.bf16.msra.mxu0 %v5079
        %5098 = vmatpush.bf16.msra.mxu0 %v5077
        %5099 = vmatpush.bf16.msra.mxu0 %v5075
        %5100 = vmatpush.bf16.msra.mxu0 %v5073
        %5101 = vmatpush.bf16.msra.mxu0 %v5071
        %5102 = vmatpush.bf16.msra.mxu0 %v5069
        %5103 = vmatpush.bf16.msra.mxu0 %v5067
        %5104 = vmatpush.bf16.msra.mxu0 %v5065
        %5105 = vmatmul.bf16.gmra.mxu0 %v1670
        %v5106 = vpop.f32.mrf.mxu0
        %v5107 = vadd.f32 0.0, %v5106
        %v5108 = vpop.f32.mrf.mxu0
        %v5109 = vadd.f32 0.0, %v5108
        %5110 = vmatmul.bf16.gmra.mxu0 %v1671
        %v5111 = vpop.f32.mrf.mxu0
        %v5112 = vadd.f32 0.0, %v5111
        %v5113 = vpop.f32.mrf.mxu0
        %v5114 = vadd.f32 0.0, %v5113
        %5115 = vmatmul.bf16.gmra.mxu0 %v1672
        %v5116 = vpop.f32.mrf.mxu0
        %v5117 = vadd.f32 0.0, %v5116
        %v5118 = vpop.f32.mrf.mxu0
        %v5119 = vadd.f32 0.0, %v5118
        %5120 = vmatmul.bf16.gmra.mxu0 %v1673
        %v5121 = vpop.f32.mrf.mxu0
        %v5122 = vadd.f32 0.0, %v5121
        %v5123 = vpop.f32.mrf.mxu0
        %v5124 = vadd.f32 0.0, %v5123
        %5125 = vmatmul.bf16.gmra.mxu0 %v1674
        %v5126 = vpop.f32.mrf.mxu0
        %v5127 = vadd.f32 0.0, %v5126
        %v5128 = vpop.f32.mrf.mxu0
        %v5129 = vadd.f32 0.0, %v5128
        %5130 = vmatmul.bf16.gmra.mxu0 %v1675
        %v5131 = vpop.f32.mrf.mxu0
        %v5132 = vadd.f32 0.0, %v5131
        %v5133 = vpop.f32.mrf.mxu0
        %v5134 = vadd.f32 0.0, %v5133
        %5135 = vmatmul.bf16.gmra.mxu0 %v1676
        %v5136 = vpop.f32.mrf.mxu0
        %v5137 = vadd.f32 0.0, %v5136
        %v5138 = vpop.f32.mrf.mxu0
        %v5139 = vadd.f32 0.0, %v5138
        %5140 = vmatmul.bf16.gmra.mxu0 %v1677
        %v5141 = vpop.f32.mrf.mxu0
        %v5142 = vadd.f32 0.0, %v5141
        %v5143 = vpop.f32.mrf.mxu0
        %v5144 = vadd.f32 0.0, %v5143
        %5145 = vmatmul.bf16.gmra.mxu0 %v1678
        %v5146 = vpop.f32.mrf.mxu0
        %v5147 = vadd.f32 0.0, %v5146
        %v5148 = vpop.f32.mrf.mxu0
        %v5149 = vadd.f32 0.0, %v5148
        %5150 = vmatmul.bf16.gmra.mxu0 %v1679
        %v5151 = vpop.f32.mrf.mxu0
        %v5152 = vadd.f32 0.0, %v5151
        %v5153 = vpop.f32.mrf.mxu0
        %v5154 = vadd.f32 0.0, %v5153
        %5155 = vmatmul.bf16.gmra.mxu0 %v1680
        %v5156 = vpop.f32.mrf.mxu0
        %v5157 = vadd.f32 0.0, %v5156
        %v5158 = vpop.f32.mrf.mxu0
        %v5159 = vadd.f32 0.0, %v5158
        %5160 = vmatmul.bf16.gmra.mxu0 %v1681
        %v5161 = vpop.f32.mrf.mxu0
        %v5162 = vadd.f32 0.0, %v5161
        %v5163 = vpop.f32.mrf.mxu0
        %v5164 = vadd.f32 0.0, %v5163
        %5165 = vmatmul.bf16.gmra.mxu0 %v1682
        %v5166 = vpop.f32.mrf.mxu0
        %v5167 = vadd.f32 0.0, %v5166
        %v5168 = vpop.f32.mrf.mxu0
        %v5169 = vadd.f32 0.0, %v5168
        %5170 = vmatmul.bf16.gmra.mxu0 %v1683
        %v5171 = vpop.f32.mrf.mxu0
        %v5172 = vadd.f32 0.0, %v5171
        %v5173 = vpop.f32.mrf.mxu0
        %v5174 = vadd.f32 0.0, %v5173
        %5175 = vmatmul.bf16.gmra.mxu0 %v1684
        %v5176 = vpop.f32.mrf.mxu0
        %v5177 = vadd.f32 0.0, %v5176
        %v5178 = vpop.f32.mrf.mxu0
        %v5179 = vadd.f32 0.0, %v5178
        %5180 = vmatmul.bf16.gmra.mxu0 %v1685
        %v5181 = vpop.f32.mrf.mxu0
        %v5182 = vadd.f32 0.0, %v5181
        %v5183 = vpop.f32.mrf.mxu0
        %v5184 = vadd.f32 0.0, %v5183
        %5185 = vmatmul.bf16.gmra.mxu0 %v1686
        %v5186 = vpop.f32.mrf.mxu0
        %v5187 = vadd.f32 0.0, %v5186
        %v5188 = vpop.f32.mrf.mxu0
        %v5189 = vadd.f32 0.0, %v5188
        %5190 = vmatmul.bf16.gmra.mxu0 %v1687
        %v5191 = vpop.f32.mrf.mxu0
        %v5192 = vadd.f32 0.0, %v5191
        %v5193 = vpop.f32.mrf.mxu0
        %v5194 = vadd.f32 0.0, %v5193
        %5195 = vmatmul.bf16.gmra.mxu0 %v1688
        %v5196 = vpop.f32.mrf.mxu0
        %v5197 = vadd.f32 0.0, %v5196
        %v5198 = vpop.f32.mrf.mxu0
        %v5199 = vadd.f32 0.0, %v5198
        %5200 = vmatmul.bf16.gmra.mxu0 %v1689
        %v5201 = vpop.f32.mrf.mxu0
        %v5202 = vadd.f32 0.0, %v5201
        %v5203 = vpop.f32.mrf.mxu0
        %v5204 = vadd.f32 0.0, %v5203
        %5205 = vmatmul.bf16.gmra.mxu0 %v1690
        %v5206 = vpop.f32.mrf.mxu0
        %v5207 = vadd.f32 0.0, %v5206
        %v5208 = vpop.f32.mrf.mxu0
        %v5209 = vadd.f32 0.0, %v5208
        %5210 = vmatmul.bf16.gmra.mxu0 %v1691
        %v5211 = vpop.f32.mrf.mxu0
        %v5212 = vadd.f32 0.0, %v5211
        %v5213 = vpop.f32.mrf.mxu0
        %v5214 = vadd.f32 0.0, %v5213
        %5215 = vmatmul.bf16.gmra.mxu0 %v1692
        %v5216 = vpop.f32.mrf.mxu0
        %v5217 = vadd.f32 0.0, %v5216
        %v5218 = vpop.f32.mrf.mxu0
        %v5219 = vadd.f32 0.0, %v5218
        %5220 = vmatmul.bf16.gmra.mxu0 %v1693
        %v5221 = vpop.f32.mrf.mxu0
        %v5222 = vadd.f32 0.0, %v5221
        %v5223 = vpop.f32.mrf.mxu0
        %v5224 = vadd.f32 0.0, %v5223
        %5225 = vmatmul.bf16.gmra.mxu0 %v1694
        %v5226 = vpop.f32.mrf.mxu0
        %v5227 = vadd.f32 0.0, %v5226
        %v5228 = vpop.f32.mrf.mxu0
        %v5229 = vadd.f32 0.0, %v5228
        %5230 = vmatmul.bf16.gmra.mxu0 %v1695
        %v5231 = vpop.f32.mrf.mxu0
        %v5232 = vadd.f32 0.0, %v5231
        %v5233 = vpop.f32.mrf.mxu0
        %v5234 = vadd.f32 0.0, %v5233
        %5235 = vmatmul.bf16.gmra.mxu0 %v1696
        %v5236 = vpop.f32.mrf.mxu0
        %v5237 = vadd.f32 0.0, %v5236
        %v5238 = vpop.f32.mrf.mxu0
        %v5239 = vadd.f32 0.0, %v5238
        %5240 = vmatmul.bf16.gmra.mxu0 %v1697
        %v5241 = vpop.f32.mrf.mxu0
        %v5242 = vadd.f32 0.0, %v5241
        %v5243 = vpop.f32.mrf.mxu0
        %v5244 = vadd.f32 0.0, %v5243
        %5245 = vmatmul.bf16.gmra.mxu0 %v1698
        %v5246 = vpop.f32.mrf.mxu0
        %v5247 = vadd.f32 0.0, %v5246
        %v5248 = vpop.f32.mrf.mxu0
        %v5249 = vadd.f32 0.0, %v5248
        %5250 = vmatmul.bf16.gmra.mxu0 %v1699
        %v5251 = vpop.f32.mrf.mxu0
        %v5252 = vadd.f32 0.0, %v5251
        %v5253 = vpop.f32.mrf.mxu0
        %v5254 = vadd.f32 0.0, %v5253
        %5255 = vmatmul.bf16.gmra.mxu0 %v1700
        %v5256 = vpop.f32.mrf.mxu0
        %v5257 = vadd.f32 0.0, %v5256
        %v5258 = vpop.f32.mrf.mxu0
        %v5259 = vadd.f32 0.0, %v5258
        %5260 = vmatmul.bf16.gmra.mxu0 %v1701
        %v5261 = vpop.f32.mrf.mxu0
        %v5262 = vadd.f32 0.0, %v5261
        %v5263 = vpop.f32.mrf.mxu0
        %v5264 = vadd.f32 0.0, %v5263
        %5265 = vdwg.mxu0
        %5266 = vmatpush.bf16.msra.mxu0 %v5080
        %5267 = vmatpush.bf16.msra.mxu0 %v5078
        %5268 = vmatpush.bf16.msra.mxu0 %v5076
        %5269 = vmatpush.bf16.msra.mxu0 %v5074
        %5270 = vmatpush.bf16.msra.mxu0 %v5072
        %5271 = vmatpush.bf16.msra.mxu0 %v5070
        %5272 = vmatpush.bf16.msra.mxu0 %v5068
        %5273 = vmatpush.bf16.msra.mxu0 %v5066
        %5274 = vmatmul.bf16.gmra.mxu0 %v1670
        %v5275 = vpop.f32.mrf.mxu0
        %v5276 = vadd.f32 0.0, %v5275
        %v5277 = vpop.f32.mrf.mxu0
        %v5278 = vadd.f32 0.0, %v5277
        %5279 = vmatmul.bf16.gmra.mxu0 %v1671
        %v5280 = vpop.f32.mrf.mxu0
        %v5281 = vadd.f32 0.0, %v5280
        %v5282 = vpop.f32.mrf.mxu0
        %v5283 = vadd.f32 0.0, %v5282
        %5284 = vmatmul.bf16.gmra.mxu0 %v1672
        %v5285 = vpop.f32.mrf.mxu0
        %v5286 = vadd.f32 0.0, %v5285
        %v5287 = vpop.f32.mrf.mxu0
        %v5288 = vadd.f32 0.0, %v5287
        %5289 = vmatmul.bf16.gmra.mxu0 %v1673
        %v5290 = vpop.f32.mrf.mxu0
        %v5291 = vadd.f32 0.0, %v5290
        %v5292 = vpop.f32.mrf.mxu0
        %v5293 = vadd.f32 0.0, %v5292
        %5294 = vmatmul.bf16.gmra.mxu0 %v1674
        %v5295 = vpop.f32.mrf.mxu0
        %v5296 = vadd.f32 0.0, %v5295
        %v5297 = vpop.f32.mrf.mxu0
        %v5298 = vadd.f32 0.0, %v5297
        %5299 = vmatmul.bf16.gmra.mxu0 %v1675
        %v5300 = vpop.f32.mrf.mxu0
        %v5301 = vadd.f32 0.0, %v5300
        %v5302 = vpop.f32.mrf.mxu0
        %v5303 = vadd.f32 0.0, %v5302
        %5304 = vmatmul.bf16.gmra.mxu0 %v1676
        %v5305 = vpop.f32.mrf.mxu0
        %v5306 = vadd.f32 0.0, %v5305
        %v5307 = vpop.f32.mrf.mxu0
        %v5308 = vadd.f32 0.0, %v5307
        %5309 = vmatmul.bf16.gmra.mxu0 %v1677
        %v5310 = vpop.f32.mrf.mxu0
        %v5311 = vadd.f32 0.0, %v5310
        %v5312 = vpop.f32.mrf.mxu0
        %v5313 = vadd.f32 0.0, %v5312
        %5314 = vmatmul.bf16.gmra.mxu0 %v1678
        %v5315 = vpop.f32.mrf.mxu0
        %v5316 = vadd.f32 0.0, %v5315
        %v5317 = vpop.f32.mrf.mxu0
        %v5318 = vadd.f32 0.0, %v5317
        %5319 = vmatmul.bf16.gmra.mxu0 %v1679
        %v5320 = vpop.f32.mrf.mxu0
        %v5321 = vadd.f32 0.0, %v5320
        %v5322 = vpop.f32.mrf.mxu0
        %v5323 = vadd.f32 0.0, %v5322
        %5324 = vmatmul.bf16.gmra.mxu0 %v1680
        %v5325 = vpop.f32.mrf.mxu0
        %v5326 = vadd.f32 0.0, %v5325
        %v5327 = vpop.f32.mrf.mxu0
        %v5328 = vadd.f32 0.0, %v5327
        %5329 = vmatmul.bf16.gmra.mxu0 %v1681
        %v5330 = vpop.f32.mrf.mxu0
        %v5331 = vadd.f32 0.0, %v5330
        %v5332 = vpop.f32.mrf.mxu0
        %v5333 = vadd.f32 0.0, %v5332
        %5334 = vmatmul.bf16.gmra.mxu0 %v1682
        %v5335 = vpop.f32.mrf.mxu0
        %v5336 = vadd.f32 0.0, %v5335
        %v5337 = vpop.f32.mrf.mxu0
        %v5338 = vadd.f32 0.0, %v5337
        %5339 = vmatmul.bf16.gmra.mxu0 %v1683
        %v5340 = vpop.f32.mrf.mxu0
        %v5341 = vadd.f32 0.0, %v5340
        %v5342 = vpop.f32.mrf.mxu0
        %v5343 = vadd.f32 0.0, %v5342
        %5344 = vmatmul.bf16.gmra.mxu0 %v1684
        %v5345 = vpop.f32.mrf.mxu0
        %v5346 = vadd.f32 0.0, %v5345
        %v5347 = vpop.f32.mrf.mxu0
        %v5348 = vadd.f32 0.0, %v5347
        %5349 = vmatmul.bf16.gmra.mxu0 %v1685
        %v5350 = vpop.f32.mrf.mxu0
        %v5351 = vadd.f32 0.0, %v5350
        %v5352 = vpop.f32.mrf.mxu0
        %v5353 = vadd.f32 0.0, %v5352
        %5354 = vmatmul.bf16.gmra.mxu0 %v1686
        %v5355 = vpop.f32.mrf.mxu0
        %v5356 = vadd.f32 0.0, %v5355
        %v5357 = vpop.f32.mrf.mxu0
        %v5358 = vadd.f32 0.0, %v5357
        %5359 = vmatmul.bf16.gmra.mxu0 %v1687
        %v5360 = vpop.f32.mrf.mxu0
        %v5361 = vadd.f32 0.0, %v5360
        %v5362 = vpop.f32.mrf.mxu0
        %v5363 = vadd.f32 0.0, %v5362
        %5364 = vmatmul.bf16.gmra.mxu0 %v1688
        %v5365 = vpop.f32.mrf.mxu0
        %v5366 = vadd.f32 0.0, %v5365
        %v5367 = vpop.f32.mrf.mxu0
        %v5368 = vadd.f32 0.0, %v5367
        %5369 = vmatmul.bf16.gmra.mxu0 %v1689
        %v5370 = vpop.f32.mrf.mxu0
        %v5371 = vadd.f32 0.0, %v5370
        %v5372 = vpop.f32.mrf.mxu0
        %v5373 = vadd.f32 0.0, %v5372
        %5374 = vmatmul.bf16.gmra.mxu0 %v1690
        %v5375 = vpop.f32.mrf.mxu0
        %v5376 = vadd.f32 0.0, %v5375
        %v5377 = vpop.f32.mrf.mxu0
        %v5378 = vadd.f32 0.0, %v5377
        %5379 = vmatmul.bf16.gmra.mxu0 %v1691
        %v5380 = vpop.f32.mrf.mxu0
        %v5381 = vadd.f32 0.0, %v5380
        %v5382 = vpop.f32.mrf.mxu0
        %v5383 = vadd.f32 0.0, %v5382
        %5384 = vmatmul.bf16.gmra.mxu0 %v1692
        %v5385 = vpop.f32.mrf.mxu0
        %v5386 = vadd.f32 0.0, %v5385
        %v5387 = vpop.f32.mrf.mxu0
        %v5388 = vadd.f32 0.0, %v5387
        %5389 = vmatmul.bf16.gmra.mxu0 %v1693
        %v5390 = vpop.f32.mrf.mxu0
        %v5391 = vadd.f32 0.0, %v5390
        %v5392 = vpop.f32.mrf.mxu0
        %v5393 = vadd.f32 0.0, %v5392
        %5394 = vmatmul.bf16.gmra.mxu0 %v1694
        %v5395 = vpop.f32.mrf.mxu0
        %v5396 = vadd.f32 0.0, %v5395
        %v5397 = vpop.f32.mrf.mxu0
        %v5398 = vadd.f32 0.0, %v5397
        %5399 = vmatmul.bf16.gmra.mxu0 %v1695
        %v5400 = vpop.f32.mrf.mxu0
        %v5401 = vadd.f32 0.0, %v5400
        %v5402 = vpop.f32.mrf.mxu0
        %v5403 = vadd.f32 0.0, %v5402
        %5404 = vmatmul.bf16.gmra.mxu0 %v1696
        %v5405 = vpop.f32.mrf.mxu0
        %v5406 = vadd.f32 0.0, %v5405
        %v5407 = vpop.f32.mrf.mxu0
        %v5408 = vadd.f32 0.0, %v5407
        %5409 = vmatmul.bf16.gmra.mxu0 %v1697
        %v5410 = vpop.f32.mrf.mxu0
        %v5411 = vadd.f32 0.0, %v5410
        %v5412 = vpop.f32.mrf.mxu0
        %v5413 = vadd.f32 0.0, %v5412
        %5414 = vmatmul.bf16.gmra.mxu0 %v1698
        %v5415 = vpop.f32.mrf.mxu0
        %v5416 = vadd.f32 0.0, %v5415
        %v5417 = vpop.f32.mrf.mxu0
        %v5418 = vadd.f32 0.0, %v5417
        %5419 = vmatmul.bf16.gmra.mxu0 %v1699
        %v5420 = vpop.f32.mrf.mxu0
        %v5421 = vadd.f32 0.0, %v5420
        %v5422 = vpop.f32.mrf.mxu0
        %v5423 = vadd.f32 0.0, %v5422
        %5424 = vmatmul.bf16.gmra.mxu0 %v1700
        %v5425 = vpop.f32.mrf.mxu0
        %v5426 = vadd.f32 0.0, %v5425
        %v5427 = vpop.f32.mrf.mxu0
        %v5428 = vadd.f32 0.0, %v5427
        %5429 = vmatmul.bf16.gmra.mxu0 %v1701
        %v5430 = vpop.f32.mrf.mxu0
        %v5431 = vadd.f32 0.0, %v5430
        %v5432 = vpop.f32.mrf.mxu0
        %v5433 = vadd.f32 0.0, %v5432
        %5434 = vdwg.mxu0
        // Predicated region
        $region153: #{get_transform_forward.1} parent=119 // pred_check
          %p5435 = pneg %p2163
        $region154: #{get_transform_forward.1} parent=119 // pred_check_branch
          %5437 = sbr.rel (%p5435) target = $region156
        $region155: #{get_transform_forward.1} parent=119 // pred_region
          %v5438 = vld [vmem:[#allocation2 + $0x30] sm:$0xff]
          %v5439 = vld [vmem:[#allocation2 + $0x38] sm:$0xff]
          %v5440 = vmax.f32 %v5107, %v5109
          %v5441 = vmax.f32 %v5440, %v5112
          %v5442 = vmax.f32 %v5441, %v5114
          %v5443 = vmax.f32 %v5442, %v5117
          %v5444 = vmax.f32 %v5443, %v5119
          %v5445 = vmax.f32 %v5444, %v5122
          %v5446 = vmax.f32 %v5445, %v5124
          %v5447 = vrot.slane %v5446, 4
          %v5448 = vmax.f32 %v5446, %v5447
          %v5449 = vrot.slane %v5448, 2
          %v5450 = vmax.f32 %v5448, %v5449
          %v5451 = vrot.slane %v5450, 1
          %v5452 = vmax.f32 %v5450, %v5451
          %v5453 = vmax.f32 %v5276, %v5278
          %v5454 = vmax.f32 %v5453, %v5281
          %v5455 = vmax.f32 %v5454, %v5283
          %v5456 = vmax.f32 %v5455, %v5286
          %v5457 = vmax.f32 %v5456, %v5288
          %v5458 = vmax.f32 %v5457, %v5291
          %v5459 = vmax.f32 %v5458, %v5293
          %v5460 = vrot.slane %v5459, 4
          %v5461 = vmax.f32 %v5459, %v5460
          %v5462 = vrot.slane %v5461, 2
          %v5463 = vmax.f32 %v5461, %v5462
          %v5464 = vrot.slane %v5463, 1
          %v5465 = vmax.f32 %v5463, %v5464
          %v5466 = vmax.f32 %v5127, %v5129
          %v5467 = vmax.f32 %v5466, %v5132
          %v5468 = vmax.f32 %v5467, %v5134
          %v5469 = vmax.f32 %v5468, %v5137
          %v5470 = vmax.f32 %v5469, %v5139
          %v5471 = vmax.f32 %v5470, %v5142
          %v5472 = vmax.f32 %v5471, %v5144
          %v5473 = vrot.slane %v5472, 4
          %v5474 = vmax.f32 %v5472, %v5473
          %v5475 = vrot.slane %v5474, 2
          %v5476 = vmax.f32 %v5474, %v5475
          %v5477 = vrot.slane %v5476, 1
          %v5478 = vmax.f32 %v5476, %v5477
          %v5479 = vmax.f32 %v5296, %v5298
          %v5480 = vmax.f32 %v5479, %v5301
          %v5481 = vmax.f32 %v5480, %v5303
          %v5482 = vmax.f32 %v5481, %v5306
          %v5483 = vmax.f32 %v5482, %v5308
          %v5484 = vmax.f32 %v5483, %v5311
          %v5485 = vmax.f32 %v5484, %v5313
          %v5486 = vrot.slane %v5485, 4
          %v5487 = vmax.f32 %v5485, %v5486
          %v5488 = vrot.slane %v5487, 2
          %v5489 = vmax.f32 %v5487, %v5488
          %v5490 = vrot.slane %v5489, 1
          %v5491 = vmax.f32 %v5489, %v5490
          %v5492 = vmax.f32 %v5147, %v5149
          %v5493 = vmax.f32 %v5492, %v5152
          %v5494 = vmax.f32 %v5493, %v5154
          %v5495 = vmax.f32 %v5494, %v5157
          %v5496 = vmax.f32 %v5495, %v5159
          %v5497 = vmax.f32 %v5496, %v5162
          %v5498 = vmax.f32 %v5497, %v5164
          %v5499 = vrot.slane %v5498, 4
          %v5500 = vmax.f32 %v5498, %v5499
          %v5501 = vrot.slane %v5500, 2
          %v5502 = vmax.f32 %v5500, %v5501
          %v5503 = vrot.slane %v5502, 1
          %v5504 = vmax.f32 %v5502, %v5503
          %v5505 = vmax.f32 %v5316, %v5318
          %v5506 = vmax.f32 %v5505, %v5321
          %v5507 = vmax.f32 %v5506, %v5323
          %v5508 = vmax.f32 %v5507, %v5326
          %v5509 = vmax.f32 %v5508, %v5328
          %v5510 = vmax.f32 %v5509, %v5331
          %v5511 = vmax.f32 %v5510, %v5333
          %v5512 = vrot.slane %v5511, 4
          %v5513 = vmax.f32 %v5511, %v5512
          %v5514 = vrot.slane %v5513, 2
          %v5515 = vmax.f32 %v5513, %v5514
          %v5516 = vrot.slane %v5515, 1
          %v5517 = vmax.f32 %v5515, %v5516
          %v5518 = vmax.f32 %v5167, %v5169
          %v5519 = vmax.f32 %v5518, %v5172
          %v5520 = vmax.f32 %v5519, %v5174
          %v5521 = vmax.f32 %v5520, %v5177
          %v5522 = vmax.f32 %v5521, %v5179
          %v5523 = vmax.f32 %v5522, %v5182
          %v5524 = vmax.f32 %v5523, %v5184
          %v5525 = vrot.slane %v5524, 4
          %v5526 = vmax.f32 %v5524, %v5525
          %v5527 = vrot.slane %v5526, 2
          %v5528 = vmax.f32 %v5526, %v5527
          %v5529 = vrot.slane %v5528, 1
          %v5530 = vmax.f32 %v5528, %v5529
          %v5531 = vmax.f32 %v5336, %v5338
          %v5532 = vmax.f32 %v5531, %v5341
          %v5533 = vmax.f32 %v5532, %v5343
          %v5534 = vmax.f32 %v5533, %v5346
          %v5535 = vmax.f32 %v5534, %v5348
          %v5536 = vmax.f32 %v5535, %v5351
          %v5537 = vmax.f32 %v5536, %v5353
          %v5538 = vrot.slane %v5537, 4
          %v5539 = vmax.f32 %v5537, %v5538
          %v5540 = vrot.slane %v5539, 2
          %v5541 = vmax.f32 %v5539, %v5540
          %v5542 = vrot.slane %v5541, 1
          %v5543 = vmax.f32 %v5541, %v5542
          %v5544 = vmax.f32 %v5187, %v5189
          %v5545 = vmax.f32 %v5544, %v5192
          %v5546 = vmax.f32 %v5545, %v5194
          %v5547 = vmax.f32 %v5546, %v5197
          %v5548 = vmax.f32 %v5547, %v5199
          %v5549 = vmax.f32 %v5548, %v5202
          %v5550 = vmax.f32 %v5549, %v5204
          %v5551 = vrot.slane %v5550, 4
          %v5552 = vmax.f32 %v5550, %v5551
          %v5553 = vrot.slane %v5552, 2
          %v5554 = vmax.f32 %v5552, %v5553
          %v5555 = vrot.slane %v5554, 1
          %v5556 = vmax.f32 %v5554, %v5555
          %v5557 = vmax.f32 %v5356, %v5358
          %v5558 = vmax.f32 %v5557, %v5361
          %v5559 = vmax.f32 %v5558, %v5363
          %v5560 = vmax.f32 %v5559, %v5366
          %v5561 = vmax.f32 %v5560, %v5368
          %v5562 = vmax.f32 %v5561, %v5371
          %v5563 = vmax.f32 %v5562, %v5373
          %v5564 = vrot.slane %v5563, 4
          %v5565 = vmax.f32 %v5563, %v5564
          %v5566 = vrot.slane %v5565, 2
          %v5567 = vmax.f32 %v5565, %v5566
          %v5568 = vrot.slane %v5567, 1
          %v5569 = vmax.f32 %v5567, %v5568
          %v5570 = vmax.f32 %v5207, %v5209
          %v5571 = vmax.f32 %v5570, %v5212
          %v5572 = vmax.f32 %v5571, %v5214
          %v5573 = vmax.f32 %v5572, %v5217
          %v5574 = vmax.f32 %v5573, %v5219
          %v5575 = vmax.f32 %v5574, %v5222
          %v5576 = vmax.f32 %v5575, %v5224
          %v5577 = vrot.slane %v5576, 4
          %v5578 = vmax.f32 %v5576, %v5577
          %v5579 = vrot.slane %v5578, 2
          %v5580 = vmax.f32 %v5578, %v5579
          %v5581 = vrot.slane %v5580, 1
          %v5582 = vmax.f32 %v5580, %v5581
          %v5583 = vmax.f32 %v5376, %v5378
          %v5584 = vmax.f32 %v5583, %v5381
          %v5585 = vmax.f32 %v5584, %v5383
          %v5586 = vmax.f32 %v5585, %v5386
          %v5587 = vmax.f32 %v5586, %v5388
          %v5588 = vmax.f32 %v5587, %v5391
          %v5589 = vmax.f32 %v5588, %v5393
          %v5590 = vrot.slane %v5589, 4
          %v5591 = vmax.f32 %v5589, %v5590
          %v5592 = vrot.slane %v5591, 2
          %v5593 = vmax.f32 %v5591, %v5592
          %v5594 = vrot.slane %v5593, 1
          %v5595 = vmax.f32 %v5593, %v5594
          %v5596 = vmax.f32 %v5227, %v5229
          %v5597 = vmax.f32 %v5596, %v5232
          %v5598 = vmax.f32 %v5597, %v5234
          %v5599 = vmax.f32 %v5598, %v5237
          %v5600 = vmax.f32 %v5599, %v5239
          %v5601 = vmax.f32 %v5600, %v5242
          %v5602 = vmax.f32 %v5601, %v5244
          %v5603 = vrot.slane %v5602, 4
          %v5604 = vmax.f32 %v5602, %v5603
          %v5605 = vrot.slane %v5604, 2
          %v5606 = vmax.f32 %v5604, %v5605
          %v5607 = vrot.slane %v5606, 1
          %v5608 = vmax.f32 %v5606, %v5607
          %v5609 = vmax.f32 %v5396, %v5398
          %v5610 = vmax.f32 %v5609, %v5401
          %v5611 = vmax.f32 %v5610, %v5403
          %v5612 = vmax.f32 %v5611, %v5406
          %v5613 = vmax.f32 %v5612, %v5408
          %v5614 = vmax.f32 %v5613, %v5411
          %v5615 = vmax.f32 %v5614, %v5413
          %v5616 = vrot.slane %v5615, 4
          %v5617 = vmax.f32 %v5615, %v5616
          %v5618 = vrot.slane %v5617, 2
          %v5619 = vmax.f32 %v5617, %v5618
          %v5620 = vrot.slane %v5619, 1
          %v5621 = vmax.f32 %v5619, %v5620
          %v5622 = vmax.f32 %v5247, %v5249
          %v5623 = vmax.f32 %v5622, %v5252
          %v5624 = vmax.f32 %v5623, %v5254
          %v5625 = vmax.f32 %v5624, %v5257
          %v5626 = vmax.f32 %v5625, %v5259
          %v5627 = vmax.f32 %v5626, %v5262
          %v5628 = vmax.f32 %v5627, %v5264
          %v5629 = vrot.slane %v5628, 4
          %v5630 = vmax.f32 %v5628, %v5629
          %v5631 = vrot.slane %v5630, 2
          %v5632 = vmax.f32 %v5630, %v5631
          %v5633 = vrot.slane %v5632, 1
          %v5634 = vmax.f32 %v5632, %v5633
          %v5635 = vmax.f32 %v5416, %v5418
          %v5636 = vmax.f32 %v5635, %v5421
          %v5637 = vmax.f32 %v5636, %v5423
          %v5638 = vmax.f32 %v5637, %v5426
          %v5639 = vmax.f32 %v5638, %v5428
          %v5640 = vmax.f32 %v5639, %v5431
          %v5641 = vmax.f32 %v5640, %v5433
          %v5642 = vrot.slane %v5641, 4
          %v5643 = vmax.f32 %v5641, %v5642
          %v5644 = vrot.slane %v5643, 2
          %v5645 = vmax.f32 %v5643, %v5644
          %v5646 = vrot.slane %v5645, 1
          %v5647 = vmax.f32 %v5645, %v5646
          %vm5664 = vcmask 1041409
          %v5665 = vsel %vm5664, %v5478, %v5452
          %vm5666 = vcmask 1042434
          %v5667 = vsel %vm5666, %v5504, %v5665
          %vm5668 = vcmask 1043459
          %v5669 = vsel %vm5668, %v5530, %v5667
          %vm5670 = vcmask 1044484
          %v5671 = vsel %vm5670, %v5556, %v5669
          %vm5672 = vcmask 1045509
          %v5673 = vsel %vm5672, %v5582, %v5671
          %vm5674 = vcmask 1046534
          %v5675 = vsel %vm5674, %v5608, %v5673
          %vm5676 = vcmask 1047559
          %v5677 = vsel %vm5676, %v5634, %v5675
          %v5678 = vsel %vm5664, %v5491, %v5465
          %v5679 = vsel %vm5666, %v5517, %v5678
          %v5680 = vsel %vm5668, %v5543, %v5679
          %v5681 = vsel %vm5670, %v5569, %v5680
          %v5682 = vsel %vm5672, %v5595, %v5681
          %v5683 = vsel %vm5674, %v5621, %v5682
          %v5684 = vsel %vm5676, %v5647, %v5683
          %v5687 = vmax.f32 %v5438, %v5677
          %v5688 = vmax.f32 %v5439, %v5684
          %5689 = vst [vmem:[#allocation2 + $0x30] sm:$0xff] %v5687
          %5690 = vst [vmem:[#allocation2 + $0x38] sm:$0xff] %v5688
        $region156: #{get_transform_forward.1} parent=119 // pred_fallthru
          _
        // Predicated region
        $region157: #{get_transform_forward.1} parent=119 // pred_check
          %p5691 = pneg %p2420
        $region158: #{get_transform_forward.1} parent=119 // pred_check_branch
          %5693 = sbr.rel (%p5691) target = $region160
        $region159: #{get_transform_forward.1} parent=119 // pred_region
          %v5694 = vsel %vm1721, 1, 0
          %v5695 = vsel %vm1722, 1, 0
          %v5696 = vsel %vm1723, 1, 0
          %v5697 = vsel %vm1724, 1, 0
          %v5698 = vsel %vm1725, 1, 0
          %v5699 = vsel %vm1726, 1, 0
          %v5700 = vsel %vm1727, 1, 0
          %v5701 = vsel %vm1728, 1, 0
          %vm5702 = vcmp.eq.s32.totalorder %v5694, 1
          %vm5703 = vcmp.eq.s32.totalorder %v5695, 1
          %vm5704 = vcmp.eq.s32.totalorder %v5696, 1
          %vm5705 = vcmp.eq.s32.totalorder %v5697, 1
          %vm5706 = vcmp.eq.s32.totalorder %v5698, 1
          %vm5707 = vcmp.eq.s32.totalorder %v5699, 1
          %vm5708 = vcmp.eq.s32.totalorder %v5700, 1
          %vm5709 = vcmp.eq.s32.totalorder %v5701, 1
          %v5710 = vsel %vm5702, %v5107, -inf
          %v5711 = vsel %vm5702, %v5276, -inf
          %v5712 = vsel %vm5703, %v5109, -inf
          %v5713 = vsel %vm5703, %v5278, -inf
          %v5714 = vsel %vm5704, %v5112, -inf
          %v5715 = vsel %vm5704, %v5281, -inf
          %v5716 = vsel %vm5705, %v5114, -inf
          %v5717 = vsel %vm5705, %v5283, -inf
          %v5718 = vsel %vm5706, %v5117, -inf
          %v5719 = vsel %vm5706, %v5286, -inf
          %v5720 = vsel %vm5707, %v5119, -inf
          %v5721 = vsel %vm5707, %v5288, -inf
          %v5722 = vsel %vm5708, %v5122, -inf
          %v5723 = vsel %vm5708, %v5291, -inf
          %v5724 = vsel %vm5709, %v5124, -inf
          %v5725 = vsel %vm5709, %v5293, -inf
          %v5726 = vsel %vm5702, %v5127, -inf
          %v5727 = vsel %vm5702, %v5296, -inf
          %v5728 = vsel %vm5703, %v5129, -inf
          %v5729 = vsel %vm5703, %v5298, -inf
          %v5730 = vsel %vm5704, %v5132, -inf
          %v5731 = vsel %vm5704, %v5301, -inf
          %v5732 = vsel %vm5705, %v5134, -inf
          %v5733 = vsel %vm5705, %v5303, -inf
          %v5734 = vsel %vm5706, %v5137, -inf
          %v5735 = vsel %vm5706, %v5306, -inf
          %v5736 = vsel %vm5707, %v5139, -inf
          %v5737 = vsel %vm5707, %v5308, -inf
          %v5738 = vsel %vm5708, %v5142, -inf
          %v5739 = vsel %vm5708, %v5311, -inf
          %v5740 = vsel %vm5709, %v5144, -inf
          %v5741 = vsel %vm5709, %v5313, -inf
          %v5742 = vsel %vm5702, %v5147, -inf
          %v5743 = vsel %vm5702, %v5316, -inf
          %v5744 = vsel %vm5703, %v5149, -inf
          %v5745 = vsel %vm5703, %v5318, -inf
          %v5746 = vsel %vm5704, %v5152, -inf
          %v5747 = vsel %vm5704, %v5321, -inf
          %v5748 = vsel %vm5705, %v5154, -inf
          %v5749 = vsel %vm5705, %v5323, -inf
          %v5750 = vsel %vm5706, %v5157, -inf
          %v5751 = vsel %vm5706, %v5326, -inf
          %v5752 = vsel %vm5707, %v5159, -inf
          %v5753 = vsel %vm5707, %v5328, -inf
          %v5754 = vsel %vm5708, %v5162, -inf
          %v5755 = vsel %vm5708, %v5331, -inf
          %v5756 = vsel %vm5709, %v5164, -inf
          %v5757 = vsel %vm5709, %v5333, -inf
          %v5758 = vsel %vm5702, %v5167, -inf
          %v5759 = vsel %vm5702, %v5336, -inf
          %v5760 = vsel %vm5703, %v5169, -inf
          %v5761 = vsel %vm5703, %v5338, -inf
          %v5762 = vsel %vm5704, %v5172, -inf
          %v5763 = vsel %vm5704, %v5341, -inf
          %v5764 = vsel %vm5705, %v5174, -inf
          %v5765 = vsel %vm5705, %v5343, -inf
          %v5766 = vsel %vm5706, %v5177, -inf
          %v5767 = vsel %vm5706, %v5346, -inf
          %v5768 = vsel %vm5707, %v5179, -inf
          %v5769 = vsel %vm5707, %v5348, -inf
          %v5770 = vsel %vm5708, %v5182, -inf
          %v5771 = vsel %vm5708, %v5351, -inf
          %v5772 = vsel %vm5709, %v5184, -inf
          %v5773 = vsel %vm5709, %v5353, -inf
          %v5774 = vsel %vm5702, %v5187, -inf
          %v5775 = vsel %vm5702, %v5356, -inf
          %v5776 = vsel %vm5703, %v5189, -inf
          %v5777 = vsel %vm5703, %v5358, -inf
          %v5778 = vsel %vm5704, %v5192, -inf
          %v5779 = vsel %vm5704, %v5361, -inf
          %v5780 = vsel %vm5705, %v5194, -inf
          %v5781 = vsel %vm5705, %v5363, -inf
          %v5782 = vsel %vm5706, %v5197, -inf
          %v5783 = vsel %vm5706, %v5366, -inf
          %v5784 = vsel %vm5707, %v5199, -inf
          %v5785 = vsel %vm5707, %v5368, -inf
          %v5786 = vsel %vm5708, %v5202, -inf
          %v5787 = vsel %vm5708, %v5371, -inf
          %v5788 = vsel %vm5709, %v5204, -inf
          %v5789 = vsel %vm5709, %v5373, -inf
          %v5790 = vsel %vm5702, %v5207, -inf
          %v5791 = vsel %vm5702, %v5376, -inf
          %v5792 = vsel %vm5703, %v5209, -inf
          %v5793 = vsel %vm5703, %v5378, -inf
          %v5794 = vsel %vm5704, %v5212, -inf
          %v5795 = vsel %vm5704, %v5381, -inf
          %v5796 = vsel %vm5705, %v5214, -inf
          %v5797 = vsel %vm5705, %v5383, -inf
          %v5798 = vsel %vm5706, %v5217, -inf
          %v5799 = vsel %vm5706, %v5386, -inf
          %v5800 = vsel %vm5707, %v5219, -inf
          %v5801 = vsel %vm5707, %v5388, -inf
          %v5802 = vsel %vm5708, %v5222, -inf
          %v5803 = vsel %vm5708, %v5391, -inf
          %v5804 = vsel %vm5709, %v5224, -inf
          %v5805 = vsel %vm5709, %v5393, -inf
          %v5806 = vsel %vm5702, %v5227, -inf
          %v5807 = vsel %vm5702, %v5396, -inf
          %v5808 = vsel %vm5703, %v5229, -inf
          %v5809 = vsel %vm5703, %v5398, -inf
          %v5810 = vsel %vm5704, %v5232, -inf
          %v5811 = vsel %vm5704, %v5401, -inf
          %v5812 = vsel %vm5705, %v5234, -inf
          %v5813 = vsel %vm5705, %v5403, -inf
          %v5814 = vsel %vm5706, %v5237, -inf
          %v5815 = vsel %vm5706, %v5406, -inf
          %v5816 = vsel %vm5707, %v5239, -inf
          %v5817 = vsel %vm5707, %v5408, -inf
          %v5818 = vsel %vm5708, %v5242, -inf
          %v5819 = vsel %vm5708, %v5411, -inf
          %v5820 = vsel %vm5709, %v5244, -inf
          %v5821 = vsel %vm5709, %v5413, -inf
          %v5822 = vsel %vm5702, %v5247, -inf
          %v5823 = vsel %vm5702, %v5416, -inf
          %v5824 = vsel %vm5703, %v5249, -inf
          %v5825 = vsel %vm5703, %v5418, -inf
          %v5826 = vsel %vm5704, %v5252, -inf
          %v5827 = vsel %vm5704, %v5421, -inf
          %v5828 = vsel %vm5705, %v5254, -inf
          %v5829 = vsel %vm5705, %v5423, -inf
          %v5830 = vsel %vm5706, %v5257, -inf
          %v5831 = vsel %vm5706, %v5426, -inf
          %v5832 = vsel %vm5707, %v5259, -inf
          %v5833 = vsel %vm5707, %v5428, -inf
          %v5834 = vsel %vm5708, %v5262, -inf
          %v5835 = vsel %vm5708, %v5431, -inf
          %v5836 = vsel %vm5709, %v5264, -inf
          %v5837 = vsel %vm5709, %v5433, -inf
          %v5838 = vld [vmem:[#allocation2 + $0x30] sm:$0xff]
          %v5839 = vld [vmem:[#allocation2 + $0x38] sm:$0xff]
          %v5840 = vmax.f32 %v5710, %v5712
          %v5841 = vmax.f32 %v5840, %v5714
          %v5842 = vmax.f32 %v5841, %v5716
          %v5843 = vmax.f32 %v5842, %v5718
          %v5844 = vmax.f32 %v5843, %v5720
          %v5845 = vmax.f32 %v5844, %v5722
          %v5846 = vmax.f32 %v5845, %v5724
          %v5847 = vrot.slane %v5846, 4
          %v5848 = vmax.f32 %v5846, %v5847
          %v5849 = vrot.slane %v5848, 2
          %v5850 = vmax.f32 %v5848, %v5849
          %v5851 = vrot.slane %v5850, 1
          %v5852 = vmax.f32 %v5850, %v5851
          %v5853 = vmax.f32 %v5711, %v5713
          %v5854 = vmax.f32 %v5853, %v5715
          %v5855 = vmax.f32 %v5854, %v5717
          %v5856 = vmax.f32 %v5855, %v5719
          %v5857 = vmax.f32 %v5856, %v5721
          %v5858 = vmax.f32 %v5857, %v5723
          %v5859 = vmax.f32 %v5858, %v5725
          %v5860 = vrot.slane %v5859, 4
          %v5861 = vmax.f32 %v5859, %v5860
          %v5862 = vrot.slane %v5861, 2
          %v5863 = vmax.f32 %v5861, %v5862
          %v5864 = vrot.slane %v5863, 1
          %v5865 = vmax.f32 %v5863, %v5864
          %v5866 = vmax.f32 %v5726, %v5728
          %v5867 = vmax.f32 %v5866, %v5730
          %v5868 = vmax.f32 %v5867, %v5732
          %v5869 = vmax.f32 %v5868, %v5734
          %v5870 = vmax.f32 %v5869, %v5736
          %v5871 = vmax.f32 %v5870, %v5738
          %v5872 = vmax.f32 %v5871, %v5740
          %v5873 = vrot.slane %v5872, 4
          %v5874 = vmax.f32 %v5872, %v5873
          %v5875 = vrot.slane %v5874, 2
          %v5876 = vmax.f32 %v5874, %v5875
          %v5877 = vrot.slane %v5876, 1
          %v5878 = vmax.f32 %v5876, %v5877
          %v5879 = vmax.f32 %v5727, %v5729
          %v5880 = vmax.f32 %v5879, %v5731
          %v5881 = vmax.f32 %v5880, %v5733
          %v5882 = vmax.f32 %v5881, %v5735
          %v5883 = vmax.f32 %v5882, %v5737
          %v5884 = vmax.f32 %v5883, %v5739
          %v5885 = vmax.f32 %v5884, %v5741
          %v5886 = vrot.slane %v5885, 4
          %v5887 = vmax.f32 %v5885, %v5886
          %v5888 = vrot.slane %v5887, 2
          %v5889 = vmax.f32 %v5887, %v5888
          %v5890 = vrot.slane %v5889, 1
          %v5891 = vmax.f32 %v5889, %v5890
          %v5892 = vmax.f32 %v5742, %v5744
          %v5893 = vmax.f32 %v5892, %v5746
          %v5894 = vmax.f32 %v5893, %v5748
          %v5895 = vmax.f32 %v5894, %v5750
          %v5896 = vmax.f32 %v5895, %v5752
          %v5897 = vmax.f32 %v5896, %v5754
          %v5898 = vmax.f32 %v5897, %v5756
          %v5899 = vrot.slane %v5898, 4
          %v5900 = vmax.f32 %v5898, %v5899
          %v5901 = vrot.slane %v5900, 2
          %v5902 = vmax.f32 %v5900, %v5901
          %v5903 = vrot.slane %v5902, 1
          %v5904 = vmax.f32 %v5902, %v5903
          %v5905 = vmax.f32 %v5743, %v5745
          %v5906 = vmax.f32 %v5905, %v5747
          %v5907 = vmax.f32 %v5906, %v5749
          %v5908 = vmax.f32 %v5907, %v5751
          %v5909 = vmax.f32 %v5908, %v5753
          %v5910 = vmax.f32 %v5909, %v5755
          %v5911 = vmax.f32 %v5910, %v5757
          %v5912 = vrot.slane %v5911, 4
          %v5913 = vmax.f32 %v5911, %v5912
          %v5914 = vrot.slane %v5913, 2
          %v5915 = vmax.f32 %v5913, %v5914
          %v5916 = vrot.slane %v5915, 1
          %v5917 = vmax.f32 %v5915, %v5916
          %v5918 = vmax.f32 %v5758, %v5760
          %v5919 = vmax.f32 %v5918, %v5762
          %v5920 = vmax.f32 %v5919, %v5764
          %v5921 = vmax.f32 %v5920, %v5766
          %v5922 = vmax.f32 %v5921, %v5768
          %v5923 = vmax.f32 %v5922, %v5770
          %v5924 = vmax.f32 %v5923, %v5772
          %v5925 = vrot.slane %v5924, 4
          %v5926 = vmax.f32 %v5924, %v5925
          %v5927 = vrot.slane %v5926, 2
          %v5928 = vmax.f32 %v5926, %v5927
          %v5929 = vrot.slane %v5928, 1
          %v5930 = vmax.f32 %v5928, %v5929
          %v5931 = vmax.f32 %v5759, %v5761
          %v5932 = vmax.f32 %v5931, %v5763
          %v5933 = vmax.f32 %v5932, %v5765
          %v5934 = vmax.f32 %v5933, %v5767
          %v5935 = vmax.f32 %v5934, %v5769
          %v5936 = vmax.f32 %v5935, %v5771
          %v5937 = vmax.f32 %v5936, %v5773
          %v5938 = vrot.slane %v5937, 4
          %v5939 = vmax.f32 %v5937, %v5938
          %v5940 = vrot.slane %v5939, 2
          %v5941 = vmax.f32 %v5939, %v5940
          %v5942 = vrot.slane %v5941, 1
          %v5943 = vmax.f32 %v5941, %v5942
          %v5944 = vmax.f32 %v5774, %v5776
          %v5945 = vmax.f32 %v5944, %v5778
          %v5946 = vmax.f32 %v5945, %v5780
          %v5947 = vmax.f32 %v5946, %v5782
          %v5948 = vmax.f32 %v5947, %v5784
          %v5949 = vmax.f32 %v5948, %v5786
          %v5950 = vmax.f32 %v5949, %v5788
          %v5951 = vrot.slane %v5950, 4
          %v5952 = vmax.f32 %v5950, %v5951
          %v5953 = vrot.slane %v5952, 2
          %v5954 = vmax.f32 %v5952, %v5953
          %v5955 = vrot.slane %v5954, 1
          %v5956 = vmax.f32 %v5954, %v5955
          %v5957 = vmax.f32 %v5775, %v5777
          %v5958 = vmax.f32 %v5957, %v5779
          %v5959 = vmax.f32 %v5958, %v5781
          %v5960 = vmax.f32 %v5959, %v5783
          %v5961 = vmax.f32 %v5960, %v5785
          %v5962 = vmax.f32 %v5961, %v5787
          %v5963 = vmax.f32 %v5962, %v5789
          %v5964 = vrot.slane %v5963, 4
          %v5965 = vmax.f32 %v5963, %v5964
          %v5966 = vrot.slane %v5965, 2
          %v5967 = vmax.f32 %v5965, %v5966
          %v5968 = vrot.slane %v5967, 1
          %v5969 = vmax.f32 %v5967, %v5968
          %v5970 = vmax.f32 %v5790, %v5792
          %v5971 = vmax.f32 %v5970, %v5794
          %v5972 = vmax.f32 %v5971, %v5796
          %v5973 = vmax.f32 %v5972, %v5798
          %v5974 = vmax.f32 %v5973, %v5800
          %v5975 = vmax.f32 %v5974, %v5802
          %v5976 = vmax.f32 %v5975, %v5804
          %v5977 = vrot.slane %v5976, 4
          %v5978 = vmax.f32 %v5976, %v5977
          %v5979 = vrot.slane %v5978, 2
          %v5980 = vmax.f32 %v5978, %v5979
          %v5981 = vrot.slane %v5980, 1
          %v5982 = vmax.f32 %v5980, %v5981
          %v5983 = vmax.f32 %v5791, %v5793
          %v5984 = vmax.f32 %v5983, %v5795
          %v5985 = vmax.f32 %v5984, %v5797
          %v5986 = vmax.f32 %v5985, %v5799
          %v5987 = vmax.f32 %v5986, %v5801
          %v5988 = vmax.f32 %v5987, %v5803
          %v5989 = vmax.f32 %v5988, %v5805
          %v5990 = vrot.slane %v5989, 4
          %v5991 = vmax.f32 %v5989, %v5990
          %v5992 = vrot.slane %v5991, 2
          %v5993 = vmax.f32 %v5991, %v5992
          %v5994 = vrot.slane %v5993, 1
          %v5995 = vmax.f32 %v5993, %v5994
          %v5996 = vmax.f32 %v5806, %v5808
          %v5997 = vmax.f32 %v5996, %v5810
          %v5998 = vmax.f32 %v5997, %v5812
          %v5999 = vmax.f32 %v5998, %v5814
          %v6000 = vmax.f32 %v5999, %v5816
          %v6001 = vmax.f32 %v6000, %v5818
          %v6002 = vmax.f32 %v6001, %v5820
          %v6003 = vrot.slane %v6002, 4
          %v6004 = vmax.f32 %v6002, %v6003
          %v6005 = vrot.slane %v6004, 2
          %v6006 = vmax.f32 %v6004, %v6005
          %v6007 = vrot.slane %v6006, 1
          %v6008 = vmax.f32 %v6006, %v6007
          %v6009 = vmax.f32 %v5807, %v5809
          %v6010 = vmax.f32 %v6009, %v5811
          %v6011 = vmax.f32 %v6010, %v5813
          %v6012 = vmax.f32 %v6011, %v5815
          %v6013 = vmax.f32 %v6012, %v5817
          %v6014 = vmax.f32 %v6013, %v5819
          %v6015 = vmax.f32 %v6014, %v5821
          %v6016 = vrot.slane %v6015, 4
          %v6017 = vmax.f32 %v6015, %v6016
          %v6018 = vrot.slane %v6017, 2
          %v6019 = vmax.f32 %v6017, %v6018
          %v6020 = vrot.slane %v6019, 1
          %v6021 = vmax.f32 %v6019, %v6020
          %v6022 = vmax.f32 %v5822, %v5824
          %v6023 = vmax.f32 %v6022, %v5826
          %v6024 = vmax.f32 %v6023, %v5828
          %v6025 = vmax.f32 %v6024, %v5830
          %v6026 = vmax.f32 %v6025, %v5832
          %v6027 = vmax.f32 %v6026, %v5834
          %v6028 = vmax.f32 %v6027, %v5836
          %v6029 = vrot.slane %v6028, 4
          %v6030 = vmax.f32 %v6028, %v6029
          %v6031 = vrot.slane %v6030, 2
          %v6032 = vmax.f32 %v6030, %v6031
          %v6033 = vrot.slane %v6032, 1
          %v6034 = vmax.f32 %v6032, %v6033
          %v6035 = vmax.f32 %v5823, %v5825
          %v6036 = vmax.f32 %v6035, %v5827
          %v6037 = vmax.f32 %v6036, %v5829
          %v6038 = vmax.f32 %v6037, %v5831
          %v6039 = vmax.f32 %v6038, %v5833
          %v6040 = vmax.f32 %v6039, %v5835
          %v6041 = vmax.f32 %v6040, %v5837
          %v6042 = vrot.slane %v6041, 4
          %v6043 = vmax.f32 %v6041, %v6042
          %v6044 = vrot.slane %v6043, 2
          %v6045 = vmax.f32 %v6043, %v6044
          %v6046 = vrot.slane %v6045, 1
          %v6047 = vmax.f32 %v6045, %v6046
          %vm6064 = vcmask 1041409
          %v6065 = vsel %vm6064, %v5878, %v5852
          %vm6066 = vcmask 1042434
          %v6067 = vsel %vm6066, %v5904, %v6065
          %vm6068 = vcmask 1043459
          %v6069 = vsel %vm6068, %v5930, %v6067
          %vm6070 = vcmask 1044484
          %v6071 = vsel %vm6070, %v5956, %v6069
          %vm6072 = vcmask 1045509
          %v6073 = vsel %vm6072, %v5982, %v6071
          %vm6074 = vcmask 1046534
          %v6075 = vsel %vm6074, %v6008, %v6073
          %vm6076 = vcmask 1047559
          %v6077 = vsel %vm6076, %v6034, %v6075
          %v6078 = vsel %vm6064, %v5891, %v5865
          %v6079 = vsel %vm6066, %v5917, %v6078
          %v6080 = vsel %vm6068, %v5943, %v6079
          %v6081 = vsel %vm6070, %v5969, %v6080
          %v6082 = vsel %vm6072, %v5995, %v6081
          %v6083 = vsel %vm6074, %v6021, %v6082
          %v6084 = vsel %vm6076, %v6047, %v6083
          %v6087 = vmax.f32 %v5838, %v6077
          %v6088 = vmax.f32 %v5839, %v6084
          %6089 = vst [vmem:[#allocation2 + $0x30] sm:$0xff] %v6087
          %6090 = vst [vmem:[#allocation2 + $0x38] sm:$0xff] %v6088
          %v6091 = vld [vmem:[#allocation2] sm:$0xff]
          %v6092 = vld [vmem:[#allocation2 + $0x8] sm:$0xff]
          %v6093 = vld [vmem:[#allocation2 + $0x10] sm:$0xff]
          %v6094 = vld [vmem:[#allocation2 + $0x18] sm:$0xff]
          %v6095 = vld [vmem:[#allocation2 + $0x20] sm:$0xff]
          %v6096 = vld [vmem:[#allocation2 + $0x28] sm:$0xff]
          %v6097 = vld [vmem:[#allocation2 + $0x30] sm:$0xff]
          %v6098 = vld [vmem:[#allocation2 + $0x38] sm:$0xff]
          %v6099 = vld [vmem:[%s6] sm:$0xff]
          %v6101 = vperm.slane %v6099, 0
          %v6102 = vperm.slane %v6099, 1
          %v6103 = vperm.slane %v6099, 2
          %v6104 = vperm.slane %v6099, 3
          %v6105 = vperm.slane %v6099, 4
          %v6106 = vperm.slane %v6099, 5
          %v6107 = vperm.slane %v6099, 6
          %v6108 = vperm.slane %v6099, 7
          %v6117 = vadd.f32 %v6091, %v6101
          %v6118 = vadd.f32 %v6092, %v6102
          %v6119 = vadd.f32 %v6093, %v6103
          %v6120 = vadd.f32 %v6094, %v6104
          %v6121 = vadd.f32 %v6095, %v6105
          %v6122 = vadd.f32 %v6096, %v6106
          %v6123 = vadd.f32 %v6097, %v6107
          %v6124 = vadd.f32 %v6098, %v6108
          %v6125 = vmax.f32 %v6117, 0.0
          %v6126 = vmax.f32 %v6118, 0.0
          %v6127 = vmax.f32 %v6119, 0.0
          %v6128 = vmax.f32 %v6120, 0.0
          %v6129 = vmax.f32 %v6121, 0.0
          %v6130 = vmax.f32 %v6122, 0.0
          %v6131 = vmax.f32 %v6123, 0.0
          %v6132 = vmax.f32 %v6124, 0.0
          %v6133 = vpack.c.bf16 %v6125, %v6125
          %v6134 = vpack.c.bf16 %v6126, %v6126
          %v6135 = vpack.c.bf16 %v6127, %v6127
          %v6136 = vpack.c.bf16 %v6128, %v6128
          %v6137 = vpack.c.bf16 %v6129, %v6129
          %v6138 = vpack.c.bf16 %v6130, %v6130
          %v6139 = vpack.c.bf16 %v6131, %v6131
          %v6140 = vpack.c.bf16 %v6132, %v6132
          %v6141 = vld [vmem:[%s7] sm:$0xf]
          %v6142 = vld [vmem:[%s7 + $0x4] sm:$0xf]
          %v6143 = vld [vmem:[%s7 + $0x8] sm:$0xf]
          %v6144 = vld [vmem:[%s7 + $0xc] sm:$0xf]
          %v6145 = vld [vmem:[%s7 + $0x10] sm:$0xf]
          %v6146 = vld [vmem:[%s7 + $0x14] sm:$0xf]
          %v6147 = vld [vmem:[%s7 + $0x18] sm:$0xf]
          %v6148 = vld [vmem:[%s7 + $0x1c] sm:$0xf]
          %v6149 = vld [vmem:[%s7 + $0x20] sm:$0xf]
          %v6150 = vld [vmem:[%s7 + $0x24] sm:$0xf]
          %v6151 = vld [vmem:[%s7 + $0x28] sm:$0xf]
          %v6152 = vld [vmem:[%s7 + $0x2c] sm:$0xf]
          %v6153 = vld [vmem:[%s7 + $0x30] sm:$0xf]
          %v6154 = vld [vmem:[%s7 + $0x34] sm:$0xf]
          %v6155 = vld [vmem:[%s7 + $0x38] sm:$0xf]
          %v6156 = vld [vmem:[%s7 + $0x3c] sm:$0xf]
          %v6157 = vld [vmem:[%s7 + $0x40] sm:$0xf]
          %v6158 = vld [vmem:[%s7 + $0x44] sm:$0xf]
          %v6159 = vld [vmem:[%s7 + $0x48] sm:$0xf]
          %v6160 = vld [vmem:[%s7 + $0x4c] sm:$0xf]
          %v6161 = vld [vmem:[%s7 + $0x50] sm:$0xf]
          %v6162 = vld [vmem:[%s7 + $0x54] sm:$0xf]
          %v6163 = vld [vmem:[%s7 + $0x58] sm:$0xf]
          %v6164 = vld [vmem:[%s7 + $0x5c] sm:$0xf]
          %v6165 = vld [vmem:[%s7 + $0x60] sm:$0xf]
          %v6166 = vld [vmem:[%s7 + $0x64] sm:$0xf]
          %v6167 = vld [vmem:[%s7 + $0x68] sm:$0xf]
          %v6168 = vld [vmem:[%s7 + $0x6c] sm:$0xf]
          %v6169 = vld [vmem:[%s7 + $0x70] sm:$0xf]
          %v6170 = vld [vmem:[%s7 + $0x74] sm:$0xf]
          %v6171 = vld [vmem:[%s7 + $0x78] sm:$0xf]
          %v6172 = vld [vmem:[%s7 + $0x7c] sm:$0xf]
          %v6173 = vld [vmem:[%s7 + $0x80] sm:$0xf]
          %v6174 = vld [vmem:[%s7 + $0x84] sm:$0xf]
          %v6175 = vld [vmem:[%s7 + $0x88] sm:$0xf]
          %v6176 = vld [vmem:[%s7 + $0x8c] sm:$0xf]
          %v6177 = vld [vmem:[%s7 + $0x90] sm:$0xf]
          %v6178 = vld [vmem:[%s7 + $0x94] sm:$0xf]
          %v6179 = vld [vmem:[%s7 + $0x98] sm:$0xf]
          %v6180 = vld [vmem:[%s7 + $0x9c] sm:$0xf]
          %v6181 = vld [vmem:[%s7 + $0xa0] sm:$0xf]
          %v6182 = vld [vmem:[%s7 + $0xa4] sm:$0xf]
          %v6183 = vld [vmem:[%s7 + $0xa8] sm:$0xf]
          %v6184 = vld [vmem:[%s7 + $0xac] sm:$0xf]
          %v6185 = vld [vmem:[%s7 + $0xb0] sm:$0xf]
          %v6186 = vld [vmem:[%s7 + $0xb4] sm:$0xf]
          %v6187 = vld [vmem:[%s7 + $0xb8] sm:$0xf]
          %v6188 = vld [vmem:[%s7 + $0xbc] sm:$0xf]
          %v6189 = vld [vmem:[%s7 + $0xc0] sm:$0xf]
          %v6190 = vld [vmem:[%s7 + $0xc4] sm:$0xf]
          %v6191 = vld [vmem:[%s7 + $0xc8] sm:$0xf]
          %v6192 = vld [vmem:[%s7 + $0xcc] sm:$0xf]
          %v6193 = vld [vmem:[%s7 + $0xd0] sm:$0xf]
          %v6194 = vld [vmem:[%s7 + $0xd4] sm:$0xf]
          %v6195 = vld [vmem:[%s7 + $0xd8] sm:$0xf]
          %v6196 = vld [vmem:[%s7 + $0xdc] sm:$0xf]
          %v6197 = vld [vmem:[%s7 + $0xe0] sm:$0xf]
          %v6198 = vld [vmem:[%s7 + $0xe4] sm:$0xf]
          %v6199 = vld [vmem:[%s7 + $0xe8] sm:$0xf]
          %v6200 = vld [vmem:[%s7 + $0xec] sm:$0xf]
          %v6201 = vld [vmem:[%s7 + $0xf0] sm:$0xf]
          %v6202 = vld [vmem:[%s7 + $0xf4] sm:$0xf]
          %v6203 = vld [vmem:[%s7 + $0xf8] sm:$0xf]
          %v6204 = vld [vmem:[%s7 + $0xfc] sm:$0xf]
          %v6205 = vld [vmem:[%s7 + $0x100] sm:$0xf]
          %v6206 = vld [vmem:[%s7 + $0x104] sm:$0xf]
          %v6207 = vld [vmem:[%s7 + $0x108] sm:$0xf]
          %v6208 = vld [vmem:[%s7 + $0x10c] sm:$0xf]
          %v6209 = vld [vmem:[%s7 + $0x110] sm:$0xf]
          %v6210 = vld [vmem:[%s7 + $0x114] sm:$0xf]
          %v6211 = vld [vmem:[%s7 + $0x118] sm:$0xf]
          %v6212 = vld [vmem:[%s7 + $0x11c] sm:$0xf]
          %v6213 = vld [vmem:[%s7 + $0x120] sm:$0xf]
          %v6214 = vld [vmem:[%s7 + $0x124] sm:$0xf]
          %v6215 = vld [vmem:[%s7 + $0x128] sm:$0xf]
          %v6216 = vld [vmem:[%s7 + $0x12c] sm:$0xf]
          %v6217 = vld [vmem:[%s7 + $0x130] sm:$0xf]
          %v6218 = vld [vmem:[%s7 + $0x134] sm:$0xf]
          %v6219 = vld [vmem:[%s7 + $0x138] sm:$0xf]
          %v6220 = vld [vmem:[%s7 + $0x13c] sm:$0xf]
          %v6221 = vld [vmem:[%s7 + $0x140] sm:$0xf]
          %v6222 = vld [vmem:[%s7 + $0x144] sm:$0xf]
          %v6223 = vld [vmem:[%s7 + $0x148] sm:$0xf]
          %v6224 = vld [vmem:[%s7 + $0x14c] sm:$0xf]
          %v6225 = vld [vmem:[%s7 + $0x150] sm:$0xf]
          %v6226 = vld [vmem:[%s7 + $0x154] sm:$0xf]
          %v6227 = vld [vmem:[%s7 + $0x158] sm:$0xf]
          %v6228 = vld [vmem:[%s7 + $0x15c] sm:$0xf]
          %v6229 = vld [vmem:[%s7 + $0x160] sm:$0xf]
          %v6230 = vld [vmem:[%s7 + $0x164] sm:$0xf]
          %v6231 = vld [vmem:[%s7 + $0x168] sm:$0xf]
          %v6232 = vld [vmem:[%s7 + $0x16c] sm:$0xf]
          %v6233 = vld [vmem:[%s7 + $0x170] sm:$0xf]
          %v6234 = vld [vmem:[%s7 + $0x174] sm:$0xf]
          %v6235 = vld [vmem:[%s7 + $0x178] sm:$0xf]
          %v6236 = vld [vmem:[%s7 + $0x17c] sm:$0xf]
          %v6237 = vld [vmem:[%s7 + $0x180] sm:$0xf]
          %v6238 = vld [vmem:[%s7 + $0x184] sm:$0xf]
          %v6239 = vld [vmem:[%s7 + $0x188] sm:$0xf]
          %v6240 = vld [vmem:[%s7 + $0x18c] sm:$0xf]
          %v6241 = vld [vmem:[%s7 + $0x190] sm:$0xf]
          %v6242 = vld [vmem:[%s7 + $0x194] sm:$0xf]
          %v6243 = vld [vmem:[%s7 + $0x198] sm:$0xf]
          %v6244 = vld [vmem:[%s7 + $0x19c] sm:$0xf]
          %v6245 = vld [vmem:[%s7 + $0x1a0] sm:$0xf]
          %v6246 = vld [vmem:[%s7 + $0x1a4] sm:$0xf]
          %v6247 = vld [vmem:[%s7 + $0x1a8] sm:$0xf]
          %v6248 = vld [vmem:[%s7 + $0x1ac] sm:$0xf]
          %v6249 = vld [vmem:[%s7 + $0x1b0] sm:$0xf]
          %v6250 = vld [vmem:[%s7 + $0x1b4] sm:$0xf]
          %v6251 = vld [vmem:[%s7 + $0x1b8] sm:$0xf]
          %v6252 = vld [vmem:[%s7 + $0x1bc] sm:$0xf]
          %v6253 = vld [vmem:[%s7 + $0x1c0] sm:$0xf]
          %v6254 = vld [vmem:[%s7 + $0x1c4] sm:$0xf]
          %v6255 = vld [vmem:[%s7 + $0x1c8] sm:$0xf]
          %v6256 = vld [vmem:[%s7 + $0x1cc] sm:$0xf]
          %v6257 = vld [vmem:[%s7 + $0x1d0] sm:$0xf]
          %v6258 = vld [vmem:[%s7 + $0x1d4] sm:$0xf]
          %v6259 = vld [vmem:[%s7 + $0x1d8] sm:$0xf]
          %v6260 = vld [vmem:[%s7 + $0x1dc] sm:$0xf]
          %v6261 = vld [vmem:[%s7 + $0x1e0] sm:$0xf]
          %v6262 = vld [vmem:[%s7 + $0x1e4] sm:$0xf]
          %v6263 = vld [vmem:[%s7 + $0x1e8] sm:$0xf]
          %v6264 = vld [vmem:[%s7 + $0x1ec] sm:$0xf]
          %v6265 = vld [vmem:[%s7 + $0x1f0] sm:$0xf]
          %v6266 = vld [vmem:[%s7 + $0x1f4] sm:$0xf]
          %v6267 = vld [vmem:[%s7 + $0x1f8] sm:$0xf]
          %v6268 = vld [vmem:[%s7 + $0x1fc] sm:$0xf]
          %v6269 = vld [vmem:[%s8] sm:$0x1]
          %v6271 = vperm.slane %v6269, 0
          %v6401 = vunpack.c.l.b16 %v6141
          %v6402 = vunpack.c.l.b16 %v6142
          %v6403 = vunpack.c.l.b16 %v6143
          %v6404 = vunpack.c.l.b16 %v6144
          %v6405 = vunpack.c.l.b16 %v6145
          %v6406 = vunpack.c.l.b16 %v6146
          %v6407 = vunpack.c.l.b16 %v6147
          %v6408 = vunpack.c.l.b16 %v6148
          %v6409 = vunpack.c.l.b16 %v6149
          %v6410 = vunpack.c.l.b16 %v6150
          %v6411 = vunpack.c.l.b16 %v6151
          %v6412 = vunpack.c.l.b16 %v6152
          %v6413 = vunpack.c.l.b16 %v6153
          %v6414 = vunpack.c.l.b16 %v6154
          %v6415 = vunpack.c.l.b16 %v6155
          %v6416 = vunpack.c.l.b16 %v6156
          %v6417 = vunpack.c.l.b16 %v6157
          %v6418 = vunpack.c.l.b16 %v6158
          %v6419 = vunpack.c.l.b16 %v6159
          %v6420 = vunpack.c.l.b16 %v6160
          %v6421 = vunpack.c.l.b16 %v6161
          %v6422 = vunpack.c.l.b16 %v6162
          %v6423 = vunpack.c.l.b16 %v6163
          %v6424 = vunpack.c.l.b16 %v6164
          %v6425 = vunpack.c.l.b16 %v6165
          %v6426 = vunpack.c.l.b16 %v6166
          %v6427 = vunpack.c.l.b16 %v6167
          %v6428 = vunpack.c.l.b16 %v6168
          %v6429 = vunpack.c.l.b16 %v6169
          %v6430 = vunpack.c.l.b16 %v6170
          %v6431 = vunpack.c.l.b16 %v6171
          %v6432 = vunpack.c.l.b16 %v6172
          %v6433 = vunpack.c.l.b16 %v6173
          %v6434 = vunpack.c.l.b16 %v6174
          %v6435 = vunpack.c.l.b16 %v6175
          %v6436 = vunpack.c.l.b16 %v6176
          %v6437 = vunpack.c.l.b16 %v6177
          %v6438 = vunpack.c.l.b16 %v6178
          %v6439 = vunpack.c.l.b16 %v6179
          %v6440 = vunpack.c.l.b16 %v6180
          %v6441 = vunpack.c.l.b16 %v6181
          %v6442 = vunpack.c.l.b16 %v6182
          %v6443 = vunpack.c.l.b16 %v6183
          %v6444 = vunpack.c.l.b16 %v6184
          %v6445 = vunpack.c.l.b16 %v6185
          %v6446 = vunpack.c.l.b16 %v6186
          %v6447 = vunpack.c.l.b16 %v6187
          %v6448 = vunpack.c.l.b16 %v6188
          %v6449 = vunpack.c.l.b16 %v6189
          %v6450 = vunpack.c.l.b16 %v6190
          %v6451 = vunpack.c.l.b16 %v6191
          %v6452 = vunpack.c.l.b16 %v6192
          %v6453 = vunpack.c.l.b16 %v6193
          %v6454 = vunpack.c.l.b16 %v6194
          %v6455 = vunpack.c.l.b16 %v6195
          %v6456 = vunpack.c.l.b16 %v6196
          %v6457 = vunpack.c.l.b16 %v6197
          %v6458 = vunpack.c.l.b16 %v6198
          %v6459 = vunpack.c.l.b16 %v6199
          %v6460 = vunpack.c.l.b16 %v6200
          %v6461 = vunpack.c.l.b16 %v6201
          %v6462 = vunpack.c.l.b16 %v6202
          %v6463 = vunpack.c.l.b16 %v6203
          %v6464 = vunpack.c.l.b16 %v6204
          %v6465 = vunpack.c.l.b16 %v6205
          %v6466 = vunpack.c.l.b16 %v6206
          %v6467 = vunpack.c.l.b16 %v6207
          %v6468 = vunpack.c.l.b16 %v6208
          %v6469 = vunpack.c.l.b16 %v6209
          %v6470 = vunpack.c.l.b16 %v6210
          %v6471 = vunpack.c.l.b16 %v6211
          %v6472 = vunpack.c.l.b16 %v6212
          %v6473 = vunpack.c.l.b16 %v6213
          %v6474 = vunpack.c.l.b16 %v6214
          %v6475 = vunpack.c.l.b16 %v6215
          %v6476 = vunpack.c.l.b16 %v6216
          %v6477 = vunpack.c.l.b16 %v6217
          %v6478 = vunpack.c.l.b16 %v6218
          %v6479 = vunpack.c.l.b16 %v6219
          %v6480 = vunpack.c.l.b16 %v6220
          %v6481 = vunpack.c.l.b16 %v6221
          %v6482 = vunpack.c.l.b16 %v6222
          %v6483 = vunpack.c.l.b16 %v6223
          %v6484 = vunpack.c.l.b16 %v6224
          %v6485 = vunpack.c.l.b16 %v6225
          %v6486 = vunpack.c.l.b16 %v6226
          %v6487 = vunpack.c.l.b16 %v6227
          %v6488 = vunpack.c.l.b16 %v6228
          %v6489 = vunpack.c.l.b16 %v6229
          %v6490 = vunpack.c.l.b16 %v6230
          %v6491 = vunpack.c.l.b16 %v6231
          %v6492 = vunpack.c.l.b16 %v6232
          %v6493 = vunpack.c.l.b16 %v6233
          %v6494 = vunpack.c.l.b16 %v6234
          %v6495 = vunpack.c.l.b16 %v6235
          %v6496 = vunpack.c.l.b16 %v6236
          %v6497 = vunpack.c.l.b16 %v6237
          %v6498 = vunpack.c.l.b16 %v6238
          %v6499 = vunpack.c.l.b16 %v6239
          %v6500 = vunpack.c.l.b16 %v6240
          %v6501 = vunpack.c.l.b16 %v6241
          %v6502 = vunpack.c.l.b16 %v6242
          %v6503 = vunpack.c.l.b16 %v6243
          %v6504 = vunpack.c.l.b16 %v6244
          %v6505 = vunpack.c.l.b16 %v6245
          %v6506 = vunpack.c.l.b16 %v6246
          %v6507 = vunpack.c.l.b16 %v6247
          %v6508 = vunpack.c.l.b16 %v6248
          %v6509 = vunpack.c.l.b16 %v6249
          %v6510 = vunpack.c.l.b16 %v6250
          %v6511 = vunpack.c.l.b16 %v6251
          %v6512 = vunpack.c.l.b16 %v6252
          %v6513 = vunpack.c.l.b16 %v6253
          %v6514 = vunpack.c.l.b16 %v6254
          %v6515 = vunpack.c.l.b16 %v6255
          %v6516 = vunpack.c.l.b16 %v6256
          %v6517 = vunpack.c.l.b16 %v6257
          %v6518 = vunpack.c.l.b16 %v6258
          %v6519 = vunpack.c.l.b16 %v6259
          %v6520 = vunpack.c.l.b16 %v6260
          %v6521 = vunpack.c.l.b16 %v6261
          %v6522 = vunpack.c.l.b16 %v6262
          %v6523 = vunpack.c.l.b16 %v6263
          %v6524 = vunpack.c.l.b16 %v6264
          %v6525 = vunpack.c.l.b16 %v6265
          %v6526 = vunpack.c.l.b16 %v6266
          %v6527 = vunpack.c.l.b16 %v6267
          %v6528 = vunpack.c.l.b16 %v6268
          %v6529 = vpack.c.b16 %v6402, %v6401
          %v6530 = vpack.c.b16 %v6404, %v6403
          %v6531 = vpack.c.b16 %v6406, %v6405
          %v6532 = vpack.c.b16 %v6408, %v6407
          %v6533 = vpack.c.b16 %v6410, %v6409
          %v6534 = vpack.c.b16 %v6412, %v6411
          %v6535 = vpack.c.b16 %v6414, %v6413
          %v6536 = vpack.c.b16 %v6416, %v6415
          %v6537 = vpack.c.b16 %v6418, %v6417
          %v6538 = vpack.c.b16 %v6420, %v6419
          %v6539 = vpack.c.b16 %v6422, %v6421
          %v6540 = vpack.c.b16 %v6424, %v6423
          %v6541 = vpack.c.b16 %v6426, %v6425
          %v6542 = vpack.c.b16 %v6428, %v6427
          %v6543 = vpack.c.b16 %v6430, %v6429
          %v6544 = vpack.c.b16 %v6432, %v6431
          %v6545 = vpack.c.b16 %v6434, %v6433
          %v6546 = vpack.c.b16 %v6436, %v6435
          %v6547 = vpack.c.b16 %v6438, %v6437
          %v6548 = vpack.c.b16 %v6440, %v6439
          %v6549 = vpack.c.b16 %v6442, %v6441
          %v6550 = vpack.c.b16 %v6444, %v6443
          %v6551 = vpack.c.b16 %v6446, %v6445
          %v6552 = vpack.c.b16 %v6448, %v6447
          %v6553 = vpack.c.b16 %v6450, %v6449
          %v6554 = vpack.c.b16 %v6452, %v6451
          %v6555 = vpack.c.b16 %v6454, %v6453
          %v6556 = vpack.c.b16 %v6456, %v6455
          %v6557 = vpack.c.b16 %v6458, %v6457
          %v6558 = vpack.c.b16 %v6460, %v6459
          %v6559 = vpack.c.b16 %v6462, %v6461
          %v6560 = vpack.c.b16 %v6464, %v6463
          %v6561 = vpack.c.b16 %v6466, %v6465
          %v6562 = vpack.c.b16 %v6468, %v6467
          %v6563 = vpack.c.b16 %v6470, %v6469
          %v6564 = vpack.c.b16 %v6472, %v6471
          %v6565 = vpack.c.b16 %v6474, %v6473
          %v6566 = vpack.c.b16 %v6476, %v6475
          %v6567 = vpack.c.b16 %v6478, %v6477
          %v6568 = vpack.c.b16 %v6480, %v6479
          %v6569 = vpack.c.b16 %v6482, %v6481
          %v6570 = vpack.c.b16 %v6484, %v6483
          %v6571 = vpack.c.b16 %v6486, %v6485
          %v6572 = vpack.c.b16 %v6488, %v6487
          %v6573 = vpack.c.b16 %v6490, %v6489
          %v6574 = vpack.c.b16 %v6492, %v6491
          %v6575 = vpack.c.b16 %v6494, %v6493
          %v6576 = vpack.c.b16 %v6496, %v6495
          %v6577 = vpack.c.b16 %v6498, %v6497
          %v6578 = vpack.c.b16 %v6500, %v6499
          %v6579 = vpack.c.b16 %v6502, %v6501
          %v6580 = vpack.c.b16 %v6504, %v6503
          %v6581 = vpack.c.b16 %v6506, %v6505
          %v6582 = vpack.c.b16 %v6508, %v6507
          %v6583 = vpack.c.b16 %v6510, %v6509
          %v6584 = vpack.c.b16 %v6512, %v6511
          %v6585 = vpack.c.b16 %v6514, %v6513
          %v6586 = vpack.c.b16 %v6516, %v6515
          %v6587 = vpack.c.b16 %v6518, %v6517
          %v6588 = vpack.c.b16 %v6520, %v6519
          %v6589 = vpack.c.b16 %v6522, %v6521
          %v6590 = vpack.c.b16 %v6524, %v6523
          %v6591 = vpack.c.b16 %v6526, %v6525
          %v6592 = vpack.c.b16 %v6528, %v6527
          %6657 = vmatpush.bf16.msra.mxu0 %v6536
          %6658 = vmatpush.bf16.msra.mxu0 %v6535
          %6659 = vmatpush.bf16.msra.mxu0 %v6534
          %6660 = vmatpush.bf16.msra.mxu0 %v6533
          %6661 = vmatpush.bf16.msra.mxu0 %v6532
          %6662 = vmatpush.bf16.msra.mxu0 %v6531
          %6663 = vmatpush.bf16.msra.mxu0 %v6530
          %6664 = vmatpush.bf16.msra.mxu0 %v6529
          %6665 = vmatmul.bf16.gmra.mxu0 %v6133
          %v6666 = vpop.f32.mrf.mxu0
          %v6667 = vadd.f32 %v6271, %v6666
          %v6668 = vpop.f32.mrf.mxu0
          %6669 = vdwg.mxu0
          %6670 = vmatpush.bf16.msra.mxu0 %v6544
          %6671 = vmatpush.bf16.msra.mxu0 %v6543
          %6672 = vmatpush.bf16.msra.mxu0 %v6542
          %6673 = vmatpush.bf16.msra.mxu0 %v6541
          %6674 = vmatpush.bf16.msra.mxu0 %v6540
          %6675 = vmatpush.bf16.msra.mxu0 %v6539
          %6676 = vmatpush.bf16.msra.mxu0 %v6538
          %6677 = vmatpush.bf16.msra.mxu0 %v6537
          %6678 = vmatmul.bf16.gmra.mxu0 %v6134
          %v6679 = vpop.f32.mrf.mxu0
          %v6680 = vadd.f32 %v6667, %v6679
          %v6681 = vpop.f32.mrf.mxu0
          %6682 = vdwg.mxu0
          %6683 = vmatpush.bf16.msra.mxu0 %v6552
          %6684 = vmatpush.bf16.msra.mxu0 %v6551
          %6685 = vmatpush.bf16.msra.mxu0 %v6550
          %6686 = vmatpush.bf16.msra.mxu0 %v6549
          %6687 = vmatpush.bf16.msra.mxu0 %v6548
          %6688 = vmatpush.bf16.msra.mxu0 %v6547
          %6689 = vmatpush.bf16.msra.mxu0 %v6546
          %6690 = vmatpush.bf16.msra.mxu0 %v6545
          %6691 = vmatmul.bf16.gmra.mxu0 %v6135
          %v6692 = vpop.f32.mrf.mxu0
          %v6693 = vadd.f32 %v6680, %v6692
          %v6694 = vpop.f32.mrf.mxu0
          %6695 = vdwg.mxu0
          %6696 = vmatpush.bf16.msra.mxu0 %v6560
          %6697 = vmatpush.bf16.msra.mxu0 %v6559
          %6698 = vmatpush.bf16.msra.mxu0 %v6558
          %6699 = vmatpush.bf16.msra.mxu0 %v6557
          %6700 = vmatpush.bf16.msra.mxu0 %v6556
          %6701 = vmatpush.bf16.msra.mxu0 %v6555
          %6702 = vmatpush.bf16.msra.mxu0 %v6554
          %6703 = vmatpush.bf16.msra.mxu0 %v6553
          %6704 = vmatmul.bf16.gmra.mxu0 %v6136
          %v6705 = vpop.f32.mrf.mxu0
          %v6706 = vadd.f32 %v6693, %v6705
          %v6707 = vpop.f32.mrf.mxu0
          %6708 = vdwg.mxu0
          %6709 = vmatpush.bf16.msra.mxu0 %v6568
          %6710 = vmatpush.bf16.msra.mxu0 %v6567
          %6711 = vmatpush.bf16.msra.mxu0 %v6566
          %6712 = vmatpush.bf16.msra.mxu0 %v6565
          %6713 = vmatpush.bf16.msra.mxu0 %v6564
          %6714 = vmatpush.bf16.msra.mxu0 %v6563
          %6715 = vmatpush.bf16.msra.mxu0 %v6562
          %6716 = vmatpush.bf16.msra.mxu0 %v6561
          %6717 = vmatmul.bf16.gmra.mxu0 %v6137
          %v6718 = vpop.f32.mrf.mxu0
          %v6719 = vadd.f32 %v6706, %v6718
          %v6720 = vpop.f32.mrf.mxu0
          %6721 = vdwg.mxu0
          %6722 = vmatpush.bf16.msra.mxu0 %v6576
          %6723 = vmatpush.bf16.msra.mxu0 %v6575
          %6724 = vmatpush.bf16.msra.mxu0 %v6574
          %6725 = vmatpush.bf16.msra.mxu0 %v6573
          %6726 = vmatpush.bf16.msra.mxu0 %v6572
          %6727 = vmatpush.bf16.msra.mxu0 %v6571
          %6728 = vmatpush.bf16.msra.mxu0 %v6570
          %6729 = vmatpush.bf16.msra.mxu0 %v6569
          %6730 = vmatmul.bf16.gmra.mxu0 %v6138
          %v6731 = vpop.f32.mrf.mxu0
          %v6732 = vadd.f32 %v6719, %v6731
          %v6733 = vpop.f32.mrf.mxu0
          %6734 = vdwg.mxu0
          %6735 = vmatpush.bf16.msra.mxu0 %v6584
          %6736 = vmatpush.bf16.msra.mxu0 %v6583
          %6737 = vmatpush.bf16.msra.mxu0 %v6582
          %6738 = vmatpush.bf16.msra.mxu0 %v6581
          %6739 = vmatpush.bf16.msra.mxu0 %v6580
          %6740 = vmatpush.bf16.msra.mxu0 %v6579
          %6741 = vmatpush.bf16.msra.mxu0 %v6578
          %6742 = vmatpush.bf16.msra.mxu0 %v6577
          %6743 = vmatmul.bf16.gmra.mxu0 %v6139
          %v6744 = vpop.f32.mrf.mxu0
          %v6745 = vadd.f32 %v6732, %v6744
          %v6746 = vpop.f32.mrf.mxu0
          %6747 = vdwg.mxu0
          %6748 = vmatpush.bf16.msra.mxu0 %v6592
          %6749 = vmatpush.bf16.msra.mxu0 %v6591
          %6750 = vmatpush.bf16.msra.mxu0 %v6590
          %6751 = vmatpush.bf16.msra.mxu0 %v6589
          %6752 = vmatpush.bf16.msra.mxu0 %v6588
          %6753 = vmatpush.bf16.msra.mxu0 %v6587
          %6754 = vmatpush.bf16.msra.mxu0 %v6586
          %6755 = vmatpush.bf16.msra.mxu0 %v6585
          %6756 = vmatmul.bf16.gmra.mxu0 %v6140
          %v6757 = vpop.f32.mrf.mxu0
          %v6758 = vadd.f32 %v6745, %v6757
          %v6759 = vpop.f32.mrf.mxu0
          %6760 = vdwg.mxu0
          %v6761 = vmax.f32 %v6758, 0.0
          %v6762 = vpack.c.bf16 %v6761, %v6761
          %v6763 = vld [vmem:[%s9] sm:$0xf]
          %v6764 = vld [vmem:[%s9 + $0x4] sm:$0xf]
          %v6765 = vld [vmem:[%s9 + $0x8] sm:$0xf]
          %v6766 = vld [vmem:[%s9 + $0xc] sm:$0xf]
          %v6767 = vld [vmem:[%s9 + $0x10] sm:$0xf]
          %v6768 = vld [vmem:[%s9 + $0x14] sm:$0xf]
          %v6769 = vld [vmem:[%s9 + $0x18] sm:$0xf]
          %v6770 = vld [vmem:[%s9 + $0x1c] sm:$0xf]
          %v6771 = vld [vmem:[%s9 + $0x20] sm:$0xf]
          %v6772 = vld [vmem:[%s9 + $0x24] sm:$0xf]
          %v6773 = vld [vmem:[%s9 + $0x28] sm:$0xf]
          %v6774 = vld [vmem:[%s9 + $0x2c] sm:$0xf]
          %v6775 = vld [vmem:[%s9 + $0x30] sm:$0xf]
          %v6776 = vld [vmem:[%s9 + $0x34] sm:$0xf]
          %v6777 = vld [vmem:[%s9 + $0x38] sm:$0xf]
          %v6778 = vld [vmem:[%s9 + $0x3c] sm:$0xf]
          %v6779 = vld [vmem:[%s10] sm:$0x1]
          %v6781 = vperm.slane %v6779, 0
          %v6799 = vunpack.c.l.b16 %v6763
          %v6800 = vunpack.c.l.b16 %v6764
          %v6801 = vunpack.c.l.b16 %v6765
          %v6802 = vunpack.c.l.b16 %v6766
          %v6803 = vunpack.c.l.b16 %v6767
          %v6804 = vunpack.c.l.b16 %v6768
          %v6805 = vunpack.c.l.b16 %v6769
          %v6806 = vunpack.c.l.b16 %v6770
          %v6807 = vunpack.c.l.b16 %v6771
          %v6808 = vunpack.c.l.b16 %v6772
          %v6809 = vunpack.c.l.b16 %v6773
          %v6810 = vunpack.c.l.b16 %v6774
          %v6811 = vunpack.c.l.b16 %v6775
          %v6812 = vunpack.c.l.b16 %v6776
          %v6813 = vunpack.c.l.b16 %v6777
          %v6814 = vunpack.c.l.b16 %v6778
          %v6815 = vpack.c.b16 %v6800, %v6799
          %v6816 = vpack.c.b16 %v6802, %v6801
          %v6817 = vpack.c.b16 %v6804, %v6803
          %v6818 = vpack.c.b16 %v6806, %v6805
          %v6819 = vpack.c.b16 %v6808, %v6807
          %v6820 = vpack.c.b16 %v6810, %v6809
          %v6821 = vpack.c.b16 %v6812, %v6811
          %v6822 = vpack.c.b16 %v6814, %v6813
          %6831 = vmatpush.bf16.msra.mxu0 %v6822
          %6832 = vmatpush.bf16.msra.mxu0 %v6821
          %6833 = vmatpush.bf16.msra.mxu0 %v6820
          %6834 = vmatpush.bf16.msra.mxu0 %v6819
          %6835 = vmatpush.bf16.msra.mxu0 %v6818
          %6836 = vmatpush.bf16.msra.mxu0 %v6817
          %6837 = vmatpush.bf16.msra.mxu0 %v6816
          %6838 = vmatpush.bf16.msra.mxu0 %v6815
          %6839 = vmatmul.bf16.gmra.mxu0 %v6762
          %v6840 = vpop.f32.mrf.mxu0
          %v6841 = vadd.f32 %v6781, %v6840
          %v6842 = vpop.f32.mrf.mxu0
          %6843 = vdwg.mxu0
          %v6844 = vmax.f32 %v6841, 0.0
          %v6845 = vpack.c.bf16 %v6844, %v6844
          %v6846 = vld [vmem:[%s11] sm:$0xf]
          %v6847 = vld [vmem:[%s11 + $0x4] sm:$0xf]
          %v6848 = vld [vmem:[%s11 + $0x8] sm:$0xf]
          %v6849 = vld [vmem:[%s11 + $0xc] sm:$0xf]
          %v6850 = vld [vmem:[%s11 + $0x10] sm:$0xf]
          %v6851 = vld [vmem:[%s11 + $0x14] sm:$0xf]
          %v6852 = vld [vmem:[%s11 + $0x18] sm:$0xf]
          %v6853 = vld [vmem:[%s11 + $0x1c] sm:$0xf]
          %v6854 = vld [vmem:[%s11 + $0x20] sm:$0xf]
          %v6855 = vld [vmem:[%s11 + $0x24] sm:$0xf]
          %v6856 = vld [vmem:[%s11 + $0x28] sm:$0xf]
          %v6857 = vld [vmem:[%s11 + $0x2c] sm:$0xf]
          %v6858 = vld [vmem:[%s11 + $0x30] sm:$0xf]
          %v6859 = vld [vmem:[%s11 + $0x34] sm:$0xf]
          %v6860 = vld [vmem:[%s11 + $0x38] sm:$0xf]
          %v6861 = vld [vmem:[%s11 + $0x3c] sm:$0xf]
          %v6862 = vld [vmem:[%s12] sm:$0x1]
          %v6864 = vperm.slane %v6862, 0
          %v6882 = vunpack.c.l.b16 %v6846
          %v6883 = vunpack.c.l.b16 %v6847
          %v6884 = vunpack.c.l.b16 %v6848
          %v6885 = vunpack.c.l.b16 %v6849
          %v6886 = vunpack.c.l.b16 %v6850
          %v6887 = vunpack.c.l.b16 %v6851
          %v6888 = vunpack.c.l.b16 %v6852
          %v6889 = vunpack.c.l.b16 %v6853
          %v6890 = vunpack.c.l.b16 %v6854
          %v6891 = vunpack.c.l.b16 %v6855
          %v6892 = vunpack.c.l.b16 %v6856
          %v6893 = vunpack.c.l.b16 %v6857
          %v6894 = vunpack.c.l.b16 %v6858
          %v6895 = vunpack.c.l.b16 %v6859
          %v6896 = vunpack.c.l.b16 %v6860
          %v6897 = vunpack.c.l.b16 %v6861
          %v6898 = vpack.c.b16 %v6883, %v6882
          %v6899 = vpack.c.b16 %v6885, %v6884
          %v6900 = vpack.c.b16 %v6887, %v6886
          %v6901 = vpack.c.b16 %v6889, %v6888
          %v6902 = vpack.c.b16 %v6891, %v6890
          %v6903 = vpack.c.b16 %v6893, %v6892
          %v6904 = vpack.c.b16 %v6895, %v6894
          %v6905 = vpack.c.b16 %v6897, %v6896
          %6914 = vmatpush.bf16.msra.mxu0 %v6905
          %6915 = vmatpush.bf16.msra.mxu0 %v6904
          %6916 = vmatpush.bf16.msra.mxu0 %v6903
          %6917 = vmatpush.bf16.msra.mxu0 %v6902
          %6918 = vmatpush.bf16.msra.mxu0 %v6901
          %6919 = vmatpush.bf16.msra.mxu0 %v6900
          %6920 = vmatpush.bf16.msra.mxu0 %v6899
          %6921 = vmatpush.bf16.msra.mxu0 %v6898
          %6922 = vmatmul.bf16.gmra.mxu0 %v6845
          %v6923 = vpop.f32.mrf.mxu0
          %v6924 = vadd.f32 %v6864, %v6923
          %v6925 = vpop.f32.mrf.mxu0
          %6926 = vdwg.mxu0
          %vm6927 = vcmask 72704
          %6928 = vst.msk [vmem:[%s723] sm:$0xff] %vm6927, %v6924
        $region160: #{get_transform_forward.1} parent=119 // pred_fallthru
          _
        %p6929 = scmp.lt.s32.totalorder %s28, 1
        %s6930 = scalar_select %p6929, %s28, 1
        %s6931 = smul.addr %s6930, 8
        %s6932 = scalar_lea.vmem %s13, %s6931
        // Predicated region
        $region161: #{get_transform_forward.1} parent=119 // pred_check
          %p6933 = pneg %p334
        $region162: #{get_transform_forward.1} parent=119 // pred_check_branch
          %6935 = sbr.rel (%p6933) target = $region164
        $region163: #{get_transform_forward.1} parent=119 // pred_region
          _
        $region164: #{get_transform_forward.1} parent=119 // pred_fallthru
          _
      $region120: #{get_transform_forward.1} parent=5 // pred_fallthru
        _
      %p6936 = scmp.le.s32.totalorder 2, %s19
      // Predicated region
      $region165: #{get_transform_forward.1} parent=5 // pred_check
        %p6937 = pneg %p6936
      $region166: #{get_transform_forward.1} parent=5 // pred_check_branch
        %6939 = sbr.rel (%p6937) target = $region168
      $region167: #{get_transform_forward.1} parent=5 // pred_region
        %s6940 = ssub.s32 %s19, 2
        // Predicated region
        $region169: #{get_transform_forward.1} parent=167 // pred_check
          %p6941 = pneg %p340
        $region170: #{get_transform_forward.1} parent=167 // pred_check_branch
          %6943 = sbr.rel (%p6941) target = $region172
        $region171: #{get_transform_forward.1} parent=167 // pred_region
          %p6944 = scmp.lt.s32.totalorder %s30, 1
          %s6945 = scalar_select %p6944, %s30, 1
          %s6946 = smul.addr %s6945, 8
          %s6947 = scalar_lea.vmem %s13, %s6946
        $region172: #{get_transform_forward.1} parent=167 // pred_fallthru
          _
      $region168: #{get_transform_forward.1} parent=5 // pred_fallthru
        _
    $region6: #{get_transform_forward.1} parent=1 // loop_footer
      %s23 = sadd.s32 1, %s19
    $region7: #{get_transform_forward.1} parent=1 // loop_footer_branch
      %18 = sbr.rel target = $region3
    $region8: #{get_transform_forward.1} parent=1 // loop_exit
      _

</llo_original>
